<compile_context>
chip_gen: v6e
topology: v6e:2x2x1
jax: 0.10.0
libtpu: 0.0.40
codegen_flags: <defaults>
</compile_context>

<pallas_src>
import functools

import jax
import jax.numpy as jnp
import numpy as np
from jax import lax
from jax.experimental import pallas as pl
from jax.experimental.pallas import tpu as pltpu


VMEM_SPEC = pl.BlockSpec(memory_space=pltpu.MemorySpace.VMEM)

_K = 39                 # all branch kernels are zero-embedded in a 39-tap frame
_PAD = (_K - 1) // 2    # 'same' padding of the 39-tap frame
_EPS = 1e-5


# ----------------------------------------------------------------------------
# Fused kernel
# ----------------------------------------------------------------------------
def _fused_kernel(*refs, treedef, dims):
    """Entire forward pass; activations are 2-D (channels, batch*length) f32."""
    batch, length, nf, hidden, c_out = dims
    x_ref = refs[0]
    o_ref = refs[-1]
    p = jax.tree_util.tree_unflatten(treedef, refs[1:-1])
    f32 = jnp.float32

    def batchnorm(y, g_ref, b_ref, relu):
        # training-mode BN over (batch, length) == the lane axis; one pass.
        inv_n = 1.0 / y.shape[1]
        mean = jnp.sum(y, axis=1, keepdims=True) * inv_n
        ex2 = jnp.sum(y * y, axis=1, keepdims=True) * inv_n
        var = ex2 - mean * mean
        out = (y - mean) * (g_ref[...] * lax.rsqrt(var + _EPS)) + b_ref[...]
        return jnp.maximum(out, 0.0) if relu else out

    def inception_module(cur, m):
        ni = cur.shape[0]
        # bottleneck 1x1 conv: single GEMM over all batch*length columns.
        bott = jnp.dot(m['w_bott'][...], cur, preferred_element_type=f32)

        zpad = jnp.zeros((nf, _PAD), f32)
        ninf = jnp.full((ni, 1), -jnp.inf, f32)
        slabs = []
        for b in range(batch):                     # static, tiny B
            cols = slice(b * length, (b + 1) * length)
            bp = jnp.concatenate([zpad, bott[:, cols], zpad], axis=1)
            xb = jnp.concatenate([ninf, cur[:, cols], ninf], axis=1)
            pooled = jnp.maximum(
                jnp.maximum(xb[:, 0:length], xb[:, 1:length + 1]),
                xb[:, 2:length + 2])
            # im2col row blocks ordered (tap k, channel c); maxpool input last.
            blocks = [bp[:, k:k + length] for k in range(_K)]
            blocks.append(pooled)
            slabs.append(jnp.concatenate(blocks, axis=0))   # (K*nf + ni, L)
        slab = jnp.concatenate(slabs, axis=1)                # (K*nf + ni, B*L)
        # one GEMM produces all 4*nf concatenated channels (3 convs + mp-conv)
        y = jnp.dot(m['w_comb'][...], slab, preferred_element_type=f32)
        return batchnorm(y, m['g'], m['b'], relu=True)

    cur = x_ref[...]                               # (c_in, B*L)
    res = cur
    for d in range(6):
        cur = inception_module(cur, p['modules'][d])
        if d == 2:                                 # ConvBlock(c_in->4nf) shortcut
            sp = p['shortcut'][0]
            sc = jnp.dot(sp['w'][...], res, preferred_element_type=f32)
            sc = batchnorm(sc, sp['g'], sp['b'], relu=False)
            cur = jnp.maximum(cur + sc, 0.0)
            res = cur
        elif d == 5:                               # BN1d(4nf) shortcut
            sp = p['shortcut'][1]
            sc = batchnorm(res, sp['g'], sp['b'], relu=False)
            cur = jnp.maximum(cur + sc, 0.0)
            res = cur

    # --- RNN (tanh, 1 layer, batch_first, h0=0) + FC head ---------------------
    # shuffle=True: sequence axis = channels (T = 4*nf), feature axis = length.
    # cur is already time-major: cur[t, b*L + i].
    seq_steps = 4 * nf
    rnn = p['rnn']
    # hoisted input projection: one GEMM for the whole sequence (T, B*H)
    xw = jnp.dot(cur, rnn['wih_blk'][...], preferred_element_type=f32)
    whh_blk = rnn['whh_blk'][...]
    bias = rnn['bias'][...]
    h = jnp.zeros((1, batch * hidden), f32)        # flattened (b, h) hidden state
    for t in range(seq_steps):                     # static -> fully unrolled
        h = jnp.tanh(xw[t:t + 1, :]
                     + jnp.dot(h, whh_blk, preferred_element_type=f32)
                     + bias)
    out_flat = (jnp.dot(h, rnn['wfc_blk'][...], preferred_element_type=f32)
                + rnn['bfc'][...])                 # (1, B*c_out)
    o_ref[...] = jnp.concatenate(
        [out_flat[:, b * c_out:(b + 1) * c_out] for b in range(batch)], axis=0)


# ----------------------------------------------------------------------------
# Wrapper
# ----------------------------------------------------------------------------
def forward(x, packed):
    batch, c_in, length = x.shape
    nf = packed['modules'][0]['w_bott'].shape[0]
    hidden = packed['rnn']['whh_blk'].shape[0] // batch
    c_out = packed['rnn']['bfc'].shape[1] // batch

    # the only wrapper-side activation op: put x in (channels, batch*length)
    x2d = jnp.transpose(x, (1, 0, 2)).reshape(c_in, batch * length)

    leaves, treedef = jax.tree_util.tree_flatten(packed)
    kernel = functools.partial(_fused_kernel, treedef=treedef,
                               dims=(batch, length, nf, hidden, c_out))
    return pl.pallas_call(
        kernel,
        out_shape=jax.ShapeDtypeStruct((batch, c_out), jnp.float32),
        in_specs=[VMEM_SPEC] * (1 + len(leaves)),
        out_specs=VMEM_SPEC,
    )(x2d, *leaves)


# ----------------------------------------------------------------------------
# One-time host-side weight packing
# ----------------------------------------------------------------------------
def _block_diag(w, n):
    m, k = w.shape
    rows = []
    for i in range(n):
        rows.append(jnp.concatenate(
            [w if j == i else jnp.zeros((m, k), w.dtype) for j in range(n)],
            axis=1))
    return jnp.concatenate(rows, axis=0)


def pack_params(params, batch):
    nf = params['inception']['modules'][0]['bottleneck'].shape[0]

    def embed(w):                       # zero-embed k-tap conv into 39-tap frame
        k = w.shape[-1]
        off = (_K - k) // 2
        return jnp.zeros(w.shape[:-1] + (_K,), jnp.float32).at[..., off:off + k].set(w)

    modules = []
    for mp in params['inception']['modules']:
        ni = mp['bottleneck'].shape[1]
        wb = jnp.concatenate([embed(mp['conv39']), embed(mp['conv19']),
                              embed(mp['conv9'])], axis=0)          # (3nf, nf, 39)
        w_im2col = jnp.transpose(wb, (0, 2, 1)).reshape(3 * nf, _K * nf)  # (k,c) cols
        w_mp = mp['mpconv'][:, :, 0]                                # (nf, ni)
        w_comb = jnp.concatenate([
            jnp.concatenate([w_im2col, jnp.zeros((3 * nf, ni), jnp.float32)], axis=1),
            jnp.concatenate([jnp.zeros((nf, _K * nf), jnp.float32), w_mp], axis=1)],
            axis=0)                                                 # (4nf, 39nf+ni)
        modules.append({'w_comb': w_comb,
                        'w_bott': mp['bottleneck'][:, :, 0],
                        'g': mp['bn_g'].reshape(-1, 1),
                        'b': mp['bn_b'].reshape(-1, 1)})

    sp0 = params['inception']['shortcut'][0]
    sp1 = params['inception']['shortcut'][1]
    shortcut = [{'w': sp0['conv'][:, :, 0],
                 'g': sp0['bn_g'].reshape(-1, 1), 'b': sp0['bn_b'].reshape(-1, 1)},
                {'g': sp1['bn_g'].reshape(-1, 1), 'b': sp1['bn_b'].reshape(-1, 1)}]

    rnn, fc = params['rnn'], params['fc']
    hidden = rnn['whh'].shape[0]
    c_out = fc['w'].shape[0]
    wih_t, whh_t, wfc_t = rnn['wih'].T, rnn['whh'].T, fc['w'].T
    bias = rnn['bih'] + rnn['bhh']
    packed_rnn = {
        'wih_blk': _block_diag(wih_t, batch),                     # (B*I, B*H)
        'whh_blk': _block_diag(whh_t, batch),                     # (B*H, B*H)
        'bias': jnp.tile(bias, batch).reshape(1, batch * hidden),
        'wfc_blk': _block_diag(wfc_t, batch),                     # (B*H, B*c_out)
        'bfc': jnp.tile(fc['b'], batch).reshape(1, batch * c_out),
    }
    return {'modules': modules, 'shortcut': shortcut, 'rnn': packed_rnn}


# ----------------------------------------------------------------------------
# Deterministic parameter init (shapes follow the PyTorch module __init__)
# ----------------------------------------------------------------------------
def init_params(key, c_in, c_out, seq_len, nf, hidden):
    keys = iter(jax.random.split(key, 64))

    def rnd(shape, scale=0.1):
        return jax.random.normal(next(keys), shape, jnp.float32) * scale

    def uni(shape, bound):
        return jax.random.uniform(next(keys), shape, jnp.float32,
                                  minval=-bound, maxval=bound)

    modules = []
    ni = c_in
    for _ in range(6):
        modules.append({
            'bottleneck': rnd((nf, ni, 1)),
            'conv39': rnd((nf, nf, 39)),
            'conv19': rnd((nf, nf, 19)),
            'conv9': rnd((nf, nf, 9)),
            'mpconv': rnd((nf, ni, 1)),
            'bn_g': jnp.ones((4 * nf,), jnp.float32),
            'bn_b': jnp.zeros((4 * nf,), jnp.float32),
        })
        ni = 4 * nf

    shortcut = [
        # d == 2: n_in = c_in != 4*nf -> ConvBlock(c_in, 4*nf, ks=1, act=None)
        {'conv': rnd((4 * nf, c_in, 1)),
         'bn_g': jnp.ones((4 * nf,), jnp.float32),
         'bn_b': jnp.zeros((4 * nf,), jnp.float32)},
        # d == 5: n_in == n_out == 4*nf -> BN1d(4*nf)
        {'bn_g': jnp.ones((4 * nf,), jnp.float32),
         'bn_b': jnp.zeros((4 * nf,), jnp.float32)},
    ]

    s = 1.0 / float(hidden) ** 0.5
    rnn = {'wih': uni((hidden, seq_len), s),
           'whh': uni((hidden, hidden), s),
           'bih': uni((hidden,), s),
           'bhh': uni((hidden,), s)}
    fc = {'w': uni((c_out, hidden), s),
          'b': uni((c_out,), s)}

    return {'inception': {'modules': modules, 'shortcut': shortcut},
            'rnn': rnn, 'fc': fc}


# ----------------------------------------------------------------------------
# Pure-JAX reference (mirrors the PyTorch module) for a correctness check
# ----------------------------------------------------------------------------
def _ref_conv1d(x, w):
    k = w.shape[-1]
    pad = (k - 1) // 2
    l = x.shape[-1]
    xp = jnp.pad(x, ((0, 0), (0, 0), (pad, pad)))
    out = jnp.zeros((x.shape[0], w.shape[0], l), jnp.float32)
    for j in range(k):
        out = out + jnp.einsum('oi,bil->bol', w[:, :, j], xp[:, :, j:j + l],
                               precision='highest')
    return out


def _ref_bn(x, g, b, relu):
    mean = jnp.mean(x, axis=(0, 2), keepdims=True)
    var = jnp.mean((x - mean) ** 2, axis=(0, 2), keepdims=True)
    y = (x - mean) / jnp.sqrt(var + _EPS) * g.reshape(1, -1, 1) + b.reshape(1, -1, 1)
    return jnp.maximum(y, 0.0) if relu else y


def _ref_maxpool3(x):
    l = x.shape[-1]
    xp = jnp.pad(x, ((0, 0), (0, 0), (1, 1)), constant_values=-jnp.inf)
    return jnp.maximum(jnp.maximum(xp[..., 0:l], xp[..., 1:l + 1]), xp[..., 2:l + 2])


def reference_forward(x, params):
    def module(z, mp):
        bott = _ref_conv1d(z, mp['bottleneck'])
        cat = jnp.concatenate([_ref_conv1d(bott, mp['conv39']),
                               _ref_conv1d(bott, mp['conv19']),
                               _ref_conv1d(bott, mp['conv9']),
                               _ref_conv1d(_ref_maxpool3(z), mp['mpconv'])], axis=1)
        return _ref_bn(cat, mp['bn_g'], mp['bn_b'], True)

    inc = x
    res = x
    for d in range(6):
        inc = module(inc, params['inception']['modules'][d])
        if d % 3 == 2:
            sp = params['inception']['shortcut'][d // 3]
            sc = _ref_conv1d(res, sp['conv']) if 'conv' in sp else res
            sc = _ref_bn(sc, sp['bn_g'], sp['bn_b'], False)
            inc = jnp.maximum(inc + sc, 0.0)
            res = inc

    rnn, fc = params['rnn'], params['fc']
    batch, hidden = x.shape[0], rnn['whh'].shape[0]
    h = jnp.zeros((batch, hidden), jnp.float32)
    for t in range(inc.shape[1]):
        h = jnp.tanh(jnp.dot(inc[:, t, :], rnn['wih'].T, precision='highest')
                     + rnn['bih']
                     + jnp.dot(h, rnn['whh'].T, precision='highest')
                     + rnn['bhh'])
    return jnp.dot(h, fc['w'].T, precision='highest') + fc['b']


# ----------------------------------------------------------------------------
if __name__ == "__main__":
    c_in, c_out, seq_len = 4, 3, 16
    nf, hidden, batch = 8, 16, 2

    key = jax.random.PRNGKey(0)
    kx, kp = jax.random.split(key)
    x = jax.random.normal(kx, (batch, c_in, seq_len), jnp.float32)
    params = init_params(kp, c_in, c_out, seq_len, nf, hidden)
    packed = pack_params(params, batch)       # one-time host-side weight prep

    out = jax.jit(forward)(x, packed)
    out = jax.block_until_ready(out)
    assert out.shape == (batch, c_out), out.shape
    assert bool(jnp.all(jnp.isfinite(out)))

    ref = jax.jit(reference_forward)(x, params)
    ref = jax.block_until_ready(ref)
    np.testing.assert_allclose(np.asarray(out), np.asarray(ref),
                               rtol=2e-2, atol=2e-2)

    print("KERNEL_OK")
</pallas_src>

<mosaic_0001>
module attributes {stable_mosaic.version = 11 : i64} {
  func.func @_fused_kernel(%arg0: memref<4x32xf32, #tpu.memory_space<vmem>>, %arg1: memref<32x1xf32, #tpu.memory_space<vmem>>, %arg2: memref<32x1xf32, #tpu.memory_space<vmem>>, %arg3: memref<8x4xf32, #tpu.memory_space<vmem>>, %arg4: memref<32x316xf32, #tpu.memory_space<vmem>>, %arg5: memref<32x1xf32, #tpu.memory_space<vmem>>, %arg6: memref<32x1xf32, #tpu.memory_space<vmem>>, %arg7: memref<8x32xf32, #tpu.memory_space<vmem>>, %arg8: memref<32x344xf32, #tpu.memory_space<vmem>>, %arg9: memref<32x1xf32, #tpu.memory_space<vmem>>, %arg10: memref<32x1xf32, #tpu.memory_space<vmem>>, %arg11: memref<8x32xf32, #tpu.memory_space<vmem>>, %arg12: memref<32x344xf32, #tpu.memory_space<vmem>>, %arg13: memref<32x1xf32, #tpu.memory_space<vmem>>, %arg14: memref<32x1xf32, #tpu.memory_space<vmem>>, %arg15: memref<8x32xf32, #tpu.memory_space<vmem>>, %arg16: memref<32x344xf32, #tpu.memory_space<vmem>>, %arg17: memref<32x1xf32, #tpu.memory_space<vmem>>, %arg18: memref<32x1xf32, #tpu.memory_space<vmem>>, %arg19: memref<8x32xf32, #tpu.memory_space<vmem>>, %arg20: memref<32x344xf32, #tpu.memory_space<vmem>>, %arg21: memref<32x1xf32, #tpu.memory_space<vmem>>, %arg22: memref<32x1xf32, #tpu.memory_space<vmem>>, %arg23: memref<8x32xf32, #tpu.memory_space<vmem>>, %arg24: memref<32x344xf32, #tpu.memory_space<vmem>>, %arg25: memref<1x6xf32, #tpu.memory_space<vmem>>, %arg26: memref<1x32xf32, #tpu.memory_space<vmem>>, %arg27: memref<32x6xf32, #tpu.memory_space<vmem>>, %arg28: memref<32x32xf32, #tpu.memory_space<vmem>>, %arg29: memref<32x32xf32, #tpu.memory_space<vmem>>, %arg30: memref<32x1xf32, #tpu.memory_space<vmem>>, %arg31: memref<32x1xf32, #tpu.memory_space<vmem>>, %arg32: memref<32x4xf32, #tpu.memory_space<vmem>>, %arg33: memref<32x1xf32, #tpu.memory_space<vmem>>, %arg34: memref<32x1xf32, #tpu.memory_space<vmem>>, %arg35: memref<2x3xf32, #tpu.memory_space<vmem>>) attributes {dimension_semantics = [], scalar_prefetch = 0 : i64, scratch_operands = 0 : i64, tpu.core_type = #tpu.core_type<tc>} {
    %c0 = arith.constant 0 : index
    %c0_0 = arith.constant 0 : index
    %0 = vector.load %arg0[%c0, %c0_0] : memref<4x32xf32, #tpu.memory_space<vmem>>, vector<4x32xf32>
    %c0_1 = arith.constant 0 : index
    %c0_2 = arith.constant 0 : index
    %1 = vector.load %arg3[%c0_1, %c0_2] : memref<8x4xf32, #tpu.memory_space<vmem>>, vector<8x4xf32>
    %cst = arith.constant dense<0.000000e+00> : vector<8x32xf32>
    %2 = tpu.matmul %1, %0, %cst {dimension_numbers = #tpu.dot_dimension_numbers<[1], [0], [0], [1], [0, 0, 1, 1], [], []>} : vector<8x4xf32>, vector<4x32xf32>, vector<8x32xf32> -> vector<8x32xf32>
    %cst_3 = arith.constant 0.000000e+00 : f32
    %3 = vector.broadcast %cst_3 : f32 to vector<8x19xf32>
    %cst_4 = arith.constant 0xFF800000 : f32
    %4 = vector.broadcast %cst_4 : f32 to vector<4x1xf32>
    %5 = vector.extract_strided_slice %2 {offsets = [0, 0], sizes = [8, 16], strides = [1, 1]} : vector<8x32xf32> to vector<8x16xf32>
    %6 = tpu.concatenate %3, %5, %3 in 1 : vector<8x19xf32>, vector<8x16xf32>, vector<8x19xf32> -> vector<8x54xf32>
    %7 = vector.extract_strided_slice %0 {offsets = [0, 0], sizes = [4, 16], strides = [1, 1]} : vector<4x32xf32> to vector<4x16xf32>
    %8 = tpu.concatenate %4, %7, %4 in 1 : vector<4x1xf32>, vector<4x16xf32>, vector<4x1xf32> -> vector<4x18xf32>
    %9 = vector.extract_strided_slice %8 {offsets = [0, 0], sizes = [4, 16], strides = [1, 1]} : vector<4x18xf32> to vector<4x16xf32>
    %10 = vector.extract_strided_slice %8 {offsets = [0, 1], sizes = [4, 16], strides = [1, 1]} : vector<4x18xf32> to vector<4x16xf32>
    %11 = arith.maximumf %9, %10 : vector<4x16xf32>
    %12 = vector.extract_strided_slice %8 {offsets = [0, 2], sizes = [4, 16], strides = [1, 1]} : vector<4x18xf32> to vector<4x16xf32>
    %13 = arith.maximumf %11, %12 : vector<4x16xf32>
    %14 = vector.extract_strided_slice %6 {offsets = [0, 0], sizes = [8, 16], strides = [1, 1]} : vector<8x54xf32> to vector<8x16xf32>
    %15 = vector.extract_strided_slice %6 {offsets = [0, 1], sizes = [8, 16], strides = [1, 1]} : vector<8x54xf32> to vector<8x16xf32>
    %16 = vector.extract_strided_slice %6 {offsets = [0, 2], sizes = [8, 16], strides = [1, 1]} : vector<8x54xf32> to vector<8x16xf32>
    %17 = vector.extract_strided_slice %6 {offsets = [0, 3], sizes = [8, 16], strides = [1, 1]} : vector<8x54xf32> to vector<8x16xf32>
    %18 = vector.extract_strided_slice %6 {offsets = [0, 4], sizes = [8, 16], strides = [1, 1]} : vector<8x54xf32> to vector<8x16xf32>
    %19 = vector.extract_strided_slice %6 {offsets = [0, 5], sizes = [8, 16], strides = [1, 1]} : vector<8x54xf32> to vector<8x16xf32>
    %20 = vector.extract_strided_slice %6 {offsets = [0, 6], sizes = [8, 16], strides = [1, 1]} : vector<8x54xf32> to vector<8x16xf32>
    %21 = vector.extract_strided_slice %6 {offsets = [0, 7], sizes = [8, 16], strides = [1, 1]} : vector<8x54xf32> to vector<8x16xf32>
    %22 = vector.extract_strided_slice %6 {offsets = [0, 8], sizes = [8, 16], strides = [1, 1]} : vector<8x54xf32> to vector<8x16xf32>
    %23 = vector.extract_strided_slice %6 {offsets = [0, 9], sizes = [8, 16], strides = [1, 1]} : vector<8x54xf32> to vector<8x16xf32>
    %24 = vector.extract_strided_slice %6 {offsets = [0, 10], sizes = [8, 16], strides = [1, 1]} : vector<8x54xf32> to vector<8x16xf32>
    %25 = vector.extract_strided_slice %6 {offsets = [0, 11], sizes = [8, 16], strides = [1, 1]} : vector<8x54xf32> to vector<8x16xf32>
    %26 = vector.extract_strided_slice %6 {offsets = [0, 12], sizes = [8, 16], strides = [1, 1]} : vector<8x54xf32> to vector<8x16xf32>
    %27 = vector.extract_strided_slice %6 {offsets = [0, 13], sizes = [8, 16], strides = [1, 1]} : vector<8x54xf32> to vector<8x16xf32>
    %28 = vector.extract_strided_slice %6 {offsets = [0, 14], sizes = [8, 16], strides = [1, 1]} : vector<8x54xf32> to vector<8x16xf32>
    %29 = vector.extract_strided_slice %6 {offsets = [0, 15], sizes = [8, 16], strides = [1, 1]} : vector<8x54xf32> to vector<8x16xf32>
    %30 = vector.extract_strided_slice %6 {offsets = [0, 16], sizes = [8, 16], strides = [1, 1]} : vector<8x54xf32> to vector<8x16xf32>
    %31 = vector.extract_strided_slice %6 {offsets = [0, 17], sizes = [8, 16], strides = [1, 1]} : vector<8x54xf32> to vector<8x16xf32>
    %32 = vector.extract_strided_slice %6 {offsets = [0, 18], sizes = [8, 16], strides = [1, 1]} : vector<8x54xf32> to vector<8x16xf32>
    %33 = vector.extract_strided_slice %6 {offsets = [0, 19], sizes = [8, 16], strides = [1, 1]} : vector<8x54xf32> to vector<8x16xf32>
    %34 = vector.extract_strided_slice %6 {offsets = [0, 20], sizes = [8, 16], strides = [1, 1]} : vector<8x54xf32> to vector<8x16xf32>
    %35 = vector.extract_strided_slice %6 {offsets = [0, 21], sizes = [8, 16], strides = [1, 1]} : vector<8x54xf32> to vector<8x16xf32>
    %36 = vector.extract_strided_slice %6 {offsets = [0, 22], sizes = [8, 16], strides = [1, 1]} : vector<8x54xf32> to vector<8x16xf32>
    %37 = vector.extract_strided_slice %6 {offsets = [0, 23], sizes = [8, 16], strides = [1, 1]} : vector<8x54xf32> to vector<8x16xf32>
    %38 = vector.extract_strided_slice %6 {offsets = [0, 24], sizes = [8, 16], strides = [1, 1]} : vector<8x54xf32> to vector<8x16xf32>
    %39 = vector.extract_strided_slice %6 {offsets = [0, 25], sizes = [8, 16], strides = [1, 1]} : vector<8x54xf32> to vector<8x16xf32>
    %40 = vector.extract_strided_slice %6 {offsets = [0, 26], sizes = [8, 16], strides = [1, 1]} : vector<8x54xf32> to vector<8x16xf32>
    %41 = vector.extract_strided_slice %6 {offsets = [0, 27], sizes = [8, 16], strides = [1, 1]} : vector<8x54xf32> to vector<8x16xf32>
    %42 = vector.extract_strided_slice %6 {offsets = [0, 28], sizes = [8, 16], strides = [1, 1]} : vector<8x54xf32> to vector<8x16xf32>
    %43 = vector.extract_strided_slice %6 {offsets = [0, 29], sizes = [8, 16], strides = [1, 1]} : vector<8x54xf32> to vector<8x16xf32>
    %44 = vector.extract_strided_slice %6 {offsets = [0, 30], sizes = [8, 16], strides = [1, 1]} : vector<8x54xf32> to vector<8x16xf32>
    %45 = vector.extract_strided_slice %6 {offsets = [0, 31], sizes = [8, 16], strides = [1, 1]} : vector<8x54xf32> to vector<8x16xf32>
    %46 = vector.extract_strided_slice %6 {offsets = [0, 32], sizes = [8, 16], strides = [1, 1]} : vector<8x54xf32> to vector<8x16xf32>
    %47 = vector.extract_strided_slice %6 {offsets = [0, 33], sizes = [8, 16], strides = [1, 1]} : vector<8x54xf32> to vector<8x16xf32>
    %48 = vector.extract_strided_slice %6 {offsets = [0, 34], sizes = [8, 16], strides = [1, 1]} : vector<8x54xf32> to vector<8x16xf32>
    %49 = vector.extract_strided_slice %6 {offsets = [0, 35], sizes = [8, 16], strides = [1, 1]} : vector<8x54xf32> to vector<8x16xf32>
    %50 = vector.extract_strided_slice %6 {offsets = [0, 36], sizes = [8, 16], strides = [1, 1]} : vector<8x54xf32> to vector<8x16xf32>
    %51 = vector.extract_strided_slice %6 {offsets = [0, 37], sizes = [8, 16], strides = [1, 1]} : vector<8x54xf32> to vector<8x16xf32>
    %52 = vector.extract_strided_slice %6 {offsets = [0, 38], sizes = [8, 16], strides = [1, 1]} : vector<8x54xf32> to vector<8x16xf32>
    %53 = tpu.concatenate %14, %15, %16, %17, %18, %19, %20, %21, %22, %23, %24, %25, %26, %27, %28, %29 in 0 : vector<8x16xf32>, vector<8x16xf32>, vector<8x16xf32>, vector<8x16xf32>, vector<8x16xf32>, vector<8x16xf32>, vector<8x16xf32>, vector<8x16xf32>, vector<8x16xf32>, vector<8x16xf32>, vector<8x16xf32>, vector<8x16xf32>, vector<8x16xf32>, vector<8x16xf32>, vector<8x16xf32>, vector<8x16xf32> -> vector<128x16xf32>
    %54 = tpu.concatenate %30, %31, %32, %33, %34, %35, %36, %37, %38, %39, %40, %41, %42, %43, %44, %45 in 0 : vector<8x16xf32>, vector<8x16xf32>, vector<8x16xf32>, vector<8x16xf32>, vector<8x16xf32>, vector<8x16xf32>, vector<8x16xf32>, vector<8x16xf32>, vector<8x16xf32>, vector<8x16xf32>, vector<8x16xf32>, vector<8x16xf32>, vector<8x16xf32>, vector<8x16xf32>, vector<8x16xf32>, vector<8x16xf32> -> vector<128x16xf32>
    %55 = tpu.concatenate %46, %47, %48, %49, %50, %51, %52, %13 in 0 : vector<8x16xf32>, vector<8x16xf32>, vector<8x16xf32>, vector<8x16xf32>, vector<8x16xf32>, vector<8x16xf32>, vector<8x16xf32>, vector<4x16xf32> -> vector<60x16xf32>
    %56 = tpu.concatenate %53, %54, %55 in 0 : vector<128x16xf32>, vector<128x16xf32>, vector<60x16xf32> -> vector<316x16xf32>
    %57 = vector.extract_strided_slice %2 {offsets = [0, 16], sizes = [8, 16], strides = [1, 1]} : vector<8x32xf32> to vector<8x16xf32>
    %58 = tpu.concatenate %3, %57, %3 in 1 : vector<8x19xf32>, vector<8x16xf32>, vector<8x19xf32> -> vector<8x54xf32>
    %59 = vector.extract_strided_slice %0 {offsets = [0, 16], sizes = [4, 16], strides = [1, 1]} : vector<4x32xf32> to vector<4x16xf32>
    %60 = tpu.concatenate %4, %59, %4 in 1 : vector<4x1xf32>, vector<4x16xf32>, vector<4x1xf32> -> vector<4x18xf32>
    %61 = vector.extract_strided_slice %60 {offsets = [0, 0], sizes = [4, 16], strides = [1, 1]} : vector<4x18xf32> to vector<4x16xf32>
    %62 = vector.extract_strided_slice %60 {offsets = [0, 1], sizes = [4, 16], strides = [1, 1]} : vector<4x18xf32> to vector<4x16xf32>
    %63 = arith.maximumf %61, %62 : vector<4x16xf32>
    %64 = vector.extract_strided_slice %60 {offsets = [0, 2], sizes = [4, 16], strides = [1, 1]} : vector<4x18xf32> to vector<4x16xf32>
    %65 = arith.maximumf %63, %64 : vector<4x16xf32>
    %66 = vector.extract_strided_slice %58 {offsets = [0, 0], sizes = [8, 16], strides = [1, 1]} : vector<8x54xf32> to vector<8x16xf32>
    %67 = vector.extract_strided_slice %58 {offsets = [0, 1], sizes = [8, 16], strides = [1, 1]} : vector<8x54xf32> to vector<8x16xf32>
    %68 = vector.extract_strided_slice %58 {offsets = [0, 2], sizes = [8, 16], strides = [1, 1]} : vector<8x54xf32> to vector<8x16xf32>
    %69 = vector.extract_strided_slice %58 {offsets = [0, 3], sizes = [8, 16], strides = [1, 1]} : vector<8x54xf32> to vector<8x16xf32>
    %70 = vector.extract_strided_slice %58 {offsets = [0, 4], sizes = [8, 16], strides = [1, 1]} : vector<8x54xf32> to vector<8x16xf32>
    %71 = vector.extract_strided_slice %58 {offsets = [0, 5], sizes = [8, 16], strides = [1, 1]} : vector<8x54xf32> to vector<8x16xf32>
    %72 = vector.extract_strided_slice %58 {offsets = [0, 6], sizes = [8, 16], strides = [1, 1]} : vector<8x54xf32> to vector<8x16xf32>
    %73 = vector.extract_strided_slice %58 {offsets = [0, 7], sizes = [8, 16], strides = [1, 1]} : vector<8x54xf32> to vector<8x16xf32>
    %74 = vector.extract_strided_slice %58 {offsets = [0, 8], sizes = [8, 16], strides = [1, 1]} : vector<8x54xf32> to vector<8x16xf32>
    %75 = vector.extract_strided_slice %58 {offsets = [0, 9], sizes = [8, 16], strides = [1, 1]} : vector<8x54xf32> to vector<8x16xf32>
    %76 = vector.extract_strided_slice %58 {offsets = [0, 10], sizes = [8, 16], strides = [1, 1]} : vector<8x54xf32> to vector<8x16xf32>
    %77 = vector.extract_strided_slice %58 {offsets = [0, 11], sizes = [8, 16], strides = [1, 1]} : vector<8x54xf32> to vector<8x16xf32>
    %78 = vector.extract_strided_slice %58 {offsets = [0, 12], sizes = [8, 16], strides = [1, 1]} : vector<8x54xf32> to vector<8x16xf32>
    %79 = vector.extract_strided_slice %58 {offsets = [0, 13], sizes = [8, 16], strides = [1, 1]} : vector<8x54xf32> to vector<8x16xf32>
    %80 = vector.extract_strided_slice %58 {offsets = [0, 14], sizes = [8, 16], strides = [1, 1]} : vector<8x54xf32> to vector<8x16xf32>
    %81 = vector.extract_strided_slice %58 {offsets = [0, 15], sizes = [8, 16], strides = [1, 1]} : vector<8x54xf32> to vector<8x16xf32>
    %82 = vector.extract_strided_slice %58 {offsets = [0, 16], sizes = [8, 16], strides = [1, 1]} : vector<8x54xf32> to vector<8x16xf32>
    %83 = vector.extract_strided_slice %58 {offsets = [0, 17], sizes = [8, 16], strides = [1, 1]} : vector<8x54xf32> to vector<8x16xf32>
    %84 = vector.extract_strided_slice %58 {offsets = [0, 18], sizes = [8, 16], strides = [1, 1]} : vector<8x54xf32> to vector<8x16xf32>
    %85 = vector.extract_strided_slice %58 {offsets = [0, 19], sizes = [8, 16], strides = [1, 1]} : vector<8x54xf32> to vector<8x16xf32>
    %86 = vector.extract_strided_slice %58 {offsets = [0, 20], sizes = [8, 16], strides = [1, 1]} : vector<8x54xf32> to vector<8x16xf32>
    %87 = vector.extract_strided_slice %58 {offsets = [0, 21], sizes = [8, 16], strides = [1, 1]} : vector<8x54xf32> to vector<8x16xf32>
    %88 = vector.extract_strided_slice %58 {offsets = [0, 22], sizes = [8, 16], strides = [1, 1]} : vector<8x54xf32> to vector<8x16xf32>
    %89 = vector.extract_strided_slice %58 {offsets = [0, 23], sizes = [8, 16], strides = [1, 1]} : vector<8x54xf32> to vector<8x16xf32>
    %90 = vector.extract_strided_slice %58 {offsets = [0, 24], sizes = [8, 16], strides = [1, 1]} : vector<8x54xf32> to vector<8x16xf32>
    %91 = vector.extract_strided_slice %58 {offsets = [0, 25], sizes = [8, 16], strides = [1, 1]} : vector<8x54xf32> to vector<8x16xf32>
    %92 = vector.extract_strided_slice %58 {offsets = [0, 26], sizes = [8, 16], strides = [1, 1]} : vector<8x54xf32> to vector<8x16xf32>
    %93 = vector.extract_strided_slice %58 {offsets = [0, 27], sizes = [8, 16], strides = [1, 1]} : vector<8x54xf32> to vector<8x16xf32>
    %94 = vector.extract_strided_slice %58 {offsets = [0, 28], sizes = [8, 16], strides = [1, 1]} : vector<8x54xf32> to vector<8x16xf32>
    %95 = vector.extract_strided_slice %58 {offsets = [0, 29], sizes = [8, 16], strides = [1, 1]} : vector<8x54xf32> to vector<8x16xf32>
    %96 = vector.extract_strided_slice %58 {offsets = [0, 30], sizes = [8, 16], strides = [1, 1]} : vector<8x54xf32> to vector<8x16xf32>
    %97 = vector.extract_strided_slice %58 {offsets = [0, 31], sizes = [8, 16], strides = [1, 1]} : vector<8x54xf32> to vector<8x16xf32>
    %98 = vector.extract_strided_slice %58 {offsets = [0, 32], sizes = [8, 16], strides = [1, 1]} : vector<8x54xf32> to vector<8x16xf32>
    %99 = vector.extract_strided_slice %58 {offsets = [0, 33], sizes = [8, 16], strides = [1, 1]} : vector<8x54xf32> to vector<8x16xf32>
    %100 = vector.extract_strided_slice %58 {offsets = [0, 34], sizes = [8, 16], strides = [1, 1]} : vector<8x54xf32> to vector<8x16xf32>
    %101 = vector.extract_strided_slice %58 {offsets = [0, 35], sizes = [8, 16], strides = [1, 1]} : vector<8x54xf32> to vector<8x16xf32>
    %102 = vector.extract_strided_slice %58 {offsets = [0, 36], sizes = [8, 16], strides = [1, 1]} : vector<8x54xf32> to vector<8x16xf32>
    %103 = vector.extract_strided_slice %58 {offsets = [0, 37], sizes = [8, 16], strides = [1, 1]} : vector<8x54xf32> to vector<8x16xf32>
    %104 = vector.extract_strided_slice %58 {offsets = [0, 38], sizes = [8, 16], strides = [1, 1]} : vector<8x54xf32> to vector<8x16xf32>
    %105 = tpu.concatenate %66, %67, %68, %69, %70, %71, %72, %73, %74, %75, %76, %77, %78, %79, %80, %81 in 0 : vector<8x16xf32>, vector<8x16xf32>, vector<8x16xf32>, vector<8x16xf32>, vector<8x16xf32>, vector<8x16xf32>, vector<8x16xf32>, vector<8x16xf32>, vector<8x16xf32>, vector<8x16xf32>, vector<8x16xf32>, vector<8x16xf32>, vector<8x16xf32>, vector<8x16xf32>, vector<8x16xf32>, vector<8x16xf32> -> vector<128x16xf32>
    %106 = tpu.concatenate %82, %83, %84, %85, %86, %87, %88, %89, %90, %91, %92, %93, %94, %95, %96, %97 in 0 : vector<8x16xf32>, vector<8x16xf32>, vector<8x16xf32>, vector<8x16xf32>, vector<8x16xf32>, vector<8x16xf32>, vector<8x16xf32>, vector<8x16xf32>, vector<8x16xf32>, vector<8x16xf32>, vector<8x16xf32>, vector<8x16xf32>, vector<8x16xf32>, vector<8x16xf32>, vector<8x16xf32>, vector<8x16xf32> -> vector<128x16xf32>
    %107 = tpu.concatenate %98, %99, %100, %101, %102, %103, %104, %65 in 0 : vector<8x16xf32>, vector<8x16xf32>, vector<8x16xf32>, vector<8x16xf32>, vector<8x16xf32>, vector<8x16xf32>, vector<8x16xf32>, vector<4x16xf32> -> vector<60x16xf32>
    %108 = tpu.concatenate %105, %106, %107 in 0 : vector<128x16xf32>, vector<128x16xf32>, vector<60x16xf32> -> vector<316x16xf32>
    %109 = tpu.concatenate %56, %108 in 1 : vector<316x16xf32>, vector<316x16xf32> -> vector<316x32xf32>
    %c0_5 = arith.constant 0 : index
    %c0_6 = arith.constant 0 : index
    %110 = vector.load %arg4[%c0_5, %c0_6] : memref<32x316xf32, #tpu.memory_space<vmem>>, vector<32x316xf32>
    %cst_7 = arith.constant dense<0.000000e+00> : vector<32x32xf32>
    %111 = tpu.matmul %110, %109, %cst_7 {dimension_numbers = #tpu.dot_dimension_numbers<[1], [0], [0], [1], [0, 0, 1, 1], [], []>} : vector<32x316xf32>, vector<316x32xf32>, vector<32x32xf32> -> vector<32x32xf32>
    %cst_8 = arith.constant dense<0.000000e+00> : vector<32xf32>
    %112 = vector.multi_reduction <add>, %111, %cst_8 [1] : vector<32x32xf32> to vector<32xf32>
    %113 = vector.shape_cast %112 : vector<32xf32> to vector<32x1xf32>
    %cst_9 = arith.constant 3.125000e-02 : f32
    %114 = vector.broadcast %cst_9 : f32 to vector<32x1xf32>
    %115 = arith.mulf %113, %114 : vector<32x1xf32>
    %116 = arith.mulf %111, %111 : vector<32x32xf32>
    %cst_10 = arith.constant dense<0.000000e+00> : vector<32xf32>
    %117 = vector.multi_reduction <add>, %116, %cst_10 [1] : vector<32x32xf32> to vector<32xf32>
    %118 = vector.shape_cast %117 : vector<32xf32> to vector<32x1xf32>
    %cst_11 = arith.constant 3.125000e-02 : f32
    %119 = vector.broadcast %cst_11 : f32 to vector<32x1xf32>
    %120 = arith.mulf %118, %119 : vector<32x1xf32>
    %121 = arith.mulf %115, %115 : vector<32x1xf32>
    %122 = arith.subf %120, %121 : vector<32x1xf32>
    %123 = vector.broadcast %115 : vector<32x1xf32> to vector<32x32xf32>
    %124 = arith.subf %111, %123 : vector<32x32xf32>
    %c0_12 = arith.constant 0 : index
    %c0_13 = arith.constant 0 : index
    %125 = vector.load %arg2[%c0_12, %c0_13] : memref<32x1xf32, #tpu.memory_space<vmem>>, vector<32x1xf32>
    %cst_14 = arith.constant 9.99999974E-6 : f32
    %126 = vector.broadcast %cst_14 : f32 to vector<32x1xf32>
    %127 = arith.addf %122, %126 : vector<32x1xf32>
    %128 = math.rsqrt %127 : vector<32x1xf32>
    %129 = arith.mulf %125, %128 : vector<32x1xf32>
    %130 = vector.broadcast %129 : vector<32x1xf32> to vector<32x32xf32>
    %131 = arith.mulf %124, %130 : vector<32x32xf32>
    %c0_15 = arith.constant 0 : index
    %c0_16 = arith.constant 0 : index
    %132 = vector.load %arg1[%c0_15, %c0_16] : memref<32x1xf32, #tpu.memory_space<vmem>>, vector<32x1xf32>
    %133 = vector.broadcast %132 : vector<32x1xf32> to vector<32x32xf32>
    %134 = arith.addf %131, %133 : vector<32x32xf32>
    %cst_17 = arith.constant 0.000000e+00 : f32
    %135 = vector.broadcast %cst_17 : f32 to vector<32x32xf32>
    %136 = arith.maximumf %134, %135 : vector<32x32xf32>
    %c0_18 = arith.constant 0 : index
    %c0_19 = arith.constant 0 : index
    %137 = vector.load %arg7[%c0_18, %c0_19] : memref<8x32xf32, #tpu.memory_space<vmem>>, vector<8x32xf32>
    %cst_20 = arith.constant dense<0.000000e+00> : vector<8x32xf32>
    %138 = tpu.matmul %137, %136, %cst_20 {dimension_numbers = #tpu.dot_dimension_numbers<[1], [0], [0], [1], [0, 0, 1, 1], [], []>} : vector<8x32xf32>, vector<32x32xf32>, vector<8x32xf32> -> vector<8x32xf32>
    %cst_21 = arith.constant 0.000000e+00 : f32
    %139 = vector.broadcast %cst_21 : f32 to vector<8x19xf32>
    %cst_22 = arith.constant 0xFF800000 : f32
    %140 = vector.broadcast %cst_22 : f32 to vector<32x1xf32>
    %141 = vector.extract_strided_slice %138 {offsets = [0, 0], sizes = [8, 16], strides = [1, 1]} : vector<8x32xf32> to vector<8x16xf32>
    %142 = tpu.concatenate %139, %141, %139 in 1 : vector<8x19xf32>, vector<8x16xf32>, vector<8x19xf32> -> vector<8x54xf32>
    %143 = vector.extract_strided_slice %136 {offsets = [0, 0], sizes = [32, 16], strides = [1, 1]} : vector<32x32xf32> to vector<32x16xf32>
    %144 = tpu.concatenate %140, %143, %140 in 1 : vector<32x1xf32>, vector<32x16xf32>, vector<32x1xf32> -> vector<32x18xf32>
    %145 = vector.extract_strided_slice %144 {offsets = [0, 0], sizes = [32, 16], strides = [1, 1]} : vector<32x18xf32> to vector<32x16xf32>
    %146 = vector.extract_strided_slice %144 {offsets = [0, 1], sizes = [32, 16], strides = [1, 1]} : vector<32x18xf32> to vector<32x16xf32>
    %147 = arith.maximumf %145, %146 : vector<32x16xf32>
    %148 = vector.extract_strided_slice %144 {offsets = [0, 2], sizes = [32, 16], strides = [1, 1]} : vector<32x18xf32> to vector<32x16xf32>
    %149 = arith.maximumf %147, %148 : vector<32x16xf32>
    %150 = vector.extract_strided_slice %142 {offsets = [0, 0], sizes = [8, 16], strides = [1, 1]} : vector<8x54xf32> to vector<8x16xf32>
    %151 = vector.extract_strided_slice %142 {offsets = [0, 1], sizes = [8, 16], strides = [1, 1]} : vector<8x54xf32> to vector<8x16xf32>
    %152 = vector.extract_strided_slice %142 {offsets = [0, 2], sizes = [8, 16], strides = [1, 1]} : vector<8x54xf32> to vector<8x16xf32>
    %153 = vector.extract_strided_slice %142 {offsets = [0, 3], sizes = [8, 16], strides = [1, 1]} : vector<8x54xf32> to vector<8x16xf32>
    %154 = vector.extract_strided_slice %142 {offsets = [0, 4], sizes = [8, 16], strides = [1, 1]} : vector<8x54xf32> to vector<8x16xf32>
    %155 = vector.extract_strided_slice %142 {offsets = [0, 5], sizes = [8, 16], strides = [1, 1]} : vector<8x54xf32> to vector<8x16xf32>
    %156 = vector.extract_strided_slice %142 {offsets = [0, 6], sizes = [8, 16], strides = [1, 1]} : vector<8x54xf32> to vector<8x16xf32>
    %157 = vector.extract_strided_slice %142 {offsets = [0, 7], sizes = [8, 16], strides = [1, 1]} : vector<8x54xf32> to vector<8x16xf32>
    %158 = vector.extract_strided_slice %142 {offsets = [0, 8], sizes = [8, 16], strides = [1, 1]} : vector<8x54xf32> to vector<8x16xf32>
    %159 = vector.extract_strided_slice %142 {offsets = [0, 9], sizes = [8, 16], strides = [1, 1]} : vector<8x54xf32> to vector<8x16xf32>
    %160 = vector.extract_strided_slice %142 {offsets = [0, 10], sizes = [8, 16], strides = [1, 1]} : vector<8x54xf32> to vector<8x16xf32>
    %161 = vector.extract_strided_slice %142 {offsets = [0, 11], sizes = [8, 16], strides = [1, 1]} : vector<8x54xf32> to vector<8x16xf32>
    %162 = vector.extract_strided_slice %142 {offsets = [0, 12], sizes = [8, 16], strides = [1, 1]} : vector<8x54xf32> to vector<8x16xf32>
    %163 = vector.extract_strided_slice %142 {offsets = [0, 13], sizes = [8, 16], strides = [1, 1]} : vector<8x54xf32> to vector<8x16xf32>
    %164 = vector.extract_strided_slice %142 {offsets = [0, 14], sizes = [8, 16], strides = [1, 1]} : vector<8x54xf32> to vector<8x16xf32>
    %165 = vector.extract_strided_slice %142 {offsets = [0, 15], sizes = [8, 16], strides = [1, 1]} : vector<8x54xf32> to vector<8x16xf32>
    %166 = vector.extract_strided_slice %142 {offsets = [0, 16], sizes = [8, 16], strides = [1, 1]} : vector<8x54xf32> to vector<8x16xf32>
    %167 = vector.extract_strided_slice %142 {offsets = [0, 17], sizes = [8, 16], strides = [1, 1]} : vector<8x54xf32> to vector<8x16xf32>
    %168 = vector.extract_strided_slice %142 {offsets = [0, 18], sizes = [8, 16], strides = [1, 1]} : vector<8x54xf32> to vector<8x16xf32>
    %169 = vector.extract_strided_slice %142 {offsets = [0, 19], sizes = [8, 16], strides = [1, 1]} : vector<8x54xf32> to vector<8x16xf32>
    %170 = vector.extract_strided_slice %142 {offsets = [0, 20], sizes = [8, 16], strides = [1, 1]} : vector<8x54xf32> to vector<8x16xf32>
    %171 = vector.extract_strided_slice %142 {offsets = [0, 21], sizes = [8, 16], strides = [1, 1]} : vector<8x54xf32> to vector<8x16xf32>
    %172 = vector.extract_strided_slice %142 {offsets = [0, 22], sizes = [8, 16], strides = [1, 1]} : vector<8x54xf32> to vector<8x16xf32>
    %173 = vector.extract_strided_slice %142 {offsets = [0, 23], sizes = [8, 16], strides = [1, 1]} : vector<8x54xf32> to vector<8x16xf32>
    %174 = vector.extract_strided_slice %142 {offsets = [0, 24], sizes = [8, 16], strides = [1, 1]} : vector<8x54xf32> to vector<8x16xf32>
    %175 = vector.extract_strided_slice %142 {offsets = [0, 25], sizes = [8, 16], strides = [1, 1]} : vector<8x54xf32> to vector<8x16xf32>
    %176 = vector.extract_strided_slice %142 {offsets = [0, 26], sizes = [8, 16], strides = [1, 1]} : vector<8x54xf32> to vector<8x16xf32>
    %177 = vector.extract_strided_slice %142 {offsets = [0, 27], sizes = [8, 16], strides = [1, 1]} : vector<8x54xf32> to vector<8x16xf32>
    %178 = vector.extract_strided_slice %142 {offsets = [0, 28], sizes = [8, 16], strides = [1, 1]} : vector<8x54xf32> to vector<8x16xf32>
    %179 = vector.extract_strided_slice %142 {offsets = [0, 29], sizes = [8, 16], strides = [1, 1]} : vector<8x54xf32> to vector<8x16xf32>
    %180 = vector.extract_strided_slice %142 {offsets = [0, 30], sizes = [8, 16], strides = [1, 1]} : vector<8x54xf32> to vector<8x16xf32>
    %181 = vector.extract_strided_slice %142 {offsets = [0, 31], sizes = [8, 16], strides = [1, 1]} : vector<8x54xf32> to vector<8x16xf32>
    %182 = vector.extract_strided_slice %142 {offsets = [0, 32], sizes = [8, 16], strides = [1, 1]} : vector<8x54xf32> to vector<8x16xf32>
    %183 = vector.extract_strided_slice %142 {offsets = [0, 33], sizes = [8, 16], strides = [1, 1]} : vector<8x54xf32> to vector<8x16xf32>
    %184 = vector.extract_strided_slice %142 {offsets = [0, 34], sizes = [8, 16], strides = [1, 1]} : vector<8x54xf32> to vector<8x16xf32>
    %185 = vector.extract_strided_slice %142 {offsets = [0, 35], sizes = [8, 16], strides = [1, 1]} : vector<8x54xf32> to vector<8x16xf32>
    %186 = vector.extract_strided_slice %142 {offsets = [0, 36], sizes = [8, 16], strides = [1, 1]} : vector<8x54xf32> to vector<8x16xf32>
    %187 = vector.extract_strided_slice %142 {offsets = [0, 37], sizes = [8, 16], strides = [1, 1]} : vector<8x54xf32> to vector<8x16xf32>
    %188 = vector.extract_strided_slice %142 {offsets = [0, 38], sizes = [8, 16], strides = [1, 1]} : vector<8x54xf32> to vector<8x16xf32>
    %189 = tpu.concatenate %150, %151, %152, %153, %154, %155, %156, %157, %158, %159, %160, %161, %162, %163, %164, %165 in 0 : vector<8x16xf32>, vector<8x16xf32>, vector<8x16xf32>, vector<8x16xf32>, vector<8x16xf32>, vector<8x16xf32>, vector<8x16xf32>, vector<8x16xf32>, vector<8x16xf32>, vector<8x16xf32>, vector<8x16xf32>, vector<8x16xf32>, vector<8x16xf32>, vector<8x16xf32>, vector<8x16xf32>, vector<8x16xf32> -> vector<128x16xf32>
    %190 = tpu.concatenate %166, %167, %168, %169, %170, %171, %172, %173, %174, %175, %176, %177, %178, %179, %180, %181 in 0 : vector<8x16xf32>, vector<8x16xf32>, vector<8x16xf32>, vector<8x16xf32>, vector<8x16xf32>, vector<8x16xf32>, vector<8x16xf32>, vector<8x16xf32>, vector<8x16xf32>, vector<8x16xf32>, vector<8x16xf32>, vector<8x16xf32>, vector<8x16xf32>, vector<8x16xf32>, vector<8x16xf32>, vector<8x16xf32> -> vector<128x16xf32>
    %191 = tpu.concatenate %182, %183, %184, %185, %186, %187, %188, %149 in 0 : vector<8x16xf32>, vector<8x16xf32>, vector<8x16xf32>, vector<8x16xf32>, vector<8x16xf32>, vector<8x16xf32>, vector<8x16xf32>, vector<32x16xf32> -> vector<88x16xf32>
    %192 = tpu.concatenate %189, %190, %191 in 0 : vector<128x16xf32>, vector<128x16xf32>, vector<88x16xf32> -> vector<344x16xf32>
    %193 = vector.extract_strided_slice %138 {offsets = [0, 16], sizes = [8, 16], strides = [1, 1]} : vector<8x32xf32> to vector<8x16xf32>
    %194 = tpu.concatenate %139, %193, %139 in 1 : vector<8x19xf32>, vector<8x16xf32>, vector<8x19xf32> -> vector<8x54xf32>
    %195 = vector.extract_strided_slice %136 {offsets = [0, 16], sizes = [32, 16], strides = [1, 1]} : vector<32x32xf32> to vector<32x16xf32>
    %196 = tpu.concatenate %140, %195, %140 in 1 : vector<32x1xf32>, vector<32x16xf32>, vector<32x1xf32> -> vector<32x18xf32>
    %197 = vector.extract_strided_slice %196 {offsets = [0, 0], sizes = [32, 16], strides = [1, 1]} : vector<32x18xf32> to vector<32x16xf32>
    %198 = vector.extract_strided_slice %196 {offsets = [0, 1], sizes = [32, 16], strides = [1, 1]} : vector<32x18xf32> to vector<32x16xf32>
    %199 = arith.maximumf %197, %198 : vector<32x16xf32>
    %200 = vector.extract_strided_slice %196 {offsets = [0, 2], sizes = [32, 16], strides = [1, 1]} : vector<32x18xf32> to vector<32x16xf32>
    %201 = arith.maximumf %199, %200 : vector<32x16xf32>
    %202 = vector.extract_strided_slice %194 {offsets = [0, 0], sizes = [8, 16], strides = [1, 1]} : vector<8x54xf32> to vector<8x16xf32>
    %203 = vector.extract_strided_slice %194 {offsets = [0, 1], sizes = [8, 16], strides = [1, 1]} : vector<8x54xf32> to vector<8x16xf32>
    %204 = vector.extract_strided_slice %194 {offsets = [0, 2], sizes = [8, 16], strides = [1, 1]} : vector<8x54xf32> to vector<8x16xf32>
    %205 = vector.extract_strided_slice %194 {offsets = [0, 3], sizes = [8, 16], strides = [1, 1]} : vector<8x54xf32> to vector<8x16xf32>
    %206 = vector.extract_strided_slice %194 {offsets = [0, 4], sizes = [8, 16], strides = [1, 1]} : vector<8x54xf32> to vector<8x16xf32>
    %207 = vector.extract_strided_slice %194 {offsets = [0, 5], sizes = [8, 16], strides = [1, 1]} : vector<8x54xf32> to vector<8x16xf32>
    %208 = vector.extract_strided_slice %194 {offsets = [0, 6], sizes = [8, 16], strides = [1, 1]} : vector<8x54xf32> to vector<8x16xf32>
    %209 = vector.extract_strided_slice %194 {offsets = [0, 7], sizes = [8, 16], strides = [1, 1]} : vector<8x54xf32> to vector<8x16xf32>
    %210 = vector.extract_strided_slice %194 {offsets = [0, 8], sizes = [8, 16], strides = [1, 1]} : vector<8x54xf32> to vector<8x16xf32>
    %211 = vector.extract_strided_slice %194 {offsets = [0, 9], sizes = [8, 16], strides = [1, 1]} : vector<8x54xf32> to vector<8x16xf32>
    %212 = vector.extract_strided_slice %194 {offsets = [0, 10], sizes = [8, 16], strides = [1, 1]} : vector<8x54xf32> to vector<8x16xf32>
    %213 = vector.extract_strided_slice %194 {offsets = [0, 11], sizes = [8, 16], strides = [1, 1]} : vector<8x54xf32> to vector<8x16xf32>
    %214 = vector.extract_strided_slice %194 {offsets = [0, 12], sizes = [8, 16], strides = [1, 1]} : vector<8x54xf32> to vector<8x16xf32>
    %215 = vector.extract_strided_slice %194 {offsets = [0, 13], sizes = [8, 16], strides = [1, 1]} : vector<8x54xf32> to vector<8x16xf32>
    %216 = vector.extract_strided_slice %194 {offsets = [0, 14], sizes = [8, 16], strides = [1, 1]} : vector<8x54xf32> to vector<8x16xf32>
    %217 = vector.extract_strided_slice %194 {offsets = [0, 15], sizes = [8, 16], strides = [1, 1]} : vector<8x54xf32> to vector<8x16xf32>
    %218 = vector.extract_strided_slice %194 {offsets = [0, 16], sizes = [8, 16], strides = [1, 1]} : vector<8x54xf32> to vector<8x16xf32>
    %219 = vector.extract_strided_slice %194 {offsets = [0, 17], sizes = [8, 16], strides = [1, 1]} : vector<8x54xf32> to vector<8x16xf32>
    %220 = vector.extract_strided_slice %194 {offsets = [0, 18], sizes = [8, 16], strides = [1, 1]} : vector<8x54xf32> to vector<8x16xf32>
    %221 = vector.extract_strided_slice %194 {offsets = [0, 19], sizes = [8, 16], strides = [1, 1]} : vector<8x54xf32> to vector<8x16xf32>
    %222 = vector.extract_strided_slice %194 {offsets = [0, 20], sizes = [8, 16], strides = [1, 1]} : vector<8x54xf32> to vector<8x16xf32>
    %223 = vector.extract_strided_slice %194 {offsets = [0, 21], sizes = [8, 16], strides = [1, 1]} : vector<8x54xf32> to vector<8x16xf32>
    %224 = vector.extract_strided_slice %194 {offsets = [0, 22], sizes = [8, 16], strides = [1, 1]} : vector<8x54xf32> to vector<8x16xf32>
    %225 = vector.extract_strided_slice %194 {offsets = [0, 23], sizes = [8, 16], strides = [1, 1]} : vector<8x54xf32> to vector<8x16xf32>
    %226 = vector.extract_strided_slice %194 {offsets = [0, 24], sizes = [8, 16], strides = [1, 1]} : vector<8x54xf32> to vector<8x16xf32>
    %227 = vector.extract_strided_slice %194 {offsets = [0, 25], sizes = [8, 16], strides = [1, 1]} : vector<8x54xf32> to vector<8x16xf32>
    %228 = vector.extract_strided_slice %194 {offsets = [0, 26], sizes = [8, 16], strides = [1, 1]} : vector<8x54xf32> to vector<8x16xf32>
    %229 = vector.extract_strided_slice %194 {offsets = [0, 27], sizes = [8, 16], strides = [1, 1]} : vector<8x54xf32> to vector<8x16xf32>
    %230 = vector.extract_strided_slice %194 {offsets = [0, 28], sizes = [8, 16], strides = [1, 1]} : vector<8x54xf32> to vector<8x16xf32>
    %231 = vector.extract_strided_slice %194 {offsets = [0, 29], sizes = [8, 16], strides = [1, 1]} : vector<8x54xf32> to vector<8x16xf32>
    %232 = vector.extract_strided_slice %194 {offsets = [0, 30], sizes = [8, 16], strides = [1, 1]} : vector<8x54xf32> to vector<8x16xf32>
    %233 = vector.extract_strided_slice %194 {offsets = [0, 31], sizes = [8, 16], strides = [1, 1]} : vector<8x54xf32> to vector<8x16xf32>
    %234 = vector.extract_strided_slice %194 {offsets = [0, 32], sizes = [8, 16], strides = [1, 1]} : vector<8x54xf32> to vector<8x16xf32>
    %235 = vector.extract_strided_slice %194 {offsets = [0, 33], sizes = [8, 16], strides = [1, 1]} : vector<8x54xf32> to vector<8x16xf32>
    %236 = vector.extract_strided_slice %194 {offsets = [0, 34], sizes = [8, 16], strides = [1, 1]} : vector<8x54xf32> to vector<8x16xf32>
    %237 = vector.extract_strided_slice %194 {offsets = [0, 35], sizes = [8, 16], strides = [1, 1]} : vector<8x54xf32> to vector<8x16xf32>
    %238 = vector.extract_strided_slice %194 {offsets = [0, 36], sizes = [8, 16], strides = [1, 1]} : vector<8x54xf32> to vector<8x16xf32>
    %239 = vector.extract_strided_slice %194 {offsets = [0, 37], sizes = [8, 16], strides = [1, 1]} : vector<8x54xf32> to vector<8x16xf32>
    %240 = vector.extract_strided_slice %194 {offsets = [0, 38], sizes = [8, 16], strides = [1, 1]} : vector<8x54xf32> to vector<8x16xf32>
    %241 = tpu.concatenate %202, %203, %204, %205, %206, %207, %208, %209, %210, %211, %212, %213, %214, %215, %216, %217 in 0 : vector<8x16xf32>, vector<8x16xf32>, vector<8x16xf32>, vector<8x16xf32>, vector<8x16xf32>, vector<8x16xf32>, vector<8x16xf32>, vector<8x16xf32>, vector<8x16xf32>, vector<8x16xf32>, vector<8x16xf32>, vector<8x16xf32>, vector<8x16xf32>, vector<8x16xf32>, vector<8x16xf32>, vector<8x16xf32> -> vector<128x16xf32>
    %242 = tpu.concatenate %218, %219, %220, %221, %222, %223, %224, %225, %226, %227, %228, %229, %230, %231, %232, %233 in 0 : vector<8x16xf32>, vector<8x16xf32>, vector<8x16xf32>, vector<8x16xf32>, vector<8x16xf32>, vector<8x16xf32>, vector<8x16xf32>, vector<8x16xf32>, vector<8x16xf32>, vector<8x16xf32>, vector<8x16xf32>, vector<8x16xf32>, vector<8x16xf32>, vector<8x16xf32>, vector<8x16xf32>, vector<8x16xf32> -> vector<128x16xf32>
    %243 = tpu.concatenate %234, %235, %236, %237, %238, %239, %240, %201 in 0 : vector<8x16xf32>, vector<8x16xf32>, vector<8x16xf32>, vector<8x16xf32>, vector<8x16xf32>, vector<8x16xf32>, vector<8x16xf32>, vector<32x16xf32> -> vector<88x16xf32>
    %244 = tpu.concatenate %241, %242, %243 in 0 : vector<128x16xf32>, vector<128x16xf32>, vector<88x16xf32> -> vector<344x16xf32>
    %245 = tpu.concatenate %192, %244 in 1 : vector<344x16xf32>, vector<344x16xf32> -> vector<344x32xf32>
    %c0_23 = arith.constant 0 : index
    %c0_24 = arith.constant 0 : index
    %246 = vector.load %arg8[%c0_23, %c0_24] : memref<32x344xf32, #tpu.memory_space<vmem>>, vector<32x344xf32>
    %cst_25 = arith.constant dense<0.000000e+00> : vector<32x32xf32>
    %247 = tpu.matmul %246, %245, %cst_25 {dimension_numbers = #tpu.dot_dimension_numbers<[1], [0], [0], [1], [0, 0, 1, 1], [], []>} : vector<32x344xf32>, vector<344x32xf32>, vector<32x32xf32> -> vector<32x32xf32>
    %cst_26 = arith.constant dense<0.000000e+00> : vector<32xf32>
    %248 = vector.multi_reduction <add>, %247, %cst_26 [1] : vector<32x32xf32> to vector<32xf32>
    %249 = vector.shape_cast %248 : vector<32xf32> to vector<32x1xf32>
    %cst_27 = arith.constant 3.125000e-02 : f32
    %250 = vector.broadcast %cst_27 : f32 to vector<32x1xf32>
    %251 = arith.mulf %249, %250 : vector<32x1xf32>
    %252 = arith.mulf %247, %247 : vector<32x32xf32>
    %cst_28 = arith.constant dense<0.000000e+00> : vector<32xf32>
    %253 = vector.multi_reduction <add>, %252, %cst_28 [1] : vector<32x32xf32> to vector<32xf32>
    %254 = vector.shape_cast %253 : vector<32xf32> to vector<32x1xf32>
    %cst_29 = arith.constant 3.125000e-02 : f32
    %255 = vector.broadcast %cst_29 : f32 to vector<32x1xf32>
    %256 = arith.mulf %254, %255 : vector<32x1xf32>
    %257 = arith.mulf %251, %251 : vector<32x1xf32>
    %258 = arith.subf %256, %257 : vector<32x1xf32>
    %259 = vector.broadcast %251 : vector<32x1xf32> to vector<32x32xf32>
    %260 = arith.subf %247, %259 : vector<32x32xf32>
    %c0_30 = arith.constant 0 : index
    %c0_31 = arith.constant 0 : index
    %261 = vector.load %arg6[%c0_30, %c0_31] : memref<32x1xf32, #tpu.memory_space<vmem>>, vector<32x1xf32>
    %cst_32 = arith.constant 9.99999974E-6 : f32
    %262 = vector.broadcast %cst_32 : f32 to vector<32x1xf32>
    %263 = arith.addf %258, %262 : vector<32x1xf32>
    %264 = math.rsqrt %263 : vector<32x1xf32>
    %265 = arith.mulf %261, %264 : vector<32x1xf32>
    %266 = vector.broadcast %265 : vector<32x1xf32> to vector<32x32xf32>
    %267 = arith.mulf %260, %266 : vector<32x32xf32>
    %c0_33 = arith.constant 0 : index
    %c0_34 = arith.constant 0 : index
    %268 = vector.load %arg5[%c0_33, %c0_34] : memref<32x1xf32, #tpu.memory_space<vmem>>, vector<32x1xf32>
    %269 = vector.broadcast %268 : vector<32x1xf32> to vector<32x32xf32>
    %270 = arith.addf %267, %269 : vector<32x32xf32>
    %cst_35 = arith.constant 0.000000e+00 : f32
    %271 = vector.broadcast %cst_35 : f32 to vector<32x32xf32>
    %272 = arith.maximumf %270, %271 : vector<32x32xf32>
    %c0_36 = arith.constant 0 : index
    %c0_37 = arith.constant 0 : index
    %273 = vector.load %arg11[%c0_36, %c0_37] : memref<8x32xf32, #tpu.memory_space<vmem>>, vector<8x32xf32>
    %cst_38 = arith.constant dense<0.000000e+00> : vector<8x32xf32>
    %274 = tpu.matmul %273, %272, %cst_38 {dimension_numbers = #tpu.dot_dimension_numbers<[1], [0], [0], [1], [0, 0, 1, 1], [], []>} : vector<8x32xf32>, vector<32x32xf32>, vector<8x32xf32> -> vector<8x32xf32>
    %cst_39 = arith.constant 0.000000e+00 : f32
    %275 = vector.broadcast %cst_39 : f32 to vector<8x19xf32>
    %cst_40 = arith.constant 0xFF800000 : f32
    %276 = vector.broadcast %cst_40 : f32 to vector<32x1xf32>
    %277 = vector.extract_strided_slice %274 {offsets = [0, 0], sizes = [8, 16], strides = [1, 1]} : vector<8x32xf32> to vector<8x16xf32>
    %278 = tpu.concatenate %275, %277, %275 in 1 : vector<8x19xf32>, vector<8x16xf32>, vector<8x19xf32> -> vector<8x54xf32>
    %279 = vector.extract_strided_slice %272 {offsets = [0, 0], sizes = [32, 16], strides = [1, 1]} : vector<32x32xf32> to vector<32x16xf32>
    %280 = tpu.concatenate %276, %279, %276 in 1 : vector<32x1xf32>, vector<32x16xf32>, vector<32x1xf32> -> vector<32x18xf32>
    %281 = vector.extract_strided_slice %280 {offsets = [0, 0], sizes = [32, 16], strides = [1, 1]} : vector<32x18xf32> to vector<32x16xf32>
    %282 = vector.extract_strided_slice %280 {offsets = [0, 1], sizes = [32, 16], strides = [1, 1]} : vector<32x18xf32> to vector<32x16xf32>
    %283 = arith.maximumf %281, %282 : vector<32x16xf32>
    %284 = vector.extract_strided_slice %280 {offsets = [0, 2], sizes = [32, 16], strides = [1, 1]} : vector<32x18xf32> to vector<32x16xf32>
    %285 = arith.maximumf %283, %284 : vector<32x16xf32>
    %286 = vector.extract_strided_slice %278 {offsets = [0, 0], sizes = [8, 16], strides = [1, 1]} : vector<8x54xf32> to vector<8x16xf32>
    %287 = vector.extract_strided_slice %278 {offsets = [0, 1], sizes = [8, 16], strides = [1, 1]} : vector<8x54xf32> to vector<8x16xf32>
    %288 = vector.extract_strided_slice %278 {offsets = [0, 2], sizes = [8, 16], strides = [1, 1]} : vector<8x54xf32> to vector<8x16xf32>
    %289 = vector.extract_strided_slice %278 {offsets = [0, 3], sizes = [8, 16], strides = [1, 1]} : vector<8x54xf32> to vector<8x16xf32>
    %290 = vector.extract_strided_slice %278 {offsets = [0, 4], sizes = [8, 16], strides = [1, 1]} : vector<8x54xf32> to vector<8x16xf32>
    %291 = vector.extract_strided_slice %278 {offsets = [0, 5], sizes = [8, 16], strides = [1, 1]} : vector<8x54xf32> to vector<8x16xf32>
    %292 = vector.extract_strided_slice %278 {offsets = [0, 6], sizes = [8, 16], strides = [1, 1]} : vector<8x54xf32> to vector<8x16xf32>
    %293 = vector.extract_strided_slice %278 {offsets = [0, 7], sizes = [8, 16], strides = [1, 1]} : vector<8x54xf32> to vector<8x16xf32>
    %294 = vector.extract_strided_slice %278 {offsets = [0, 8], sizes = [8, 16], strides = [1, 1]} : vector<8x54xf32> to vector<8x16xf32>
    %295 = vector.extract_strided_slice %278 {offsets = [0, 9], sizes = [8, 16], strides = [1, 1]} : vector<8x54xf32> to vector<8x16xf32>
    %296 = vector.extract_strided_slice %278 {offsets = [0, 10], sizes = [8, 16], strides = [1, 1]} : vector<8x54xf32> to vector<8x16xf32>
    %297 = vector.extract_strided_slice %278 {offsets = [0, 11], sizes = [8, 16], strides = [1, 1]} : vector<8x54xf32> to vector<8x16xf32>
    %298 = vector.extract_strided_slice %278 {offsets = [0, 12], sizes = [8, 16], strides = [1, 1]} : vector<8x54xf32> to vector<8x16xf32>
    %299 = vector.extract_strided_slice %278 {offsets = [0, 13], sizes = [8, 16], strides = [1, 1]} : vector<8x54xf32> to vector<8x16xf32>
    %300 = vector.extract_strided_slice %278 {offsets = [0, 14], sizes = [8, 16], strides = [1, 1]} : vector<8x54xf32> to vector<8x16xf32>
    %301 = vector.extract_strided_slice %278 {offsets = [0, 15], sizes = [8, 16], strides = [1, 1]} : vector<8x54xf32> to vector<8x16xf32>
    %302 = vector.extract_strided_slice %278 {offsets = [0, 16], sizes = [8, 16], strides = [1, 1]} : vector<8x54xf32> to vector<8x16xf32>
    %303 = vector.extract_strided_slice %278 {offsets = [0, 17], sizes = [8, 16], strides = [1, 1]} : vector<8x54xf32> to vector<8x16xf32>
    %304 = vector.extract_strided_slice %278 {offsets = [0, 18], sizes = [8, 16], strides = [1, 1]} : vector<8x54xf32> to vector<8x16xf32>
    %305 = vector.extract_strided_slice %278 {offsets = [0, 19], sizes = [8, 16], strides = [1, 1]} : vector<8x54xf32> to vector<8x16xf32>
    %306 = vector.extract_strided_slice %278 {offsets = [0, 20], sizes = [8, 16], strides = [1, 1]} : vector<8x54xf32> to vector<8x16xf32>
    %307 = vector.extract_strided_slice %278 {offsets = [0, 21], sizes = [8, 16], strides = [1, 1]} : vector<8x54xf32> to vector<8x16xf32>
    %308 = vector.extract_strided_slice %278 {offsets = [0, 22], sizes = [8, 16], strides = [1, 1]} : vector<8x54xf32> to vector<8x16xf32>
    %309 = vector.extract_strided_slice %278 {offsets = [0, 23], sizes = [8, 16], strides = [1, 1]} : vector<8x54xf32> to vector<8x16xf32>
    %310 = vector.extract_strided_slice %278 {offsets = [0, 24], sizes = [8, 16], strides = [1, 1]} : vector<8x54xf32> to vector<8x16xf32>
    %311 = vector.extract_strided_slice %278 {offsets = [0, 25], sizes = [8, 16], strides = [1, 1]} : vector<8x54xf32> to vector<8x16xf32>
    %312 = vector.extract_strided_slice %278 {offsets = [0, 26], sizes = [8, 16], strides = [1, 1]} : vector<8x54xf32> to vector<8x16xf32>
    %313 = vector.extract_strided_slice %278 {offsets = [0, 27], sizes = [8, 16], strides = [1, 1]} : vector<8x54xf32> to vector<8x16xf32>
    %314 = vector.extract_strided_slice %278 {offsets = [0, 28], sizes = [8, 16], strides = [1, 1]} : vector<8x54xf32> to vector<8x16xf32>
    %315 = vector.extract_strided_slice %278 {offsets = [0, 29], sizes = [8, 16], strides = [1, 1]} : vector<8x54xf32> to vector<8x16xf32>
    %316 = vector.extract_strided_slice %278 {offsets = [0, 30], sizes = [8, 16], strides = [1, 1]} : vector<8x54xf32> to vector<8x16xf32>
    %317 = vector.extract_strided_slice %278 {offsets = [0, 31], sizes = [8, 16], strides = [1, 1]} : vector<8x54xf32> to vector<8x16xf32>
    %318 = vector.extract_strided_slice %278 {offsets = [0, 32], sizes = [8, 16], strides = [1, 1]} : vector<8x54xf32> to vector<8x16xf32>
    %319 = vector.extract_strided_slice %278 {offsets = [0, 33], sizes = [8, 16], strides = [1, 1]} : vector<8x54xf32> to vector<8x16xf32>
    %320 = vector.extract_strided_slice %278 {offsets = [0, 34], sizes = [8, 16], strides = [1, 1]} : vector<8x54xf32> to vector<8x16xf32>
    %321 = vector.extract_strided_slice %278 {offsets = [0, 35], sizes = [8, 16], strides = [1, 1]} : vector<8x54xf32> to vector<8x16xf32>
    %322 = vector.extract_strided_slice %278 {offsets = [0, 36], sizes = [8, 16], strides = [1, 1]} : vector<8x54xf32> to vector<8x16xf32>
    %323 = vector.extract_strided_slice %278 {offsets = [0, 37], sizes = [8, 16], strides = [1, 1]} : vector<8x54xf32> to vector<8x16xf32>
    %324 = vector.extract_strided_slice %278 {offsets = [0, 38], sizes = [8, 16], strides = [1, 1]} : vector<8x54xf32> to vector<8x16xf32>
    %325 = tpu.concatenate %286, %287, %288, %289, %290, %291, %292, %293, %294, %295, %296, %297, %298, %299, %300, %301 in 0 : vector<8x16xf32>, vector<8x16xf32>, vector<8x16xf32>, vector<8x16xf32>, vector<8x16xf32>, vector<8x16xf32>, vector<8x16xf32>, vector<8x16xf32>, vector<8x16xf32>, vector<8x16xf32>, vector<8x16xf32>, vector<8x16xf32>, vector<8x16xf32>, vector<8x16xf32>, vector<8x16xf32>, vector<8x16xf32> -> vector<128x16xf32>
    %326 = tpu.concatenate %302, %303, %304, %305, %306, %307, %308, %309, %310, %311, %312, %313, %314, %315, %316, %317 in 0 : vector<8x16xf32>, vector<8x16xf32>, vector<8x16xf32>, vector<8x16xf32>, vector<8x16xf32>, vector<8x16xf32>, vector<8x16xf32>, vector<8x16xf32>, vector<8x16xf32>, vector<8x16xf32>, vector<8x16xf32>, vector<8x16xf32>, vector<8x16xf32>, vector<8x16xf32>, vector<8x16xf32>, vector<8x16xf32> -> vector<128x16xf32>
    %327 = tpu.concatenate %318, %319, %320, %321, %322, %323, %324, %285 in 0 : vector<8x16xf32>, vector<8x16xf32>, vector<8x16xf32>, vector<8x16xf32>, vector<8x16xf32>, vector<8x16xf32>, vector<8x16xf32>, vector<32x16xf32> -> vector<88x16xf32>
    %328 = tpu.concatenate %325, %326, %327 in 0 : vector<128x16xf32>, vector<128x16xf32>, vector<88x16xf32> -> vector<344x16xf32>
    %329 = vector.extract_strided_slice %274 {offsets = [0, 16], sizes = [8, 16], strides = [1, 1]} : vector<8x32xf32> to vector<8x16xf32>
    %330 = tpu.concatenate %275, %329, %275 in 1 : vector<8x19xf32>, vector<8x16xf32>, vector<8x19xf32> -> vector<8x54xf32>
    %331 = vector.extract_strided_slice %272 {offsets = [0, 16], sizes = [32, 16], strides = [1, 1]} : vector<32x32xf32> to vector<32x16xf32>
    %332 = tpu.concatenate %276, %331, %276 in 1 : vector<32x1xf32>, vector<32x16xf32>, vector<32x1xf32> -> vector<32x18xf32>
    %333 = vector.extract_strided_slice %332 {offsets = [0, 0], sizes = [32, 16], strides = [1, 1]} : vector<32x18xf32> to vector<32x16xf32>
    %334 = vector.extract_strided_slice %332 {offsets = [0, 1], sizes = [32, 16], strides = [1, 1]} : vector<32x18xf32> to vector<32x16xf32>
    %335 = arith.maximumf %333, %334 : vector<32x16xf32>
    %336 = vector.extract_strided_slice %332 {offsets = [0, 2], sizes = [32, 16], strides = [1, 1]} : vector<32x18xf32> to vector<32x16xf32>
    %337 = arith.maximumf %335, %336 : vector<32x16xf32>
    %338 = vector.extract_strided_slice %330 {offsets = [0, 0], sizes = [8, 16], strides = [1, 1]} : vector<8x54xf32> to vector<8x16xf32>
    %339 = vector.extract_strided_slice %330 {offsets = [0, 1], sizes = [8, 16], strides = [1, 1]} : vector<8x54xf32> to vector<8x16xf32>
    %340 = vector.extract_strided_slice %330 {offsets = [0, 2], sizes = [8, 16], strides = [1, 1]} : vector<8x54xf32> to vector<8x16xf32>
    %341 = vector.extract_strided_slice %330 {offsets = [0, 3], sizes = [8, 16], strides = [1, 1]} : vector<8x54xf32> to vector<8x16xf32>
    %342 = vector.extract_strided_slice %330 {offsets = [0, 4], sizes = [8, 16], strides = [1, 1]} : vector<8x54xf32> to vector<8x16xf32>
    %343 = vector.extract_strided_slice %330 {offsets = [0, 5], sizes = [8, 16], strides = [1, 1]} : vector<8x54xf32> to vector<8x16xf32>
    %344 = vector.extract_strided_slice %330 {offsets = [0, 6], sizes = [8, 16], strides = [1, 1]} : vector<8x54xf32> to vector<8x16xf32>
    %345 = vector.extract_strided_slice %330 {offsets = [0, 7], sizes = [8, 16], strides = [1, 1]} : vector<8x54xf32> to vector<8x16xf32>
    %346 = vector.extract_strided_slice %330 {offsets = [0, 8], sizes = [8, 16], strides = [1, 1]} : vector<8x54xf32> to vector<8x16xf32>
    %347 = vector.extract_strided_slice %330 {offsets = [0, 9], sizes = [8, 16], strides = [1, 1]} : vector<8x54xf32> to vector<8x16xf32>
    %348 = vector.extract_strided_slice %330 {offsets = [0, 10], sizes = [8, 16], strides = [1, 1]} : vector<8x54xf32> to vector<8x16xf32>
    %349 = vector.extract_strided_slice %330 {offsets = [0, 11], sizes = [8, 16], strides = [1, 1]} : vector<8x54xf32> to vector<8x16xf32>
    %350 = vector.extract_strided_slice %330 {offsets = [0, 12], sizes = [8, 16], strides = [1, 1]} : vector<8x54xf32> to vector<8x16xf32>
    %351 = vector.extract_strided_slice %330 {offsets = [0, 13], sizes = [8, 16], strides = [1, 1]} : vector<8x54xf32> to vector<8x16xf32>
    %352 = vector.extract_strided_slice %330 {offsets = [0, 14], sizes = [8, 16], strides = [1, 1]} : vector<8x54xf32> to vector<8x16xf32>
    %353 = vector.extract_strided_slice %330 {offsets = [0, 15], sizes = [8, 16], strides = [1, 1]} : vector<8x54xf32> to vector<8x16xf32>
    %354 = vector.extract_strided_slice %330 {offsets = [0, 16], sizes = [8, 16], strides = [1, 1]} : vector<8x54xf32> to vector<8x16xf32>
    %355 = vector.extract_strided_slice %330 {offsets = [0, 17], sizes = [8, 16], strides = [1, 1]} : vector<8x54xf32> to vector<8x16xf32>
    %356 = vector.extract_strided_slice %330 {offsets = [0, 18], sizes = [8, 16], strides = [1, 1]} : vector<8x54xf32> to vector<8x16xf32>
    %357 = vector.extract_strided_slice %330 {offsets = [0, 19], sizes = [8, 16], strides = [1, 1]} : vector<8x54xf32> to vector<8x16xf32>
    %358 = vector.extract_strided_slice %330 {offsets = [0, 20], sizes = [8, 16], strides = [1, 1]} : vector<8x54xf32> to vector<8x16xf32>
    %359 = vector.extract_strided_slice %330 {offsets = [0, 21], sizes = [8, 16], strides = [1, 1]} : vector<8x54xf32> to vector<8x16xf32>
    %360 = vector.extract_strided_slice %330 {offsets = [0, 22], sizes = [8, 16], strides = [1, 1]} : vector<8x54xf32> to vector<8x16xf32>
    %361 = vector.extract_strided_slice %330 {offsets = [0, 23], sizes = [8, 16], strides = [1, 1]} : vector<8x54xf32> to vector<8x16xf32>
    %362 = vector.extract_strided_slice %330 {offsets = [0, 24], sizes = [8, 16], strides = [1, 1]} : vector<8x54xf32> to vector<8x16xf32>
    %363 = vector.extract_strided_slice %330 {offsets = [0, 25], sizes = [8, 16], strides = [1, 1]} : vector<8x54xf32> to vector<8x16xf32>
    %364 = vector.extract_strided_slice %330 {offsets = [0, 26], sizes = [8, 16], strides = [1, 1]} : vector<8x54xf32> to vector<8x16xf32>
    %365 = vector.extract_strided_slice %330 {offsets = [0, 27], sizes = [8, 16], strides = [1, 1]} : vector<8x54xf32> to vector<8x16xf32>
    %366 = vector.extract_strided_slice %330 {offsets = [0, 28], sizes = [8, 16], strides = [1, 1]} : vector<8x54xf32> to vector<8x16xf32>
    %367 = vector.extract_strided_slice %330 {offsets = [0, 29], sizes = [8, 16], strides = [1, 1]} : vector<8x54xf32> to vector<8x16xf32>
    %368 = vector.extract_strided_slice %330 {offsets = [0, 30], sizes = [8, 16], strides = [1, 1]} : vector<8x54xf32> to vector<8x16xf32>
    %369 = vector.extract_strided_slice %330 {offsets = [0, 31], sizes = [8, 16], strides = [1, 1]} : vector<8x54xf32> to vector<8x16xf32>
    %370 = vector.extract_strided_slice %330 {offsets = [0, 32], sizes = [8, 16], strides = [1, 1]} : vector<8x54xf32> to vector<8x16xf32>
    %371 = vector.extract_strided_slice %330 {offsets = [0, 33], sizes = [8, 16], strides = [1, 1]} : vector<8x54xf32> to vector<8x16xf32>
    %372 = vector.extract_strided_slice %330 {offsets = [0, 34], sizes = [8, 16], strides = [1, 1]} : vector<8x54xf32> to vector<8x16xf32>
    %373 = vector.extract_strided_slice %330 {offsets = [0, 35], sizes = [8, 16], strides = [1, 1]} : vector<8x54xf32> to vector<8x16xf32>
    %374 = vector.extract_strided_slice %330 {offsets = [0, 36], sizes = [8, 16], strides = [1, 1]} : vector<8x54xf32> to vector<8x16xf32>
    %375 = vector.extract_strided_slice %330 {offsets = [0, 37], sizes = [8, 16], strides = [1, 1]} : vector<8x54xf32> to vector<8x16xf32>
    %376 = vector.extract_strided_slice %330 {offsets = [0, 38], sizes = [8, 16], strides = [1, 1]} : vector<8x54xf32> to vector<8x16xf32>
    %377 = tpu.concatenate %338, %339, %340, %341, %342, %343, %344, %345, %346, %347, %348, %349, %350, %351, %352, %353 in 0 : vector<8x16xf32>, vector<8x16xf32>, vector<8x16xf32>, vector<8x16xf32>, vector<8x16xf32>, vector<8x16xf32>, vector<8x16xf32>, vector<8x16xf32>, vector<8x16xf32>, vector<8x16xf32>, vector<8x16xf32>, vector<8x16xf32>, vector<8x16xf32>, vector<8x16xf32>, vector<8x16xf32>, vector<8x16xf32> -> vector<128x16xf32>
    %378 = tpu.concatenate %354, %355, %356, %357, %358, %359, %360, %361, %362, %363, %364, %365, %366, %367, %368, %369 in 0 : vector<8x16xf32>, vector<8x16xf32>, vector<8x16xf32>, vector<8x16xf32>, vector<8x16xf32>, vector<8x16xf32>, vector<8x16xf32>, vector<8x16xf32>, vector<8x16xf32>, vector<8x16xf32>, vector<8x16xf32>, vector<8x16xf32>, vector<8x16xf32>, vector<8x16xf32>, vector<8x16xf32>, vector<8x16xf32> -> vector<128x16xf32>
    %379 = tpu.concatenate %370, %371, %372, %373, %374, %375, %376, %337 in 0 : vector<8x16xf32>, vector<8x16xf32>, vector<8x16xf32>, vector<8x16xf32>, vector<8x16xf32>, vector<8x16xf32>, vector<8x16xf32>, vector<32x16xf32> -> vector<88x16xf32>
    %380 = tpu.concatenate %377, %378, %379 in 0 : vector<128x16xf32>, vector<128x16xf32>, vector<88x16xf32> -> vector<344x16xf32>
    %381 = tpu.concatenate %328, %380 in 1 : vector<344x16xf32>, vector<344x16xf32> -> vector<344x32xf32>
    %c0_41 = arith.constant 0 : index
    %c0_42 = arith.constant 0 : index
    %382 = vector.load %arg12[%c0_41, %c0_42] : memref<32x344xf32, #tpu.memory_space<vmem>>, vector<32x344xf32>
    %cst_43 = arith.constant dense<0.000000e+00> : vector<32x32xf32>
    %383 = tpu.matmul %382, %381, %cst_43 {dimension_numbers = #tpu.dot_dimension_numbers<[1], [0], [0], [1], [0, 0, 1, 1], [], []>} : vector<32x344xf32>, vector<344x32xf32>, vector<32x32xf32> -> vector<32x32xf32>
    %cst_44 = arith.constant dense<0.000000e+00> : vector<32xf32>
    %384 = vector.multi_reduction <add>, %383, %cst_44 [1] : vector<32x32xf32> to vector<32xf32>
    %385 = vector.shape_cast %384 : vector<32xf32> to vector<32x1xf32>
    %cst_45 = arith.constant 3.125000e-02 : f32
    %386 = vector.broadcast %cst_45 : f32 to vector<32x1xf32>
    %387 = arith.mulf %385, %386 : vector<32x1xf32>
    %388 = arith.mulf %383, %383 : vector<32x32xf32>
    %cst_46 = arith.constant dense<0.000000e+00> : vector<32xf32>
    %389 = vector.multi_reduction <add>, %388, %cst_46 [1] : vector<32x32xf32> to vector<32xf32>
    %390 = vector.shape_cast %389 : vector<32xf32> to vector<32x1xf32>
    %cst_47 = arith.constant 3.125000e-02 : f32
    %391 = vector.broadcast %cst_47 : f32 to vector<32x1xf32>
    %392 = arith.mulf %390, %391 : vector<32x1xf32>
    %393 = arith.mulf %387, %387 : vector<32x1xf32>
    %394 = arith.subf %392, %393 : vector<32x1xf32>
    %395 = vector.broadcast %387 : vector<32x1xf32> to vector<32x32xf32>
    %396 = arith.subf %383, %395 : vector<32x32xf32>
    %c0_48 = arith.constant 0 : index
    %c0_49 = arith.constant 0 : index
    %397 = vector.load %arg10[%c0_48, %c0_49] : memref<32x1xf32, #tpu.memory_space<vmem>>, vector<32x1xf32>
    %cst_50 = arith.constant 9.99999974E-6 : f32
    %398 = vector.broadcast %cst_50 : f32 to vector<32x1xf32>
    %399 = arith.addf %394, %398 : vector<32x1xf32>
    %400 = math.rsqrt %399 : vector<32x1xf32>
    %401 = arith.mulf %397, %400 : vector<32x1xf32>
    %402 = vector.broadcast %401 : vector<32x1xf32> to vector<32x32xf32>
    %403 = arith.mulf %396, %402 : vector<32x32xf32>
    %c0_51 = arith.constant 0 : index
    %c0_52 = arith.constant 0 : index
    %404 = vector.load %arg9[%c0_51, %c0_52] : memref<32x1xf32, #tpu.memory_space<vmem>>, vector<32x1xf32>
    %405 = vector.broadcast %404 : vector<32x1xf32> to vector<32x32xf32>
    %406 = arith.addf %403, %405 : vector<32x32xf32>
    %cst_53 = arith.constant 0.000000e+00 : f32
    %407 = vector.broadcast %cst_53 : f32 to vector<32x32xf32>
    %408 = arith.maximumf %406, %407 : vector<32x32xf32>
    %c0_54 = arith.constant 0 : index
    %c0_55 = arith.constant 0 : index
    %409 = vector.load %arg32[%c0_54, %c0_55] : memref<32x4xf32, #tpu.memory_space<vmem>>, vector<32x4xf32>
    %cst_56 = arith.constant dense<0.000000e+00> : vector<32x32xf32>
    %410 = tpu.matmul %409, %0, %cst_56 {dimension_numbers = #tpu.dot_dimension_numbers<[1], [0], [0], [1], [0, 0, 1, 1], [], []>} : vector<32x4xf32>, vector<4x32xf32>, vector<32x32xf32> -> vector<32x32xf32>
    %cst_57 = arith.constant dense<0.000000e+00> : vector<32xf32>
    %411 = vector.multi_reduction <add>, %410, %cst_57 [1] : vector<32x32xf32> to vector<32xf32>
    %412 = vector.shape_cast %411 : vector<32xf32> to vector<32x1xf32>
    %cst_58 = arith.constant 3.125000e-02 : f32
    %413 = vector.broadcast %cst_58 : f32 to vector<32x1xf32>
    %414 = arith.mulf %412, %413 : vector<32x1xf32>
    %415 = arith.mulf %410, %410 : vector<32x32xf32>
    %cst_59 = arith.constant dense<0.000000e+00> : vector<32xf32>
    %416 = vector.multi_reduction <add>, %415, %cst_59 [1] : vector<32x32xf32> to vector<32xf32>
    %417 = vector.shape_cast %416 : vector<32xf32> to vector<32x1xf32>
    %cst_60 = arith.constant 3.125000e-02 : f32
    %418 = vector.broadcast %cst_60 : f32 to vector<32x1xf32>
    %419 = arith.mulf %417, %418 : vector<32x1xf32>
    %420 = arith.mulf %414, %414 : vector<32x1xf32>
    %421 = arith.subf %419, %420 : vector<32x1xf32>
    %422 = vector.broadcast %414 : vector<32x1xf32> to vector<32x32xf32>
    %423 = arith.subf %410, %422 : vector<32x32xf32>
    %c0_61 = arith.constant 0 : index
    %c0_62 = arith.constant 0 : index
    %424 = vector.load %arg31[%c0_61, %c0_62] : memref<32x1xf32, #tpu.memory_space<vmem>>, vector<32x1xf32>
    %cst_63 = arith.constant 9.99999974E-6 : f32
    %425 = vector.broadcast %cst_63 : f32 to vector<32x1xf32>
    %426 = arith.addf %421, %425 : vector<32x1xf32>
    %427 = math.rsqrt %426 : vector<32x1xf32>
    %428 = arith.mulf %424, %427 : vector<32x1xf32>
    %429 = vector.broadcast %428 : vector<32x1xf32> to vector<32x32xf32>
    %430 = arith.mulf %423, %429 : vector<32x32xf32>
    %c0_64 = arith.constant 0 : index
    %c0_65 = arith.constant 0 : index
    %431 = vector.load %arg30[%c0_64, %c0_65] : memref<32x1xf32, #tpu.memory_space<vmem>>, vector<32x1xf32>
    %432 = vector.broadcast %431 : vector<32x1xf32> to vector<32x32xf32>
    %433 = arith.addf %430, %432 : vector<32x32xf32>
    %434 = arith.addf %408, %433 : vector<32x32xf32>
    %cst_66 = arith.constant 0.000000e+00 : f32
    %435 = vector.broadcast %cst_66 : f32 to vector<32x32xf32>
    %436 = arith.maximumf %434, %435 : vector<32x32xf32>
    %c0_67 = arith.constant 0 : index
    %c0_68 = arith.constant 0 : index
    %437 = vector.load %arg15[%c0_67, %c0_68] : memref<8x32xf32, #tpu.memory_space<vmem>>, vector<8x32xf32>
    %cst_69 = arith.constant dense<0.000000e+00> : vector<8x32xf32>
    %438 = tpu.matmul %437, %436, %cst_69 {dimension_numbers = #tpu.dot_dimension_numbers<[1], [0], [0], [1], [0, 0, 1, 1], [], []>} : vector<8x32xf32>, vector<32x32xf32>, vector<8x32xf32> -> vector<8x32xf32>
    %cst_70 = arith.constant 0.000000e+00 : f32
    %439 = vector.broadcast %cst_70 : f32 to vector<8x19xf32>
    %cst_71 = arith.constant 0xFF800000 : f32
    %440 = vector.broadcast %cst_71 : f32 to vector<32x1xf32>
    %441 = vector.extract_strided_slice %438 {offsets = [0, 0], sizes = [8, 16], strides = [1, 1]} : vector<8x32xf32> to vector<8x16xf32>
    %442 = tpu.concatenate %439, %441, %439 in 1 : vector<8x19xf32>, vector<8x16xf32>, vector<8x19xf32> -> vector<8x54xf32>
    %443 = vector.extract_strided_slice %436 {offsets = [0, 0], sizes = [32, 16], strides = [1, 1]} : vector<32x32xf32> to vector<32x16xf32>
    %444 = tpu.concatenate %440, %443, %440 in 1 : vector<32x1xf32>, vector<32x16xf32>, vector<32x1xf32> -> vector<32x18xf32>
    %445 = vector.extract_strided_slice %444 {offsets = [0, 0], sizes = [32, 16], strides = [1, 1]} : vector<32x18xf32> to vector<32x16xf32>
    %446 = vector.extract_strided_slice %444 {offsets = [0, 1], sizes = [32, 16], strides = [1, 1]} : vector<32x18xf32> to vector<32x16xf32>
    %447 = arith.maximumf %445, %446 : vector<32x16xf32>
    %448 = vector.extract_strided_slice %444 {offsets = [0, 2], sizes = [32, 16], strides = [1, 1]} : vector<32x18xf32> to vector<32x16xf32>
    %449 = arith.maximumf %447, %448 : vector<32x16xf32>
    %450 = vector.extract_strided_slice %442 {offsets = [0, 0], sizes = [8, 16], strides = [1, 1]} : vector<8x54xf32> to vector<8x16xf32>
    %451 = vector.extract_strided_slice %442 {offsets = [0, 1], sizes = [8, 16], strides = [1, 1]} : vector<8x54xf32> to vector<8x16xf32>
    %452 = vector.extract_strided_slice %442 {offsets = [0, 2], sizes = [8, 16], strides = [1, 1]} : vector<8x54xf32> to vector<8x16xf32>
    %453 = vector.extract_strided_slice %442 {offsets = [0, 3], sizes = [8, 16], strides = [1, 1]} : vector<8x54xf32> to vector<8x16xf32>
    %454 = vector.extract_strided_slice %442 {offsets = [0, 4], sizes = [8, 16], strides = [1, 1]} : vector<8x54xf32> to vector<8x16xf32>
    %455 = vector.extract_strided_slice %442 {offsets = [0, 5], sizes = [8, 16], strides = [1, 1]} : vector<8x54xf32> to vector<8x16xf32>
    %456 = vector.extract_strided_slice %442 {offsets = [0, 6], sizes = [8, 16], strides = [1, 1]} : vector<8x54xf32> to vector<8x16xf32>
    %457 = vector.extract_strided_slice %442 {offsets = [0, 7], sizes = [8, 16], strides = [1, 1]} : vector<8x54xf32> to vector<8x16xf32>
    %458 = vector.extract_strided_slice %442 {offsets = [0, 8], sizes = [8, 16], strides = [1, 1]} : vector<8x54xf32> to vector<8x16xf32>
    %459 = vector.extract_strided_slice %442 {offsets = [0, 9], sizes = [8, 16], strides = [1, 1]} : vector<8x54xf32> to vector<8x16xf32>
    %460 = vector.extract_strided_slice %442 {offsets = [0, 10], sizes = [8, 16], strides = [1, 1]} : vector<8x54xf32> to vector<8x16xf32>
    %461 = vector.extract_strided_slice %442 {offsets = [0, 11], sizes = [8, 16], strides = [1, 1]} : vector<8x54xf32> to vector<8x16xf32>
    %462 = vector.extract_strided_slice %442 {offsets = [0, 12], sizes = [8, 16], strides = [1, 1]} : vector<8x54xf32> to vector<8x16xf32>
    %463 = vector.extract_strided_slice %442 {offsets = [0, 13], sizes = [8, 16], strides = [1, 1]} : vector<8x54xf32> to vector<8x16xf32>
    %464 = vector.extract_strided_slice %442 {offsets = [0, 14], sizes = [8, 16], strides = [1, 1]} : vector<8x54xf32> to vector<8x16xf32>
    %465 = vector.extract_strided_slice %442 {offsets = [0, 15], sizes = [8, 16], strides = [1, 1]} : vector<8x54xf32> to vector<8x16xf32>
    %466 = vector.extract_strided_slice %442 {offsets = [0, 16], sizes = [8, 16], strides = [1, 1]} : vector<8x54xf32> to vector<8x16xf32>
    %467 = vector.extract_strided_slice %442 {offsets = [0, 17], sizes = [8, 16], strides = [1, 1]} : vector<8x54xf32> to vector<8x16xf32>
    %468 = vector.extract_strided_slice %442 {offsets = [0, 18], sizes = [8, 16], strides = [1, 1]} : vector<8x54xf32> to vector<8x16xf32>
    %469 = vector.extract_strided_slice %442 {offsets = [0, 19], sizes = [8, 16], strides = [1, 1]} : vector<8x54xf32> to vector<8x16xf32>
    %470 = vector.extract_strided_slice %442 {offsets = [0, 20], sizes = [8, 16], strides = [1, 1]} : vector<8x54xf32> to vector<8x16xf32>
    %471 = vector.extract_strided_slice %442 {offsets = [0, 21], sizes = [8, 16], strides = [1, 1]} : vector<8x54xf32> to vector<8x16xf32>
    %472 = vector.extract_strided_slice %442 {offsets = [0, 22], sizes = [8, 16], strides = [1, 1]} : vector<8x54xf32> to vector<8x16xf32>
    %473 = vector.extract_strided_slice %442 {offsets = [0, 23], sizes = [8, 16], strides = [1, 1]} : vector<8x54xf32> to vector<8x16xf32>
    %474 = vector.extract_strided_slice %442 {offsets = [0, 24], sizes = [8, 16], strides = [1, 1]} : vector<8x54xf32> to vector<8x16xf32>
    %475 = vector.extract_strided_slice %442 {offsets = [0, 25], sizes = [8, 16], strides = [1, 1]} : vector<8x54xf32> to vector<8x16xf32>
    %476 = vector.extract_strided_slice %442 {offsets = [0, 26], sizes = [8, 16], strides = [1, 1]} : vector<8x54xf32> to vector<8x16xf32>
    %477 = vector.extract_strided_slice %442 {offsets = [0, 27], sizes = [8, 16], strides = [1, 1]} : vector<8x54xf32> to vector<8x16xf32>
    %478 = vector.extract_strided_slice %442 {offsets = [0, 28], sizes = [8, 16], strides = [1, 1]} : vector<8x54xf32> to vector<8x16xf32>
    %479 = vector.extract_strided_slice %442 {offsets = [0, 29], sizes = [8, 16], strides = [1, 1]} : vector<8x54xf32> to vector<8x16xf32>
    %480 = vector.extract_strided_slice %442 {offsets = [0, 30], sizes = [8, 16], strides = [1, 1]} : vector<8x54xf32> to vector<8x16xf32>
    %481 = vector.extract_strided_slice %442 {offsets = [0, 31], sizes = [8, 16], strides = [1, 1]} : vector<8x54xf32> to vector<8x16xf32>
    %482 = vector.extract_strided_slice %442 {offsets = [0, 32], sizes = [8, 16], strides = [1, 1]} : vector<8x54xf32> to vector<8x16xf32>
    %483 = vector.extract_strided_slice %442 {offsets = [0, 33], sizes = [8, 16], strides = [1, 1]} : vector<8x54xf32> to vector<8x16xf32>
    %484 = vector.extract_strided_slice %442 {offsets = [0, 34], sizes = [8, 16], strides = [1, 1]} : vector<8x54xf32> to vector<8x16xf32>
    %485 = vector.extract_strided_slice %442 {offsets = [0, 35], sizes = [8, 16], strides = [1, 1]} : vector<8x54xf32> to vector<8x16xf32>
    %486 = vector.extract_strided_slice %442 {offsets = [0, 36], sizes = [8, 16], strides = [1, 1]} : vector<8x54xf32> to vector<8x16xf32>
    %487 = vector.extract_strided_slice %442 {offsets = [0, 37], sizes = [8, 16], strides = [1, 1]} : vector<8x54xf32> to vector<8x16xf32>
    %488 = vector.extract_strided_slice %442 {offsets = [0, 38], sizes = [8, 16], strides = [1, 1]} : vector<8x54xf32> to vector<8x16xf32>
    %489 = tpu.concatenate %450, %451, %452, %453, %454, %455, %456, %457, %458, %459, %460, %461, %462, %463, %464, %465 in 0 : vector<8x16xf32>, vector<8x16xf32>, vector<8x16xf32>, vector<8x16xf32>, vector<8x16xf32>, vector<8x16xf32>, vector<8x16xf32>, vector<8x16xf32>, vector<8x16xf32>, vector<8x16xf32>, vector<8x16xf32>, vector<8x16xf32>, vector<8x16xf32>, vector<8x16xf32>, vector<8x16xf32>, vector<8x16xf32> -> vector<128x16xf32>
    %490 = tpu.concatenate %466, %467, %468, %469, %470, %471, %472, %473, %474, %475, %476, %477, %478, %479, %480, %481 in 0 : vector<8x16xf32>, vector<8x16xf32>, vector<8x16xf32>, vector<8x16xf32>, vector<8x16xf32>, vector<8x16xf32>, vector<8x16xf32>, vector<8x16xf32>, vector<8x16xf32>, vector<8x16xf32>, vector<8x16xf32>, vector<8x16xf32>, vector<8x16xf32>, vector<8x16xf32>, vector<8x16xf32>, vector<8x16xf32> -> vector<128x16xf32>
    %491 = tpu.concatenate %482, %483, %484, %485, %486, %487, %488, %449 in 0 : vector<8x16xf32>, vector<8x16xf32>, vector<8x16xf32>, vector<8x16xf32>, vector<8x16xf32>, vector<8x16xf32>, vector<8x16xf32>, vector<32x16xf32> -> vector<88x16xf32>
    %492 = tpu.concatenate %489, %490, %491 in 0 : vector<128x16xf32>, vector<128x16xf32>, vector<88x16xf32> -> vector<344x16xf32>
    %493 = vector.extract_strided_slice %438 {offsets = [0, 16], sizes = [8, 16], strides = [1, 1]} : vector<8x32xf32> to vector<8x16xf32>
    %494 = tpu.concatenate %439, %493, %439 in 1 : vector<8x19xf32>, vector<8x16xf32>, vector<8x19xf32> -> vector<8x54xf32>
    %495 = vector.extract_strided_slice %436 {offsets = [0, 16], sizes = [32, 16], strides = [1, 1]} : vector<32x32xf32> to vector<32x16xf32>
    %496 = tpu.concatenate %440, %495, %440 in 1 : vector<32x1xf32>, vector<32x16xf32>, vector<32x1xf32> -> vector<32x18xf32>
    %497 = vector.extract_strided_slice %496 {offsets = [0, 0], sizes = [32, 16], strides = [1, 1]} : vector<32x18xf32> to vector<32x16xf32>
    %498 = vector.extract_strided_slice %496 {offsets = [0, 1], sizes = [32, 16], strides = [1, 1]} : vector<32x18xf32> to vector<32x16xf32>
    %499 = arith.maximumf %497, %498 : vector<32x16xf32>
    %500 = vector.extract_strided_slice %496 {offsets = [0, 2], sizes = [32, 16], strides = [1, 1]} : vector<32x18xf32> to vector<32x16xf32>
    %501 = arith.maximumf %499, %500 : vector<32x16xf32>
    %502 = vector.extract_strided_slice %494 {offsets = [0, 0], sizes = [8, 16], strides = [1, 1]} : vector<8x54xf32> to vector<8x16xf32>
    %503 = vector.extract_strided_slice %494 {offsets = [0, 1], sizes = [8, 16], strides = [1, 1]} : vector<8x54xf32> to vector<8x16xf32>
    %504 = vector.extract_strided_slice %494 {offsets = [0, 2], sizes = [8, 16], strides = [1, 1]} : vector<8x54xf32> to vector<8x16xf32>
    %505 = vector.extract_strided_slice %494 {offsets = [0, 3], sizes = [8, 16], strides = [1, 1]} : vector<8x54xf32> to vector<8x16xf32>
    %506 = vector.extract_strided_slice %494 {offsets = [0, 4], sizes = [8, 16], strides = [1, 1]} : vector<8x54xf32> to vector<8x16xf32>
    %507 = vector.extract_strided_slice %494 {offsets = [0, 5], sizes = [8, 16], strides = [1, 1]} : vector<8x54xf32> to vector<8x16xf32>
    %508 = vector.extract_strided_slice %494 {offsets = [0, 6], sizes = [8, 16], strides = [1, 1]} : vector<8x54xf32> to vector<8x16xf32>
    %509 = vector.extract_strided_slice %494 {offsets = [0, 7], sizes = [8, 16], strides = [1, 1]} : vector<8x54xf32> to vector<8x16xf32>
    %510 = vector.extract_strided_slice %494 {offsets = [0, 8], sizes = [8, 16], strides = [1, 1]} : vector<8x54xf32> to vector<8x16xf32>
    %511 = vector.extract_strided_slice %494 {offsets = [0, 9], sizes = [8, 16], strides = [1, 1]} : vector<8x54xf32> to vector<8x16xf32>
    %512 = vector.extract_strided_slice %494 {offsets = [0, 10], sizes = [8, 16], strides = [1, 1]} : vector<8x54xf32> to vector<8x16xf32>
    %513 = vector.extract_strided_slice %494 {offsets = [0, 11], sizes = [8, 16], strides = [1, 1]} : vector<8x54xf32> to vector<8x16xf32>
    %514 = vector.extract_strided_slice %494 {offsets = [0, 12], sizes = [8, 16], strides = [1, 1]} : vector<8x54xf32> to vector<8x16xf32>
    %515 = vector.extract_strided_slice %494 {offsets = [0, 13], sizes = [8, 16], strides = [1, 1]} : vector<8x54xf32> to vector<8x16xf32>
    %516 = vector.extract_strided_slice %494 {offsets = [0, 14], sizes = [8, 16], strides = [1, 1]} : vector<8x54xf32> to vector<8x16xf32>
    %517 = vector.extract_strided_slice %494 {offsets = [0, 15], sizes = [8, 16], strides = [1, 1]} : vector<8x54xf32> to vector<8x16xf32>
    %518 = vector.extract_strided_slice %494 {offsets = [0, 16], sizes = [8, 16], strides = [1, 1]} : vector<8x54xf32> to vector<8x16xf32>
    %519 = vector.extract_strided_slice %494 {offsets = [0, 17], sizes = [8, 16], strides = [1, 1]} : vector<8x54xf32> to vector<8x16xf32>
    %520 = vector.extract_strided_slice %494 {offsets = [0, 18], sizes = [8, 16], strides = [1, 1]} : vector<8x54xf32> to vector<8x16xf32>
    %521 = vector.extract_strided_slice %494 {offsets = [0, 19], sizes = [8, 16], strides = [1, 1]} : vector<8x54xf32> to vector<8x16xf32>
    %522 = vector.extract_strided_slice %494 {offsets = [0, 20], sizes = [8, 16], strides = [1, 1]} : vector<8x54xf32> to vector<8x16xf32>
    %523 = vector.extract_strided_slice %494 {offsets = [0, 21], sizes = [8, 16], strides = [1, 1]} : vector<8x54xf32> to vector<8x16xf32>
    %524 = vector.extract_strided_slice %494 {offsets = [0, 22], sizes = [8, 16], strides = [1, 1]} : vector<8x54xf32> to vector<8x16xf32>
    %525 = vector.extract_strided_slice %494 {offsets = [0, 23], sizes = [8, 16], strides = [1, 1]} : vector<8x54xf32> to vector<8x16xf32>
    %526 = vector.extract_strided_slice %494 {offsets = [0, 24], sizes = [8, 16], strides = [1, 1]} : vector<8x54xf32> to vector<8x16xf32>
    %527 = vector.extract_strided_slice %494 {offsets = [0, 25], sizes = [8, 16], strides = [1, 1]} : vector<8x54xf32> to vector<8x16xf32>
    %528 = vector.extract_strided_slice %494 {offsets = [0, 26], sizes = [8, 16], strides = [1, 1]} : vector<8x54xf32> to vector<8x16xf32>
    %529 = vector.extract_strided_slice %494 {offsets = [0, 27], sizes = [8, 16], strides = [1, 1]} : vector<8x54xf32> to vector<8x16xf32>
    %530 = vector.extract_strided_slice %494 {offsets = [0, 28], sizes = [8, 16], strides = [1, 1]} : vector<8x54xf32> to vector<8x16xf32>
    %531 = vector.extract_strided_slice %494 {offsets = [0, 29], sizes = [8, 16], strides = [1, 1]} : vector<8x54xf32> to vector<8x16xf32>
    %532 = vector.extract_strided_slice %494 {offsets = [0, 30], sizes = [8, 16], strides = [1, 1]} : vector<8x54xf32> to vector<8x16xf32>
    %533 = vector.extract_strided_slice %494 {offsets = [0, 31], sizes = [8, 16], strides = [1, 1]} : vector<8x54xf32> to vector<8x16xf32>
    %534 = vector.extract_strided_slice %494 {offsets = [0, 32], sizes = [8, 16], strides = [1, 1]} : vector<8x54xf32> to vector<8x16xf32>
    %535 = vector.extract_strided_slice %494 {offsets = [0, 33], sizes = [8, 16], strides = [1, 1]} : vector<8x54xf32> to vector<8x16xf32>
    %536 = vector.extract_strided_slice %494 {offsets = [0, 34], sizes = [8, 16], strides = [1, 1]} : vector<8x54xf32> to vector<8x16xf32>
    %537 = vector.extract_strided_slice %494 {offsets = [0, 35], sizes = [8, 16], strides = [1, 1]} : vector<8x54xf32> to vector<8x16xf32>
    %538 = vector.extract_strided_slice %494 {offsets = [0, 36], sizes = [8, 16], strides = [1, 1]} : vector<8x54xf32> to vector<8x16xf32>
    %539 = vector.extract_strided_slice %494 {offsets = [0, 37], sizes = [8, 16], strides = [1, 1]} : vector<8x54xf32> to vector<8x16xf32>
    %540 = vector.extract_strided_slice %494 {offsets = [0, 38], sizes = [8, 16], strides = [1, 1]} : vector<8x54xf32> to vector<8x16xf32>
    %541 = tpu.concatenate %502, %503, %504, %505, %506, %507, %508, %509, %510, %511, %512, %513, %514, %515, %516, %517 in 0 : vector<8x16xf32>, vector<8x16xf32>, vector<8x16xf32>, vector<8x16xf32>, vector<8x16xf32>, vector<8x16xf32>, vector<8x16xf32>, vector<8x16xf32>, vector<8x16xf32>, vector<8x16xf32>, vector<8x16xf32>, vector<8x16xf32>, vector<8x16xf32>, vector<8x16xf32>, vector<8x16xf32>, vector<8x16xf32> -> vector<128x16xf32>
    %542 = tpu.concatenate %518, %519, %520, %521, %522, %523, %524, %525, %526, %527, %528, %529, %530, %531, %532, %533 in 0 : vector<8x16xf32>, vector<8x16xf32>, vector<8x16xf32>, vector<8x16xf32>, vector<8x16xf32>, vector<8x16xf32>, vector<8x16xf32>, vector<8x16xf32>, vector<8x16xf32>, vector<8x16xf32>, vector<8x16xf32>, vector<8x16xf32>, vector<8x16xf32>, vector<8x16xf32>, vector<8x16xf32>, vector<8x16xf32> -> vector<128x16xf32>
    %543 = tpu.concatenate %534, %535, %536, %537, %538, %539, %540, %501 in 0 : vector<8x16xf32>, vector<8x16xf32>, vector<8x16xf32>, vector<8x16xf32>, vector<8x16xf32>, vector<8x16xf32>, vector<8x16xf32>, vector<32x16xf32> -> vector<88x16xf32>
    %544 = tpu.concatenate %541, %542, %543 in 0 : vector<128x16xf32>, vector<128x16xf32>, vector<88x16xf32> -> vector<344x16xf32>
    %545 = tpu.concatenate %492, %544 in 1 : vector<344x16xf32>, vector<344x16xf32> -> vector<344x32xf32>
    %c0_72 = arith.constant 0 : index
    %c0_73 = arith.constant 0 : index
    %546 = vector.load %arg16[%c0_72, %c0_73] : memref<32x344xf32, #tpu.memory_space<vmem>>, vector<32x344xf32>
    %cst_74 = arith.constant dense<0.000000e+00> : vector<32x32xf32>
    %547 = tpu.matmul %546, %545, %cst_74 {dimension_numbers = #tpu.dot_dimension_numbers<[1], [0], [0], [1], [0, 0, 1, 1], [], []>} : vector<32x344xf32>, vector<344x32xf32>, vector<32x32xf32> -> vector<32x32xf32>
    %cst_75 = arith.constant dense<0.000000e+00> : vector<32xf32>
    %548 = vector.multi_reduction <add>, %547, %cst_75 [1] : vector<32x32xf32> to vector<32xf32>
    %549 = vector.shape_cast %548 : vector<32xf32> to vector<32x1xf32>
    %cst_76 = arith.constant 3.125000e-02 : f32
    %550 = vector.broadcast %cst_76 : f32 to vector<32x1xf32>
    %551 = arith.mulf %549, %550 : vector<32x1xf32>
    %552 = arith.mulf %547, %547 : vector<32x32xf32>
    %cst_77 = arith.constant dense<0.000000e+00> : vector<32xf32>
    %553 = vector.multi_reduction <add>, %552, %cst_77 [1] : vector<32x32xf32> to vector<32xf32>
    %554 = vector.shape_cast %553 : vector<32xf32> to vector<32x1xf32>
    %cst_78 = arith.constant 3.125000e-02 : f32
    %555 = vector.broadcast %cst_78 : f32 to vector<32x1xf32>
    %556 = arith.mulf %554, %555 : vector<32x1xf32>
    %557 = arith.mulf %551, %551 : vector<32x1xf32>
    %558 = arith.subf %556, %557 : vector<32x1xf32>
    %559 = vector.broadcast %551 : vector<32x1xf32> to vector<32x32xf32>
    %560 = arith.subf %547, %559 : vector<32x32xf32>
    %c0_79 = arith.constant 0 : index
    %c0_80 = arith.constant 0 : index
    %561 = vector.load %arg14[%c0_79, %c0_80] : memref<32x1xf32, #tpu.memory_space<vmem>>, vector<32x1xf32>
    %cst_81 = arith.constant 9.99999974E-6 : f32
    %562 = vector.broadcast %cst_81 : f32 to vector<32x1xf32>
    %563 = arith.addf %558, %562 : vector<32x1xf32>
    %564 = math.rsqrt %563 : vector<32x1xf32>
    %565 = arith.mulf %561, %564 : vector<32x1xf32>
    %566 = vector.broadcast %565 : vector<32x1xf32> to vector<32x32xf32>
    %567 = arith.mulf %560, %566 : vector<32x32xf32>
    %c0_82 = arith.constant 0 : index
    %c0_83 = arith.constant 0 : index
    %568 = vector.load %arg13[%c0_82, %c0_83] : memref<32x1xf32, #tpu.memory_space<vmem>>, vector<32x1xf32>
    %569 = vector.broadcast %568 : vector<32x1xf32> to vector<32x32xf32>
    %570 = arith.addf %567, %569 : vector<32x32xf32>
    %cst_84 = arith.constant 0.000000e+00 : f32
    %571 = vector.broadcast %cst_84 : f32 to vector<32x32xf32>
    %572 = arith.maximumf %570, %571 : vector<32x32xf32>
    %c0_85 = arith.constant 0 : index
    %c0_86 = arith.constant 0 : index
    %573 = vector.load %arg19[%c0_85, %c0_86] : memref<8x32xf32, #tpu.memory_space<vmem>>, vector<8x32xf32>
    %cst_87 = arith.constant dense<0.000000e+00> : vector<8x32xf32>
    %574 = tpu.matmul %573, %572, %cst_87 {dimension_numbers = #tpu.dot_dimension_numbers<[1], [0], [0], [1], [0, 0, 1, 1], [], []>} : vector<8x32xf32>, vector<32x32xf32>, vector<8x32xf32> -> vector<8x32xf32>
    %cst_88 = arith.constant 0.000000e+00 : f32
    %575 = vector.broadcast %cst_88 : f32 to vector<8x19xf32>
    %cst_89 = arith.constant 0xFF800000 : f32
    %576 = vector.broadcast %cst_89 : f32 to vector<32x1xf32>
    %577 = vector.extract_strided_slice %574 {offsets = [0, 0], sizes = [8, 16], strides = [1, 1]} : vector<8x32xf32> to vector<8x16xf32>
    %578 = tpu.concatenate %575, %577, %575 in 1 : vector<8x19xf32>, vector<8x16xf32>, vector<8x19xf32> -> vector<8x54xf32>
    %579 = vector.extract_strided_slice %572 {offsets = [0, 0], sizes = [32, 16], strides = [1, 1]} : vector<32x32xf32> to vector<32x16xf32>
    %580 = tpu.concatenate %576, %579, %576 in 1 : vector<32x1xf32>, vector<32x16xf32>, vector<32x1xf32> -> vector<32x18xf32>
    %581 = vector.extract_strided_slice %580 {offsets = [0, 0], sizes = [32, 16], strides = [1, 1]} : vector<32x18xf32> to vector<32x16xf32>
    %582 = vector.extract_strided_slice %580 {offsets = [0, 1], sizes = [32, 16], strides = [1, 1]} : vector<32x18xf32> to vector<32x16xf32>
    %583 = arith.maximumf %581, %582 : vector<32x16xf32>
    %584 = vector.extract_strided_slice %580 {offsets = [0, 2], sizes = [32, 16], strides = [1, 1]} : vector<32x18xf32> to vector<32x16xf32>
    %585 = arith.maximumf %583, %584 : vector<32x16xf32>
    %586 = vector.extract_strided_slice %578 {offsets = [0, 0], sizes = [8, 16], strides = [1, 1]} : vector<8x54xf32> to vector<8x16xf32>
    %587 = vector.extract_strided_slice %578 {offsets = [0, 1], sizes = [8, 16], strides = [1, 1]} : vector<8x54xf32> to vector<8x16xf32>
    %588 = vector.extract_strided_slice %578 {offsets = [0, 2], sizes = [8, 16], strides = [1, 1]} : vector<8x54xf32> to vector<8x16xf32>
    %589 = vector.extract_strided_slice %578 {offsets = [0, 3], sizes = [8, 16], strides = [1, 1]} : vector<8x54xf32> to vector<8x16xf32>
    %590 = vector.extract_strided_slice %578 {offsets = [0, 4], sizes = [8, 16], strides = [1, 1]} : vector<8x54xf32> to vector<8x16xf32>
    %591 = vector.extract_strided_slice %578 {offsets = [0, 5], sizes = [8, 16], strides = [1, 1]} : vector<8x54xf32> to vector<8x16xf32>
    %592 = vector.extract_strided_slice %578 {offsets = [0, 6], sizes = [8, 16], strides = [1, 1]} : vector<8x54xf32> to vector<8x16xf32>
    %593 = vector.extract_strided_slice %578 {offsets = [0, 7], sizes = [8, 16], strides = [1, 1]} : vector<8x54xf32> to vector<8x16xf32>
    %594 = vector.extract_strided_slice %578 {offsets = [0, 8], sizes = [8, 16], strides = [1, 1]} : vector<8x54xf32> to vector<8x16xf32>
    %595 = vector.extract_strided_slice %578 {offsets = [0, 9], sizes = [8, 16], strides = [1, 1]} : vector<8x54xf32> to vector<8x16xf32>
    %596 = vector.extract_strided_slice %578 {offsets = [0, 10], sizes = [8, 16], strides = [1, 1]} : vector<8x54xf32> to vector<8x16xf32>
    %597 = vector.extract_strided_slice %578 {offsets = [0, 11], sizes = [8, 16], strides = [1, 1]} : vector<8x54xf32> to vector<8x16xf32>
    %598 = vector.extract_strided_slice %578 {offsets = [0, 12], sizes = [8, 16], strides = [1, 1]} : vector<8x54xf32> to vector<8x16xf32>
    %599 = vector.extract_strided_slice %578 {offsets = [0, 13], sizes = [8, 16], strides = [1, 1]} : vector<8x54xf32> to vector<8x16xf32>
    %600 = vector.extract_strided_slice %578 {offsets = [0, 14], sizes = [8, 16], strides = [1, 1]} : vector<8x54xf32> to vector<8x16xf32>
    %601 = vector.extract_strided_slice %578 {offsets = [0, 15], sizes = [8, 16], strides = [1, 1]} : vector<8x54xf32> to vector<8x16xf32>
    %602 = vector.extract_strided_slice %578 {offsets = [0, 16], sizes = [8, 16], strides = [1, 1]} : vector<8x54xf32> to vector<8x16xf32>
    %603 = vector.extract_strided_slice %578 {offsets = [0, 17], sizes = [8, 16], strides = [1, 1]} : vector<8x54xf32> to vector<8x16xf32>
    %604 = vector.extract_strided_slice %578 {offsets = [0, 18], sizes = [8, 16], strides = [1, 1]} : vector<8x54xf32> to vector<8x16xf32>
    %605 = vector.extract_strided_slice %578 {offsets = [0, 19], sizes = [8, 16], strides = [1, 1]} : vector<8x54xf32> to vector<8x16xf32>
    %606 = vector.extract_strided_slice %578 {offsets = [0, 20], sizes = [8, 16], strides = [1, 1]} : vector<8x54xf32> to vector<8x16xf32>
    %607 = vector.extract_strided_slice %578 {offsets = [0, 21], sizes = [8, 16], strides = [1, 1]} : vector<8x54xf32> to vector<8x16xf32>
    %608 = vector.extract_strided_slice %578 {offsets = [0, 22], sizes = [8, 16], strides = [1, 1]} : vector<8x54xf32> to vector<8x16xf32>
    %609 = vector.extract_strided_slice %578 {offsets = [0, 23], sizes = [8, 16], strides = [1, 1]} : vector<8x54xf32> to vector<8x16xf32>
    %610 = vector.extract_strided_slice %578 {offsets = [0, 24], sizes = [8, 16], strides = [1, 1]} : vector<8x54xf32> to vector<8x16xf32>
    %611 = vector.extract_strided_slice %578 {offsets = [0, 25], sizes = [8, 16], strides = [1, 1]} : vector<8x54xf32> to vector<8x16xf32>
    %612 = vector.extract_strided_slice %578 {offsets = [0, 26], sizes = [8, 16], strides = [1, 1]} : vector<8x54xf32> to vector<8x16xf32>
    %613 = vector.extract_strided_slice %578 {offsets = [0, 27], sizes = [8, 16], strides = [1, 1]} : vector<8x54xf32> to vector<8x16xf32>
    %614 = vector.extract_strided_slice %578 {offsets = [0, 28], sizes = [8, 16], strides = [1, 1]} : vector<8x54xf32> to vector<8x16xf32>
    %615 = vector.extract_strided_slice %578 {offsets = [0, 29], sizes = [8, 16], strides = [1, 1]} : vector<8x54xf32> to vector<8x16xf32>
    %616 = vector.extract_strided_slice %578 {offsets = [0, 30], sizes = [8, 16], strides = [1, 1]} : vector<8x54xf32> to vector<8x16xf32>
    %617 = vector.extract_strided_slice %578 {offsets = [0, 31], sizes = [8, 16], strides = [1, 1]} : vector<8x54xf32> to vector<8x16xf32>
    %618 = vector.extract_strided_slice %578 {offsets = [0, 32], sizes = [8, 16], strides = [1, 1]} : vector<8x54xf32> to vector<8x16xf32>
    %619 = vector.extract_strided_slice %578 {offsets = [0, 33], sizes = [8, 16], strides = [1, 1]} : vector<8x54xf32> to vector<8x16xf32>
    %620 = vector.extract_strided_slice %578 {offsets = [0, 34], sizes = [8, 16], strides = [1, 1]} : vector<8x54xf32> to vector<8x16xf32>
    %621 = vector.extract_strided_slice %578 {offsets = [0, 35], sizes = [8, 16], strides = [1, 1]} : vector<8x54xf32> to vector<8x16xf32>
    %622 = vector.extract_strided_slice %578 {offsets = [0, 36], sizes = [8, 16], strides = [1, 1]} : vector<8x54xf32> to vector<8x16xf32>
    %623 = vector.extract_strided_slice %578 {offsets = [0, 37], sizes = [8, 16], strides = [1, 1]} : vector<8x54xf32> to vector<8x16xf32>
    %624 = vector.extract_strided_slice %578 {offsets = [0, 38], sizes = [8, 16], strides = [1, 1]} : vector<8x54xf32> to vector<8x16xf32>
    %625 = tpu.concatenate %586, %587, %588, %589, %590, %591, %592, %593, %594, %595, %596, %597, %598, %599, %600, %601 in 0 : vector<8x16xf32>, vector<8x16xf32>, vector<8x16xf32>, vector<8x16xf32>, vector<8x16xf32>, vector<8x16xf32>, vector<8x16xf32>, vector<8x16xf32>, vector<8x16xf32>, vector<8x16xf32>, vector<8x16xf32>, vector<8x16xf32>, vector<8x16xf32>, vector<8x16xf32>, vector<8x16xf32>, vector<8x16xf32> -> vector<128x16xf32>
    %626 = tpu.concatenate %602, %603, %604, %605, %606, %607, %608, %609, %610, %611, %612, %613, %614, %615, %616, %617 in 0 : vector<8x16xf32>, vector<8x16xf32>, vector<8x16xf32>, vector<8x16xf32>, vector<8x16xf32>, vector<8x16xf32>, vector<8x16xf32>, vector<8x16xf32>, vector<8x16xf32>, vector<8x16xf32>, vector<8x16xf32>, vector<8x16xf32>, vector<8x16xf32>, vector<8x16xf32>, vector<8x16xf32>, vector<8x16xf32> -> vector<128x16xf32>
    %627 = tpu.concatenate %618, %619, %620, %621, %622, %623, %624, %585 in 0 : vector<8x16xf32>, vector<8x16xf32>, vector<8x16xf32>, vector<8x16xf32>, vector<8x16xf32>, vector<8x16xf32>, vector<8x16xf32>, vector<32x16xf32> -> vector<88x16xf32>
    %628 = tpu.concatenate %625, %626, %627 in 0 : vector<128x16xf32>, vector<128x16xf32>, vector<88x16xf32> -> vector<344x16xf32>
    %629 = vector.extract_strided_slice %574 {offsets = [0, 16], sizes = [8, 16], strides = [1, 1]} : vector<8x32xf32> to vector<8x16xf32>
    %630 = tpu.concatenate %575, %629, %575 in 1 : vector<8x19xf32>, vector<8x16xf32>, vector<8x19xf32> -> vector<8x54xf32>
    %631 = vector.extract_strided_slice %572 {offsets = [0, 16], sizes = [32, 16], strides = [1, 1]} : vector<32x32xf32> to vector<32x16xf32>
    %632 = tpu.concatenate %576, %631, %576 in 1 : vector<32x1xf32>, vector<32x16xf32>, vector<32x1xf32> -> vector<32x18xf32>
    %633 = vector.extract_strided_slice %632 {offsets = [0, 0], sizes = [32, 16], strides = [1, 1]} : vector<32x18xf32> to vector<32x16xf32>
    %634 = vector.extract_strided_slice %632 {offsets = [0, 1], sizes = [32, 16], strides = [1, 1]} : vector<32x18xf32> to vector<32x16xf32>
    %635 = arith.maximumf %633, %634 : vector<32x16xf32>
    %636 = vector.extract_strided_slice %632 {offsets = [0, 2], sizes = [32, 16], strides = [1, 1]} : vector<32x18xf32> to vector<32x16xf32>
    %637 = arith.maximumf %635, %636 : vector<32x16xf32>
    %638 = vector.extract_strided_slice %630 {offsets = [0, 0], sizes = [8, 16], strides = [1, 1]} : vector<8x54xf32> to vector<8x16xf32>
    %639 = vector.extract_strided_slice %630 {offsets = [0, 1], sizes = [8, 16], strides = [1, 1]} : vector<8x54xf32> to vector<8x16xf32>
    %640 = vector.extract_strided_slice %630 {offsets = [0, 2], sizes = [8, 16], strides = [1, 1]} : vector<8x54xf32> to vector<8x16xf32>
    %641 = vector.extract_strided_slice %630 {offsets = [0, 3], sizes = [8, 16], strides = [1, 1]} : vector<8x54xf32> to vector<8x16xf32>
    %642 = vector.extract_strided_slice %630 {offsets = [0, 4], sizes = [8, 16], strides = [1, 1]} : vector<8x54xf32> to vector<8x16xf32>
    %643 = vector.extract_strided_slice %630 {offsets = [0, 5], sizes = [8, 16], strides = [1, 1]} : vector<8x54xf32> to vector<8x16xf32>
    %644 = vector.extract_strided_slice %630 {offsets = [0, 6], sizes = [8, 16], strides = [1, 1]} : vector<8x54xf32> to vector<8x16xf32>
    %645 = vector.extract_strided_slice %630 {offsets = [0, 7], sizes = [8, 16], strides = [1, 1]} : vector<8x54xf32> to vector<8x16xf32>
    %646 = vector.extract_strided_slice %630 {offsets = [0, 8], sizes = [8, 16], strides = [1, 1]} : vector<8x54xf32> to vector<8x16xf32>
    %647 = vector.extract_strided_slice %630 {offsets = [0, 9], sizes = [8, 16], strides = [1, 1]} : vector<8x54xf32> to vector<8x16xf32>
    %648 = vector.extract_strided_slice %630 {offsets = [0, 10], sizes = [8, 16], strides = [1, 1]} : vector<8x54xf32> to vector<8x16xf32>
    %649 = vector.extract_strided_slice %630 {offsets = [0, 11], sizes = [8, 16], strides = [1, 1]} : vector<8x54xf32> to vector<8x16xf32>
    %650 = vector.extract_strided_slice %630 {offsets = [0, 12], sizes = [8, 16], strides = [1, 1]} : vector<8x54xf32> to vector<8x16xf32>
    %651 = vector.extract_strided_slice %630 {offsets = [0, 13], sizes = [8, 16], strides = [1, 1]} : vector<8x54xf32> to vector<8x16xf32>
    %652 = vector.extract_strided_slice %630 {offsets = [0, 14], sizes = [8, 16], strides = [1, 1]} : vector<8x54xf32> to vector<8x16xf32>
    %653 = vector.extract_strided_slice %630 {offsets = [0, 15], sizes = [8, 16], strides = [1, 1]} : vector<8x54xf32> to vector<8x16xf32>
    %654 = vector.extract_strided_slice %630 {offsets = [0, 16], sizes = [8, 16], strides = [1, 1]} : vector<8x54xf32> to vector<8x16xf32>
    %655 = vector.extract_strided_slice %630 {offsets = [0, 17], sizes = [8, 16], strides = [1, 1]} : vector<8x54xf32> to vector<8x16xf32>
    %656 = vector.extract_strided_slice %630 {offsets = [0, 18], sizes = [8, 16], strides = [1, 1]} : vector<8x54xf32> to vector<8x16xf32>
    %657 = vector.extract_strided_slice %630 {offsets = [0, 19], sizes = [8, 16], strides = [1, 1]} : vector<8x54xf32> to vector<8x16xf32>
    %658 = vector.extract_strided_slice %630 {offsets = [0, 20], sizes = [8, 16], strides = [1, 1]} : vector<8x54xf32> to vector<8x16xf32>
    %659 = vector.extract_strided_slice %630 {offsets = [0, 21], sizes = [8, 16], strides = [1, 1]} : vector<8x54xf32> to vector<8x16xf32>
    %660 = vector.extract_strided_slice %630 {offsets = [0, 22], sizes = [8, 16], strides = [1, 1]} : vector<8x54xf32> to vector<8x16xf32>
    %661 = vector.extract_strided_slice %630 {offsets = [0, 23], sizes = [8, 16], strides = [1, 1]} : vector<8x54xf32> to vector<8x16xf32>
    %662 = vector.extract_strided_slice %630 {offsets = [0, 24], sizes = [8, 16], strides = [1, 1]} : vector<8x54xf32> to vector<8x16xf32>
    %663 = vector.extract_strided_slice %630 {offsets = [0, 25], sizes = [8, 16], strides = [1, 1]} : vector<8x54xf32> to vector<8x16xf32>
    %664 = vector.extract_strided_slice %630 {offsets = [0, 26], sizes = [8, 16], strides = [1, 1]} : vector<8x54xf32> to vector<8x16xf32>
    %665 = vector.extract_strided_slice %630 {offsets = [0, 27], sizes = [8, 16], strides = [1, 1]} : vector<8x54xf32> to vector<8x16xf32>
    %666 = vector.extract_strided_slice %630 {offsets = [0, 28], sizes = [8, 16], strides = [1, 1]} : vector<8x54xf32> to vector<8x16xf32>
    %667 = vector.extract_strided_slice %630 {offsets = [0, 29], sizes = [8, 16], strides = [1, 1]} : vector<8x54xf32> to vector<8x16xf32>
    %668 = vector.extract_strided_slice %630 {offsets = [0, 30], sizes = [8, 16], strides = [1, 1]} : vector<8x54xf32> to vector<8x16xf32>
    %669 = vector.extract_strided_slice %630 {offsets = [0, 31], sizes = [8, 16], strides = [1, 1]} : vector<8x54xf32> to vector<8x16xf32>
    %670 = vector.extract_strided_slice %630 {offsets = [0, 32], sizes = [8, 16], strides = [1, 1]} : vector<8x54xf32> to vector<8x16xf32>
    %671 = vector.extract_strided_slice %630 {offsets = [0, 33], sizes = [8, 16], strides = [1, 1]} : vector<8x54xf32> to vector<8x16xf32>
    %672 = vector.extract_strided_slice %630 {offsets = [0, 34], sizes = [8, 16], strides = [1, 1]} : vector<8x54xf32> to vector<8x16xf32>
    %673 = vector.extract_strided_slice %630 {offsets = [0, 35], sizes = [8, 16], strides = [1, 1]} : vector<8x54xf32> to vector<8x16xf32>
    %674 = vector.extract_strided_slice %630 {offsets = [0, 36], sizes = [8, 16], strides = [1, 1]} : vector<8x54xf32> to vector<8x16xf32>
    %675 = vector.extract_strided_slice %630 {offsets = [0, 37], sizes = [8, 16], strides = [1, 1]} : vector<8x54xf32> to vector<8x16xf32>
    %676 = vector.extract_strided_slice %630 {offsets = [0, 38], sizes = [8, 16], strides = [1, 1]} : vector<8x54xf32> to vector<8x16xf32>
    %677 = tpu.concatenate %638, %639, %640, %641, %642, %643, %644, %645, %646, %647, %648, %649, %650, %651, %652, %653 in 0 : vector<8x16xf32>, vector<8x16xf32>, vector<8x16xf32>, vector<8x16xf32>, vector<8x16xf32>, vector<8x16xf32>, vector<8x16xf32>, vector<8x16xf32>, vector<8x16xf32>, vector<8x16xf32>, vector<8x16xf32>, vector<8x16xf32>, vector<8x16xf32>, vector<8x16xf32>, vector<8x16xf32>, vector<8x16xf32> -> vector<128x16xf32>
    %678 = tpu.concatenate %654, %655, %656, %657, %658, %659, %660, %661, %662, %663, %664, %665, %666, %667, %668, %669 in 0 : vector<8x16xf32>, vector<8x16xf32>, vector<8x16xf32>, vector<8x16xf32>, vector<8x16xf32>, vector<8x16xf32>, vector<8x16xf32>, vector<8x16xf32>, vector<8x16xf32>, vector<8x16xf32>, vector<8x16xf32>, vector<8x16xf32>, vector<8x16xf32>, vector<8x16xf32>, vector<8x16xf32>, vector<8x16xf32> -> vector<128x16xf32>
    %679 = tpu.concatenate %670, %671, %672, %673, %674, %675, %676, %637 in 0 : vector<8x16xf32>, vector<8x16xf32>, vector<8x16xf32>, vector<8x16xf32>, vector<8x16xf32>, vector<8x16xf32>, vector<8x16xf32>, vector<32x16xf32> -> vector<88x16xf32>
    %680 = tpu.concatenate %677, %678, %679 in 0 : vector<128x16xf32>, vector<128x16xf32>, vector<88x16xf32> -> vector<344x16xf32>
    %681 = tpu.concatenate %628, %680 in 1 : vector<344x16xf32>, vector<344x16xf32> -> vector<344x32xf32>
    %c0_90 = arith.constant 0 : index
    %c0_91 = arith.constant 0 : index
    %682 = vector.load %arg20[%c0_90, %c0_91] : memref<32x344xf32, #tpu.memory_space<vmem>>, vector<32x344xf32>
    %cst_92 = arith.constant dense<0.000000e+00> : vector<32x32xf32>
    %683 = tpu.matmul %682, %681, %cst_92 {dimension_numbers = #tpu.dot_dimension_numbers<[1], [0], [0], [1], [0, 0, 1, 1], [], []>} : vector<32x344xf32>, vector<344x32xf32>, vector<32x32xf32> -> vector<32x32xf32>
    %cst_93 = arith.constant dense<0.000000e+00> : vector<32xf32>
    %684 = vector.multi_reduction <add>, %683, %cst_93 [1] : vector<32x32xf32> to vector<32xf32>
    %685 = vector.shape_cast %684 : vector<32xf32> to vector<32x1xf32>
    %cst_94 = arith.constant 3.125000e-02 : f32
    %686 = vector.broadcast %cst_94 : f32 to vector<32x1xf32>
    %687 = arith.mulf %685, %686 : vector<32x1xf32>
    %688 = arith.mulf %683, %683 : vector<32x32xf32>
    %cst_95 = arith.constant dense<0.000000e+00> : vector<32xf32>
    %689 = vector.multi_reduction <add>, %688, %cst_95 [1] : vector<32x32xf32> to vector<32xf32>
    %690 = vector.shape_cast %689 : vector<32xf32> to vector<32x1xf32>
    %cst_96 = arith.constant 3.125000e-02 : f32
    %691 = vector.broadcast %cst_96 : f32 to vector<32x1xf32>
    %692 = arith.mulf %690, %691 : vector<32x1xf32>
    %693 = arith.mulf %687, %687 : vector<32x1xf32>
    %694 = arith.subf %692, %693 : vector<32x1xf32>
    %695 = vector.broadcast %687 : vector<32x1xf32> to vector<32x32xf32>
    %696 = arith.subf %683, %695 : vector<32x32xf32>
    %c0_97 = arith.constant 0 : index
    %c0_98 = arith.constant 0 : index
    %697 = vector.load %arg18[%c0_97, %c0_98] : memref<32x1xf32, #tpu.memory_space<vmem>>, vector<32x1xf32>
    %cst_99 = arith.constant 9.99999974E-6 : f32
    %698 = vector.broadcast %cst_99 : f32 to vector<32x1xf32>
    %699 = arith.addf %694, %698 : vector<32x1xf32>
    %700 = math.rsqrt %699 : vector<32x1xf32>
    %701 = arith.mulf %697, %700 : vector<32x1xf32>
    %702 = vector.broadcast %701 : vector<32x1xf32> to vector<32x32xf32>
    %703 = arith.mulf %696, %702 : vector<32x32xf32>
    %c0_100 = arith.constant 0 : index
    %c0_101 = arith.constant 0 : index
    %704 = vector.load %arg17[%c0_100, %c0_101] : memref<32x1xf32, #tpu.memory_space<vmem>>, vector<32x1xf32>
    %705 = vector.broadcast %704 : vector<32x1xf32> to vector<32x32xf32>
    %706 = arith.addf %703, %705 : vector<32x32xf32>
    %cst_102 = arith.constant 0.000000e+00 : f32
    %707 = vector.broadcast %cst_102 : f32 to vector<32x32xf32>
    %708 = arith.maximumf %706, %707 : vector<32x32xf32>
    %c0_103 = arith.constant 0 : index
    %c0_104 = arith.constant 0 : index
    %709 = vector.load %arg23[%c0_103, %c0_104] : memref<8x32xf32, #tpu.memory_space<vmem>>, vector<8x32xf32>
    %cst_105 = arith.constant dense<0.000000e+00> : vector<8x32xf32>
    %710 = tpu.matmul %709, %708, %cst_105 {dimension_numbers = #tpu.dot_dimension_numbers<[1], [0], [0], [1], [0, 0, 1, 1], [], []>} : vector<8x32xf32>, vector<32x32xf32>, vector<8x32xf32> -> vector<8x32xf32>
    %cst_106 = arith.constant 0.000000e+00 : f32
    %711 = vector.broadcast %cst_106 : f32 to vector<8x19xf32>
    %cst_107 = arith.constant 0xFF800000 : f32
    %712 = vector.broadcast %cst_107 : f32 to vector<32x1xf32>
    %713 = vector.extract_strided_slice %710 {offsets = [0, 0], sizes = [8, 16], strides = [1, 1]} : vector<8x32xf32> to vector<8x16xf32>
    %714 = tpu.concatenate %711, %713, %711 in 1 : vector<8x19xf32>, vector<8x16xf32>, vector<8x19xf32> -> vector<8x54xf32>
    %715 = vector.extract_strided_slice %708 {offsets = [0, 0], sizes = [32, 16], strides = [1, 1]} : vector<32x32xf32> to vector<32x16xf32>
    %716 = tpu.concatenate %712, %715, %712 in 1 : vector<32x1xf32>, vector<32x16xf32>, vector<32x1xf32> -> vector<32x18xf32>
    %717 = vector.extract_strided_slice %716 {offsets = [0, 0], sizes = [32, 16], strides = [1, 1]} : vector<32x18xf32> to vector<32x16xf32>
    %718 = vector.extract_strided_slice %716 {offsets = [0, 1], sizes = [32, 16], strides = [1, 1]} : vector<32x18xf32> to vector<32x16xf32>
    %719 = arith.maximumf %717, %718 : vector<32x16xf32>
    %720 = vector.extract_strided_slice %716 {offsets = [0, 2], sizes = [32, 16], strides = [1, 1]} : vector<32x18xf32> to vector<32x16xf32>
    %721 = arith.maximumf %719, %720 : vector<32x16xf32>
    %722 = vector.extract_strided_slice %714 {offsets = [0, 0], sizes = [8, 16], strides = [1, 1]} : vector<8x54xf32> to vector<8x16xf32>
    %723 = vector.extract_strided_slice %714 {offsets = [0, 1], sizes = [8, 16], strides = [1, 1]} : vector<8x54xf32> to vector<8x16xf32>
    %724 = vector.extract_strided_slice %714 {offsets = [0, 2], sizes = [8, 16], strides = [1, 1]} : vector<8x54xf32> to vector<8x16xf32>
    %725 = vector.extract_strided_slice %714 {offsets = [0, 3], sizes = [8, 16], strides = [1, 1]} : vector<8x54xf32> to vector<8x16xf32>
    %726 = vector.extract_strided_slice %714 {offsets = [0, 4], sizes = [8, 16], strides = [1, 1]} : vector<8x54xf32> to vector<8x16xf32>
    %727 = vector.extract_strided_slice %714 {offsets = [0, 5], sizes = [8, 16], strides = [1, 1]} : vector<8x54xf32> to vector<8x16xf32>
    %728 = vector.extract_strided_slice %714 {offsets = [0, 6], sizes = [8, 16], strides = [1, 1]} : vector<8x54xf32> to vector<8x16xf32>
    %729 = vector.extract_strided_slice %714 {offsets = [0, 7], sizes = [8, 16], strides = [1, 1]} : vector<8x54xf32> to vector<8x16xf32>
    %730 = vector.extract_strided_slice %714 {offsets = [0, 8], sizes = [8, 16], strides = [1, 1]} : vector<8x54xf32> to vector<8x16xf32>
    %731 = vector.extract_strided_slice %714 {offsets = [0, 9], sizes = [8, 16], strides = [1, 1]} : vector<8x54xf32> to vector<8x16xf32>
    %732 = vector.extract_strided_slice %714 {offsets = [0, 10], sizes = [8, 16], strides = [1, 1]} : vector<8x54xf32> to vector<8x16xf32>
    %733 = vector.extract_strided_slice %714 {offsets = [0, 11], sizes = [8, 16], strides = [1, 1]} : vector<8x54xf32> to vector<8x16xf32>
    %734 = vector.extract_strided_slice %714 {offsets = [0, 12], sizes = [8, 16], strides = [1, 1]} : vector<8x54xf32> to vector<8x16xf32>
    %735 = vector.extract_strided_slice %714 {offsets = [0, 13], sizes = [8, 16], strides = [1, 1]} : vector<8x54xf32> to vector<8x16xf32>
    %736 = vector.extract_strided_slice %714 {offsets = [0, 14], sizes = [8, 16], strides = [1, 1]} : vector<8x54xf32> to vector<8x16xf32>
    %737 = vector.extract_strided_slice %714 {offsets = [0, 15], sizes = [8, 16], strides = [1, 1]} : vector<8x54xf32> to vector<8x16xf32>
    %738 = vector.extract_strided_slice %714 {offsets = [0, 16], sizes = [8, 16], strides = [1, 1]} : vector<8x54xf32> to vector<8x16xf32>
    %739 = vector.extract_strided_slice %714 {offsets = [0, 17], sizes = [8, 16], strides = [1, 1]} : vector<8x54xf32> to vector<8x16xf32>
    %740 = vector.extract_strided_slice %714 {offsets = [0, 18], sizes = [8, 16], strides = [1, 1]} : vector<8x54xf32> to vector<8x16xf32>
    %741 = vector.extract_strided_slice %714 {offsets = [0, 19], sizes = [8, 16], strides = [1, 1]} : vector<8x54xf32> to vector<8x16xf32>
    %742 = vector.extract_strided_slice %714 {offsets = [0, 20], sizes = [8, 16], strides = [1, 1]} : vector<8x54xf32> to vector<8x16xf32>
    %743 = vector.extract_strided_slice %714 {offsets = [0, 21], sizes = [8, 16], strides = [1, 1]} : vector<8x54xf32> to vector<8x16xf32>
    %744 = vector.extract_strided_slice %714 {offsets = [0, 22], sizes = [8, 16], strides = [1, 1]} : vector<8x54xf32> to vector<8x16xf32>
    %745 = vector.extract_strided_slice %714 {offsets = [0, 23], sizes = [8, 16], strides = [1, 1]} : vector<8x54xf32> to vector<8x16xf32>
    %746 = vector.extract_strided_slice %714 {offsets = [0, 24], sizes = [8, 16], strides = [1, 1]} : vector<8x54xf32> to vector<8x16xf32>
    %747 = vector.extract_strided_slice %714 {offsets = [0, 25], sizes = [8, 16], strides = [1, 1]} : vector<8x54xf32> to vector<8x16xf32>
    %748 = vector.extract_strided_slice %714 {offsets = [0, 26], sizes = [8, 16], strides = [1, 1]} : vector<8x54xf32> to vector<8x16xf32>
    %749 = vector.extract_strided_slice %714 {offsets = [0, 27], sizes = [8, 16], strides = [1, 1]} : vector<8x54xf32> to vector<8x16xf32>
    %750 = vector.extract_strided_slice %714 {offsets = [0, 28], sizes = [8, 16], strides = [1, 1]} : vector<8x54xf32> to vector<8x16xf32>
    %751 = vector.extract_strided_slice %714 {offsets = [0, 29], sizes = [8, 16], strides = [1, 1]} : vector<8x54xf32> to vector<8x16xf32>
    %752 = vector.extract_strided_slice %714 {offsets = [0, 30], sizes = [8, 16], strides = [1, 1]} : vector<8x54xf32> to vector<8x16xf32>
    %753 = vector.extract_strided_slice %714 {offsets = [0, 31], sizes = [8, 16], strides = [1, 1]} : vector<8x54xf32> to vector<8x16xf32>
    %754 = vector.extract_strided_slice %714 {offsets = [0, 32], sizes = [8, 16], strides = [1, 1]} : vector<8x54xf32> to vector<8x16xf32>
    %755 = vector.extract_strided_slice %714 {offsets = [0, 33], sizes = [8, 16], strides = [1, 1]} : vector<8x54xf32> to vector<8x16xf32>
    %756 = vector.extract_strided_slice %714 {offsets = [0, 34], sizes = [8, 16], strides = [1, 1]} : vector<8x54xf32> to vector<8x16xf32>
    %757 = vector.extract_strided_slice %714 {offsets = [0, 35], sizes = [8, 16], strides = [1, 1]} : vector<8x54xf32> to vector<8x16xf32>
    %758 = vector.extract_strided_slice %714 {offsets = [0, 36], sizes = [8, 16], strides = [1, 1]} : vector<8x54xf32> to vector<8x16xf32>
    %759 = vector.extract_strided_slice %714 {offsets = [0, 37], sizes = [8, 16], strides = [1, 1]} : vector<8x54xf32> to vector<8x16xf32>
    %760 = vector.extract_strided_slice %714 {offsets = [0, 38], sizes = [8, 16], strides = [1, 1]} : vector<8x54xf32> to vector<8x16xf32>
    %761 = tpu.concatenate %722, %723, %724, %725, %726, %727, %728, %729, %730, %731, %732, %733, %734, %735, %736, %737 in 0 : vector<8x16xf32>, vector<8x16xf32>, vector<8x16xf32>, vector<8x16xf32>, vector<8x16xf32>, vector<8x16xf32>, vector<8x16xf32>, vector<8x16xf32>, vector<8x16xf32>, vector<8x16xf32>, vector<8x16xf32>, vector<8x16xf32>, vector<8x16xf32>, vector<8x16xf32>, vector<8x16xf32>, vector<8x16xf32> -> vector<128x16xf32>
    %762 = tpu.concatenate %738, %739, %740, %741, %742, %743, %744, %745, %746, %747, %748, %749, %750, %751, %752, %753 in 0 : vector<8x16xf32>, vector<8x16xf32>, vector<8x16xf32>, vector<8x16xf32>, vector<8x16xf32>, vector<8x16xf32>, vector<8x16xf32>, vector<8x16xf32>, vector<8x16xf32>, vector<8x16xf32>, vector<8x16xf32>, vector<8x16xf32>, vector<8x16xf32>, vector<8x16xf32>, vector<8x16xf32>, vector<8x16xf32> -> vector<128x16xf32>
    %763 = tpu.concatenate %754, %755, %756, %757, %758, %759, %760, %721 in 0 : vector<8x16xf32>, vector<8x16xf32>, vector<8x16xf32>, vector<8x16xf32>, vector<8x16xf32>, vector<8x16xf32>, vector<8x16xf32>, vector<32x16xf32> -> vector<88x16xf32>
    %764 = tpu.concatenate %761, %762, %763 in 0 : vector<128x16xf32>, vector<128x16xf32>, vector<88x16xf32> -> vector<344x16xf32>
    %765 = vector.extract_strided_slice %710 {offsets = [0, 16], sizes = [8, 16], strides = [1, 1]} : vector<8x32xf32> to vector<8x16xf32>
    %766 = tpu.concatenate %711, %765, %711 in 1 : vector<8x19xf32>, vector<8x16xf32>, vector<8x19xf32> -> vector<8x54xf32>
    %767 = vector.extract_strided_slice %708 {offsets = [0, 16], sizes = [32, 16], strides = [1, 1]} : vector<32x32xf32> to vector<32x16xf32>
    %768 = tpu.concatenate %712, %767, %712 in 1 : vector<32x1xf32>, vector<32x16xf32>, vector<32x1xf32> -> vector<32x18xf32>
    %769 = vector.extract_strided_slice %768 {offsets = [0, 0], sizes = [32, 16], strides = [1, 1]} : vector<32x18xf32> to vector<32x16xf32>
    %770 = vector.extract_strided_slice %768 {offsets = [0, 1], sizes = [32, 16], strides = [1, 1]} : vector<32x18xf32> to vector<32x16xf32>
    %771 = arith.maximumf %769, %770 : vector<32x16xf32>
    %772 = vector.extract_strided_slice %768 {offsets = [0, 2], sizes = [32, 16], strides = [1, 1]} : vector<32x18xf32> to vector<32x16xf32>
    %773 = arith.maximumf %771, %772 : vector<32x16xf32>
    %774 = vector.extract_strided_slice %766 {offsets = [0, 0], sizes = [8, 16], strides = [1, 1]} : vector<8x54xf32> to vector<8x16xf32>
    %775 = vector.extract_strided_slice %766 {offsets = [0, 1], sizes = [8, 16], strides = [1, 1]} : vector<8x54xf32> to vector<8x16xf32>
    %776 = vector.extract_strided_slice %766 {offsets = [0, 2], sizes = [8, 16], strides = [1, 1]} : vector<8x54xf32> to vector<8x16xf32>
    %777 = vector.extract_strided_slice %766 {offsets = [0, 3], sizes = [8, 16], strides = [1, 1]} : vector<8x54xf32> to vector<8x16xf32>
    %778 = vector.extract_strided_slice %766 {offsets = [0, 4], sizes = [8, 16], strides = [1, 1]} : vector<8x54xf32> to vector<8x16xf32>
    %779 = vector.extract_strided_slice %766 {offsets = [0, 5], sizes = [8, 16], strides = [1, 1]} : vector<8x54xf32> to vector<8x16xf32>
    %780 = vector.extract_strided_slice %766 {offsets = [0, 6], sizes = [8, 16], strides = [1, 1]} : vector<8x54xf32> to vector<8x16xf32>
    %781 = vector.extract_strided_slice %766 {offsets = [0, 7], sizes = [8, 16], strides = [1, 1]} : vector<8x54xf32> to vector<8x16xf32>
    %782 = vector.extract_strided_slice %766 {offsets = [0, 8], sizes = [8, 16], strides = [1, 1]} : vector<8x54xf32> to vector<8x16xf32>
    %783 = vector.extract_strided_slice %766 {offsets = [0, 9], sizes = [8, 16], strides = [1, 1]} : vector<8x54xf32> to vector<8x16xf32>
    %784 = vector.extract_strided_slice %766 {offsets = [0, 10], sizes = [8, 16], strides = [1, 1]} : vector<8x54xf32> to vector<8x16xf32>
    %785 = vector.extract_strided_slice %766 {offsets = [0, 11], sizes = [8, 16], strides = [1, 1]} : vector<8x54xf32> to vector<8x16xf32>
    %786 = vector.extract_strided_slice %766 {offsets = [0, 12], sizes = [8, 16], strides = [1, 1]} : vector<8x54xf32> to vector<8x16xf32>
    %787 = vector.extract_strided_slice %766 {offsets = [0, 13], sizes = [8, 16], strides = [1, 1]} : vector<8x54xf32> to vector<8x16xf32>
    %788 = vector.extract_strided_slice %766 {offsets = [0, 14], sizes = [8, 16], strides = [1, 1]} : vector<8x54xf32> to vector<8x16xf32>
    %789 = vector.extract_strided_slice %766 {offsets = [0, 15], sizes = [8, 16], strides = [1, 1]} : vector<8x54xf32> to vector<8x16xf32>
    %790 = vector.extract_strided_slice %766 {offsets = [0, 16], sizes = [8, 16], strides = [1, 1]} : vector<8x54xf32> to vector<8x16xf32>
    %791 = vector.extract_strided_slice %766 {offsets = [0, 17], sizes = [8, 16], strides = [1, 1]} : vector<8x54xf32> to vector<8x16xf32>
    %792 = vector.extract_strided_slice %766 {offsets = [0, 18], sizes = [8, 16], strides = [1, 1]} : vector<8x54xf32> to vector<8x16xf32>
    %793 = vector.extract_strided_slice %766 {offsets = [0, 19], sizes = [8, 16], strides = [1, 1]} : vector<8x54xf32> to vector<8x16xf32>
    %794 = vector.extract_strided_slice %766 {offsets = [0, 20], sizes = [8, 16], strides = [1, 1]} : vector<8x54xf32> to vector<8x16xf32>
    %795 = vector.extract_strided_slice %766 {offsets = [0, 21], sizes = [8, 16], strides = [1, 1]} : vector<8x54xf32> to vector<8x16xf32>
    %796 = vector.extract_strided_slice %766 {offsets = [0, 22], sizes = [8, 16], strides = [1, 1]} : vector<8x54xf32> to vector<8x16xf32>
    %797 = vector.extract_strided_slice %766 {offsets = [0, 23], sizes = [8, 16], strides = [1, 1]} : vector<8x54xf32> to vector<8x16xf32>
    %798 = vector.extract_strided_slice %766 {offsets = [0, 24], sizes = [8, 16], strides = [1, 1]} : vector<8x54xf32> to vector<8x16xf32>
    %799 = vector.extract_strided_slice %766 {offsets = [0, 25], sizes = [8, 16], strides = [1, 1]} : vector<8x54xf32> to vector<8x16xf32>
    %800 = vector.extract_strided_slice %766 {offsets = [0, 26], sizes = [8, 16], strides = [1, 1]} : vector<8x54xf32> to vector<8x16xf32>
    %801 = vector.extract_strided_slice %766 {offsets = [0, 27], sizes = [8, 16], strides = [1, 1]} : vector<8x54xf32> to vector<8x16xf32>
    %802 = vector.extract_strided_slice %766 {offsets = [0, 28], sizes = [8, 16], strides = [1, 1]} : vector<8x54xf32> to vector<8x16xf32>
    %803 = vector.extract_strided_slice %766 {offsets = [0, 29], sizes = [8, 16], strides = [1, 1]} : vector<8x54xf32> to vector<8x16xf32>
    %804 = vector.extract_strided_slice %766 {offsets = [0, 30], sizes = [8, 16], strides = [1, 1]} : vector<8x54xf32> to vector<8x16xf32>
    %805 = vector.extract_strided_slice %766 {offsets = [0, 31], sizes = [8, 16], strides = [1, 1]} : vector<8x54xf32> to vector<8x16xf32>
    %806 = vector.extract_strided_slice %766 {offsets = [0, 32], sizes = [8, 16], strides = [1, 1]} : vector<8x54xf32> to vector<8x16xf32>
    %807 = vector.extract_strided_slice %766 {offsets = [0, 33], sizes = [8, 16], strides = [1, 1]} : vector<8x54xf32> to vector<8x16xf32>
    %808 = vector.extract_strided_slice %766 {offsets = [0, 34], sizes = [8, 16], strides = [1, 1]} : vector<8x54xf32> to vector<8x16xf32>
    %809 = vector.extract_strided_slice %766 {offsets = [0, 35], sizes = [8, 16], strides = [1, 1]} : vector<8x54xf32> to vector<8x16xf32>
    %810 = vector.extract_strided_slice %766 {offsets = [0, 36], sizes = [8, 16], strides = [1, 1]} : vector<8x54xf32> to vector<8x16xf32>
    %811 = vector.extract_strided_slice %766 {offsets = [0, 37], sizes = [8, 16], strides = [1, 1]} : vector<8x54xf32> to vector<8x16xf32>
    %812 = vector.extract_strided_slice %766 {offsets = [0, 38], sizes = [8, 16], strides = [1, 1]} : vector<8x54xf32> to vector<8x16xf32>
    %813 = tpu.concatenate %774, %775, %776, %777, %778, %779, %780, %781, %782, %783, %784, %785, %786, %787, %788, %789 in 0 : vector<8x16xf32>, vector<8x16xf32>, vector<8x16xf32>, vector<8x16xf32>, vector<8x16xf32>, vector<8x16xf32>, vector<8x16xf32>, vector<8x16xf32>, vector<8x16xf32>, vector<8x16xf32>, vector<8x16xf32>, vector<8x16xf32>, vector<8x16xf32>, vector<8x16xf32>, vector<8x16xf32>, vector<8x16xf32> -> vector<128x16xf32>
    %814 = tpu.concatenate %790, %791, %792, %793, %794, %795, %796, %797, %798, %799, %800, %801, %802, %803, %804, %805 in 0 : vector<8x16xf32>, vector<8x16xf32>, vector<8x16xf32>, vector<8x16xf32>, vector<8x16xf32>, vector<8x16xf32>, vector<8x16xf32>, vector<8x16xf32>, vector<8x16xf32>, vector<8x16xf32>, vector<8x16xf32>, vector<8x16xf32>, vector<8x16xf32>, vector<8x16xf32>, vector<8x16xf32>, vector<8x16xf32> -> vector<128x16xf32>
    %815 = tpu.concatenate %806, %807, %808, %809, %810, %811, %812, %773 in 0 : vector<8x16xf32>, vector<8x16xf32>, vector<8x16xf32>, vector<8x16xf32>, vector<8x16xf32>, vector<8x16xf32>, vector<8x16xf32>, vector<32x16xf32> -> vector<88x16xf32>
    %816 = tpu.concatenate %813, %814, %815 in 0 : vector<128x16xf32>, vector<128x16xf32>, vector<88x16xf32> -> vector<344x16xf32>
    %817 = tpu.concatenate %764, %816 in 1 : vector<344x16xf32>, vector<344x16xf32> -> vector<344x32xf32>
    %c0_108 = arith.constant 0 : index
    %c0_109 = arith.constant 0 : index
    %818 = vector.load %arg24[%c0_108, %c0_109] : memref<32x344xf32, #tpu.memory_space<vmem>>, vector<32x344xf32>
    %cst_110 = arith.constant dense<0.000000e+00> : vector<32x32xf32>
    %819 = tpu.matmul %818, %817, %cst_110 {dimension_numbers = #tpu.dot_dimension_numbers<[1], [0], [0], [1], [0, 0, 1, 1], [], []>} : vector<32x344xf32>, vector<344x32xf32>, vector<32x32xf32> -> vector<32x32xf32>
    %cst_111 = arith.constant dense<0.000000e+00> : vector<32xf32>
    %820 = vector.multi_reduction <add>, %819, %cst_111 [1] : vector<32x32xf32> to vector<32xf32>
    %821 = vector.shape_cast %820 : vector<32xf32> to vector<32x1xf32>
    %cst_112 = arith.constant 3.125000e-02 : f32
    %822 = vector.broadcast %cst_112 : f32 to vector<32x1xf32>
    %823 = arith.mulf %821, %822 : vector<32x1xf32>
    %824 = arith.mulf %819, %819 : vector<32x32xf32>
    %cst_113 = arith.constant dense<0.000000e+00> : vector<32xf32>
    %825 = vector.multi_reduction <add>, %824, %cst_113 [1] : vector<32x32xf32> to vector<32xf32>
    %826 = vector.shape_cast %825 : vector<32xf32> to vector<32x1xf32>
    %cst_114 = arith.constant 3.125000e-02 : f32
    %827 = vector.broadcast %cst_114 : f32 to vector<32x1xf32>
    %828 = arith.mulf %826, %827 : vector<32x1xf32>
    %829 = arith.mulf %823, %823 : vector<32x1xf32>
    %830 = arith.subf %828, %829 : vector<32x1xf32>
    %831 = vector.broadcast %823 : vector<32x1xf32> to vector<32x32xf32>
    %832 = arith.subf %819, %831 : vector<32x32xf32>
    %c0_115 = arith.constant 0 : index
    %c0_116 = arith.constant 0 : index
    %833 = vector.load %arg22[%c0_115, %c0_116] : memref<32x1xf32, #tpu.memory_space<vmem>>, vector<32x1xf32>
    %cst_117 = arith.constant 9.99999974E-6 : f32
    %834 = vector.broadcast %cst_117 : f32 to vector<32x1xf32>
    %835 = arith.addf %830, %834 : vector<32x1xf32>
    %836 = math.rsqrt %835 : vector<32x1xf32>
    %837 = arith.mulf %833, %836 : vector<32x1xf32>
    %838 = vector.broadcast %837 : vector<32x1xf32> to vector<32x32xf32>
    %839 = arith.mulf %832, %838 : vector<32x32xf32>
    %c0_118 = arith.constant 0 : index
    %c0_119 = arith.constant 0 : index
    %840 = vector.load %arg21[%c0_118, %c0_119] : memref<32x1xf32, #tpu.memory_space<vmem>>, vector<32x1xf32>
    %841 = vector.broadcast %840 : vector<32x1xf32> to vector<32x32xf32>
    %842 = arith.addf %839, %841 : vector<32x32xf32>
    %cst_120 = arith.constant 0.000000e+00 : f32
    %843 = vector.broadcast %cst_120 : f32 to vector<32x32xf32>
    %844 = arith.maximumf %842, %843 : vector<32x32xf32>
    %cst_121 = arith.constant dense<0.000000e+00> : vector<32xf32>
    %845 = vector.multi_reduction <add>, %436, %cst_121 [1] : vector<32x32xf32> to vector<32xf32>
    %846 = vector.shape_cast %845 : vector<32xf32> to vector<32x1xf32>
    %cst_122 = arith.constant 3.125000e-02 : f32
    %847 = vector.broadcast %cst_122 : f32 to vector<32x1xf32>
    %848 = arith.mulf %846, %847 : vector<32x1xf32>
    %849 = arith.mulf %436, %436 : vector<32x32xf32>
    %cst_123 = arith.constant dense<0.000000e+00> : vector<32xf32>
    %850 = vector.multi_reduction <add>, %849, %cst_123 [1] : vector<32x32xf32> to vector<32xf32>
    %851 = vector.shape_cast %850 : vector<32xf32> to vector<32x1xf32>
    %cst_124 = arith.constant 3.125000e-02 : f32
    %852 = vector.broadcast %cst_124 : f32 to vector<32x1xf32>
    %853 = arith.mulf %851, %852 : vector<32x1xf32>
    %854 = arith.mulf %848, %848 : vector<32x1xf32>
    %855 = arith.subf %853, %854 : vector<32x1xf32>
    %856 = vector.broadcast %848 : vector<32x1xf32> to vector<32x32xf32>
    %857 = arith.subf %436, %856 : vector<32x32xf32>
    %c0_125 = arith.constant 0 : index
    %c0_126 = arith.constant 0 : index
    %858 = vector.load %arg34[%c0_125, %c0_126] : memref<32x1xf32, #tpu.memory_space<vmem>>, vector<32x1xf32>
    %cst_127 = arith.constant 9.99999974E-6 : f32
    %859 = vector.broadcast %cst_127 : f32 to vector<32x1xf32>
    %860 = arith.addf %855, %859 : vector<32x1xf32>
    %861 = math.rsqrt %860 : vector<32x1xf32>
    %862 = arith.mulf %858, %861 : vector<32x1xf32>
    %863 = vector.broadcast %862 : vector<32x1xf32> to vector<32x32xf32>
    %864 = arith.mulf %857, %863 : vector<32x32xf32>
    %c0_128 = arith.constant 0 : index
    %c0_129 = arith.constant 0 : index
    %865 = vector.load %arg33[%c0_128, %c0_129] : memref<32x1xf32, #tpu.memory_space<vmem>>, vector<32x1xf32>
    %866 = vector.broadcast %865 : vector<32x1xf32> to vector<32x32xf32>
    %867 = arith.addf %864, %866 : vector<32x32xf32>
    %868 = arith.addf %844, %867 : vector<32x32xf32>
    %cst_130 = arith.constant 0.000000e+00 : f32
    %869 = vector.broadcast %cst_130 : f32 to vector<32x32xf32>
    %870 = arith.maximumf %868, %869 : vector<32x32xf32>
    %c0_131 = arith.constant 0 : index
    %c0_132 = arith.constant 0 : index
    %871 = vector.load %arg29[%c0_131, %c0_132] : memref<32x32xf32, #tpu.memory_space<vmem>>, vector<32x32xf32>
    %cst_133 = arith.constant dense<0.000000e+00> : vector<32x32xf32>
    %872 = tpu.matmul %870, %871, %cst_133 {dimension_numbers = #tpu.dot_dimension_numbers<[1], [0], [0], [1], [0, 0, 1, 1], [], []>} : vector<32x32xf32>, vector<32x32xf32>, vector<32x32xf32> -> vector<32x32xf32>
    %c0_134 = arith.constant 0 : index
    %c0_135 = arith.constant 0 : index
    %873 = vector.load %arg28[%c0_134, %c0_135] : memref<32x32xf32, #tpu.memory_space<vmem>>, vector<32x32xf32>
    %c0_136 = arith.constant 0 : index
    %c0_137 = arith.constant 0 : index
    %874 = vector.load %arg26[%c0_136, %c0_137] : memref<1x32xf32, #tpu.memory_space<vmem>>, vector<1x32xf32>
    %cst_138 = arith.constant 0.000000e+00 : f32
    %875 = vector.broadcast %cst_138 : f32 to vector<1x32xf32>
    %876 = vector.extract_strided_slice %872 {offsets = [0, 0], sizes = [1, 32], strides = [1, 1]} : vector<32x32xf32> to vector<1x32xf32>
    %cst_139 = arith.constant dense<0.000000e+00> : vector<1x32xf32>
    %877 = tpu.matmul %875, %873, %cst_139 {dimension_numbers = #tpu.dot_dimension_numbers<[1], [0], [0], [1], [0, 0, 1, 1], [], []>} : vector<1x32xf32>, vector<32x32xf32>, vector<1x32xf32> -> vector<1x32xf32>
    %878 = arith.addf %876, %877 : vector<1x32xf32>
    %879 = arith.addf %878, %874 : vector<1x32xf32>
    %880 = math.tanh %879 : vector<1x32xf32>
    %881 = vector.extract_strided_slice %872 {offsets = [1, 0], sizes = [1, 32], strides = [1, 1]} : vector<32x32xf32> to vector<1x32xf32>
    %cst_140 = arith.constant dense<0.000000e+00> : vector<1x32xf32>
    %882 = tpu.matmul %880, %873, %cst_140 {dimension_numbers = #tpu.dot_dimension_numbers<[1], [0], [0], [1], [0, 0, 1, 1], [], []>} : vector<1x32xf32>, vector<32x32xf32>, vector<1x32xf32> -> vector<1x32xf32>
    %883 = arith.addf %881, %882 : vector<1x32xf32>
    %884 = arith.addf %883, %874 : vector<1x32xf32>
    %885 = math.tanh %884 : vector<1x32xf32>
    %886 = vector.extract_strided_slice %872 {offsets = [2, 0], sizes = [1, 32], strides = [1, 1]} : vector<32x32xf32> to vector<1x32xf32>
    %cst_141 = arith.constant dense<0.000000e+00> : vector<1x32xf32>
    %887 = tpu.matmul %885, %873, %cst_141 {dimension_numbers = #tpu.dot_dimension_numbers<[1], [0], [0], [1], [0, 0, 1, 1], [], []>} : vector<1x32xf32>, vector<32x32xf32>, vector<1x32xf32> -> vector<1x32xf32>
    %888 = arith.addf %886, %887 : vector<1x32xf32>
    %889 = arith.addf %888, %874 : vector<1x32xf32>
    %890 = math.tanh %889 : vector<1x32xf32>
    %891 = vector.extract_strided_slice %872 {offsets = [3, 0], sizes = [1, 32], strides = [1, 1]} : vector<32x32xf32> to vector<1x32xf32>
    %cst_142 = arith.constant dense<0.000000e+00> : vector<1x32xf32>
    %892 = tpu.matmul %890, %873, %cst_142 {dimension_numbers = #tpu.dot_dimension_numbers<[1], [0], [0], [1], [0, 0, 1, 1], [], []>} : vector<1x32xf32>, vector<32x32xf32>, vector<1x32xf32> -> vector<1x32xf32>
    %893 = arith.addf %891, %892 : vector<1x32xf32>
    %894 = arith.addf %893, %874 : vector<1x32xf32>
    %895 = math.tanh %894 : vector<1x32xf32>
    %896 = vector.extract_strided_slice %872 {offsets = [4, 0], sizes = [1, 32], strides = [1, 1]} : vector<32x32xf32> to vector<1x32xf32>
    %cst_143 = arith.constant dense<0.000000e+00> : vector<1x32xf32>
    %897 = tpu.matmul %895, %873, %cst_143 {dimension_numbers = #tpu.dot_dimension_numbers<[1], [0], [0], [1], [0, 0, 1, 1], [], []>} : vector<1x32xf32>, vector<32x32xf32>, vector<1x32xf32> -> vector<1x32xf32>
    %898 = arith.addf %896, %897 : vector<1x32xf32>
    %899 = arith.addf %898, %874 : vector<1x32xf32>
    %900 = math.tanh %899 : vector<1x32xf32>
    %901 = vector.extract_strided_slice %872 {offsets = [5, 0], sizes = [1, 32], strides = [1, 1]} : vector<32x32xf32> to vector<1x32xf32>
    %cst_144 = arith.constant dense<0.000000e+00> : vector<1x32xf32>
    %902 = tpu.matmul %900, %873, %cst_144 {dimension_numbers = #tpu.dot_dimension_numbers<[1], [0], [0], [1], [0, 0, 1, 1], [], []>} : vector<1x32xf32>, vector<32x32xf32>, vector<1x32xf32> -> vector<1x32xf32>
    %903 = arith.addf %901, %902 : vector<1x32xf32>
    %904 = arith.addf %903, %874 : vector<1x32xf32>
    %905 = math.tanh %904 : vector<1x32xf32>
    %906 = vector.extract_strided_slice %872 {offsets = [6, 0], sizes = [1, 32], strides = [1, 1]} : vector<32x32xf32> to vector<1x32xf32>
    %cst_145 = arith.constant dense<0.000000e+00> : vector<1x32xf32>
    %907 = tpu.matmul %905, %873, %cst_145 {dimension_numbers = #tpu.dot_dimension_numbers<[1], [0], [0], [1], [0, 0, 1, 1], [], []>} : vector<1x32xf32>, vector<32x32xf32>, vector<1x32xf32> -> vector<1x32xf32>
    %908 = arith.addf %906, %907 : vector<1x32xf32>
    %909 = arith.addf %908, %874 : vector<1x32xf32>
    %910 = math.tanh %909 : vector<1x32xf32>
    %911 = vector.extract_strided_slice %872 {offsets = [7, 0], sizes = [1, 32], strides = [1, 1]} : vector<32x32xf32> to vector<1x32xf32>
    %cst_146 = arith.constant dense<0.000000e+00> : vector<1x32xf32>
    %912 = tpu.matmul %910, %873, %cst_146 {dimension_numbers = #tpu.dot_dimension_numbers<[1], [0], [0], [1], [0, 0, 1, 1], [], []>} : vector<1x32xf32>, vector<32x32xf32>, vector<1x32xf32> -> vector<1x32xf32>
    %913 = arith.addf %911, %912 : vector<1x32xf32>
    %914 = arith.addf %913, %874 : vector<1x32xf32>
    %915 = math.tanh %914 : vector<1x32xf32>
    %916 = vector.extract_strided_slice %872 {offsets = [8, 0], sizes = [1, 32], strides = [1, 1]} : vector<32x32xf32> to vector<1x32xf32>
    %cst_147 = arith.constant dense<0.000000e+00> : vector<1x32xf32>
    %917 = tpu.matmul %915, %873, %cst_147 {dimension_numbers = #tpu.dot_dimension_numbers<[1], [0], [0], [1], [0, 0, 1, 1], [], []>} : vector<1x32xf32>, vector<32x32xf32>, vector<1x32xf32> -> vector<1x32xf32>
    %918 = arith.addf %916, %917 : vector<1x32xf32>
    %919 = arith.addf %918, %874 : vector<1x32xf32>
    %920 = math.tanh %919 : vector<1x32xf32>
    %921 = vector.extract_strided_slice %872 {offsets = [9, 0], sizes = [1, 32], strides = [1, 1]} : vector<32x32xf32> to vector<1x32xf32>
    %cst_148 = arith.constant dense<0.000000e+00> : vector<1x32xf32>
    %922 = tpu.matmul %920, %873, %cst_148 {dimension_numbers = #tpu.dot_dimension_numbers<[1], [0], [0], [1], [0, 0, 1, 1], [], []>} : vector<1x32xf32>, vector<32x32xf32>, vector<1x32xf32> -> vector<1x32xf32>
    %923 = arith.addf %921, %922 : vector<1x32xf32>
    %924 = arith.addf %923, %874 : vector<1x32xf32>
    %925 = math.tanh %924 : vector<1x32xf32>
    %926 = vector.extract_strided_slice %872 {offsets = [10, 0], sizes = [1, 32], strides = [1, 1]} : vector<32x32xf32> to vector<1x32xf32>
    %cst_149 = arith.constant dense<0.000000e+00> : vector<1x32xf32>
    %927 = tpu.matmul %925, %873, %cst_149 {dimension_numbers = #tpu.dot_dimension_numbers<[1], [0], [0], [1], [0, 0, 1, 1], [], []>} : vector<1x32xf32>, vector<32x32xf32>, vector<1x32xf32> -> vector<1x32xf32>
    %928 = arith.addf %926, %927 : vector<1x32xf32>
    %929 = arith.addf %928, %874 : vector<1x32xf32>
    %930 = math.tanh %929 : vector<1x32xf32>
    %931 = vector.extract_strided_slice %872 {offsets = [11, 0], sizes = [1, 32], strides = [1, 1]} : vector<32x32xf32> to vector<1x32xf32>
    %cst_150 = arith.constant dense<0.000000e+00> : vector<1x32xf32>
    %932 = tpu.matmul %930, %873, %cst_150 {dimension_numbers = #tpu.dot_dimension_numbers<[1], [0], [0], [1], [0, 0, 1, 1], [], []>} : vector<1x32xf32>, vector<32x32xf32>, vector<1x32xf32> -> vector<1x32xf32>
    %933 = arith.addf %931, %932 : vector<1x32xf32>
    %934 = arith.addf %933, %874 : vector<1x32xf32>
    %935 = math.tanh %934 : vector<1x32xf32>
    %936 = vector.extract_strided_slice %872 {offsets = [12, 0], sizes = [1, 32], strides = [1, 1]} : vector<32x32xf32> to vector<1x32xf32>
    %cst_151 = arith.constant dense<0.000000e+00> : vector<1x32xf32>
    %937 = tpu.matmul %935, %873, %cst_151 {dimension_numbers = #tpu.dot_dimension_numbers<[1], [0], [0], [1], [0, 0, 1, 1], [], []>} : vector<1x32xf32>, vector<32x32xf32>, vector<1x32xf32> -> vector<1x32xf32>
    %938 = arith.addf %936, %937 : vector<1x32xf32>
    %939 = arith.addf %938, %874 : vector<1x32xf32>
    %940 = math.tanh %939 : vector<1x32xf32>
    %941 = vector.extract_strided_slice %872 {offsets = [13, 0], sizes = [1, 32], strides = [1, 1]} : vector<32x32xf32> to vector<1x32xf32>
    %cst_152 = arith.constant dense<0.000000e+00> : vector<1x32xf32>
    %942 = tpu.matmul %940, %873, %cst_152 {dimension_numbers = #tpu.dot_dimension_numbers<[1], [0], [0], [1], [0, 0, 1, 1], [], []>} : vector<1x32xf32>, vector<32x32xf32>, vector<1x32xf32> -> vector<1x32xf32>
    %943 = arith.addf %941, %942 : vector<1x32xf32>
    %944 = arith.addf %943, %874 : vector<1x32xf32>
    %945 = math.tanh %944 : vector<1x32xf32>
    %946 = vector.extract_strided_slice %872 {offsets = [14, 0], sizes = [1, 32], strides = [1, 1]} : vector<32x32xf32> to vector<1x32xf32>
    %cst_153 = arith.constant dense<0.000000e+00> : vector<1x32xf32>
    %947 = tpu.matmul %945, %873, %cst_153 {dimension_numbers = #tpu.dot_dimension_numbers<[1], [0], [0], [1], [0, 0, 1, 1], [], []>} : vector<1x32xf32>, vector<32x32xf32>, vector<1x32xf32> -> vector<1x32xf32>
    %948 = arith.addf %946, %947 : vector<1x32xf32>
    %949 = arith.addf %948, %874 : vector<1x32xf32>
    %950 = math.tanh %949 : vector<1x32xf32>
    %951 = vector.extract_strided_slice %872 {offsets = [15, 0], sizes = [1, 32], strides = [1, 1]} : vector<32x32xf32> to vector<1x32xf32>
    %cst_154 = arith.constant dense<0.000000e+00> : vector<1x32xf32>
    %952 = tpu.matmul %950, %873, %cst_154 {dimension_numbers = #tpu.dot_dimension_numbers<[1], [0], [0], [1], [0, 0, 1, 1], [], []>} : vector<1x32xf32>, vector<32x32xf32>, vector<1x32xf32> -> vector<1x32xf32>
    %953 = arith.addf %951, %952 : vector<1x32xf32>
    %954 = arith.addf %953, %874 : vector<1x32xf32>
    %955 = math.tanh %954 : vector<1x32xf32>
    %956 = vector.extract_strided_slice %872 {offsets = [16, 0], sizes = [1, 32], strides = [1, 1]} : vector<32x32xf32> to vector<1x32xf32>
    %cst_155 = arith.constant dense<0.000000e+00> : vector<1x32xf32>
    %957 = tpu.matmul %955, %873, %cst_155 {dimension_numbers = #tpu.dot_dimension_numbers<[1], [0], [0], [1], [0, 0, 1, 1], [], []>} : vector<1x32xf32>, vector<32x32xf32>, vector<1x32xf32> -> vector<1x32xf32>
    %958 = arith.addf %956, %957 : vector<1x32xf32>
    %959 = arith.addf %958, %874 : vector<1x32xf32>
    %960 = math.tanh %959 : vector<1x32xf32>
    %961 = vector.extract_strided_slice %872 {offsets = [17, 0], sizes = [1, 32], strides = [1, 1]} : vector<32x32xf32> to vector<1x32xf32>
    %cst_156 = arith.constant dense<0.000000e+00> : vector<1x32xf32>
    %962 = tpu.matmul %960, %873, %cst_156 {dimension_numbers = #tpu.dot_dimension_numbers<[1], [0], [0], [1], [0, 0, 1, 1], [], []>} : vector<1x32xf32>, vector<32x32xf32>, vector<1x32xf32> -> vector<1x32xf32>
    %963 = arith.addf %961, %962 : vector<1x32xf32>
    %964 = arith.addf %963, %874 : vector<1x32xf32>
    %965 = math.tanh %964 : vector<1x32xf32>
    %966 = vector.extract_strided_slice %872 {offsets = [18, 0], sizes = [1, 32], strides = [1, 1]} : vector<32x32xf32> to vector<1x32xf32>
    %cst_157 = arith.constant dense<0.000000e+00> : vector<1x32xf32>
    %967 = tpu.matmul %965, %873, %cst_157 {dimension_numbers = #tpu.dot_dimension_numbers<[1], [0], [0], [1], [0, 0, 1, 1], [], []>} : vector<1x32xf32>, vector<32x32xf32>, vector<1x32xf32> -> vector<1x32xf32>
    %968 = arith.addf %966, %967 : vector<1x32xf32>
    %969 = arith.addf %968, %874 : vector<1x32xf32>
    %970 = math.tanh %969 : vector<1x32xf32>
    %971 = vector.extract_strided_slice %872 {offsets = [19, 0], sizes = [1, 32], strides = [1, 1]} : vector<32x32xf32> to vector<1x32xf32>
    %cst_158 = arith.constant dense<0.000000e+00> : vector<1x32xf32>
    %972 = tpu.matmul %970, %873, %cst_158 {dimension_numbers = #tpu.dot_dimension_numbers<[1], [0], [0], [1], [0, 0, 1, 1], [], []>} : vector<1x32xf32>, vector<32x32xf32>, vector<1x32xf32> -> vector<1x32xf32>
    %973 = arith.addf %971, %972 : vector<1x32xf32>
    %974 = arith.addf %973, %874 : vector<1x32xf32>
    %975 = math.tanh %974 : vector<1x32xf32>
    %976 = vector.extract_strided_slice %872 {offsets = [20, 0], sizes = [1, 32], strides = [1, 1]} : vector<32x32xf32> to vector<1x32xf32>
    %cst_159 = arith.constant dense<0.000000e+00> : vector<1x32xf32>
    %977 = tpu.matmul %975, %873, %cst_159 {dimension_numbers = #tpu.dot_dimension_numbers<[1], [0], [0], [1], [0, 0, 1, 1], [], []>} : vector<1x32xf32>, vector<32x32xf32>, vector<1x32xf32> -> vector<1x32xf32>
    %978 = arith.addf %976, %977 : vector<1x32xf32>
    %979 = arith.addf %978, %874 : vector<1x32xf32>
    %980 = math.tanh %979 : vector<1x32xf32>
    %981 = vector.extract_strided_slice %872 {offsets = [21, 0], sizes = [1, 32], strides = [1, 1]} : vector<32x32xf32> to vector<1x32xf32>
    %cst_160 = arith.constant dense<0.000000e+00> : vector<1x32xf32>
    %982 = tpu.matmul %980, %873, %cst_160 {dimension_numbers = #tpu.dot_dimension_numbers<[1], [0], [0], [1], [0, 0, 1, 1], [], []>} : vector<1x32xf32>, vector<32x32xf32>, vector<1x32xf32> -> vector<1x32xf32>
    %983 = arith.addf %981, %982 : vector<1x32xf32>
    %984 = arith.addf %983, %874 : vector<1x32xf32>
    %985 = math.tanh %984 : vector<1x32xf32>
    %986 = vector.extract_strided_slice %872 {offsets = [22, 0], sizes = [1, 32], strides = [1, 1]} : vector<32x32xf32> to vector<1x32xf32>
    %cst_161 = arith.constant dense<0.000000e+00> : vector<1x32xf32>
    %987 = tpu.matmul %985, %873, %cst_161 {dimension_numbers = #tpu.dot_dimension_numbers<[1], [0], [0], [1], [0, 0, 1, 1], [], []>} : vector<1x32xf32>, vector<32x32xf32>, vector<1x32xf32> -> vector<1x32xf32>
    %988 = arith.addf %986, %987 : vector<1x32xf32>
    %989 = arith.addf %988, %874 : vector<1x32xf32>
    %990 = math.tanh %989 : vector<1x32xf32>
    %991 = vector.extract_strided_slice %872 {offsets = [23, 0], sizes = [1, 32], strides = [1, 1]} : vector<32x32xf32> to vector<1x32xf32>
    %cst_162 = arith.constant dense<0.000000e+00> : vector<1x32xf32>
    %992 = tpu.matmul %990, %873, %cst_162 {dimension_numbers = #tpu.dot_dimension_numbers<[1], [0], [0], [1], [0, 0, 1, 1], [], []>} : vector<1x32xf32>, vector<32x32xf32>, vector<1x32xf32> -> vector<1x32xf32>
    %993 = arith.addf %991, %992 : vector<1x32xf32>
    %994 = arith.addf %993, %874 : vector<1x32xf32>
    %995 = math.tanh %994 : vector<1x32xf32>
    %996 = vector.extract_strided_slice %872 {offsets = [24, 0], sizes = [1, 32], strides = [1, 1]} : vector<32x32xf32> to vector<1x32xf32>
    %cst_163 = arith.constant dense<0.000000e+00> : vector<1x32xf32>
    %997 = tpu.matmul %995, %873, %cst_163 {dimension_numbers = #tpu.dot_dimension_numbers<[1], [0], [0], [1], [0, 0, 1, 1], [], []>} : vector<1x32xf32>, vector<32x32xf32>, vector<1x32xf32> -> vector<1x32xf32>
    %998 = arith.addf %996, %997 : vector<1x32xf32>
    %999 = arith.addf %998, %874 : vector<1x32xf32>
    %1000 = math.tanh %999 : vector<1x32xf32>
    %1001 = vector.extract_strided_slice %872 {offsets = [25, 0], sizes = [1, 32], strides = [1, 1]} : vector<32x32xf32> to vector<1x32xf32>
    %cst_164 = arith.constant dense<0.000000e+00> : vector<1x32xf32>
    %1002 = tpu.matmul %1000, %873, %cst_164 {dimension_numbers = #tpu.dot_dimension_numbers<[1], [0], [0], [1], [0, 0, 1, 1], [], []>} : vector<1x32xf32>, vector<32x32xf32>, vector<1x32xf32> -> vector<1x32xf32>
    %1003 = arith.addf %1001, %1002 : vector<1x32xf32>
    %1004 = arith.addf %1003, %874 : vector<1x32xf32>
    %1005 = math.tanh %1004 : vector<1x32xf32>
    %1006 = vector.extract_strided_slice %872 {offsets = [26, 0], sizes = [1, 32], strides = [1, 1]} : vector<32x32xf32> to vector<1x32xf32>
    %cst_165 = arith.constant dense<0.000000e+00> : vector<1x32xf32>
    %1007 = tpu.matmul %1005, %873, %cst_165 {dimension_numbers = #tpu.dot_dimension_numbers<[1], [0], [0], [1], [0, 0, 1, 1], [], []>} : vector<1x32xf32>, vector<32x32xf32>, vector<1x32xf32> -> vector<1x32xf32>
    %1008 = arith.addf %1006, %1007 : vector<1x32xf32>
    %1009 = arith.addf %1008, %874 : vector<1x32xf32>
    %1010 = math.tanh %1009 : vector<1x32xf32>
    %1011 = vector.extract_strided_slice %872 {offsets = [27, 0], sizes = [1, 32], strides = [1, 1]} : vector<32x32xf32> to vector<1x32xf32>
    %cst_166 = arith.constant dense<0.000000e+00> : vector<1x32xf32>
    %1012 = tpu.matmul %1010, %873, %cst_166 {dimension_numbers = #tpu.dot_dimension_numbers<[1], [0], [0], [1], [0, 0, 1, 1], [], []>} : vector<1x32xf32>, vector<32x32xf32>, vector<1x32xf32> -> vector<1x32xf32>
    %1013 = arith.addf %1011, %1012 : vector<1x32xf32>
    %1014 = arith.addf %1013, %874 : vector<1x32xf32>
    %1015 = math.tanh %1014 : vector<1x32xf32>
    %1016 = vector.extract_strided_slice %872 {offsets = [28, 0], sizes = [1, 32], strides = [1, 1]} : vector<32x32xf32> to vector<1x32xf32>
    %cst_167 = arith.constant dense<0.000000e+00> : vector<1x32xf32>
    %1017 = tpu.matmul %1015, %873, %cst_167 {dimension_numbers = #tpu.dot_dimension_numbers<[1], [0], [0], [1], [0, 0, 1, 1], [], []>} : vector<1x32xf32>, vector<32x32xf32>, vector<1x32xf32> -> vector<1x32xf32>
    %1018 = arith.addf %1016, %1017 : vector<1x32xf32>
    %1019 = arith.addf %1018, %874 : vector<1x32xf32>
    %1020 = math.tanh %1019 : vector<1x32xf32>
    %1021 = vector.extract_strided_slice %872 {offsets = [29, 0], sizes = [1, 32], strides = [1, 1]} : vector<32x32xf32> to vector<1x32xf32>
    %cst_168 = arith.constant dense<0.000000e+00> : vector<1x32xf32>
    %1022 = tpu.matmul %1020, %873, %cst_168 {dimension_numbers = #tpu.dot_dimension_numbers<[1], [0], [0], [1], [0, 0, 1, 1], [], []>} : vector<1x32xf32>, vector<32x32xf32>, vector<1x32xf32> -> vector<1x32xf32>
    %1023 = arith.addf %1021, %1022 : vector<1x32xf32>
    %1024 = arith.addf %1023, %874 : vector<1x32xf32>
    %1025 = math.tanh %1024 : vector<1x32xf32>
    %1026 = vector.extract_strided_slice %872 {offsets = [30, 0], sizes = [1, 32], strides = [1, 1]} : vector<32x32xf32> to vector<1x32xf32>
    %cst_169 = arith.constant dense<0.000000e+00> : vector<1x32xf32>
    %1027 = tpu.matmul %1025, %873, %cst_169 {dimension_numbers = #tpu.dot_dimension_numbers<[1], [0], [0], [1], [0, 0, 1, 1], [], []>} : vector<1x32xf32>, vector<32x32xf32>, vector<1x32xf32> -> vector<1x32xf32>
    %1028 = arith.addf %1026, %1027 : vector<1x32xf32>
    %1029 = arith.addf %1028, %874 : vector<1x32xf32>
    %1030 = math.tanh %1029 : vector<1x32xf32>
    %1031 = vector.extract_strided_slice %872 {offsets = [31, 0], sizes = [1, 32], strides = [1, 1]} : vector<32x32xf32> to vector<1x32xf32>
    %cst_170 = arith.constant dense<0.000000e+00> : vector<1x32xf32>
    %1032 = tpu.matmul %1030, %873, %cst_170 {dimension_numbers = #tpu.dot_dimension_numbers<[1], [0], [0], [1], [0, 0, 1, 1], [], []>} : vector<1x32xf32>, vector<32x32xf32>, vector<1x32xf32> -> vector<1x32xf32>
    %1033 = arith.addf %1031, %1032 : vector<1x32xf32>
    %1034 = arith.addf %1033, %874 : vector<1x32xf32>
    %1035 = math.tanh %1034 : vector<1x32xf32>
    %c0_171 = arith.constant 0 : index
    %c0_172 = arith.constant 0 : index
    %1036 = vector.load %arg27[%c0_171, %c0_172] : memref<32x6xf32, #tpu.memory_space<vmem>>, vector<32x6xf32>
    %cst_173 = arith.constant dense<0.000000e+00> : vector<1x6xf32>
    %1037 = tpu.matmul %1035, %1036, %cst_173 {dimension_numbers = #tpu.dot_dimension_numbers<[1], [0], [0], [1], [0, 0, 1, 1], [], []>} : vector<1x32xf32>, vector<32x6xf32>, vector<1x6xf32> -> vector<1x6xf32>
    %c0_174 = arith.constant 0 : index
    %c0_175 = arith.constant 0 : index
    %1038 = vector.load %arg25[%c0_174, %c0_175] : memref<1x6xf32, #tpu.memory_space<vmem>>, vector<1x6xf32>
    %1039 = arith.addf %1037, %1038 : vector<1x6xf32>
    %1040 = vector.extract_strided_slice %1039 {offsets = [0, 0], sizes = [1, 3], strides = [1, 1]} : vector<1x6xf32> to vector<1x3xf32>
    %1041 = vector.extract_strided_slice %1039 {offsets = [0, 3], sizes = [1, 3], strides = [1, 1]} : vector<1x6xf32> to vector<1x3xf32>
    %1042 = tpu.concatenate %1040, %1041 in 0 : vector<1x3xf32>, vector<1x3xf32> -> vector<2x3xf32>
    %c0_176 = arith.constant 0 : index
    %c0_177 = arith.constant 0 : index
    %1043 = vector.load %arg35[%c0_176, %c0_177] : memref<2x3xf32, #tpu.memory_space<vmem>>, vector<2x3xf32>
    tpu.vector_store %arg35[%c0_176, %c0_177], %1042 {strides = array<i32>} : memref<2x3xf32, #tpu.memory_space<vmem>>, vector<2x3xf32>,
    return
  }
}

</mosaic_0001>

<llo_original>
// kernel: forward.1
$region0: #{forward.1}
  #allocation0 [shape = 'u32[]', space=smem, size = 0x4, offset = 0x4, fixed_abs, tag = 'smem constant byte address 0x4 - core index']
  #allocation1 [shape = 'u32[144,128]{1,0:T(1,128)}', space=vmem, size = 0x12000, scoped, tag = 'internal scratch']
  %s0 = inlined_call_operand.smem [shape: u32[36], index: -1, kind: input, shape index: {}]
  %s1 = sld [smem:[%s0]]
  %s2 = scalar_lea.smem %s0, 1
  %s3 = sld [smem:[%s2]]
  %s4 = scalar_lea.smem %s0, 2
  %s5 = sld [smem:[%s4]]
  %s6 = scalar_lea.smem %s0, 3
  %s7 = sld [smem:[%s6]]
  %s8 = scalar_lea.smem %s0, 4
  %s9 = sld [smem:[%s8]]
  %s10 = scalar_lea.smem %s0, 5
  %s11 = sld [smem:[%s10]]
  %s12 = scalar_lea.smem %s0, 6
  %s13 = sld [smem:[%s12]]
  %s14 = scalar_lea.smem %s0, 7
  %s15 = sld [smem:[%s14]]
  %s16 = scalar_lea.smem %s0, 8
  %s17 = sld [smem:[%s16]]
  %s18 = scalar_lea.smem %s0, 9
  %s19 = sld [smem:[%s18]]
  %s20 = scalar_lea.smem %s0, 10
  %s21 = sld [smem:[%s20]]
  %s22 = scalar_lea.smem %s0, 11
  %s23 = sld [smem:[%s22]]
  %s24 = scalar_lea.smem %s0, 12
  %s25 = sld [smem:[%s24]]
  %s26 = scalar_lea.smem %s0, 13
  %s27 = sld [smem:[%s26]]
  %s28 = scalar_lea.smem %s0, 14
  %s29 = sld [smem:[%s28]]
  %s30 = scalar_lea.smem %s0, 15
  %s31 = sld [smem:[%s30]]
  %s32 = scalar_lea.smem %s0, 16
  %s33 = sld [smem:[%s32]]
  %s34 = scalar_lea.smem %s0, 17
  %s35 = sld [smem:[%s34]]
  %s36 = scalar_lea.smem %s0, 18
  %s37 = sld [smem:[%s36]]
  %s38 = scalar_lea.smem %s0, 19
  %s39 = sld [smem:[%s38]]
  %s40 = scalar_lea.smem %s0, 20
  %s41 = sld [smem:[%s40]]
  %s42 = scalar_lea.smem %s0, 21
  %s43 = sld [smem:[%s42]]
  %s44 = scalar_lea.smem %s0, 22
  %s45 = sld [smem:[%s44]]
  %s46 = scalar_lea.smem %s0, 23
  %s47 = sld [smem:[%s46]]
  %s48 = scalar_lea.smem %s0, 24
  %s49 = sld [smem:[%s48]]
  %s50 = scalar_lea.smem %s0, 25
  %s51 = sld [smem:[%s50]]
  %s52 = scalar_lea.smem %s0, 26
  %s53 = sld [smem:[%s52]]
  %s54 = scalar_lea.smem %s0, 27
  %s55 = sld [smem:[%s54]]
  %s56 = scalar_lea.smem %s0, 28
  %s57 = sld [smem:[%s56]]
  %s58 = scalar_lea.smem %s0, 29
  %s59 = sld [smem:[%s58]]
  %s60 = scalar_lea.smem %s0, 30
  %s61 = sld [smem:[%s60]]
  %s62 = scalar_lea.smem %s0, 31
  %s63 = sld [smem:[%s62]]
  %s64 = scalar_lea.smem %s0, 32
  %s65 = sld [smem:[%s64]]
  %s66 = scalar_lea.smem %s0, 33
  %s67 = sld [smem:[%s66]]
  %s68 = scalar_lea.smem %s0, 34
  %s69 = sld [smem:[%s68]]
  %s70 = scalar_lea.smem %s0, 35
  %s71 = sld [smem:[%s70]]
  %s72 = sld [smem:[#allocation0]]
  $region154: #{forward.1} parent=0
    _
  %s74 = ssub.s32 1, %s72
  %s75 = scalar_select 0, %s74, %s72
  $region1: #{forward.1} parent=0
    #allocation2 [shape = 'u8[4096]{0}', space=vmem, size = 0x1000, scoped, tag = 'input window, operand 23, single buffered']
    #allocation3 [shape = 's32[1]{0}', space=sflag, size = 0x4, scoped, tag = 'scoped memory for forward.1']
    #allocation4 [shape = 's32[1]{0}', space=sflag, size = 0x4, scoped, tag = 'scoped memory for forward.1']
    #allocation5 [shape = 'u8[1024]{0}', space=vmem, size = 0x400, scoped, tag = 'output window, operand 0, single buffered']
    %76 = vsyncpa [#allocation3], 0
    %77 = vsyncpa [#allocation4], 0
    // Predicated region
    $region2: #{forward.1} parent=1 // pred_check
      _
    $region3: #{forward.1} parent=1 // pred_check_branch
      %79 = sbr.rel (0) target = $region5
    $region4: #{forward.1} parent=1 // pred_region
      _
    $region5: #{forward.1} parent=1 // pred_fallthru
      _
    // Predicated region
    $region6: #{forward.1} parent=1 // pred_check
      _
    $region7: #{forward.1} parent=1 // pred_check_branch
      %81 = sbr.rel (0) target = $region9
    $region8: #{forward.1} parent=1 // pred_region
      _
    $region9: #{forward.1} parent=1 // pred_fallthru
      _
    // Predicated region
    $region10: #{forward.1} parent=1 // pred_check
      _
    $region11: #{forward.1} parent=1 // pred_check_branch
      %83 = sbr.rel (0) target = $region13
    $region12: #{forward.1} parent=1 // pred_region
      _
    $region13: #{forward.1} parent=1 // pred_fallthru
      _
    // Predicated region
    $region14: #{forward.1} parent=1 // pred_check
      _
    $region15: #{forward.1} parent=1 // pred_check_branch
      %85 = sbr.rel (0) target = $region17
    $region16: #{forward.1} parent=1 // pred_region
      _
    $region17: #{forward.1} parent=1 // pred_fallthru
      _
    // Predicated region
    $region18: #{forward.1} parent=1 // pred_check
      _
    $region19: #{forward.1} parent=1 // pred_check_branch
      %87 = sbr.rel (0) target = $region21
    $region20: #{forward.1} parent=1 // pred_region
      _
    $region21: #{forward.1} parent=1 // pred_fallthru
      _
    // Predicated region
    $region22: #{forward.1} parent=1 // pred_check
      _
    $region23: #{forward.1} parent=1 // pred_check_branch
      %89 = sbr.rel (0) target = $region25
    $region24: #{forward.1} parent=1 // pred_region
      _
    $region25: #{forward.1} parent=1 // pred_fallthru
      _
    // Predicated region
    $region26: #{forward.1} parent=1 // pred_check
      _
    $region27: #{forward.1} parent=1 // pred_check_branch
      %91 = sbr.rel (0) target = $region29
    $region28: #{forward.1} parent=1 // pred_region
      _
    $region29: #{forward.1} parent=1 // pred_fallthru
      _
    // Predicated region
    $region30: #{forward.1} parent=1 // pred_check
      _
    $region31: #{forward.1} parent=1 // pred_check_branch
      %93 = sbr.rel (0) target = $region33
    $region32: #{forward.1} parent=1 // pred_region
      _
    $region33: #{forward.1} parent=1 // pred_fallthru
      _
    // Predicated region
    $region34: #{forward.1} parent=1 // pred_check
      _
    $region35: #{forward.1} parent=1 // pred_check_branch
      %95 = sbr.rel (0) target = $region37
    $region36: #{forward.1} parent=1 // pred_region
      _
    $region37: #{forward.1} parent=1 // pred_fallthru
      _
    // Predicated region
    $region38: #{forward.1} parent=1 // pred_check
      _
    $region39: #{forward.1} parent=1 // pred_check_branch
      %97 = sbr.rel (0) target = $region41
    $region40: #{forward.1} parent=1 // pred_region
      _
    $region41: #{forward.1} parent=1 // pred_fallthru
      _
    // Predicated region
    $region42: #{forward.1} parent=1 // pred_check
      _
    $region43: #{forward.1} parent=1 // pred_check_branch
      %99 = sbr.rel (0) target = $region45
    $region44: #{forward.1} parent=1 // pred_region
      _
    $region45: #{forward.1} parent=1 // pred_fallthru
      _
    // Predicated region
    $region46: #{forward.1} parent=1 // pred_check
      _
    $region47: #{forward.1} parent=1 // pred_check_branch
      %101 = sbr.rel (0) target = $region49
    $region48: #{forward.1} parent=1 // pred_region
      _
    $region49: #{forward.1} parent=1 // pred_fallthru
      _
    // Predicated region
    $region50: #{forward.1} parent=1 // pred_check
      _
    $region51: #{forward.1} parent=1 // pred_check_branch
      %103 = sbr.rel (0) target = $region53
    $region52: #{forward.1} parent=1 // pred_region
      _
    $region53: #{forward.1} parent=1 // pred_fallthru
      _
    // Predicated region
    $region54: #{forward.1} parent=1 // pred_check
      _
    $region55: #{forward.1} parent=1 // pred_check_branch
      %105 = sbr.rel (0) target = $region57
    $region56: #{forward.1} parent=1 // pred_region
      _
    $region57: #{forward.1} parent=1 // pred_fallthru
      _
    // Predicated region
    $region58: #{forward.1} parent=1 // pred_check
      _
    $region59: #{forward.1} parent=1 // pred_check_branch
      %107 = sbr.rel (0) target = $region61
    $region60: #{forward.1} parent=1 // pred_region
      _
    $region61: #{forward.1} parent=1 // pred_fallthru
      _
    // Predicated region
    $region62: #{forward.1} parent=1 // pred_check
      _
    $region63: #{forward.1} parent=1 // pred_check_branch
      %109 = sbr.rel (0) target = $region65
    $region64: #{forward.1} parent=1 // pred_region
      _
    $region65: #{forward.1} parent=1 // pred_fallthru
      _
    // Predicated region
    $region66: #{forward.1} parent=1 // pred_check
      _
    $region67: #{forward.1} parent=1 // pred_check_branch
      %111 = sbr.rel (0) target = $region69
    $region68: #{forward.1} parent=1 // pred_region
      _
    $region69: #{forward.1} parent=1 // pred_fallthru
      _
    // Predicated region
    $region70: #{forward.1} parent=1 // pred_check
      _
    $region71: #{forward.1} parent=1 // pred_check_branch
      %113 = sbr.rel (0) target = $region73
    $region72: #{forward.1} parent=1 // pred_region
      _
    $region73: #{forward.1} parent=1 // pred_fallthru
      _
    // Predicated region
    $region74: #{forward.1} parent=1 // pred_check
      _
    $region75: #{forward.1} parent=1 // pred_check_branch
      %115 = sbr.rel (0) target = $region77
    $region76: #{forward.1} parent=1 // pred_region
      _
    $region77: #{forward.1} parent=1 // pred_fallthru
      _
    // Predicated region
    $region78: #{forward.1} parent=1 // pred_check
      _
    $region79: #{forward.1} parent=1 // pred_check_branch
      %117 = sbr.rel (0) target = $region81
    $region80: #{forward.1} parent=1 // pred_region
      _
    $region81: #{forward.1} parent=1 // pred_fallthru
      _
    // Predicated region
    $region82: #{forward.1} parent=1 // pred_check
      _
    $region83: #{forward.1} parent=1 // pred_check_branch
      %119 = sbr.rel (0) target = $region85
    $region84: #{forward.1} parent=1 // pred_region
      _
    $region85: #{forward.1} parent=1 // pred_fallthru
      _
    // Predicated region
    $region86: #{forward.1} parent=1 // pred_check
      _
    $region87: #{forward.1} parent=1 // pred_check_branch
      %121 = sbr.rel (0) target = $region89
    $region88: #{forward.1} parent=1 // pred_region
      _
    $region89: #{forward.1} parent=1 // pred_fallthru
      _
    // Predicated region
    $region90: #{forward.1} parent=1 // pred_check
      _
    $region91: #{forward.1} parent=1 // pred_check_branch
      %123 = sbr.rel (0) target = $region93
    $region92: #{forward.1} parent=1 // pred_region
      _
    $region93: #{forward.1} parent=1 // pred_fallthru
      _
    // Predicated region
    $region94: #{forward.1} parent=1 // pred_check
      _
    $region95: #{forward.1} parent=1 // pred_check_branch
      %125 = sbr.rel (0) target = $region97
    $region96: #{forward.1} parent=1 // pred_region
      %s127 = ssub.s32 128, 128
      %128 = vsyncadd [#allocation3], %s127
      %s130 = sshll.u32 [#allocation2], 4
      %s131 = int_to_ptr.vmem [resolvable:$true] %s130
      %133 = dma.hbm_to_vmem [thread:$0]  %s47, 128, %s131, [#allocation3]
    $region97: #{forward.1} parent=1 // pred_fallthru
      _
    // Predicated region
    $region98: #{forward.1} parent=1 // pred_check
      _
    $region99: #{forward.1} parent=1 // pred_check_branch
      %135 = sbr.rel (0) target = $region101
    $region100: #{forward.1} parent=1 // pred_region
      _
    $region101: #{forward.1} parent=1 // pred_fallthru
      _
    // Predicated region
    $region102: #{forward.1} parent=1 // pred_check
      _
    $region103: #{forward.1} parent=1 // pred_check_branch
      %137 = sbr.rel (0) target = $region105
    $region104: #{forward.1} parent=1 // pred_region
      _
    $region105: #{forward.1} parent=1 // pred_fallthru
      _
    // Predicated region
    $region106: #{forward.1} parent=1 // pred_check
      _
    $region107: #{forward.1} parent=1 // pred_check_branch
      %139 = sbr.rel (0) target = $region109
    $region108: #{forward.1} parent=1 // pred_region
      _
    $region109: #{forward.1} parent=1 // pred_fallthru
      _
    // Predicated region
    $region110: #{forward.1} parent=1 // pred_check
      _
    $region111: #{forward.1} parent=1 // pred_check_branch
      %141 = sbr.rel (0) target = $region113
    $region112: #{forward.1} parent=1 // pred_region
      _
    $region113: #{forward.1} parent=1 // pred_fallthru
      _
    // Predicated region
    $region114: #{forward.1} parent=1 // pred_check
      _
    $region115: #{forward.1} parent=1 // pred_check_branch
      %143 = sbr.rel (0) target = $region117
    $region116: #{forward.1} parent=1 // pred_region
      _
    $region117: #{forward.1} parent=1 // pred_fallthru
      _
    // Predicated region
    $region118: #{forward.1} parent=1 // pred_check
      _
    $region119: #{forward.1} parent=1 // pred_check_branch
      %145 = sbr.rel (0) target = $region121
    $region120: #{forward.1} parent=1 // pred_region
      _
    $region121: #{forward.1} parent=1 // pred_fallthru
      _
    // Predicated region
    $region122: #{forward.1} parent=1 // pred_check
      _
    $region123: #{forward.1} parent=1 // pred_check_branch
      %147 = sbr.rel (0) target = $region125
    $region124: #{forward.1} parent=1 // pred_region
      _
    $region125: #{forward.1} parent=1 // pred_fallthru
      _
    // Predicated region
    $region126: #{forward.1} parent=1 // pred_check
      _
    $region127: #{forward.1} parent=1 // pred_check_branch
      %149 = sbr.rel (0) target = $region129
    $region128: #{forward.1} parent=1 // pred_region
      _
    $region129: #{forward.1} parent=1 // pred_fallthru
      _
    // Predicated region
    $region130: #{forward.1} parent=1 // pred_check
      _
    $region131: #{forward.1} parent=1 // pred_check_branch
      %151 = sbr.rel (0) target = $region133
    $region132: #{forward.1} parent=1 // pred_region
      _
    $region133: #{forward.1} parent=1 // pred_fallthru
      _
    // Predicated region
    $region134: #{forward.1} parent=1 // pred_check
      _
    $region135: #{forward.1} parent=1 // pred_check_branch
      %153 = sbr.rel (0) target = $region137
    $region136: #{forward.1} parent=1 // pred_region
      _
    $region137: #{forward.1} parent=1 // pred_fallthru
      _
    // Predicated region
    $region138: #{forward.1} parent=1 // pred_check
      _
    $region139: #{forward.1} parent=1 // pred_check_branch
      %155 = sbr.rel (0) target = $region141
    $region140: #{forward.1} parent=1 // pred_region
      _
    $region141: #{forward.1} parent=1 // pred_fallthru
      _
    // Predicated region
    $region142: #{forward.1} parent=1 // pred_check
      _
    $region143: #{forward.1} parent=1 // pred_check_branch
      %157 = sbr.rel (0) target = $region145
    $region144: #{forward.1} parent=1 // pred_region
      %158 = dma.done [#allocation3], 128
    $region145: #{forward.1} parent=1 // pred_fallthru
      _
    %v159 = vld [vmem:[%s1] sm:$0xf]
    %v160 = vld [vmem:[%s7] sm:$0xff]
    %vm161 = vcmask 31744
    %v163 = vsel %vm161, %v160, 0
    %vm165 = vcmask 1043456
    %v167 = vsel %vm165, %v159, 0
    %169 = vmatprep.subr.mxu0 0.0
    %170 = vmatpush1.msra.mxu0 0.0
    %171 = vmatprep.subr.mxu0 0.0
    %172 = vmatpush1.msra.mxu0 0.0
    %173 = vmatprep.subr.mxu0 0.0
    %174 = vmatpush1.msra.mxu0 0.0
    %175 = vmatprep.subr.mxu0 0.0
    %176 = vmatpush1.msra.mxu0 0.0
    %177 = vmatprep.subr.mxu0 0.0
    %178 = vmatpush1.msra.mxu0 0.0
    %179 = vmatprep.subr.mxu0 0.0
    %180 = vmatpush1.msra.mxu0 0.0
    %181 = vmatprep.subr.mxu0 0.0
    %182 = vmatpush1.msra.mxu0 0.0
    %183 = vmatprep.subr.mxu0 0.0
    %184 = vmatpush1.msra.mxu0 0.0
    %185 = vmatprep.subr.mxu0 0.0
    %186 = vmatpush1.msra.mxu0 0.0
    %187 = vmatprep.subr.mxu0 0.0
    %188 = vmatpush1.msra.mxu0 0.0
    %189 = vmatprep.subr.mxu0 0.0
    %190 = vmatpush1.msra.mxu0 0.0
    %191 = vmatprep.subr.mxu0 0.0
    %192 = vmatpush1.msra.mxu0 0.0
    %193 = vmatprep.subr.mxu0 0.0
    %194 = vmatpush1.msra.mxu0 0.0
    %195 = vmatprep.subr.mxu0 0.0
    %196 = vmatpush1.msra.mxu0 0.0
    %197 = vmatprep.subr.mxu0 0.0
    %198 = vmatpush1.msra.mxu0 0.0
    %199 = vmatprep.subr.mxu0 0.0
    %200 = vmatpush1.msra.mxu0 %v167
    %201 = vmatprep.subr.mxu0 0.0
    %202 = vmatpush2.msra.mxu0 0.0
    %203 = vmatprep.subr.mxu0 0.0
    %204 = vmatpush2.msra.mxu0 0.0
    %205 = vmatprep.subr.mxu0 0.0
    %206 = vmatpush2.msra.mxu0 0.0
    %207 = vmatprep.subr.mxu0 0.0
    %208 = vmatpush2.msra.mxu0 0.0
    %209 = vmatprep.subr.mxu0 0.0
    %210 = vmatpush2.msra.mxu0 0.0
    %211 = vmatprep.subr.mxu0 0.0
    %212 = vmatpush2.msra.mxu0 0.0
    %213 = vmatprep.subr.mxu0 0.0
    %214 = vmatpush2.msra.mxu0 0.0
    %215 = vmatprep.subr.mxu0 0.0
    %216 = vmatpush2.msra.mxu0 0.0
    %217 = vmatprep.subr.mxu0 0.0
    %218 = vmatpush2.msra.mxu0 0.0
    %219 = vmatprep.subr.mxu0 0.0
    %220 = vmatpush2.msra.mxu0 0.0
    %221 = vmatprep.subr.mxu0 0.0
    %222 = vmatpush2.msra.mxu0 0.0
    %223 = vmatprep.subr.mxu0 0.0
    %224 = vmatpush2.msra.mxu0 0.0
    %225 = vmatprep.subr.mxu0 0.0
    %226 = vmatpush2.msra.mxu0 0.0
    %227 = vmatprep.subr.mxu0 0.0
    %228 = vmatpush2.msra.mxu0 0.0
    %229 = vmatprep.subr.mxu0 0.0
    %230 = vmatpush2.msra.mxu0 0.0
    %231 = vmatprep.subr.mxu0 0.0
    %232 = vmatpush2.msra.mxu0 0.0
    %233 = vmatprep.mubr.f32.mxu0 0.0
    %234 = vmatmul.mubr.f32.gmra.mxu0 %v163
    %v235 = vpop.f32.mrf.mxu0
    %v236 = vadd.f32 0.0, %v235
    %v237 = vpop.f32.mrf.mxu0
    %238 = vdwg.mxu0
    %240 = vrot.lane.b32.xlu0 %v236, 19
    %v241 = vpop.permute.xlu0 %240
    %vm243 = vcmask 154624
    %v244 = vsel %vm243, 0.0, %v241
    %vm245 = vcmask 285696
    %v246 = vsel %vm245, %v244, 0.0
    %247 = vrot.lane.b32.xlu0 %v159, 1
    %v248 = vpop.permute.xlu0 %247
    %vm250 = vcmask 7168
    %v251 = vsel %vm250, -inf, %v248
    %vm252 = vcmask 138240
    %v253 = vsel %vm252, %v251, -inf
    %255 = vrot.lane.b32.xlu0 %v253, 127
    %v256 = vpop.permute.xlu0 %255
    %v258 = vmax.f32 %v253, %v256
    %259 = vrot.lane.b32.xlu0 %v253, 126
    %v260 = vpop.permute.xlu0 %259
    %v262 = vmax.f32 %v258, %v260
    %264 = vrot.lane.b32.xlu0 %v246, 127
    %v265 = vpop.permute.xlu0 %264
    %267 = vrot.lane.b32.xlu0 %v246, 126
    %v268 = vpop.permute.xlu0 %267
    %270 = vrot.lane.b32.xlu0 %v246, 125
    %v271 = vpop.permute.xlu0 %270
    %273 = vrot.lane.b32.xlu0 %v246, 124
    %v274 = vpop.permute.xlu0 %273
    %276 = vrot.lane.b32.xlu0 %v246, 123
    %v277 = vpop.permute.xlu0 %276
    %279 = vrot.lane.b32.xlu0 %v246, 122
    %v280 = vpop.permute.xlu0 %279
    %282 = vrot.lane.b32.xlu0 %v246, 121
    %v283 = vpop.permute.xlu0 %282
    %285 = vrot.lane.b32.xlu0 %v246, 120
    %v286 = vpop.permute.xlu0 %285
    %288 = vrot.lane.b32.xlu0 %v246, 119
    %v289 = vpop.permute.xlu0 %288
    %291 = vrot.lane.b32.xlu0 %v246, 118
    %v292 = vpop.permute.xlu0 %291
    %294 = vrot.lane.b32.xlu0 %v246, 117
    %v295 = vpop.permute.xlu0 %294
    %297 = vrot.lane.b32.xlu0 %v246, 116
    %v298 = vpop.permute.xlu0 %297
    %300 = vrot.lane.b32.xlu0 %v246, 115
    %v301 = vpop.permute.xlu0 %300
    %303 = vrot.lane.b32.xlu0 %v246, 114
    %v304 = vpop.permute.xlu0 %303
    %306 = vrot.lane.b32.xlu0 %v246, 113
    %v307 = vpop.permute.xlu0 %306
    %310 = vrot.lane.b32.xlu0 %v262, 32
    %v311 = vpop.permute.xlu0 %310
    %312 = vrot.lane.b32.xlu0 %v246, 112
    %v313 = vpop.permute.xlu0 %312
    %314 = vrot.lane.b32.xlu0 %v265, 112
    %v315 = vpop.permute.xlu0 %314
    %316 = vrot.lane.b32.xlu0 %v268, 112
    %v317 = vpop.permute.xlu0 %316
    %318 = vrot.lane.b32.xlu0 %v271, 112
    %v319 = vpop.permute.xlu0 %318
    %320 = vrot.lane.b32.xlu0 %v274, 112
    %v321 = vpop.permute.xlu0 %320
    %322 = vrot.lane.b32.xlu0 %v277, 112
    %v323 = vpop.permute.xlu0 %322
    %324 = vrot.lane.b32.xlu0 %v280, 112
    %v325 = vpop.permute.xlu0 %324
    %326 = vrot.lane.b32.xlu0 %v283, 112
    %v327 = vpop.permute.xlu0 %326
    %328 = vrot.lane.b32.xlu0 %v286, 112
    %v329 = vpop.permute.xlu0 %328
    %330 = vrot.lane.b32.xlu0 %v289, 112
    %v331 = vpop.permute.xlu0 %330
    %332 = vrot.lane.b32.xlu0 %v292, 112
    %v333 = vpop.permute.xlu0 %332
    %334 = vrot.lane.b32.xlu0 %v295, 112
    %v335 = vpop.permute.xlu0 %334
    %336 = vrot.lane.b32.xlu0 %v298, 112
    %v337 = vpop.permute.xlu0 %336
    %338 = vrot.lane.b32.xlu0 %v301, 112
    %v339 = vpop.permute.xlu0 %338
    %340 = vrot.lane.b32.xlu0 %v304, 112
    %v341 = vpop.permute.xlu0 %340
    %342 = vrot.lane.b32.xlu0 %v307, 112
    %v343 = vpop.permute.xlu0 %342
    %360 = vrot.lane.b32.xlu0 %v246, 96
    %v361 = vpop.permute.xlu0 %360
    %362 = vrot.lane.b32.xlu0 %v265, 96
    %v363 = vpop.permute.xlu0 %362
    %364 = vrot.lane.b32.xlu0 %v268, 96
    %v365 = vpop.permute.xlu0 %364
    %366 = vrot.lane.b32.xlu0 %v271, 96
    %v367 = vpop.permute.xlu0 %366
    %368 = vrot.lane.b32.xlu0 %v274, 96
    %v369 = vpop.permute.xlu0 %368
    %370 = vrot.lane.b32.xlu0 %v277, 96
    %v371 = vpop.permute.xlu0 %370
    %372 = vrot.lane.b32.xlu0 %v280, 96
    %v373 = vpop.permute.xlu0 %372
    %374 = vrot.lane.b32.xlu0 %v311, 96
    %v375 = vpop.permute.xlu0 %374
    %384 = vrot.lane.b32.xlu0 %v236, 3
    %v385 = vpop.permute.xlu0 %384
    %v387 = vsel %vm243, 0.0, %v385
    %v388 = vsel %vm245, %v387, 0.0
    %389 = vrot.lane.b32.xlu0 %v159, 113
    %v390 = vpop.permute.xlu0 %389
    %v392 = vsel %vm250, -inf, %v390
    %v393 = vsel %vm252, %v392, -inf
    %395 = vrot.lane.b32.xlu0 %v393, 127
    %v396 = vpop.permute.xlu0 %395
    %v398 = vmax.f32 %v393, %v396
    %399 = vrot.lane.b32.xlu0 %v393, 126
    %v400 = vpop.permute.xlu0 %399
    %v402 = vmax.f32 %v398, %v400
    %404 = vrot.lane.b32.xlu0 %v388, 127
    %v405 = vpop.permute.xlu0 %404
    %406 = vrot.lane.b32.xlu0 %v388, 126
    %v407 = vpop.permute.xlu0 %406
    %408 = vrot.lane.b32.xlu0 %v388, 125
    %v409 = vpop.permute.xlu0 %408
    %410 = vrot.lane.b32.xlu0 %v388, 124
    %v411 = vpop.permute.xlu0 %410
    %412 = vrot.lane.b32.xlu0 %v388, 123
    %v413 = vpop.permute.xlu0 %412
    %414 = vrot.lane.b32.xlu0 %v388, 122
    %v415 = vpop.permute.xlu0 %414
    %416 = vrot.lane.b32.xlu0 %v388, 121
    %v417 = vpop.permute.xlu0 %416
    %418 = vrot.lane.b32.xlu0 %v388, 120
    %v419 = vpop.permute.xlu0 %418
    %420 = vrot.lane.b32.xlu0 %v388, 119
    %v421 = vpop.permute.xlu0 %420
    %422 = vrot.lane.b32.xlu0 %v388, 118
    %v423 = vpop.permute.xlu0 %422
    %424 = vrot.lane.b32.xlu0 %v388, 117
    %v425 = vpop.permute.xlu0 %424
    %426 = vrot.lane.b32.xlu0 %v388, 116
    %v427 = vpop.permute.xlu0 %426
    %428 = vrot.lane.b32.xlu0 %v388, 115
    %v429 = vpop.permute.xlu0 %428
    %430 = vrot.lane.b32.xlu0 %v388, 114
    %v431 = vpop.permute.xlu0 %430
    %432 = vrot.lane.b32.xlu0 %v388, 113
    %v433 = vpop.permute.xlu0 %432
    %435 = vrot.lane.b32.xlu0 %v402, 32
    %v436 = vpop.permute.xlu0 %435
    %437 = vrot.lane.b32.xlu0 %v388, 112
    %v438 = vpop.permute.xlu0 %437
    %439 = vrot.lane.b32.xlu0 %v405, 112
    %v440 = vpop.permute.xlu0 %439
    %441 = vrot.lane.b32.xlu0 %v407, 112
    %v442 = vpop.permute.xlu0 %441
    %443 = vrot.lane.b32.xlu0 %v409, 112
    %v444 = vpop.permute.xlu0 %443
    %445 = vrot.lane.b32.xlu0 %v411, 112
    %v446 = vpop.permute.xlu0 %445
    %447 = vrot.lane.b32.xlu0 %v413, 112
    %v448 = vpop.permute.xlu0 %447
    %449 = vrot.lane.b32.xlu0 %v415, 112
    %v450 = vpop.permute.xlu0 %449
    %451 = vrot.lane.b32.xlu0 %v417, 112
    %v452 = vpop.permute.xlu0 %451
    %453 = vrot.lane.b32.xlu0 %v419, 112
    %v454 = vpop.permute.xlu0 %453
    %455 = vrot.lane.b32.xlu0 %v421, 112
    %v456 = vpop.permute.xlu0 %455
    %457 = vrot.lane.b32.xlu0 %v423, 112
    %v458 = vpop.permute.xlu0 %457
    %459 = vrot.lane.b32.xlu0 %v425, 112
    %v460 = vpop.permute.xlu0 %459
    %461 = vrot.lane.b32.xlu0 %v427, 112
    %v462 = vpop.permute.xlu0 %461
    %463 = vrot.lane.b32.xlu0 %v429, 112
    %v464 = vpop.permute.xlu0 %463
    %465 = vrot.lane.b32.xlu0 %v431, 112
    %v466 = vpop.permute.xlu0 %465
    %467 = vrot.lane.b32.xlu0 %v433, 112
    %v468 = vpop.permute.xlu0 %467
    %469 = vrot.lane.b32.xlu0 %v388, 96
    %v470 = vpop.permute.xlu0 %469
    %471 = vrot.lane.b32.xlu0 %v405, 96
    %v472 = vpop.permute.xlu0 %471
    %473 = vrot.lane.b32.xlu0 %v407, 96
    %v474 = vpop.permute.xlu0 %473
    %475 = vrot.lane.b32.xlu0 %v409, 96
    %v476 = vpop.permute.xlu0 %475
    %477 = vrot.lane.b32.xlu0 %v411, 96
    %v478 = vpop.permute.xlu0 %477
    %479 = vrot.lane.b32.xlu0 %v413, 96
    %v480 = vpop.permute.xlu0 %479
    %481 = vrot.lane.b32.xlu0 %v415, 96
    %v482 = vpop.permute.xlu0 %481
    %483 = vrot.lane.b32.xlu0 %v436, 96
    %v484 = vpop.permute.xlu0 %483
    %485 = vrot.lane.b32.xlu0 %v388, 16
    %v486 = vpop.permute.xlu0 %485
    %487 = vrot.lane.b32.xlu0 %v405, 16
    %v488 = vpop.permute.xlu0 %487
    %489 = vrot.lane.b32.xlu0 %v407, 16
    %v490 = vpop.permute.xlu0 %489
    %491 = vrot.lane.b32.xlu0 %v409, 16
    %v492 = vpop.permute.xlu0 %491
    %493 = vrot.lane.b32.xlu0 %v411, 16
    %v494 = vpop.permute.xlu0 %493
    %495 = vrot.lane.b32.xlu0 %v413, 16
    %v496 = vpop.permute.xlu0 %495
    %497 = vrot.lane.b32.xlu0 %v415, 16
    %v498 = vpop.permute.xlu0 %497
    %499 = vrot.lane.b32.xlu0 %v417, 16
    %v500 = vpop.permute.xlu0 %499
    %501 = vrot.lane.b32.xlu0 %v419, 16
    %v502 = vpop.permute.xlu0 %501
    %503 = vrot.lane.b32.xlu0 %v421, 16
    %v504 = vpop.permute.xlu0 %503
    %505 = vrot.lane.b32.xlu0 %v423, 16
    %v506 = vpop.permute.xlu0 %505
    %507 = vrot.lane.b32.xlu0 %v425, 16
    %v508 = vpop.permute.xlu0 %507
    %509 = vrot.lane.b32.xlu0 %v427, 16
    %v510 = vpop.permute.xlu0 %509
    %511 = vrot.lane.b32.xlu0 %v429, 16
    %v512 = vpop.permute.xlu0 %511
    %513 = vrot.lane.b32.xlu0 %v431, 16
    %v514 = vpop.permute.xlu0 %513
    %515 = vrot.lane.b32.xlu0 %v433, 16
    %v516 = vpop.permute.xlu0 %515
    %517 = vrot.lane.b32.xlu0 %v438, 16
    %v518 = vpop.permute.xlu0 %517
    %519 = vrot.lane.b32.xlu0 %v440, 16
    %v520 = vpop.permute.xlu0 %519
    %521 = vrot.lane.b32.xlu0 %v442, 16
    %v522 = vpop.permute.xlu0 %521
    %523 = vrot.lane.b32.xlu0 %v444, 16
    %v524 = vpop.permute.xlu0 %523
    %525 = vrot.lane.b32.xlu0 %v446, 16
    %v526 = vpop.permute.xlu0 %525
    %527 = vrot.lane.b32.xlu0 %v448, 16
    %v528 = vpop.permute.xlu0 %527
    %529 = vrot.lane.b32.xlu0 %v450, 16
    %v530 = vpop.permute.xlu0 %529
    %531 = vrot.lane.b32.xlu0 %v452, 16
    %v532 = vpop.permute.xlu0 %531
    %533 = vrot.lane.b32.xlu0 %v454, 16
    %v534 = vpop.permute.xlu0 %533
    %535 = vrot.lane.b32.xlu0 %v456, 16
    %v536 = vpop.permute.xlu0 %535
    %537 = vrot.lane.b32.xlu0 %v458, 16
    %v538 = vpop.permute.xlu0 %537
    %539 = vrot.lane.b32.xlu0 %v460, 16
    %v540 = vpop.permute.xlu0 %539
    %541 = vrot.lane.b32.xlu0 %v462, 16
    %v542 = vpop.permute.xlu0 %541
    %543 = vrot.lane.b32.xlu0 %v464, 16
    %v544 = vpop.permute.xlu0 %543
    %545 = vrot.lane.b32.xlu0 %v466, 16
    %v546 = vpop.permute.xlu0 %545
    %547 = vrot.lane.b32.xlu0 %v468, 16
    %v548 = vpop.permute.xlu0 %547
    %549 = vrot.lane.b32.xlu0 %v470, 16
    %v550 = vpop.permute.xlu0 %549
    %551 = vrot.lane.b32.xlu0 %v472, 16
    %v552 = vpop.permute.xlu0 %551
    %553 = vrot.lane.b32.xlu0 %v474, 16
    %v554 = vpop.permute.xlu0 %553
    %555 = vrot.lane.b32.xlu0 %v476, 16
    %v556 = vpop.permute.xlu0 %555
    %557 = vrot.lane.b32.xlu0 %v478, 16
    %v558 = vpop.permute.xlu0 %557
    %559 = vrot.lane.b32.xlu0 %v480, 16
    %v560 = vpop.permute.xlu0 %559
    %561 = vrot.lane.b32.xlu0 %v482, 16
    %v562 = vpop.permute.xlu0 %561
    %563 = vrot.lane.b32.xlu0 %v484, 16
    %v564 = vpop.permute.xlu0 %563
    %vm605 = vcmask 130048
    %v606 = vsel %vm605, %v246, %v486
    %v607 = vsel %vm605, %v265, %v488
    %v608 = vsel %vm605, %v268, %v490
    %v609 = vsel %vm605, %v271, %v492
    %v610 = vsel %vm605, %v274, %v494
    %v611 = vsel %vm605, %v277, %v496
    %v612 = vsel %vm605, %v280, %v498
    %v613 = vsel %vm605, %v283, %v500
    %v614 = vsel %vm605, %v286, %v502
    %v615 = vsel %vm605, %v289, %v504
    %v616 = vsel %vm605, %v292, %v506
    %v617 = vsel %vm605, %v295, %v508
    %v618 = vsel %vm605, %v298, %v510
    %v619 = vsel %vm605, %v301, %v512
    %v620 = vsel %vm605, %v304, %v514
    %v621 = vsel %vm605, %v307, %v516
    %v622 = vsel %vm605, %v313, %v518
    %v623 = vsel %vm605, %v315, %v520
    %v624 = vsel %vm605, %v317, %v522
    %v625 = vsel %vm605, %v319, %v524
    %v626 = vsel %vm605, %v321, %v526
    %v627 = vsel %vm605, %v323, %v528
    %v628 = vsel %vm605, %v325, %v530
    %v629 = vsel %vm605, %v327, %v532
    %v630 = vsel %vm605, %v329, %v534
    %v631 = vsel %vm605, %v331, %v536
    %v632 = vsel %vm605, %v333, %v538
    %v633 = vsel %vm605, %v335, %v540
    %v634 = vsel %vm605, %v337, %v542
    %v635 = vsel %vm605, %v339, %v544
    %v636 = vsel %vm605, %v341, %v546
    %v637 = vsel %vm605, %v343, %v548
    %v638 = vsel %vm605, %v361, %v550
    %v639 = vsel %vm605, %v363, %v552
    %v640 = vsel %vm605, %v365, %v554
    %v641 = vsel %vm605, %v367, %v556
    %v642 = vsel %vm605, %v369, %v558
    %v643 = vsel %vm605, %v371, %v560
    %v644 = vsel %vm605, %v373, %v562
    %v645 = vsel %vm605, %v375, %v564
    %v646 = vld [vmem:[%s9] sm:$0xff]
    %v647 = vld [vmem:[%s9 + $0x8] sm:$0xff]
    %v648 = vld [vmem:[%s9 + $0x10] sm:$0xff]
    %v649 = vld [vmem:[%s9 + $0x18] sm:$0xff]
    %v650 = vld [vmem:[%s9 + $0x20] sm:$0xff]
    %v651 = vld [vmem:[%s9 + $0x28] sm:$0xff]
    %v652 = vld [vmem:[%s9 + $0x30] sm:$0xff]
    %v653 = vld [vmem:[%s9 + $0x38] sm:$0xff]
    %v654 = vld [vmem:[%s9 + $0x40] sm:$0xff]
    %v655 = vld [vmem:[%s9 + $0x48] sm:$0xff]
    %v656 = vld [vmem:[%s9 + $0x50] sm:$0xff]
    %v657 = vld [vmem:[%s9 + $0x58] sm:$0xff]
    %vm658 = vcmask 490496
    %v660 = vsel %vm658, %v648, 0
    %v663 = vsel %vm658, %v651, 0
    %v666 = vsel %vm658, %v654, 0
    %v669 = vsel %vm658, %v657, 0
    %v672 = vsel %vm165, %v645, 0
    %674 = vmatprep.subr.mxu0 0.0
    %675 = vmatpush1.msra.mxu0 %v621
    %676 = vmatprep.subr.mxu0 0.0
    %677 = vmatpush1.msra.mxu0 %v620
    %678 = vmatprep.subr.mxu0 0.0
    %679 = vmatpush1.msra.mxu0 %v619
    %680 = vmatprep.subr.mxu0 0.0
    %681 = vmatpush1.msra.mxu0 %v618
    %682 = vmatprep.subr.mxu0 0.0
    %683 = vmatpush1.msra.mxu0 %v617
    %684 = vmatprep.subr.mxu0 0.0
    %685 = vmatpush1.msra.mxu0 %v616
    %686 = vmatprep.subr.mxu0 0.0
    %687 = vmatpush1.msra.mxu0 %v615
    %688 = vmatprep.subr.mxu0 0.0
    %689 = vmatpush1.msra.mxu0 %v614
    %690 = vmatprep.subr.mxu0 0.0
    %691 = vmatpush1.msra.mxu0 %v613
    %692 = vmatprep.subr.mxu0 0.0
    %693 = vmatpush1.msra.mxu0 %v612
    %694 = vmatprep.subr.mxu0 0.0
    %695 = vmatpush1.msra.mxu0 %v611
    %696 = vmatprep.subr.mxu0 0.0
    %697 = vmatpush1.msra.mxu0 %v610
    %698 = vmatprep.subr.mxu0 0.0
    %699 = vmatpush1.msra.mxu0 %v609
    %700 = vmatprep.subr.mxu0 0.0
    %701 = vmatpush1.msra.mxu0 %v608
    %702 = vmatprep.subr.mxu0 0.0
    %703 = vmatpush1.msra.mxu0 %v607
    %704 = vmatprep.subr.mxu0 0.0
    %705 = vmatpush1.msra.mxu0 %v606
    %706 = vmatprep.subr.mxu0 0.0
    %707 = vmatpush2.msra.mxu0 %v637
    %708 = vmatprep.subr.mxu0 0.0
    %709 = vmatpush2.msra.mxu0 %v636
    %710 = vmatprep.subr.mxu0 0.0
    %711 = vmatpush2.msra.mxu0 %v635
    %712 = vmatprep.subr.mxu0 0.0
    %713 = vmatpush2.msra.mxu0 %v634
    %714 = vmatprep.subr.mxu0 0.0
    %715 = vmatpush2.msra.mxu0 %v633
    %716 = vmatprep.subr.mxu0 0.0
    %717 = vmatpush2.msra.mxu0 %v632
    %718 = vmatprep.subr.mxu0 0.0
    %719 = vmatpush2.msra.mxu0 %v631
    %720 = vmatprep.subr.mxu0 0.0
    %721 = vmatpush2.msra.mxu0 %v630
    %722 = vmatprep.subr.mxu0 0.0
    %723 = vmatpush2.msra.mxu0 %v629
    %724 = vmatprep.subr.mxu0 0.0
    %725 = vmatpush2.msra.mxu0 %v628
    %726 = vmatprep.subr.mxu0 0.0
    %727 = vmatpush2.msra.mxu0 %v627
    %728 = vmatprep.subr.mxu0 0.0
    %729 = vmatpush2.msra.mxu0 %v626
    %730 = vmatprep.subr.mxu0 0.0
    %731 = vmatpush2.msra.mxu0 %v625
    %732 = vmatprep.subr.mxu0 0.0
    %733 = vmatpush2.msra.mxu0 %v624
    %734 = vmatprep.subr.mxu0 0.0
    %735 = vmatpush2.msra.mxu0 %v623
    %736 = vmatprep.subr.mxu0 0.0
    %737 = vmatpush2.msra.mxu0 %v622
    %738 = vmatprep.mubr.f32.mxu0 %v647
    %739 = vmatmul.mubr.f32.gmra.mxu0 %v646
    %v740 = vpop.f32.mrf.mxu0
    %v741 = vadd.f32 0.0, %v740
    %v742 = vpop.f32.mrf.mxu0
    %743 = vmatprep.mubr.f32.mxu0 %v650
    %744 = vmatmul.mubr.f32.gmra.mxu0 %v649
    %v745 = vpop.f32.mrf.mxu0
    %v746 = vadd.f32 0.0, %v745
    %v747 = vpop.f32.mrf.mxu0
    %748 = vmatprep.mubr.f32.mxu0 %v653
    %749 = vmatmul.mubr.f32.gmra.mxu0 %v652
    %v750 = vpop.f32.mrf.mxu0
    %v751 = vadd.f32 0.0, %v750
    %v752 = vpop.f32.mrf.mxu0
    %753 = vmatprep.mubr.f32.mxu0 %v656
    %754 = vmatmul.mubr.f32.gmra.mxu0 %v655
    %v755 = vpop.f32.mrf.mxu0
    %v756 = vadd.f32 0.0, %v755
    %v757 = vpop.f32.mrf.mxu0
    %758 = vdwg.mxu0
    %759 = vmatprep.subr.mxu0 0.0
    %760 = vmatpush1.msra.mxu0 0.0
    %761 = vmatprep.subr.mxu0 0.0
    %762 = vmatpush1.msra.mxu0 0.0
    %763 = vmatprep.subr.mxu0 0.0
    %764 = vmatpush1.msra.mxu0 0.0
    %765 = vmatprep.subr.mxu0 0.0
    %766 = vmatpush1.msra.mxu0 0.0
    %767 = vmatprep.subr.mxu0 0.0
    %768 = vmatpush1.msra.mxu0 0.0
    %769 = vmatprep.subr.mxu0 0.0
    %770 = vmatpush1.msra.mxu0 0.0
    %771 = vmatprep.subr.mxu0 0.0
    %772 = vmatpush1.msra.mxu0 0.0
    %773 = vmatprep.subr.mxu0 0.0
    %774 = vmatpush1.msra.mxu0 0.0
    %775 = vmatprep.subr.mxu0 0.0
    %776 = vmatpush1.msra.mxu0 %v672
    %777 = vmatprep.subr.mxu0 0.0
    %778 = vmatpush1.msra.mxu0 %v644
    %779 = vmatprep.subr.mxu0 0.0
    %780 = vmatpush1.msra.mxu0 %v643
    %781 = vmatprep.subr.mxu0 0.0
    %782 = vmatpush1.msra.mxu0 %v642
    %783 = vmatprep.subr.mxu0 0.0
    %784 = vmatpush1.msra.mxu0 %v641
    %785 = vmatprep.subr.mxu0 0.0
    %786 = vmatpush1.msra.mxu0 %v640
    %787 = vmatprep.subr.mxu0 0.0
    %788 = vmatpush1.msra.mxu0 %v639
    %789 = vmatprep.subr.mxu0 0.0
    %790 = vmatpush1.msra.mxu0 %v638
    %791 = vmatprep.subr.mxu0 0.0
    %792 = vmatpush2.msra.mxu0 0.0
    %793 = vmatprep.subr.mxu0 0.0
    %794 = vmatpush2.msra.mxu0 0.0
    %795 = vmatprep.subr.mxu0 0.0
    %796 = vmatpush2.msra.mxu0 0.0
    %797 = vmatprep.subr.mxu0 0.0
    %798 = vmatpush2.msra.mxu0 0.0
    %799 = vmatprep.subr.mxu0 0.0
    %800 = vmatpush2.msra.mxu0 0.0
    %801 = vmatprep.subr.mxu0 0.0
    %802 = vmatpush2.msra.mxu0 0.0
    %803 = vmatprep.subr.mxu0 0.0
    %804 = vmatpush2.msra.mxu0 0.0
    %805 = vmatprep.subr.mxu0 0.0
    %806 = vmatpush2.msra.mxu0 0.0
    %807 = vmatprep.subr.mxu0 0.0
    %808 = vmatpush2.msra.mxu0 0.0
    %809 = vmatprep.subr.mxu0 0.0
    %810 = vmatpush2.msra.mxu0 0.0
    %811 = vmatprep.subr.mxu0 0.0
    %812 = vmatpush2.msra.mxu0 0.0
    %813 = vmatprep.subr.mxu0 0.0
    %814 = vmatpush2.msra.mxu0 0.0
    %815 = vmatprep.subr.mxu0 0.0
    %816 = vmatpush2.msra.mxu0 0.0
    %817 = vmatprep.subr.mxu0 0.0
    %818 = vmatpush2.msra.mxu0 0.0
    %819 = vmatprep.subr.mxu0 0.0
    %820 = vmatpush2.msra.mxu0 0.0
    %821 = vmatprep.subr.mxu0 0.0
    %822 = vmatpush2.msra.mxu0 0.0
    %823 = vmatprep.mubr.f32.mxu0 0.0
    %824 = vmatmul.mubr.f32.gmra.mxu0 %v660
    %v825 = vpop.f32.mrf.mxu0
    %v826 = vadd.f32 %v741, %v825
    %v827 = vpop.f32.mrf.mxu0
    %828 = vmatprep.mubr.f32.mxu0 0.0
    %829 = vmatmul.mubr.f32.gmra.mxu0 %v663
    %v830 = vpop.f32.mrf.mxu0
    %v831 = vadd.f32 %v746, %v830
    %v832 = vpop.f32.mrf.mxu0
    %833 = vmatprep.mubr.f32.mxu0 0.0
    %834 = vmatmul.mubr.f32.gmra.mxu0 %v666
    %v835 = vpop.f32.mrf.mxu0
    %v836 = vadd.f32 %v751, %v835
    %v837 = vpop.f32.mrf.mxu0
    %838 = vmatprep.mubr.f32.mxu0 0.0
    %839 = vmatmul.mubr.f32.gmra.mxu0 %v669
    %v840 = vpop.f32.mrf.mxu0
    %v841 = vadd.f32 %v756, %v840
    %v842 = vpop.f32.mrf.mxu0
    %843 = vdwg.mxu0
    %vm844 = vcmask 261120
    %v845 = vsel %vm844, %v826, 0.0
    %846 = vadd.xlane.f32.xlu0 %v845
    %v847 = vpop.xlane.xlu0 %846
    %v848 = vsel %vm844, %v831, 0.0
    %849 = vadd.xlane.f32.xlu0 %v848
    %v850 = vpop.xlane.xlu0 %849
    %v851 = vsel %vm844, %v836, 0.0
    %852 = vadd.xlane.f32.xlu0 %v851
    %v853 = vpop.xlane.xlu0 %852
    %v854 = vsel %vm844, %v841, 0.0
    %855 = vadd.xlane.f32.xlu0 %v854
    %v856 = vpop.xlane.xlu0 %855
    %v857 = vmul.f32 %v847, 0.03125
    %v858 = vmul.f32 %v850, 0.03125
    %v859 = vmul.f32 %v853, 0.03125
    %v860 = vmul.f32 %v856, 0.03125
    %v861 = vmul.f32 %v826, %v826
    %v862 = vmul.f32 %v831, %v831
    %v863 = vmul.f32 %v836, %v836
    %v864 = vmul.f32 %v841, %v841
    %v865 = vsel %vm844, %v861, 0.0
    %866 = vadd.xlane.f32.xlu0 %v865
    %v867 = vpop.xlane.xlu0 %866
    %v868 = vsel %vm844, %v862, 0.0
    %869 = vadd.xlane.f32.xlu0 %v868
    %v870 = vpop.xlane.xlu0 %869
    %v871 = vsel %vm844, %v863, 0.0
    %872 = vadd.xlane.f32.xlu0 %v871
    %v873 = vpop.xlane.xlu0 %872
    %v874 = vsel %vm844, %v864, 0.0
    %875 = vadd.xlane.f32.xlu0 %v874
    %v876 = vpop.xlane.xlu0 %875
    %v877 = vmul.f32 %v867, 0.03125
    %v878 = vmul.f32 %v870, 0.03125
    %v879 = vmul.f32 %v873, 0.03125
    %v880 = vmul.f32 %v876, 0.03125
    %v881 = vmul.f32 %v857, %v857
    %v882 = vmul.f32 %v858, %v858
    %v883 = vmul.f32 %v859, %v859
    %v884 = vmul.f32 %v860, %v860
    %v885 = vsub.f32 %v877, %v881
    %v886 = vsub.f32 %v878, %v882
    %v887 = vsub.f32 %v879, %v883
    %v888 = vsub.f32 %v880, %v884
    %v889 = vsub.f32 %v826, %v857
    %v890 = vsub.f32 %v831, %v858
    %v891 = vsub.f32 %v836, %v859
    %v892 = vsub.f32 %v841, %v860
    %v893 = vld [vmem:[%s5] sm:$0xff]
    %v894 = vld [vmem:[%s5 + $0x8] sm:$0xff]
    %v895 = vld [vmem:[%s5 + $0x10] sm:$0xff]
    %v896 = vld [vmem:[%s5 + $0x18] sm:$0xff]
    %v897 = vadd.f32 %v885, 1e-05
    %v898 = vadd.f32 %v886, 1e-05
    %v899 = vadd.f32 %v887, 1e-05
    %v900 = vadd.f32 %v888, 1e-05
    %v901 = vrsqrt.pop %v897
    %v902 = vrsqrt.pop %v898
    %v903 = vrsqrt.pop %v899
    %v904 = vrsqrt.pop %v900
    %v905 = vmul.f32 %v893, %v901
    %v906 = vmul.f32 %v894, %v902
    %v907 = vmul.f32 %v895, %v903
    %v908 = vmul.f32 %v896, %v904
    %910 = vset.pattern.permute.xlu0 0
    %911 = vperm.xlu0 %910, %v905
    %v912 = vpop.permute.xlu0 %911
    %915 = vset.pattern.permute.xlu0 0
    %916 = vperm.xlu0 %915, %v906
    %v917 = vpop.permute.xlu0 %916
    %920 = vset.pattern.permute.xlu0 0
    %921 = vperm.xlu0 %920, %v907
    %v922 = vpop.permute.xlu0 %921
    %925 = vset.pattern.permute.xlu0 0
    %926 = vperm.xlu0 %925, %v908
    %v927 = vpop.permute.xlu0 %926
    %v929 = vmul.f32 %v889, %v912
    %v930 = vmul.f32 %v890, %v917
    %v931 = vmul.f32 %v891, %v922
    %v932 = vmul.f32 %v892, %v927
    %v933 = vld [vmem:[%s3] sm:$0xff]
    %v934 = vld [vmem:[%s3 + $0x8] sm:$0xff]
    %v935 = vld [vmem:[%s3 + $0x10] sm:$0xff]
    %v936 = vld [vmem:[%s3 + $0x18] sm:$0xff]
    %938 = vset.pattern.permute.xlu0 0
    %939 = vperm.xlu0 %938, %v933
    %v940 = vpop.permute.xlu0 %939
    %943 = vset.pattern.permute.xlu0 0
    %944 = vperm.xlu0 %943, %v934
    %v945 = vpop.permute.xlu0 %944
    %948 = vset.pattern.permute.xlu0 0
    %949 = vperm.xlu0 %948, %v935
    %v950 = vpop.permute.xlu0 %949
    %953 = vset.pattern.permute.xlu0 0
    %954 = vperm.xlu0 %953, %v936
    %v955 = vpop.permute.xlu0 %954
    %v957 = vadd.f32 %v929, %v940
    %v958 = vadd.f32 %v930, %v945
    %v959 = vadd.f32 %v931, %v950
    %v960 = vadd.f32 %v932, %v955
    %v961 = vmax.f32 %v957, 0.0
    %v962 = vmax.f32 %v958, 0.0
    %v963 = vmax.f32 %v959, 0.0
    %v964 = vmax.f32 %v960, 0.0
    %v965 = vld [vmem:[%s15] sm:$0xff]
    %v967 = vsel %vm844, %v965, 0
    %969 = vmatprep.subr.mxu0 0.0
    %970 = vmatpush1.msra.mxu0 0.0
    %971 = vmatprep.subr.mxu0 0.0
    %972 = vmatpush1.msra.mxu0 0.0
    %973 = vmatprep.subr.mxu0 0.0
    %974 = vmatpush1.msra.mxu0 0.0
    %975 = vmatprep.subr.mxu0 0.0
    %976 = vmatpush1.msra.mxu0 0.0
    %977 = vmatprep.subr.mxu0 0.0
    %978 = vmatpush1.msra.mxu0 0.0
    %979 = vmatprep.subr.mxu0 0.0
    %980 = vmatpush1.msra.mxu0 0.0
    %981 = vmatprep.subr.mxu0 0.0
    %982 = vmatpush1.msra.mxu0 0.0
    %983 = vmatprep.subr.mxu0 0.0
    %984 = vmatpush1.msra.mxu0 0.0
    %985 = vmatprep.subr.mxu0 0.0
    %986 = vmatpush1.msra.mxu0 0.0
    %987 = vmatprep.subr.mxu0 0.0
    %988 = vmatpush1.msra.mxu0 0.0
    %989 = vmatprep.subr.mxu0 0.0
    %990 = vmatpush1.msra.mxu0 0.0
    %991 = vmatprep.subr.mxu0 0.0
    %992 = vmatpush1.msra.mxu0 0.0
    %993 = vmatprep.subr.mxu0 0.0
    %994 = vmatpush1.msra.mxu0 %v964
    %995 = vmatprep.subr.mxu0 0.0
    %996 = vmatpush1.msra.mxu0 %v963
    %997 = vmatprep.subr.mxu0 0.0
    %998 = vmatpush1.msra.mxu0 %v962
    %999 = vmatprep.subr.mxu0 0.0
    %1000 = vmatpush1.msra.mxu0 %v961
    %1001 = vmatprep.subr.mxu0 0.0
    %1002 = vmatpush2.msra.mxu0 0.0
    %1003 = vmatprep.subr.mxu0 0.0
    %1004 = vmatpush2.msra.mxu0 0.0
    %1005 = vmatprep.subr.mxu0 0.0
    %1006 = vmatpush2.msra.mxu0 0.0
    %1007 = vmatprep.subr.mxu0 0.0
    %1008 = vmatpush2.msra.mxu0 0.0
    %1009 = vmatprep.subr.mxu0 0.0
    %1010 = vmatpush2.msra.mxu0 0.0
    %1011 = vmatprep.subr.mxu0 0.0
    %1012 = vmatpush2.msra.mxu0 0.0
    %1013 = vmatprep.subr.mxu0 0.0
    %1014 = vmatpush2.msra.mxu0 0.0
    %1015 = vmatprep.subr.mxu0 0.0
    %1016 = vmatpush2.msra.mxu0 0.0
    %1017 = vmatprep.subr.mxu0 0.0
    %1018 = vmatpush2.msra.mxu0 0.0
    %1019 = vmatprep.subr.mxu0 0.0
    %1020 = vmatpush2.msra.mxu0 0.0
    %1021 = vmatprep.subr.mxu0 0.0
    %1022 = vmatpush2.msra.mxu0 0.0
    %1023 = vmatprep.subr.mxu0 0.0
    %1024 = vmatpush2.msra.mxu0 0.0
    %1025 = vmatprep.subr.mxu0 0.0
    %1026 = vmatpush2.msra.mxu0 0.0
    %1027 = vmatprep.subr.mxu0 0.0
    %1028 = vmatpush2.msra.mxu0 0.0
    %1029 = vmatprep.subr.mxu0 0.0
    %1030 = vmatpush2.msra.mxu0 0.0
    %1031 = vmatprep.subr.mxu0 0.0
    %1032 = vmatpush2.msra.mxu0 0.0
    %1033 = vmatprep.mubr.f32.mxu0 0.0
    %1034 = vmatmul.mubr.f32.gmra.mxu0 %v967
    %v1035 = vpop.f32.mrf.mxu0
    %v1036 = vadd.f32 0.0, %v1035
    %v1037 = vpop.f32.mrf.mxu0
    %1038 = vdwg.mxu0
    %1040 = vrot.lane.b32.xlu0 %v1036, 19
    %v1041 = vpop.permute.xlu0 %1040
    %v1043 = vsel %vm243, 0.0, %v1041
    %v1044 = vsel %vm245, %v1043, 0.0
    %1049 = vrot.lane.b32.xlu0 %v961, 1
    %v1050 = vpop.permute.xlu0 %1049
    %1051 = vrot.lane.b32.xlu0 %v962, 1
    %v1052 = vpop.permute.xlu0 %1051
    %1053 = vrot.lane.b32.xlu0 %v963, 1
    %v1054 = vpop.permute.xlu0 %1053
    %1055 = vrot.lane.b32.xlu0 %v964, 1
    %v1056 = vpop.permute.xlu0 %1055
    %v1061 = vsel %vm250, -inf, %v1050
    %v1062 = vsel %vm250, -inf, %v1052
    %v1063 = vsel %vm250, -inf, %v1054
    %v1064 = vsel %vm250, -inf, %v1056
    %v1065 = vsel %vm252, %v1061, -inf
    %v1066 = vsel %vm252, %v1062, -inf
    %v1067 = vsel %vm252, %v1063, -inf
    %v1068 = vsel %vm252, %v1064, -inf
    %1073 = vrot.lane.b32.xlu0 %v1065, 127
    %v1074 = vpop.permute.xlu0 %1073
    %1075 = vrot.lane.b32.xlu0 %v1066, 127
    %v1076 = vpop.permute.xlu0 %1075
    %1077 = vrot.lane.b32.xlu0 %v1067, 127
    %v1078 = vpop.permute.xlu0 %1077
    %1079 = vrot.lane.b32.xlu0 %v1068, 127
    %v1080 = vpop.permute.xlu0 %1079
    %v1085 = vmax.f32 %v1065, %v1074
    %v1086 = vmax.f32 %v1066, %v1076
    %v1087 = vmax.f32 %v1067, %v1078
    %v1088 = vmax.f32 %v1068, %v1080
    %1089 = vrot.lane.b32.xlu0 %v1065, 126
    %v1090 = vpop.permute.xlu0 %1089
    %1091 = vrot.lane.b32.xlu0 %v1066, 126
    %v1092 = vpop.permute.xlu0 %1091
    %1093 = vrot.lane.b32.xlu0 %v1067, 126
    %v1094 = vpop.permute.xlu0 %1093
    %1095 = vrot.lane.b32.xlu0 %v1068, 126
    %v1096 = vpop.permute.xlu0 %1095
    %v1101 = vmax.f32 %v1085, %v1090
    %v1102 = vmax.f32 %v1086, %v1092
    %v1103 = vmax.f32 %v1087, %v1094
    %v1104 = vmax.f32 %v1088, %v1096
    %1106 = vrot.lane.b32.xlu0 %v1044, 127
    %v1107 = vpop.permute.xlu0 %1106
    %1109 = vrot.lane.b32.xlu0 %v1044, 126
    %v1110 = vpop.permute.xlu0 %1109
    %1112 = vrot.lane.b32.xlu0 %v1044, 125
    %v1113 = vpop.permute.xlu0 %1112
    %1115 = vrot.lane.b32.xlu0 %v1044, 124
    %v1116 = vpop.permute.xlu0 %1115
    %1118 = vrot.lane.b32.xlu0 %v1044, 123
    %v1119 = vpop.permute.xlu0 %1118
    %1121 = vrot.lane.b32.xlu0 %v1044, 122
    %v1122 = vpop.permute.xlu0 %1121
    %1124 = vrot.lane.b32.xlu0 %v1044, 121
    %v1125 = vpop.permute.xlu0 %1124
    %1127 = vrot.lane.b32.xlu0 %v1044, 120
    %v1128 = vpop.permute.xlu0 %1127
    %1130 = vrot.lane.b32.xlu0 %v1044, 119
    %v1131 = vpop.permute.xlu0 %1130
    %1133 = vrot.lane.b32.xlu0 %v1044, 118
    %v1134 = vpop.permute.xlu0 %1133
    %1136 = vrot.lane.b32.xlu0 %v1044, 117
    %v1137 = vpop.permute.xlu0 %1136
    %1139 = vrot.lane.b32.xlu0 %v1044, 116
    %v1140 = vpop.permute.xlu0 %1139
    %1142 = vrot.lane.b32.xlu0 %v1044, 115
    %v1143 = vpop.permute.xlu0 %1142
    %1145 = vrot.lane.b32.xlu0 %v1044, 114
    %v1146 = vpop.permute.xlu0 %1145
    %1148 = vrot.lane.b32.xlu0 %v1044, 113
    %v1149 = vpop.permute.xlu0 %1148
    %1155 = vrot.lane.b32.xlu0 %v1101, 32
    %v1156 = vpop.permute.xlu0 %1155
    %1157 = vrot.lane.b32.xlu0 %v1102, 32
    %v1158 = vpop.permute.xlu0 %1157
    %1159 = vrot.lane.b32.xlu0 %v1103, 32
    %v1160 = vpop.permute.xlu0 %1159
    %1161 = vrot.lane.b32.xlu0 %v1104, 32
    %v1162 = vpop.permute.xlu0 %1161
    %1163 = vrot.lane.b32.xlu0 %v1044, 112
    %v1164 = vpop.permute.xlu0 %1163
    %1165 = vrot.lane.b32.xlu0 %v1107, 112
    %v1166 = vpop.permute.xlu0 %1165
    %1167 = vrot.lane.b32.xlu0 %v1110, 112
    %v1168 = vpop.permute.xlu0 %1167
    %1169 = vrot.lane.b32.xlu0 %v1113, 112
    %v1170 = vpop.permute.xlu0 %1169
    %1171 = vrot.lane.b32.xlu0 %v1116, 112
    %v1172 = vpop.permute.xlu0 %1171
    %1173 = vrot.lane.b32.xlu0 %v1119, 112
    %v1174 = vpop.permute.xlu0 %1173
    %1175 = vrot.lane.b32.xlu0 %v1122, 112
    %v1176 = vpop.permute.xlu0 %1175
    %1177 = vrot.lane.b32.xlu0 %v1125, 112
    %v1178 = vpop.permute.xlu0 %1177
    %1179 = vrot.lane.b32.xlu0 %v1128, 112
    %v1180 = vpop.permute.xlu0 %1179
    %1181 = vrot.lane.b32.xlu0 %v1131, 112
    %v1182 = vpop.permute.xlu0 %1181
    %1183 = vrot.lane.b32.xlu0 %v1134, 112
    %v1184 = vpop.permute.xlu0 %1183
    %1185 = vrot.lane.b32.xlu0 %v1137, 112
    %v1186 = vpop.permute.xlu0 %1185
    %1187 = vrot.lane.b32.xlu0 %v1140, 112
    %v1188 = vpop.permute.xlu0 %1187
    %1189 = vrot.lane.b32.xlu0 %v1143, 112
    %v1190 = vpop.permute.xlu0 %1189
    %1191 = vrot.lane.b32.xlu0 %v1146, 112
    %v1192 = vpop.permute.xlu0 %1191
    %1193 = vrot.lane.b32.xlu0 %v1149, 112
    %v1194 = vpop.permute.xlu0 %1193
    %1211 = vrot.lane.b32.xlu0 %v1044, 96
    %v1212 = vpop.permute.xlu0 %1211
    %1213 = vrot.lane.b32.xlu0 %v1107, 96
    %v1214 = vpop.permute.xlu0 %1213
    %1215 = vrot.lane.b32.xlu0 %v1110, 96
    %v1216 = vpop.permute.xlu0 %1215
    %1217 = vrot.lane.b32.xlu0 %v1113, 96
    %v1218 = vpop.permute.xlu0 %1217
    %1219 = vrot.lane.b32.xlu0 %v1116, 96
    %v1220 = vpop.permute.xlu0 %1219
    %1221 = vrot.lane.b32.xlu0 %v1119, 96
    %v1222 = vpop.permute.xlu0 %1221
    %1223 = vrot.lane.b32.xlu0 %v1122, 96
    %v1224 = vpop.permute.xlu0 %1223
    %1225 = vrot.lane.b32.xlu0 %v1156, 96
    %v1226 = vpop.permute.xlu0 %1225
    %1227 = vrot.lane.b32.xlu0 %v1158, 96
    %v1228 = vpop.permute.xlu0 %1227
    %1229 = vrot.lane.b32.xlu0 %v1160, 96
    %v1230 = vpop.permute.xlu0 %1229
    %1231 = vrot.lane.b32.xlu0 %v1162, 96
    %v1232 = vpop.permute.xlu0 %1231
    %1244 = vrot.lane.b32.xlu0 %v1036, 3
    %v1245 = vpop.permute.xlu0 %1244
    %v1247 = vsel %vm243, 0.0, %v1245
    %v1248 = vsel %vm245, %v1247, 0.0
    %1249 = vrot.lane.b32.xlu0 %v961, 113
    %v1250 = vpop.permute.xlu0 %1249
    %1251 = vrot.lane.b32.xlu0 %v962, 113
    %v1252 = vpop.permute.xlu0 %1251
    %1253 = vrot.lane.b32.xlu0 %v963, 113
    %v1254 = vpop.permute.xlu0 %1253
    %1255 = vrot.lane.b32.xlu0 %v964, 113
    %v1256 = vpop.permute.xlu0 %1255
    %v1261 = vsel %vm250, -inf, %v1250
    %v1262 = vsel %vm250, -inf, %v1252
    %v1263 = vsel %vm250, -inf, %v1254
    %v1264 = vsel %vm250, -inf, %v1256
    %v1265 = vsel %vm252, %v1261, -inf
    %v1266 = vsel %vm252, %v1262, -inf
    %v1267 = vsel %vm252, %v1263, -inf
    %v1268 = vsel %vm252, %v1264, -inf
    %1273 = vrot.lane.b32.xlu0 %v1265, 127
    %v1274 = vpop.permute.xlu0 %1273
    %1275 = vrot.lane.b32.xlu0 %v1266, 127
    %v1276 = vpop.permute.xlu0 %1275
    %1277 = vrot.lane.b32.xlu0 %v1267, 127
    %v1278 = vpop.permute.xlu0 %1277
    %1279 = vrot.lane.b32.xlu0 %v1268, 127
    %v1280 = vpop.permute.xlu0 %1279
    %v1285 = vmax.f32 %v1265, %v1274
    %v1286 = vmax.f32 %v1266, %v1276
    %v1287 = vmax.f32 %v1267, %v1278
    %v1288 = vmax.f32 %v1268, %v1280
    %1289 = vrot.lane.b32.xlu0 %v1265, 126
    %v1290 = vpop.permute.xlu0 %1289
    %1291 = vrot.lane.b32.xlu0 %v1266, 126
    %v1292 = vpop.permute.xlu0 %1291
    %1293 = vrot.lane.b32.xlu0 %v1267, 126
    %v1294 = vpop.permute.xlu0 %1293
    %1295 = vrot.lane.b32.xlu0 %v1268, 126
    %v1296 = vpop.permute.xlu0 %1295
    %v1301 = vmax.f32 %v1285, %v1290
    %v1302 = vmax.f32 %v1286, %v1292
    %v1303 = vmax.f32 %v1287, %v1294
    %v1304 = vmax.f32 %v1288, %v1296
    %1306 = vrot.lane.b32.xlu0 %v1248, 127
    %v1307 = vpop.permute.xlu0 %1306
    %1308 = vrot.lane.b32.xlu0 %v1248, 126
    %v1309 = vpop.permute.xlu0 %1308
    %1310 = vrot.lane.b32.xlu0 %v1248, 125
    %v1311 = vpop.permute.xlu0 %1310
    %1312 = vrot.lane.b32.xlu0 %v1248, 124
    %v1313 = vpop.permute.xlu0 %1312
    %1314 = vrot.lane.b32.xlu0 %v1248, 123
    %v1315 = vpop.permute.xlu0 %1314
    %1316 = vrot.lane.b32.xlu0 %v1248, 122
    %v1317 = vpop.permute.xlu0 %1316
    %1318 = vrot.lane.b32.xlu0 %v1248, 121
    %v1319 = vpop.permute.xlu0 %1318
    %1320 = vrot.lane.b32.xlu0 %v1248, 120
    %v1321 = vpop.permute.xlu0 %1320
    %1322 = vrot.lane.b32.xlu0 %v1248, 119
    %v1323 = vpop.permute.xlu0 %1322
    %1324 = vrot.lane.b32.xlu0 %v1248, 118
    %v1325 = vpop.permute.xlu0 %1324
    %1326 = vrot.lane.b32.xlu0 %v1248, 117
    %v1327 = vpop.permute.xlu0 %1326
    %1328 = vrot.lane.b32.xlu0 %v1248, 116
    %v1329 = vpop.permute.xlu0 %1328
    %1330 = vrot.lane.b32.xlu0 %v1248, 115
    %v1331 = vpop.permute.xlu0 %1330
    %1332 = vrot.lane.b32.xlu0 %v1248, 114
    %v1333 = vpop.permute.xlu0 %1332
    %1334 = vrot.lane.b32.xlu0 %v1248, 113
    %v1335 = vpop.permute.xlu0 %1334
    %1340 = vrot.lane.b32.xlu0 %v1301, 32
    %v1341 = vpop.permute.xlu0 %1340
    %1342 = vrot.lane.b32.xlu0 %v1302, 32
    %v1343 = vpop.permute.xlu0 %1342
    %1344 = vrot.lane.b32.xlu0 %v1303, 32
    %v1345 = vpop.permute.xlu0 %1344
    %1346 = vrot.lane.b32.xlu0 %v1304, 32
    %v1347 = vpop.permute.xlu0 %1346
    %1348 = vrot.lane.b32.xlu0 %v1248, 112
    %v1349 = vpop.permute.xlu0 %1348
    %1350 = vrot.lane.b32.xlu0 %v1307, 112
    %v1351 = vpop.permute.xlu0 %1350
    %1352 = vrot.lane.b32.xlu0 %v1309, 112
    %v1353 = vpop.permute.xlu0 %1352
    %1354 = vrot.lane.b32.xlu0 %v1311, 112
    %v1355 = vpop.permute.xlu0 %1354
    %1356 = vrot.lane.b32.xlu0 %v1313, 112
    %v1357 = vpop.permute.xlu0 %1356
    %1358 = vrot.lane.b32.xlu0 %v1315, 112
    %v1359 = vpop.permute.xlu0 %1358
    %1360 = vrot.lane.b32.xlu0 %v1317, 112
    %v1361 = vpop.permute.xlu0 %1360
    %1362 = vrot.lane.b32.xlu0 %v1319, 112
    %v1363 = vpop.permute.xlu0 %1362
    %1364 = vrot.lane.b32.xlu0 %v1321, 112
    %v1365 = vpop.permute.xlu0 %1364
    %1366 = vrot.lane.b32.xlu0 %v1323, 112
    %v1367 = vpop.permute.xlu0 %1366
    %1368 = vrot.lane.b32.xlu0 %v1325, 112
    %v1369 = vpop.permute.xlu0 %1368
    %1370 = vrot.lane.b32.xlu0 %v1327, 112
    %v1371 = vpop.permute.xlu0 %1370
    %1372 = vrot.lane.b32.xlu0 %v1329, 112
    %v1373 = vpop.permute.xlu0 %1372
    %1374 = vrot.lane.b32.xlu0 %v1331, 112
    %v1375 = vpop.permute.xlu0 %1374
    %1376 = vrot.lane.b32.xlu0 %v1333, 112
    %v1377 = vpop.permute.xlu0 %1376
    %1378 = vrot.lane.b32.xlu0 %v1335, 112
    %v1379 = vpop.permute.xlu0 %1378
    %1380 = vrot.lane.b32.xlu0 %v1248, 96
    %v1381 = vpop.permute.xlu0 %1380
    %1382 = vrot.lane.b32.xlu0 %v1307, 96
    %v1383 = vpop.permute.xlu0 %1382
    %1384 = vrot.lane.b32.xlu0 %v1309, 96
    %v1385 = vpop.permute.xlu0 %1384
    %1386 = vrot.lane.b32.xlu0 %v1311, 96
    %v1387 = vpop.permute.xlu0 %1386
    %1388 = vrot.lane.b32.xlu0 %v1313, 96
    %v1389 = vpop.permute.xlu0 %1388
    %1390 = vrot.lane.b32.xlu0 %v1315, 96
    %v1391 = vpop.permute.xlu0 %1390
    %1392 = vrot.lane.b32.xlu0 %v1317, 96
    %v1393 = vpop.permute.xlu0 %1392
    %1394 = vrot.lane.b32.xlu0 %v1341, 96
    %v1395 = vpop.permute.xlu0 %1394
    %1396 = vrot.lane.b32.xlu0 %v1343, 96
    %v1397 = vpop.permute.xlu0 %1396
    %1398 = vrot.lane.b32.xlu0 %v1345, 96
    %v1399 = vpop.permute.xlu0 %1398
    %1400 = vrot.lane.b32.xlu0 %v1347, 96
    %v1401 = vpop.permute.xlu0 %1400
    %1402 = vrot.lane.b32.xlu0 %v1248, 16
    %v1403 = vpop.permute.xlu0 %1402
    %1404 = vrot.lane.b32.xlu0 %v1307, 16
    %v1405 = vpop.permute.xlu0 %1404
    %1406 = vrot.lane.b32.xlu0 %v1309, 16
    %v1407 = vpop.permute.xlu0 %1406
    %1408 = vrot.lane.b32.xlu0 %v1311, 16
    %v1409 = vpop.permute.xlu0 %1408
    %1410 = vrot.lane.b32.xlu0 %v1313, 16
    %v1411 = vpop.permute.xlu0 %1410
    %1412 = vrot.lane.b32.xlu0 %v1315, 16
    %v1413 = vpop.permute.xlu0 %1412
    %1414 = vrot.lane.b32.xlu0 %v1317, 16
    %v1415 = vpop.permute.xlu0 %1414
    %1416 = vrot.lane.b32.xlu0 %v1319, 16
    %v1417 = vpop.permute.xlu0 %1416
    %1418 = vrot.lane.b32.xlu0 %v1321, 16
    %v1419 = vpop.permute.xlu0 %1418
    %1420 = vrot.lane.b32.xlu0 %v1323, 16
    %v1421 = vpop.permute.xlu0 %1420
    %1422 = vrot.lane.b32.xlu0 %v1325, 16
    %v1423 = vpop.permute.xlu0 %1422
    %1424 = vrot.lane.b32.xlu0 %v1327, 16
    %v1425 = vpop.permute.xlu0 %1424
    %1426 = vrot.lane.b32.xlu0 %v1329, 16
    %v1427 = vpop.permute.xlu0 %1426
    %1428 = vrot.lane.b32.xlu0 %v1331, 16
    %v1429 = vpop.permute.xlu0 %1428
    %1430 = vrot.lane.b32.xlu0 %v1333, 16
    %v1431 = vpop.permute.xlu0 %1430
    %1432 = vrot.lane.b32.xlu0 %v1335, 16
    %v1433 = vpop.permute.xlu0 %1432
    %1434 = vrot.lane.b32.xlu0 %v1349, 16
    %v1435 = vpop.permute.xlu0 %1434
    %1436 = vrot.lane.b32.xlu0 %v1351, 16
    %v1437 = vpop.permute.xlu0 %1436
    %1438 = vrot.lane.b32.xlu0 %v1353, 16
    %v1439 = vpop.permute.xlu0 %1438
    %1440 = vrot.lane.b32.xlu0 %v1355, 16
    %v1441 = vpop.permute.xlu0 %1440
    %1442 = vrot.lane.b32.xlu0 %v1357, 16
    %v1443 = vpop.permute.xlu0 %1442
    %1444 = vrot.lane.b32.xlu0 %v1359, 16
    %v1445 = vpop.permute.xlu0 %1444
    %1446 = vrot.lane.b32.xlu0 %v1361, 16
    %v1447 = vpop.permute.xlu0 %1446
    %1448 = vrot.lane.b32.xlu0 %v1363, 16
    %v1449 = vpop.permute.xlu0 %1448
    %1450 = vrot.lane.b32.xlu0 %v1365, 16
    %v1451 = vpop.permute.xlu0 %1450
    %1452 = vrot.lane.b32.xlu0 %v1367, 16
    %v1453 = vpop.permute.xlu0 %1452
    %1454 = vrot.lane.b32.xlu0 %v1369, 16
    %v1455 = vpop.permute.xlu0 %1454
    %1456 = vrot.lane.b32.xlu0 %v1371, 16
    %v1457 = vpop.permute.xlu0 %1456
    %1458 = vrot.lane.b32.xlu0 %v1373, 16
    %v1459 = vpop.permute.xlu0 %1458
    %1460 = vrot.lane.b32.xlu0 %v1375, 16
    %v1461 = vpop.permute.xlu0 %1460
    %1462 = vrot.lane.b32.xlu0 %v1377, 16
    %v1463 = vpop.permute.xlu0 %1462
    %1464 = vrot.lane.b32.xlu0 %v1379, 16
    %v1465 = vpop.permute.xlu0 %1464
    %1466 = vrot.lane.b32.xlu0 %v1381, 16
    %v1467 = vpop.permute.xlu0 %1466
    %1468 = vrot.lane.b32.xlu0 %v1383, 16
    %v1469 = vpop.permute.xlu0 %1468
    %1470 = vrot.lane.b32.xlu0 %v1385, 16
    %v1471 = vpop.permute.xlu0 %1470
    %1472 = vrot.lane.b32.xlu0 %v1387, 16
    %v1473 = vpop.permute.xlu0 %1472
    %1474 = vrot.lane.b32.xlu0 %v1389, 16
    %v1475 = vpop.permute.xlu0 %1474
    %1476 = vrot.lane.b32.xlu0 %v1391, 16
    %v1477 = vpop.permute.xlu0 %1476
    %1478 = vrot.lane.b32.xlu0 %v1393, 16
    %v1479 = vpop.permute.xlu0 %1478
    %1480 = vrot.lane.b32.xlu0 %v1395, 16
    %v1481 = vpop.permute.xlu0 %1480
    %1482 = vrot.lane.b32.xlu0 %v1397, 16
    %v1483 = vpop.permute.xlu0 %1482
    %1484 = vrot.lane.b32.xlu0 %v1399, 16
    %v1485 = vpop.permute.xlu0 %1484
    %1486 = vrot.lane.b32.xlu0 %v1401, 16
    %v1487 = vpop.permute.xlu0 %1486
    %v1531 = vsel %vm605, %v1044, %v1403
    %v1532 = vsel %vm605, %v1107, %v1405
    %v1533 = vsel %vm605, %v1110, %v1407
    %v1534 = vsel %vm605, %v1113, %v1409
    %v1535 = vsel %vm605, %v1116, %v1411
    %v1536 = vsel %vm605, %v1119, %v1413
    %v1537 = vsel %vm605, %v1122, %v1415
    %v1538 = vsel %vm605, %v1125, %v1417
    %v1539 = vsel %vm605, %v1128, %v1419
    %v1540 = vsel %vm605, %v1131, %v1421
    %v1541 = vsel %vm605, %v1134, %v1423
    %v1542 = vsel %vm605, %v1137, %v1425
    %v1543 = vsel %vm605, %v1140, %v1427
    %v1544 = vsel %vm605, %v1143, %v1429
    %v1545 = vsel %vm605, %v1146, %v1431
    %v1546 = vsel %vm605, %v1149, %v1433
    %v1547 = vsel %vm605, %v1164, %v1435
    %v1548 = vsel %vm605, %v1166, %v1437
    %v1549 = vsel %vm605, %v1168, %v1439
    %v1550 = vsel %vm605, %v1170, %v1441
    %v1551 = vsel %vm605, %v1172, %v1443
    %v1552 = vsel %vm605, %v1174, %v1445
    %v1553 = vsel %vm605, %v1176, %v1447
    %v1554 = vsel %vm605, %v1178, %v1449
    %v1555 = vsel %vm605, %v1180, %v1451
    %v1556 = vsel %vm605, %v1182, %v1453
    %v1557 = vsel %vm605, %v1184, %v1455
    %v1558 = vsel %vm605, %v1186, %v1457
    %v1559 = vsel %vm605, %v1188, %v1459
    %v1560 = vsel %vm605, %v1190, %v1461
    %v1561 = vsel %vm605, %v1192, %v1463
    %v1562 = vsel %vm605, %v1194, %v1465
    %v1563 = vsel %vm605, %v1212, %v1467
    %v1564 = vsel %vm605, %v1214, %v1469
    %v1565 = vsel %vm605, %v1216, %v1471
    %v1566 = vsel %vm605, %v1218, %v1473
    %v1567 = vsel %vm605, %v1220, %v1475
    %v1568 = vsel %vm605, %v1222, %v1477
    %v1569 = vsel %vm605, %v1224, %v1479
    %v1570 = vsel %vm605, %v1226, %v1481
    %v1571 = vsel %vm605, %v1228, %v1483
    %v1572 = vsel %vm605, %v1230, %v1485
    %v1573 = vsel %vm605, %v1232, %v1487
    %v1574 = vld [vmem:[%s17] sm:$0xff]
    %v1575 = vld [vmem:[%s17 + $0x8] sm:$0xff]
    %v1576 = vld [vmem:[%s17 + $0x10] sm:$0xff]
    %v1577 = vld [vmem:[%s17 + $0x18] sm:$0xff]
    %v1578 = vld [vmem:[%s17 + $0x20] sm:$0xff]
    %v1579 = vld [vmem:[%s17 + $0x28] sm:$0xff]
    %v1580 = vld [vmem:[%s17 + $0x30] sm:$0xff]
    %v1581 = vld [vmem:[%s17 + $0x38] sm:$0xff]
    %v1582 = vld [vmem:[%s17 + $0x40] sm:$0xff]
    %v1583 = vld [vmem:[%s17 + $0x48] sm:$0xff]
    %v1584 = vld [vmem:[%s17 + $0x50] sm:$0xff]
    %v1585 = vld [vmem:[%s17 + $0x58] sm:$0xff]
    %vm1586 = vcmask 719872
    %v1588 = vsel %vm1586, %v1576, 0
    %v1591 = vsel %vm1586, %v1579, 0
    %v1594 = vsel %vm1586, %v1582, 0
    %v1597 = vsel %vm1586, %v1585, 0
    %1599 = vmatprep.subr.mxu0 0.0
    %1600 = vmatpush1.msra.mxu0 %v1546
    %1601 = vmatprep.subr.mxu0 0.0
    %1602 = vmatpush1.msra.mxu0 %v1545
    %1603 = vmatprep.subr.mxu0 0.0
    %1604 = vmatpush1.msra.mxu0 %v1544
    %1605 = vmatprep.subr.mxu0 0.0
    %1606 = vmatpush1.msra.mxu0 %v1543
    %1607 = vmatprep.subr.mxu0 0.0
    %1608 = vmatpush1.msra.mxu0 %v1542
    %1609 = vmatprep.subr.mxu0 0.0
    %1610 = vmatpush1.msra.mxu0 %v1541
    %1611 = vmatprep.subr.mxu0 0.0
    %1612 = vmatpush1.msra.mxu0 %v1540
    %1613 = vmatprep.subr.mxu0 0.0
    %1614 = vmatpush1.msra.mxu0 %v1539
    %1615 = vmatprep.subr.mxu0 0.0
    %1616 = vmatpush1.msra.mxu0 %v1538
    %1617 = vmatprep.subr.mxu0 0.0
    %1618 = vmatpush1.msra.mxu0 %v1537
    %1619 = vmatprep.subr.mxu0 0.0
    %1620 = vmatpush1.msra.mxu0 %v1536
    %1621 = vmatprep.subr.mxu0 0.0
    %1622 = vmatpush1.msra.mxu0 %v1535
    %1623 = vmatprep.subr.mxu0 0.0
    %1624 = vmatpush1.msra.mxu0 %v1534
    %1625 = vmatprep.subr.mxu0 0.0
    %1626 = vmatpush1.msra.mxu0 %v1533
    %1627 = vmatprep.subr.mxu0 0.0
    %1628 = vmatpush1.msra.mxu0 %v1532
    %1629 = vmatprep.subr.mxu0 0.0
    %1630 = vmatpush1.msra.mxu0 %v1531
    %1631 = vmatprep.subr.mxu0 0.0
    %1632 = vmatpush2.msra.mxu0 %v1562
    %1633 = vmatprep.subr.mxu0 0.0
    %1634 = vmatpush2.msra.mxu0 %v1561
    %1635 = vmatprep.subr.mxu0 0.0
    %1636 = vmatpush2.msra.mxu0 %v1560
    %1637 = vmatprep.subr.mxu0 0.0
    %1638 = vmatpush2.msra.mxu0 %v1559
    %1639 = vmatprep.subr.mxu0 0.0
    %1640 = vmatpush2.msra.mxu0 %v1558
    %1641 = vmatprep.subr.mxu0 0.0
    %1642 = vmatpush2.msra.mxu0 %v1557
    %1643 = vmatprep.subr.mxu0 0.0
    %1644 = vmatpush2.msra.mxu0 %v1556
    %1645 = vmatprep.subr.mxu0 0.0
    %1646 = vmatpush2.msra.mxu0 %v1555
    %1647 = vmatprep.subr.mxu0 0.0
    %1648 = vmatpush2.msra.mxu0 %v1554
    %1649 = vmatprep.subr.mxu0 0.0
    %1650 = vmatpush2.msra.mxu0 %v1553
    %1651 = vmatprep.subr.mxu0 0.0
    %1652 = vmatpush2.msra.mxu0 %v1552
    %1653 = vmatprep.subr.mxu0 0.0
    %1654 = vmatpush2.msra.mxu0 %v1551
    %1655 = vmatprep.subr.mxu0 0.0
    %1656 = vmatpush2.msra.mxu0 %v1550
    %1657 = vmatprep.subr.mxu0 0.0
    %1658 = vmatpush2.msra.mxu0 %v1549
    %1659 = vmatprep.subr.mxu0 0.0
    %1660 = vmatpush2.msra.mxu0 %v1548
    %1661 = vmatprep.subr.mxu0 0.0
    %1662 = vmatpush2.msra.mxu0 %v1547
    %1663 = vmatprep.mubr.f32.mxu0 %v1575
    %1664 = vmatmul.mubr.f32.gmra.mxu0 %v1574
    %v1665 = vpop.f32.mrf.mxu0
    %v1666 = vadd.f32 0.0, %v1665
    %v1667 = vpop.f32.mrf.mxu0
    %1668 = vmatprep.mubr.f32.mxu0 %v1578
    %1669 = vmatmul.mubr.f32.gmra.mxu0 %v1577
    %v1670 = vpop.f32.mrf.mxu0
    %v1671 = vadd.f32 0.0, %v1670
    %v1672 = vpop.f32.mrf.mxu0
    %1673 = vmatprep.mubr.f32.mxu0 %v1581
    %1674 = vmatmul.mubr.f32.gmra.mxu0 %v1580
    %v1675 = vpop.f32.mrf.mxu0
    %v1676 = vadd.f32 0.0, %v1675
    %v1677 = vpop.f32.mrf.mxu0
    %1678 = vmatprep.mubr.f32.mxu0 %v1584
    %1679 = vmatmul.mubr.f32.gmra.mxu0 %v1583
    %v1680 = vpop.f32.mrf.mxu0
    %v1681 = vadd.f32 0.0, %v1680
    %v1682 = vpop.f32.mrf.mxu0
    %1683 = vdwg.mxu0
    %1684 = vmatprep.subr.mxu0 0.0
    %1685 = vmatpush1.msra.mxu0 0.0
    %1686 = vmatprep.subr.mxu0 0.0
    %1687 = vmatpush1.msra.mxu0 0.0
    %1688 = vmatprep.subr.mxu0 0.0
    %1689 = vmatpush1.msra.mxu0 0.0
    %1690 = vmatprep.subr.mxu0 0.0
    %1691 = vmatpush1.msra.mxu0 0.0
    %1692 = vmatprep.subr.mxu0 0.0
    %1693 = vmatpush1.msra.mxu0 0.0
    %1694 = vmatprep.subr.mxu0 0.0
    %1695 = vmatpush1.msra.mxu0 %v1573
    %1696 = vmatprep.subr.mxu0 0.0
    %1697 = vmatpush1.msra.mxu0 %v1572
    %1698 = vmatprep.subr.mxu0 0.0
    %1699 = vmatpush1.msra.mxu0 %v1571
    %1700 = vmatprep.subr.mxu0 0.0
    %1701 = vmatpush1.msra.mxu0 %v1570
    %1702 = vmatprep.subr.mxu0 0.0
    %1703 = vmatpush1.msra.mxu0 %v1569
    %1704 = vmatprep.subr.mxu0 0.0
    %1705 = vmatpush1.msra.mxu0 %v1568
    %1706 = vmatprep.subr.mxu0 0.0
    %1707 = vmatpush1.msra.mxu0 %v1567
    %1708 = vmatprep.subr.mxu0 0.0
    %1709 = vmatpush1.msra.mxu0 %v1566
    %1710 = vmatprep.subr.mxu0 0.0
    %1711 = vmatpush1.msra.mxu0 %v1565
    %1712 = vmatprep.subr.mxu0 0.0
    %1713 = vmatpush1.msra.mxu0 %v1564
    %1714 = vmatprep.subr.mxu0 0.0
    %1715 = vmatpush1.msra.mxu0 %v1563
    %1716 = vmatprep.subr.mxu0 0.0
    %1717 = vmatpush2.msra.mxu0 0.0
    %1718 = vmatprep.subr.mxu0 0.0
    %1719 = vmatpush2.msra.mxu0 0.0
    %1720 = vmatprep.subr.mxu0 0.0
    %1721 = vmatpush2.msra.mxu0 0.0
    %1722 = vmatprep.subr.mxu0 0.0
    %1723 = vmatpush2.msra.mxu0 0.0
    %1724 = vmatprep.subr.mxu0 0.0
    %1725 = vmatpush2.msra.mxu0 0.0
    %1726 = vmatprep.subr.mxu0 0.0
    %1727 = vmatpush2.msra.mxu0 0.0
    %1728 = vmatprep.subr.mxu0 0.0
    %1729 = vmatpush2.msra.mxu0 0.0
    %1730 = vmatprep.subr.mxu0 0.0
    %1731 = vmatpush2.msra.mxu0 0.0
    %1732 = vmatprep.subr.mxu0 0.0
    %1733 = vmatpush2.msra.mxu0 0.0
    %1734 = vmatprep.subr.mxu0 0.0
    %1735 = vmatpush2.msra.mxu0 0.0
    %1736 = vmatprep.subr.mxu0 0.0
    %1737 = vmatpush2.msra.mxu0 0.0
    %1738 = vmatprep.subr.mxu0 0.0
    %1739 = vmatpush2.msra.mxu0 0.0
    %1740 = vmatprep.subr.mxu0 0.0
    %1741 = vmatpush2.msra.mxu0 0.0
    %1742 = vmatprep.subr.mxu0 0.0
    %1743 = vmatpush2.msra.mxu0 0.0
    %1744 = vmatprep.subr.mxu0 0.0
    %1745 = vmatpush2.msra.mxu0 0.0
    %1746 = vmatprep.subr.mxu0 0.0
    %1747 = vmatpush2.msra.mxu0 0.0
    %1748 = vmatprep.mubr.f32.mxu0 0.0
    %1749 = vmatmul.mubr.f32.gmra.mxu0 %v1588
    %v1750 = vpop.f32.mrf.mxu0
    %v1751 = vadd.f32 %v1666, %v1750
    %v1752 = vpop.f32.mrf.mxu0
    %1753 = vmatprep.mubr.f32.mxu0 0.0
    %1754 = vmatmul.mubr.f32.gmra.mxu0 %v1591
    %v1755 = vpop.f32.mrf.mxu0
    %v1756 = vadd.f32 %v1671, %v1755
    %v1757 = vpop.f32.mrf.mxu0
    %1758 = vmatprep.mubr.f32.mxu0 0.0
    %1759 = vmatmul.mubr.f32.gmra.mxu0 %v1594
    %v1760 = vpop.f32.mrf.mxu0
    %v1761 = vadd.f32 %v1676, %v1760
    %v1762 = vpop.f32.mrf.mxu0
    %1763 = vmatprep.mubr.f32.mxu0 0.0
    %1764 = vmatmul.mubr.f32.gmra.mxu0 %v1597
    %v1765 = vpop.f32.mrf.mxu0
    %v1766 = vadd.f32 %v1681, %v1765
    %v1767 = vpop.f32.mrf.mxu0
    %1768 = vdwg.mxu0
    %v1769 = vsel %vm844, %v1751, 0.0
    %1770 = vadd.xlane.f32.xlu0 %v1769
    %v1771 = vpop.xlane.xlu0 %1770
    %v1772 = vsel %vm844, %v1756, 0.0
    %1773 = vadd.xlane.f32.xlu0 %v1772
    %v1774 = vpop.xlane.xlu0 %1773
    %v1775 = vsel %vm844, %v1761, 0.0
    %1776 = vadd.xlane.f32.xlu0 %v1775
    %v1777 = vpop.xlane.xlu0 %1776
    %v1778 = vsel %vm844, %v1766, 0.0
    %1779 = vadd.xlane.f32.xlu0 %v1778
    %v1780 = vpop.xlane.xlu0 %1779
    %v1781 = vmul.f32 %v1771, 0.03125
    %v1782 = vmul.f32 %v1774, 0.03125
    %v1783 = vmul.f32 %v1777, 0.03125
    %v1784 = vmul.f32 %v1780, 0.03125
    %v1785 = vmul.f32 %v1751, %v1751
    %v1786 = vmul.f32 %v1756, %v1756
    %v1787 = vmul.f32 %v1761, %v1761
    %v1788 = vmul.f32 %v1766, %v1766
    %v1789 = vsel %vm844, %v1785, 0.0
    %1790 = vadd.xlane.f32.xlu0 %v1789
    %v1791 = vpop.xlane.xlu0 %1790
    %v1792 = vsel %vm844, %v1786, 0.0
    %1793 = vadd.xlane.f32.xlu0 %v1792
    %v1794 = vpop.xlane.xlu0 %1793
    %v1795 = vsel %vm844, %v1787, 0.0
    %1796 = vadd.xlane.f32.xlu0 %v1795
    %v1797 = vpop.xlane.xlu0 %1796
    %v1798 = vsel %vm844, %v1788, 0.0
    %1799 = vadd.xlane.f32.xlu0 %v1798
    %v1800 = vpop.xlane.xlu0 %1799
    %v1801 = vmul.f32 %v1791, 0.03125
    %v1802 = vmul.f32 %v1794, 0.03125
    %v1803 = vmul.f32 %v1797, 0.03125
    %v1804 = vmul.f32 %v1800, 0.03125
    %v1805 = vmul.f32 %v1781, %v1781
    %v1806 = vmul.f32 %v1782, %v1782
    %v1807 = vmul.f32 %v1783, %v1783
    %v1808 = vmul.f32 %v1784, %v1784
    %v1809 = vsub.f32 %v1801, %v1805
    %v1810 = vsub.f32 %v1802, %v1806
    %v1811 = vsub.f32 %v1803, %v1807
    %v1812 = vsub.f32 %v1804, %v1808
    %v1813 = vsub.f32 %v1751, %v1781
    %v1814 = vsub.f32 %v1756, %v1782
    %v1815 = vsub.f32 %v1761, %v1783
    %v1816 = vsub.f32 %v1766, %v1784
    %v1817 = vld [vmem:[%s13] sm:$0xff]
    %v1818 = vld [vmem:[%s13 + $0x8] sm:$0xff]
    %v1819 = vld [vmem:[%s13 + $0x10] sm:$0xff]
    %v1820 = vld [vmem:[%s13 + $0x18] sm:$0xff]
    %v1821 = vadd.f32 %v1809, 1e-05
    %v1822 = vadd.f32 %v1810, 1e-05
    %v1823 = vadd.f32 %v1811, 1e-05
    %v1824 = vadd.f32 %v1812, 1e-05
    %v1825 = vrsqrt.pop %v1821
    %v1826 = vrsqrt.pop %v1822
    %v1827 = vrsqrt.pop %v1823
    %v1828 = vrsqrt.pop %v1824
    %v1829 = vmul.f32 %v1817, %v1825
    %v1830 = vmul.f32 %v1818, %v1826
    %v1831 = vmul.f32 %v1819, %v1827
    %v1832 = vmul.f32 %v1820, %v1828
    %1834 = vset.pattern.permute.xlu0 0
    %1835 = vperm.xlu0 %1834, %v1829
    %v1836 = vpop.permute.xlu0 %1835
    %1839 = vset.pattern.permute.xlu0 0
    %1840 = vperm.xlu0 %1839, %v1830
    %v1841 = vpop.permute.xlu0 %1840
    %1844 = vset.pattern.permute.xlu0 0
    %1845 = vperm.xlu0 %1844, %v1831
    %v1846 = vpop.permute.xlu0 %1845
    %1849 = vset.pattern.permute.xlu0 0
    %1850 = vperm.xlu0 %1849, %v1832
    %v1851 = vpop.permute.xlu0 %1850
    %v1853 = vmul.f32 %v1813, %v1836
    %v1854 = vmul.f32 %v1814, %v1841
    %v1855 = vmul.f32 %v1815, %v1846
    %v1856 = vmul.f32 %v1816, %v1851
    %v1857 = vld [vmem:[%s11] sm:$0xff]
    %v1858 = vld [vmem:[%s11 + $0x8] sm:$0xff]
    %v1859 = vld [vmem:[%s11 + $0x10] sm:$0xff]
    %v1860 = vld [vmem:[%s11 + $0x18] sm:$0xff]
    %1862 = vset.pattern.permute.xlu0 0
    %1863 = vperm.xlu0 %1862, %v1857
    %v1864 = vpop.permute.xlu0 %1863
    %1867 = vset.pattern.permute.xlu0 0
    %1868 = vperm.xlu0 %1867, %v1858
    %v1869 = vpop.permute.xlu0 %1868
    %1872 = vset.pattern.permute.xlu0 0
    %1873 = vperm.xlu0 %1872, %v1859
    %v1874 = vpop.permute.xlu0 %1873
    %1877 = vset.pattern.permute.xlu0 0
    %1878 = vperm.xlu0 %1877, %v1860
    %v1879 = vpop.permute.xlu0 %1878
    %v1881 = vadd.f32 %v1853, %v1864
    %v1882 = vadd.f32 %v1854, %v1869
    %v1883 = vadd.f32 %v1855, %v1874
    %v1884 = vadd.f32 %v1856, %v1879
    %v1885 = vmax.f32 %v1881, 0.0
    %v1886 = vmax.f32 %v1882, 0.0
    %v1887 = vmax.f32 %v1883, 0.0
    %v1888 = vmax.f32 %v1884, 0.0
    %v1889 = vld [vmem:[%s23] sm:$0xff]
    %v1891 = vsel %vm844, %v1889, 0
    %1893 = vmatprep.subr.mxu0 0.0
    %1894 = vmatpush1.msra.mxu0 0.0
    %1895 = vmatprep.subr.mxu0 0.0
    %1896 = vmatpush1.msra.mxu0 0.0
    %1897 = vmatprep.subr.mxu0 0.0
    %1898 = vmatpush1.msra.mxu0 0.0
    %1899 = vmatprep.subr.mxu0 0.0
    %1900 = vmatpush1.msra.mxu0 0.0
    %1901 = vmatprep.subr.mxu0 0.0
    %1902 = vmatpush1.msra.mxu0 0.0
    %1903 = vmatprep.subr.mxu0 0.0
    %1904 = vmatpush1.msra.mxu0 0.0
    %1905 = vmatprep.subr.mxu0 0.0
    %1906 = vmatpush1.msra.mxu0 0.0
    %1907 = vmatprep.subr.mxu0 0.0
    %1908 = vmatpush1.msra.mxu0 0.0
    %1909 = vmatprep.subr.mxu0 0.0
    %1910 = vmatpush1.msra.mxu0 0.0
    %1911 = vmatprep.subr.mxu0 0.0
    %1912 = vmatpush1.msra.mxu0 0.0
    %1913 = vmatprep.subr.mxu0 0.0
    %1914 = vmatpush1.msra.mxu0 0.0
    %1915 = vmatprep.subr.mxu0 0.0
    %1916 = vmatpush1.msra.mxu0 0.0
    %1917 = vmatprep.subr.mxu0 0.0
    %1918 = vmatpush1.msra.mxu0 %v1888
    %1919 = vmatprep.subr.mxu0 0.0
    %1920 = vmatpush1.msra.mxu0 %v1887
    %1921 = vmatprep.subr.mxu0 0.0
    %1922 = vmatpush1.msra.mxu0 %v1886
    %1923 = vmatprep.subr.mxu0 0.0
    %1924 = vmatpush1.msra.mxu0 %v1885
    %1925 = vmatprep.subr.mxu0 0.0
    %1926 = vmatpush2.msra.mxu0 0.0
    %1927 = vmatprep.subr.mxu0 0.0
    %1928 = vmatpush2.msra.mxu0 0.0
    %1929 = vmatprep.subr.mxu0 0.0
    %1930 = vmatpush2.msra.mxu0 0.0
    %1931 = vmatprep.subr.mxu0 0.0
    %1932 = vmatpush2.msra.mxu0 0.0
    %1933 = vmatprep.subr.mxu0 0.0
    %1934 = vmatpush2.msra.mxu0 0.0
    %1935 = vmatprep.subr.mxu0 0.0
    %1936 = vmatpush2.msra.mxu0 0.0
    %1937 = vmatprep.subr.mxu0 0.0
    %1938 = vmatpush2.msra.mxu0 0.0
    %1939 = vmatprep.subr.mxu0 0.0
    %1940 = vmatpush2.msra.mxu0 0.0
    %1941 = vmatprep.subr.mxu0 0.0
    %1942 = vmatpush2.msra.mxu0 0.0
    %1943 = vmatprep.subr.mxu0 0.0
    %1944 = vmatpush2.msra.mxu0 0.0
    %1945 = vmatprep.subr.mxu0 0.0
    %1946 = vmatpush2.msra.mxu0 0.0
    %1947 = vmatprep.subr.mxu0 0.0
    %1948 = vmatpush2.msra.mxu0 0.0
    %1949 = vmatprep.subr.mxu0 0.0
    %1950 = vmatpush2.msra.mxu0 0.0
    %1951 = vmatprep.subr.mxu0 0.0
    %1952 = vmatpush2.msra.mxu0 0.0
    %1953 = vmatprep.subr.mxu0 0.0
    %1954 = vmatpush2.msra.mxu0 0.0
    %1955 = vmatprep.subr.mxu0 0.0
    %1956 = vmatpush2.msra.mxu0 0.0
    %1957 = vmatprep.mubr.f32.mxu0 0.0
    %1958 = vmatmul.mubr.f32.gmra.mxu0 %v1891
    %v1959 = vpop.f32.mrf.mxu0
    %v1960 = vadd.f32 0.0, %v1959
    %v1961 = vpop.f32.mrf.mxu0
    %1962 = vdwg.mxu0
    %1964 = vrot.lane.b32.xlu0 %v1960, 19
    %v1965 = vpop.permute.xlu0 %1964
    %v1967 = vsel %vm243, 0.0, %v1965
    %v1968 = vsel %vm245, %v1967, 0.0
    %1973 = vrot.lane.b32.xlu0 %v1885, 1
    %v1974 = vpop.permute.xlu0 %1973
    %1975 = vrot.lane.b32.xlu0 %v1886, 1
    %v1976 = vpop.permute.xlu0 %1975
    %1977 = vrot.lane.b32.xlu0 %v1887, 1
    %v1978 = vpop.permute.xlu0 %1977
    %1979 = vrot.lane.b32.xlu0 %v1888, 1
    %v1980 = vpop.permute.xlu0 %1979
    %v1985 = vsel %vm250, -inf, %v1974
    %v1986 = vsel %vm250, -inf, %v1976
    %v1987 = vsel %vm250, -inf, %v1978
    %v1988 = vsel %vm250, -inf, %v1980
    %v1989 = vsel %vm252, %v1985, -inf
    %v1990 = vsel %vm252, %v1986, -inf
    %v1991 = vsel %vm252, %v1987, -inf
    %v1992 = vsel %vm252, %v1988, -inf
    %1997 = vrot.lane.b32.xlu0 %v1989, 127
    %v1998 = vpop.permute.xlu0 %1997
    %1999 = vrot.lane.b32.xlu0 %v1990, 127
    %v2000 = vpop.permute.xlu0 %1999
    %2001 = vrot.lane.b32.xlu0 %v1991, 127
    %v2002 = vpop.permute.xlu0 %2001
    %2003 = vrot.lane.b32.xlu0 %v1992, 127
    %v2004 = vpop.permute.xlu0 %2003
    %v2009 = vmax.f32 %v1989, %v1998
    %v2010 = vmax.f32 %v1990, %v2000
    %v2011 = vmax.f32 %v1991, %v2002
    %v2012 = vmax.f32 %v1992, %v2004
    %2013 = vrot.lane.b32.xlu0 %v1989, 126
    %v2014 = vpop.permute.xlu0 %2013
    %2015 = vrot.lane.b32.xlu0 %v1990, 126
    %v2016 = vpop.permute.xlu0 %2015
    %2017 = vrot.lane.b32.xlu0 %v1991, 126
    %v2018 = vpop.permute.xlu0 %2017
    %2019 = vrot.lane.b32.xlu0 %v1992, 126
    %v2020 = vpop.permute.xlu0 %2019
    %v2025 = vmax.f32 %v2009, %v2014
    %v2026 = vmax.f32 %v2010, %v2016
    %v2027 = vmax.f32 %v2011, %v2018
    %v2028 = vmax.f32 %v2012, %v2020
    %2030 = vrot.lane.b32.xlu0 %v1968, 127
    %v2031 = vpop.permute.xlu0 %2030
    %2033 = vrot.lane.b32.xlu0 %v1968, 126
    %v2034 = vpop.permute.xlu0 %2033
    %2036 = vrot.lane.b32.xlu0 %v1968, 125
    %v2037 = vpop.permute.xlu0 %2036
    %2039 = vrot.lane.b32.xlu0 %v1968, 124
    %v2040 = vpop.permute.xlu0 %2039
    %2042 = vrot.lane.b32.xlu0 %v1968, 123
    %v2043 = vpop.permute.xlu0 %2042
    %2045 = vrot.lane.b32.xlu0 %v1968, 122
    %v2046 = vpop.permute.xlu0 %2045
    %2048 = vrot.lane.b32.xlu0 %v1968, 121
    %v2049 = vpop.permute.xlu0 %2048
    %2051 = vrot.lane.b32.xlu0 %v1968, 120
    %v2052 = vpop.permute.xlu0 %2051
    %2054 = vrot.lane.b32.xlu0 %v1968, 119
    %v2055 = vpop.permute.xlu0 %2054
    %2057 = vrot.lane.b32.xlu0 %v1968, 118
    %v2058 = vpop.permute.xlu0 %2057
    %2060 = vrot.lane.b32.xlu0 %v1968, 117
    %v2061 = vpop.permute.xlu0 %2060
    %2063 = vrot.lane.b32.xlu0 %v1968, 116
    %v2064 = vpop.permute.xlu0 %2063
    %2066 = vrot.lane.b32.xlu0 %v1968, 115
    %v2067 = vpop.permute.xlu0 %2066
    %2069 = vrot.lane.b32.xlu0 %v1968, 114
    %v2070 = vpop.permute.xlu0 %2069
    %2072 = vrot.lane.b32.xlu0 %v1968, 113
    %v2073 = vpop.permute.xlu0 %2072
    %2079 = vrot.lane.b32.xlu0 %v2025, 32
    %v2080 = vpop.permute.xlu0 %2079
    %2081 = vrot.lane.b32.xlu0 %v2026, 32
    %v2082 = vpop.permute.xlu0 %2081
    %2083 = vrot.lane.b32.xlu0 %v2027, 32
    %v2084 = vpop.permute.xlu0 %2083
    %2085 = vrot.lane.b32.xlu0 %v2028, 32
    %v2086 = vpop.permute.xlu0 %2085
    %2087 = vrot.lane.b32.xlu0 %v1968, 112
    %v2088 = vpop.permute.xlu0 %2087
    %2089 = vrot.lane.b32.xlu0 %v2031, 112
    %v2090 = vpop.permute.xlu0 %2089
    %2091 = vrot.lane.b32.xlu0 %v2034, 112
    %v2092 = vpop.permute.xlu0 %2091
    %2093 = vrot.lane.b32.xlu0 %v2037, 112
    %v2094 = vpop.permute.xlu0 %2093
    %2095 = vrot.lane.b32.xlu0 %v2040, 112
    %v2096 = vpop.permute.xlu0 %2095
    %2097 = vrot.lane.b32.xlu0 %v2043, 112
    %v2098 = vpop.permute.xlu0 %2097
    %2099 = vrot.lane.b32.xlu0 %v2046, 112
    %v2100 = vpop.permute.xlu0 %2099
    %2101 = vrot.lane.b32.xlu0 %v2049, 112
    %v2102 = vpop.permute.xlu0 %2101
    %2103 = vrot.lane.b32.xlu0 %v2052, 112
    %v2104 = vpop.permute.xlu0 %2103
    %2105 = vrot.lane.b32.xlu0 %v2055, 112
    %v2106 = vpop.permute.xlu0 %2105
    %2107 = vrot.lane.b32.xlu0 %v2058, 112
    %v2108 = vpop.permute.xlu0 %2107
    %2109 = vrot.lane.b32.xlu0 %v2061, 112
    %v2110 = vpop.permute.xlu0 %2109
    %2111 = vrot.lane.b32.xlu0 %v2064, 112
    %v2112 = vpop.permute.xlu0 %2111
    %2113 = vrot.lane.b32.xlu0 %v2067, 112
    %v2114 = vpop.permute.xlu0 %2113
    %2115 = vrot.lane.b32.xlu0 %v2070, 112
    %v2116 = vpop.permute.xlu0 %2115
    %2117 = vrot.lane.b32.xlu0 %v2073, 112
    %v2118 = vpop.permute.xlu0 %2117
    %2135 = vrot.lane.b32.xlu0 %v1968, 96
    %v2136 = vpop.permute.xlu0 %2135
    %2137 = vrot.lane.b32.xlu0 %v2031, 96
    %v2138 = vpop.permute.xlu0 %2137
    %2139 = vrot.lane.b32.xlu0 %v2034, 96
    %v2140 = vpop.permute.xlu0 %2139
    %2141 = vrot.lane.b32.xlu0 %v2037, 96
    %v2142 = vpop.permute.xlu0 %2141
    %2143 = vrot.lane.b32.xlu0 %v2040, 96
    %v2144 = vpop.permute.xlu0 %2143
    %2145 = vrot.lane.b32.xlu0 %v2043, 96
    %v2146 = vpop.permute.xlu0 %2145
    %2147 = vrot.lane.b32.xlu0 %v2046, 96
    %v2148 = vpop.permute.xlu0 %2147
    %2149 = vrot.lane.b32.xlu0 %v2080, 96
    %v2150 = vpop.permute.xlu0 %2149
    %2151 = vrot.lane.b32.xlu0 %v2082, 96
    %v2152 = vpop.permute.xlu0 %2151
    %2153 = vrot.lane.b32.xlu0 %v2084, 96
    %v2154 = vpop.permute.xlu0 %2153
    %2155 = vrot.lane.b32.xlu0 %v2086, 96
    %v2156 = vpop.permute.xlu0 %2155
    %2168 = vrot.lane.b32.xlu0 %v1960, 3
    %v2169 = vpop.permute.xlu0 %2168
    %v2171 = vsel %vm243, 0.0, %v2169
    %v2172 = vsel %vm245, %v2171, 0.0
    %2173 = vrot.lane.b32.xlu0 %v1885, 113
    %v2174 = vpop.permute.xlu0 %2173
    %2175 = vrot.lane.b32.xlu0 %v1886, 113
    %v2176 = vpop.permute.xlu0 %2175
    %2177 = vrot.lane.b32.xlu0 %v1887, 113
    %v2178 = vpop.permute.xlu0 %2177
    %2179 = vrot.lane.b32.xlu0 %v1888, 113
    %v2180 = vpop.permute.xlu0 %2179
    %v2185 = vsel %vm250, -inf, %v2174
    %v2186 = vsel %vm250, -inf, %v2176
    %v2187 = vsel %vm250, -inf, %v2178
    %v2188 = vsel %vm250, -inf, %v2180
    %v2189 = vsel %vm252, %v2185, -inf
    %v2190 = vsel %vm252, %v2186, -inf
    %v2191 = vsel %vm252, %v2187, -inf
    %v2192 = vsel %vm252, %v2188, -inf
    %2197 = vrot.lane.b32.xlu0 %v2189, 127
    %v2198 = vpop.permute.xlu0 %2197
    %2199 = vrot.lane.b32.xlu0 %v2190, 127
    %v2200 = vpop.permute.xlu0 %2199
    %2201 = vrot.lane.b32.xlu0 %v2191, 127
    %v2202 = vpop.permute.xlu0 %2201
    %2203 = vrot.lane.b32.xlu0 %v2192, 127
    %v2204 = vpop.permute.xlu0 %2203
    %v2209 = vmax.f32 %v2189, %v2198
    %v2210 = vmax.f32 %v2190, %v2200
    %v2211 = vmax.f32 %v2191, %v2202
    %v2212 = vmax.f32 %v2192, %v2204
    %2213 = vrot.lane.b32.xlu0 %v2189, 126
    %v2214 = vpop.permute.xlu0 %2213
    %2215 = vrot.lane.b32.xlu0 %v2190, 126
    %v2216 = vpop.permute.xlu0 %2215
    %2217 = vrot.lane.b32.xlu0 %v2191, 126
    %v2218 = vpop.permute.xlu0 %2217
    %2219 = vrot.lane.b32.xlu0 %v2192, 126
    %v2220 = vpop.permute.xlu0 %2219
    %v2225 = vmax.f32 %v2209, %v2214
    %v2226 = vmax.f32 %v2210, %v2216
    %v2227 = vmax.f32 %v2211, %v2218
    %v2228 = vmax.f32 %v2212, %v2220
    %2230 = vrot.lane.b32.xlu0 %v2172, 127
    %v2231 = vpop.permute.xlu0 %2230
    %2232 = vrot.lane.b32.xlu0 %v2172, 126
    %v2233 = vpop.permute.xlu0 %2232
    %2234 = vrot.lane.b32.xlu0 %v2172, 125
    %v2235 = vpop.permute.xlu0 %2234
    %2236 = vrot.lane.b32.xlu0 %v2172, 124
    %v2237 = vpop.permute.xlu0 %2236
    %2238 = vrot.lane.b32.xlu0 %v2172, 123
    %v2239 = vpop.permute.xlu0 %2238
    %2240 = vrot.lane.b32.xlu0 %v2172, 122
    %v2241 = vpop.permute.xlu0 %2240
    %2242 = vrot.lane.b32.xlu0 %v2172, 121
    %v2243 = vpop.permute.xlu0 %2242
    %2244 = vrot.lane.b32.xlu0 %v2172, 120
    %v2245 = vpop.permute.xlu0 %2244
    %2246 = vrot.lane.b32.xlu0 %v2172, 119
    %v2247 = vpop.permute.xlu0 %2246
    %2248 = vrot.lane.b32.xlu0 %v2172, 118
    %v2249 = vpop.permute.xlu0 %2248
    %2250 = vrot.lane.b32.xlu0 %v2172, 117
    %v2251 = vpop.permute.xlu0 %2250
    %2252 = vrot.lane.b32.xlu0 %v2172, 116
    %v2253 = vpop.permute.xlu0 %2252
    %2254 = vrot.lane.b32.xlu0 %v2172, 115
    %v2255 = vpop.permute.xlu0 %2254
    %2256 = vrot.lane.b32.xlu0 %v2172, 114
    %v2257 = vpop.permute.xlu0 %2256
    %2258 = vrot.lane.b32.xlu0 %v2172, 113
    %v2259 = vpop.permute.xlu0 %2258
    %2264 = vrot.lane.b32.xlu0 %v2225, 32
    %v2265 = vpop.permute.xlu0 %2264
    %2266 = vrot.lane.b32.xlu0 %v2226, 32
    %v2267 = vpop.permute.xlu0 %2266
    %2268 = vrot.lane.b32.xlu0 %v2227, 32
    %v2269 = vpop.permute.xlu0 %2268
    %2270 = vrot.lane.b32.xlu0 %v2228, 32
    %v2271 = vpop.permute.xlu0 %2270
    %2272 = vrot.lane.b32.xlu0 %v2172, 112
    %v2273 = vpop.permute.xlu0 %2272
    %2274 = vrot.lane.b32.xlu0 %v2231, 112
    %v2275 = vpop.permute.xlu0 %2274
    %2276 = vrot.lane.b32.xlu0 %v2233, 112
    %v2277 = vpop.permute.xlu0 %2276
    %2278 = vrot.lane.b32.xlu0 %v2235, 112
    %v2279 = vpop.permute.xlu0 %2278
    %2280 = vrot.lane.b32.xlu0 %v2237, 112
    %v2281 = vpop.permute.xlu0 %2280
    %2282 = vrot.lane.b32.xlu0 %v2239, 112
    %v2283 = vpop.permute.xlu0 %2282
    %2284 = vrot.lane.b32.xlu0 %v2241, 112
    %v2285 = vpop.permute.xlu0 %2284
    %2286 = vrot.lane.b32.xlu0 %v2243, 112
    %v2287 = vpop.permute.xlu0 %2286
    %2288 = vrot.lane.b32.xlu0 %v2245, 112
    %v2289 = vpop.permute.xlu0 %2288
    %2290 = vrot.lane.b32.xlu0 %v2247, 112
    %v2291 = vpop.permute.xlu0 %2290
    %2292 = vrot.lane.b32.xlu0 %v2249, 112
    %v2293 = vpop.permute.xlu0 %2292
    %2294 = vrot.lane.b32.xlu0 %v2251, 112
    %v2295 = vpop.permute.xlu0 %2294
    %2296 = vrot.lane.b32.xlu0 %v2253, 112
    %v2297 = vpop.permute.xlu0 %2296
    %2298 = vrot.lane.b32.xlu0 %v2255, 112
    %v2299 = vpop.permute.xlu0 %2298
    %2300 = vrot.lane.b32.xlu0 %v2257, 112
    %v2301 = vpop.permute.xlu0 %2300
    %2302 = vrot.lane.b32.xlu0 %v2259, 112
    %v2303 = vpop.permute.xlu0 %2302
    %2304 = vrot.lane.b32.xlu0 %v2172, 96
    %v2305 = vpop.permute.xlu0 %2304
    %2306 = vrot.lane.b32.xlu0 %v2231, 96
    %v2307 = vpop.permute.xlu0 %2306
    %2308 = vrot.lane.b32.xlu0 %v2233, 96
    %v2309 = vpop.permute.xlu0 %2308
    %2310 = vrot.lane.b32.xlu0 %v2235, 96
    %v2311 = vpop.permute.xlu0 %2310
    %2312 = vrot.lane.b32.xlu0 %v2237, 96
    %v2313 = vpop.permute.xlu0 %2312
    %2314 = vrot.lane.b32.xlu0 %v2239, 96
    %v2315 = vpop.permute.xlu0 %2314
    %2316 = vrot.lane.b32.xlu0 %v2241, 96
    %v2317 = vpop.permute.xlu0 %2316
    %2318 = vrot.lane.b32.xlu0 %v2265, 96
    %v2319 = vpop.permute.xlu0 %2318
    %2320 = vrot.lane.b32.xlu0 %v2267, 96
    %v2321 = vpop.permute.xlu0 %2320
    %2322 = vrot.lane.b32.xlu0 %v2269, 96
    %v2323 = vpop.permute.xlu0 %2322
    %2324 = vrot.lane.b32.xlu0 %v2271, 96
    %v2325 = vpop.permute.xlu0 %2324
    %2326 = vrot.lane.b32.xlu0 %v2172, 16
    %v2327 = vpop.permute.xlu0 %2326
    %2328 = vrot.lane.b32.xlu0 %v2231, 16
    %v2329 = vpop.permute.xlu0 %2328
    %2330 = vrot.lane.b32.xlu0 %v2233, 16
    %v2331 = vpop.permute.xlu0 %2330
    %2332 = vrot.lane.b32.xlu0 %v2235, 16
    %v2333 = vpop.permute.xlu0 %2332
    %2334 = vrot.lane.b32.xlu0 %v2237, 16
    %v2335 = vpop.permute.xlu0 %2334
    %2336 = vrot.lane.b32.xlu0 %v2239, 16
    %v2337 = vpop.permute.xlu0 %2336
    %2338 = vrot.lane.b32.xlu0 %v2241, 16
    %v2339 = vpop.permute.xlu0 %2338
    %2340 = vrot.lane.b32.xlu0 %v2243, 16
    %v2341 = vpop.permute.xlu0 %2340
    %2342 = vrot.lane.b32.xlu0 %v2245, 16
    %v2343 = vpop.permute.xlu0 %2342
    %2344 = vrot.lane.b32.xlu0 %v2247, 16
    %v2345 = vpop.permute.xlu0 %2344
    %2346 = vrot.lane.b32.xlu0 %v2249, 16
    %v2347 = vpop.permute.xlu0 %2346
    %2348 = vrot.lane.b32.xlu0 %v2251, 16
    %v2349 = vpop.permute.xlu0 %2348
    %2350 = vrot.lane.b32.xlu0 %v2253, 16
    %v2351 = vpop.permute.xlu0 %2350
    %2352 = vrot.lane.b32.xlu0 %v2255, 16
    %v2353 = vpop.permute.xlu0 %2352
    %2354 = vrot.lane.b32.xlu0 %v2257, 16
    %v2355 = vpop.permute.xlu0 %2354
    %2356 = vrot.lane.b32.xlu0 %v2259, 16
    %v2357 = vpop.permute.xlu0 %2356
    %2358 = vrot.lane.b32.xlu0 %v2273, 16
    %v2359 = vpop.permute.xlu0 %2358
    %2360 = vrot.lane.b32.xlu0 %v2275, 16
    %v2361 = vpop.permute.xlu0 %2360
    %2362 = vrot.lane.b32.xlu0 %v2277, 16
    %v2363 = vpop.permute.xlu0 %2362
    %2364 = vrot.lane.b32.xlu0 %v2279, 16
    %v2365 = vpop.permute.xlu0 %2364
    %2366 = vrot.lane.b32.xlu0 %v2281, 16
    %v2367 = vpop.permute.xlu0 %2366
    %2368 = vrot.lane.b32.xlu0 %v2283, 16
    %v2369 = vpop.permute.xlu0 %2368
    %2370 = vrot.lane.b32.xlu0 %v2285, 16
    %v2371 = vpop.permute.xlu0 %2370
    %2372 = vrot.lane.b32.xlu0 %v2287, 16
    %v2373 = vpop.permute.xlu0 %2372
    %2374 = vrot.lane.b32.xlu0 %v2289, 16
    %v2375 = vpop.permute.xlu0 %2374
    %2376 = vrot.lane.b32.xlu0 %v2291, 16
    %v2377 = vpop.permute.xlu0 %2376
    %2378 = vrot.lane.b32.xlu0 %v2293, 16
    %v2379 = vpop.permute.xlu0 %2378
    %2380 = vrot.lane.b32.xlu0 %v2295, 16
    %v2381 = vpop.permute.xlu0 %2380
    %2382 = vrot.lane.b32.xlu0 %v2297, 16
    %v2383 = vpop.permute.xlu0 %2382
    %2384 = vrot.lane.b32.xlu0 %v2299, 16
    %v2385 = vpop.permute.xlu0 %2384
    %2386 = vrot.lane.b32.xlu0 %v2301, 16
    %v2387 = vpop.permute.xlu0 %2386
    %2388 = vrot.lane.b32.xlu0 %v2303, 16
    %v2389 = vpop.permute.xlu0 %2388
    %2390 = vrot.lane.b32.xlu0 %v2305, 16
    %v2391 = vpop.permute.xlu0 %2390
    %2392 = vrot.lane.b32.xlu0 %v2307, 16
    %v2393 = vpop.permute.xlu0 %2392
    %2394 = vrot.lane.b32.xlu0 %v2309, 16
    %v2395 = vpop.permute.xlu0 %2394
    %2396 = vrot.lane.b32.xlu0 %v2311, 16
    %v2397 = vpop.permute.xlu0 %2396
    %2398 = vrot.lane.b32.xlu0 %v2313, 16
    %v2399 = vpop.permute.xlu0 %2398
    %2400 = vrot.lane.b32.xlu0 %v2315, 16
    %v2401 = vpop.permute.xlu0 %2400
    %2402 = vrot.lane.b32.xlu0 %v2317, 16
    %v2403 = vpop.permute.xlu0 %2402
    %2404 = vrot.lane.b32.xlu0 %v2319, 16
    %v2405 = vpop.permute.xlu0 %2404
    %2406 = vrot.lane.b32.xlu0 %v2321, 16
    %v2407 = vpop.permute.xlu0 %2406
    %2408 = vrot.lane.b32.xlu0 %v2323, 16
    %v2409 = vpop.permute.xlu0 %2408
    %2410 = vrot.lane.b32.xlu0 %v2325, 16
    %v2411 = vpop.permute.xlu0 %2410
    %v2455 = vsel %vm605, %v1968, %v2327
    %v2456 = vsel %vm605, %v2031, %v2329
    %v2457 = vsel %vm605, %v2034, %v2331
    %v2458 = vsel %vm605, %v2037, %v2333
    %v2459 = vsel %vm605, %v2040, %v2335
    %v2460 = vsel %vm605, %v2043, %v2337
    %v2461 = vsel %vm605, %v2046, %v2339
    %v2462 = vsel %vm605, %v2049, %v2341
    %v2463 = vsel %vm605, %v2052, %v2343
    %v2464 = vsel %vm605, %v2055, %v2345
    %v2465 = vsel %vm605, %v2058, %v2347
    %v2466 = vsel %vm605, %v2061, %v2349
    %v2467 = vsel %vm605, %v2064, %v2351
    %v2468 = vsel %vm605, %v2067, %v2353
    %v2469 = vsel %vm605, %v2070, %v2355
    %v2470 = vsel %vm605, %v2073, %v2357
    %v2471 = vsel %vm605, %v2088, %v2359
    %v2472 = vsel %vm605, %v2090, %v2361
    %v2473 = vsel %vm605, %v2092, %v2363
    %v2474 = vsel %vm605, %v2094, %v2365
    %v2475 = vsel %vm605, %v2096, %v2367
    %v2476 = vsel %vm605, %v2098, %v2369
    %v2477 = vsel %vm605, %v2100, %v2371
    %v2478 = vsel %vm605, %v2102, %v2373
    %v2479 = vsel %vm605, %v2104, %v2375
    %v2480 = vsel %vm605, %v2106, %v2377
    %v2481 = vsel %vm605, %v2108, %v2379
    %v2482 = vsel %vm605, %v2110, %v2381
    %v2483 = vsel %vm605, %v2112, %v2383
    %v2484 = vsel %vm605, %v2114, %v2385
    %v2485 = vsel %vm605, %v2116, %v2387
    %v2486 = vsel %vm605, %v2118, %v2389
    %v2487 = vsel %vm605, %v2136, %v2391
    %v2488 = vsel %vm605, %v2138, %v2393
    %v2489 = vsel %vm605, %v2140, %v2395
    %v2490 = vsel %vm605, %v2142, %v2397
    %v2491 = vsel %vm605, %v2144, %v2399
    %v2492 = vsel %vm605, %v2146, %v2401
    %v2493 = vsel %vm605, %v2148, %v2403
    %v2494 = vsel %vm605, %v2150, %v2405
    %v2495 = vsel %vm605, %v2152, %v2407
    %v2496 = vsel %vm605, %v2154, %v2409
    %v2497 = vsel %vm605, %v2156, %v2411
    %v2498 = vld [vmem:[%s25] sm:$0xff]
    %v2499 = vld [vmem:[%s25 + $0x8] sm:$0xff]
    %v2500 = vld [vmem:[%s25 + $0x10] sm:$0xff]
    %v2501 = vld [vmem:[%s25 + $0x18] sm:$0xff]
    %v2502 = vld [vmem:[%s25 + $0x20] sm:$0xff]
    %v2503 = vld [vmem:[%s25 + $0x28] sm:$0xff]
    %v2504 = vld [vmem:[%s25 + $0x30] sm:$0xff]
    %v2505 = vld [vmem:[%s25 + $0x38] sm:$0xff]
    %v2506 = vld [vmem:[%s25 + $0x40] sm:$0xff]
    %v2507 = vld [vmem:[%s25 + $0x48] sm:$0xff]
    %v2508 = vld [vmem:[%s25 + $0x50] sm:$0xff]
    %v2509 = vld [vmem:[%s25 + $0x58] sm:$0xff]
    %v2511 = vsel %vm1586, %v2500, 0
    %v2514 = vsel %vm1586, %v2503, 0
    %v2517 = vsel %vm1586, %v2506, 0
    %v2520 = vsel %vm1586, %v2509, 0
    %2522 = vmatprep.subr.mxu0 0.0
    %2523 = vmatpush1.msra.mxu0 %v2470
    %2524 = vmatprep.subr.mxu0 0.0
    %2525 = vmatpush1.msra.mxu0 %v2469
    %2526 = vmatprep.subr.mxu0 0.0
    %2527 = vmatpush1.msra.mxu0 %v2468
    %2528 = vmatprep.subr.mxu0 0.0
    %2529 = vmatpush1.msra.mxu0 %v2467
    %2530 = vmatprep.subr.mxu0 0.0
    %2531 = vmatpush1.msra.mxu0 %v2466
    %2532 = vmatprep.subr.mxu0 0.0
    %2533 = vmatpush1.msra.mxu0 %v2465
    %2534 = vmatprep.subr.mxu0 0.0
    %2535 = vmatpush1.msra.mxu0 %v2464
    %2536 = vmatprep.subr.mxu0 0.0
    %2537 = vmatpush1.msra.mxu0 %v2463
    %2538 = vmatprep.subr.mxu0 0.0
    %2539 = vmatpush1.msra.mxu0 %v2462
    %2540 = vmatprep.subr.mxu0 0.0
    %2541 = vmatpush1.msra.mxu0 %v2461
    %2542 = vmatprep.subr.mxu0 0.0
    %2543 = vmatpush1.msra.mxu0 %v2460
    %2544 = vmatprep.subr.mxu0 0.0
    %2545 = vmatpush1.msra.mxu0 %v2459
    %2546 = vmatprep.subr.mxu0 0.0
    %2547 = vmatpush1.msra.mxu0 %v2458
    %2548 = vmatprep.subr.mxu0 0.0
    %2549 = vmatpush1.msra.mxu0 %v2457
    %2550 = vmatprep.subr.mxu0 0.0
    %2551 = vmatpush1.msra.mxu0 %v2456
    %2552 = vmatprep.subr.mxu0 0.0
    %2553 = vmatpush1.msra.mxu0 %v2455
    %2554 = vmatprep.subr.mxu0 0.0
    %2555 = vmatpush2.msra.mxu0 %v2486
    %2556 = vmatprep.subr.mxu0 0.0
    %2557 = vmatpush2.msra.mxu0 %v2485
    %2558 = vmatprep.subr.mxu0 0.0
    %2559 = vmatpush2.msra.mxu0 %v2484
    %2560 = vmatprep.subr.mxu0 0.0
    %2561 = vmatpush2.msra.mxu0 %v2483
    %2562 = vmatprep.subr.mxu0 0.0
    %2563 = vmatpush2.msra.mxu0 %v2482
    %2564 = vmatprep.subr.mxu0 0.0
    %2565 = vmatpush2.msra.mxu0 %v2481
    %2566 = vmatprep.subr.mxu0 0.0
    %2567 = vmatpush2.msra.mxu0 %v2480
    %2568 = vmatprep.subr.mxu0 0.0
    %2569 = vmatpush2.msra.mxu0 %v2479
    %2570 = vmatprep.subr.mxu0 0.0
    %2571 = vmatpush2.msra.mxu0 %v2478
    %2572 = vmatprep.subr.mxu0 0.0
    %2573 = vmatpush2.msra.mxu0 %v2477
    %2574 = vmatprep.subr.mxu0 0.0
    %2575 = vmatpush2.msra.mxu0 %v2476
    %2576 = vmatprep.subr.mxu0 0.0
    %2577 = vmatpush2.msra.mxu0 %v2475
    %2578 = vmatprep.subr.mxu0 0.0
    %2579 = vmatpush2.msra.mxu0 %v2474
    %2580 = vmatprep.subr.mxu0 0.0
    %2581 = vmatpush2.msra.mxu0 %v2473
    %2582 = vmatprep.subr.mxu0 0.0
    %2583 = vmatpush2.msra.mxu0 %v2472
    %2584 = vmatprep.subr.mxu0 0.0
    %2585 = vmatpush2.msra.mxu0 %v2471
    %2586 = vmatprep.mubr.f32.mxu0 %v2499
    %2587 = vmatmul.mubr.f32.gmra.mxu0 %v2498
    %v2588 = vpop.f32.mrf.mxu0
    %v2589 = vadd.f32 0.0, %v2588
    %v2590 = vpop.f32.mrf.mxu0
    %2591 = vmatprep.mubr.f32.mxu0 %v2502
    %2592 = vmatmul.mubr.f32.gmra.mxu0 %v2501
    %v2593 = vpop.f32.mrf.mxu0
    %v2594 = vadd.f32 0.0, %v2593
    %v2595 = vpop.f32.mrf.mxu0
    %2596 = vmatprep.mubr.f32.mxu0 %v2505
    %2597 = vmatmul.mubr.f32.gmra.mxu0 %v2504
    %v2598 = vpop.f32.mrf.mxu0
    %v2599 = vadd.f32 0.0, %v2598
    %v2600 = vpop.f32.mrf.mxu0
    %2601 = vmatprep.mubr.f32.mxu0 %v2508
    %2602 = vmatmul.mubr.f32.gmra.mxu0 %v2507
    %v2603 = vpop.f32.mrf.mxu0
    %v2604 = vadd.f32 0.0, %v2603
    %v2605 = vpop.f32.mrf.mxu0
    %2606 = vdwg.mxu0
    %2607 = vmatprep.subr.mxu0 0.0
    %2608 = vmatpush1.msra.mxu0 0.0
    %2609 = vmatprep.subr.mxu0 0.0
    %2610 = vmatpush1.msra.mxu0 0.0
    %2611 = vmatprep.subr.mxu0 0.0
    %2612 = vmatpush1.msra.mxu0 0.0
    %2613 = vmatprep.subr.mxu0 0.0
    %2614 = vmatpush1.msra.mxu0 0.0
    %2615 = vmatprep.subr.mxu0 0.0
    %2616 = vmatpush1.msra.mxu0 0.0
    %2617 = vmatprep.subr.mxu0 0.0
    %2618 = vmatpush1.msra.mxu0 %v2497
    %2619 = vmatprep.subr.mxu0 0.0
    %2620 = vmatpush1.msra.mxu0 %v2496
    %2621 = vmatprep.subr.mxu0 0.0
    %2622 = vmatpush1.msra.mxu0 %v2495
    %2623 = vmatprep.subr.mxu0 0.0
    %2624 = vmatpush1.msra.mxu0 %v2494
    %2625 = vmatprep.subr.mxu0 0.0
    %2626 = vmatpush1.msra.mxu0 %v2493
    %2627 = vmatprep.subr.mxu0 0.0
    %2628 = vmatpush1.msra.mxu0 %v2492
    %2629 = vmatprep.subr.mxu0 0.0
    %2630 = vmatpush1.msra.mxu0 %v2491
    %2631 = vmatprep.subr.mxu0 0.0
    %2632 = vmatpush1.msra.mxu0 %v2490
    %2633 = vmatprep.subr.mxu0 0.0
    %2634 = vmatpush1.msra.mxu0 %v2489
    %2635 = vmatprep.subr.mxu0 0.0
    %2636 = vmatpush1.msra.mxu0 %v2488
    %2637 = vmatprep.subr.mxu0 0.0
    %2638 = vmatpush1.msra.mxu0 %v2487
    %2639 = vmatprep.subr.mxu0 0.0
    %2640 = vmatpush2.msra.mxu0 0.0
    %2641 = vmatprep.subr.mxu0 0.0
    %2642 = vmatpush2.msra.mxu0 0.0
    %2643 = vmatprep.subr.mxu0 0.0
    %2644 = vmatpush2.msra.mxu0 0.0
    %2645 = vmatprep.subr.mxu0 0.0
    %2646 = vmatpush2.msra.mxu0 0.0
    %2647 = vmatprep.subr.mxu0 0.0
    %2648 = vmatpush2.msra.mxu0 0.0
    %2649 = vmatprep.subr.mxu0 0.0
    %2650 = vmatpush2.msra.mxu0 0.0
    %2651 = vmatprep.subr.mxu0 0.0
    %2652 = vmatpush2.msra.mxu0 0.0
    %2653 = vmatprep.subr.mxu0 0.0
    %2654 = vmatpush2.msra.mxu0 0.0
    %2655 = vmatprep.subr.mxu0 0.0
    %2656 = vmatpush2.msra.mxu0 0.0
    %2657 = vmatprep.subr.mxu0 0.0
    %2658 = vmatpush2.msra.mxu0 0.0
    %2659 = vmatprep.subr.mxu0 0.0
    %2660 = vmatpush2.msra.mxu0 0.0
    %2661 = vmatprep.subr.mxu0 0.0
    %2662 = vmatpush2.msra.mxu0 0.0
    %2663 = vmatprep.subr.mxu0 0.0
    %2664 = vmatpush2.msra.mxu0 0.0
    %2665 = vmatprep.subr.mxu0 0.0
    %2666 = vmatpush2.msra.mxu0 0.0
    %2667 = vmatprep.subr.mxu0 0.0
    %2668 = vmatpush2.msra.mxu0 0.0
    %2669 = vmatprep.subr.mxu0 0.0
    %2670 = vmatpush2.msra.mxu0 0.0
    %2671 = vmatprep.mubr.f32.mxu0 0.0
    %2672 = vmatmul.mubr.f32.gmra.mxu0 %v2511
    %v2673 = vpop.f32.mrf.mxu0
    %v2674 = vadd.f32 %v2589, %v2673
    %v2675 = vpop.f32.mrf.mxu0
    %2676 = vmatprep.mubr.f32.mxu0 0.0
    %2677 = vmatmul.mubr.f32.gmra.mxu0 %v2514
    %v2678 = vpop.f32.mrf.mxu0
    %v2679 = vadd.f32 %v2594, %v2678
    %v2680 = vpop.f32.mrf.mxu0
    %2681 = vmatprep.mubr.f32.mxu0 0.0
    %2682 = vmatmul.mubr.f32.gmra.mxu0 %v2517
    %v2683 = vpop.f32.mrf.mxu0
    %v2684 = vadd.f32 %v2599, %v2683
    %v2685 = vpop.f32.mrf.mxu0
    %2686 = vmatprep.mubr.f32.mxu0 0.0
    %2687 = vmatmul.mubr.f32.gmra.mxu0 %v2520
    %v2688 = vpop.f32.mrf.mxu0
    %v2689 = vadd.f32 %v2604, %v2688
    %v2690 = vpop.f32.mrf.mxu0
    %2691 = vdwg.mxu0
    %v2692 = vsel %vm844, %v2674, 0.0
    %2693 = vadd.xlane.f32.xlu0 %v2692
    %v2694 = vpop.xlane.xlu0 %2693
    %v2695 = vsel %vm844, %v2679, 0.0
    %2696 = vadd.xlane.f32.xlu0 %v2695
    %v2697 = vpop.xlane.xlu0 %2696
    %v2698 = vsel %vm844, %v2684, 0.0
    %2699 = vadd.xlane.f32.xlu0 %v2698
    %v2700 = vpop.xlane.xlu0 %2699
    %v2701 = vsel %vm844, %v2689, 0.0
    %2702 = vadd.xlane.f32.xlu0 %v2701
    %v2703 = vpop.xlane.xlu0 %2702
    %v2704 = vmul.f32 %v2694, 0.03125
    %v2705 = vmul.f32 %v2697, 0.03125
    %v2706 = vmul.f32 %v2700, 0.03125
    %v2707 = vmul.f32 %v2703, 0.03125
    %v2708 = vmul.f32 %v2674, %v2674
    %v2709 = vmul.f32 %v2679, %v2679
    %v2710 = vmul.f32 %v2684, %v2684
    %v2711 = vmul.f32 %v2689, %v2689
    %v2712 = vsel %vm844, %v2708, 0.0
    %2713 = vadd.xlane.f32.xlu0 %v2712
    %v2714 = vpop.xlane.xlu0 %2713
    %v2715 = vsel %vm844, %v2709, 0.0
    %2716 = vadd.xlane.f32.xlu0 %v2715
    %v2717 = vpop.xlane.xlu0 %2716
    %v2718 = vsel %vm844, %v2710, 0.0
    %2719 = vadd.xlane.f32.xlu0 %v2718
    %v2720 = vpop.xlane.xlu0 %2719
    %v2721 = vsel %vm844, %v2711, 0.0
    %2722 = vadd.xlane.f32.xlu0 %v2721
    %v2723 = vpop.xlane.xlu0 %2722
    %v2724 = vmul.f32 %v2714, 0.03125
    %v2725 = vmul.f32 %v2717, 0.03125
    %v2726 = vmul.f32 %v2720, 0.03125
    %v2727 = vmul.f32 %v2723, 0.03125
    %v2728 = vmul.f32 %v2704, %v2704
    %v2729 = vmul.f32 %v2705, %v2705
    %v2730 = vmul.f32 %v2706, %v2706
    %v2731 = vmul.f32 %v2707, %v2707
    %v2732 = vsub.f32 %v2724, %v2728
    %v2733 = vsub.f32 %v2725, %v2729
    %v2734 = vsub.f32 %v2726, %v2730
    %v2735 = vsub.f32 %v2727, %v2731
    %v2736 = vsub.f32 %v2674, %v2704
    %v2737 = vsub.f32 %v2679, %v2705
    %v2738 = vsub.f32 %v2684, %v2706
    %v2739 = vsub.f32 %v2689, %v2707
    %v2740 = vld [vmem:[%s21] sm:$0xff]
    %v2741 = vld [vmem:[%s21 + $0x8] sm:$0xff]
    %v2742 = vld [vmem:[%s21 + $0x10] sm:$0xff]
    %v2743 = vld [vmem:[%s21 + $0x18] sm:$0xff]
    %v2744 = vadd.f32 %v2732, 1e-05
    %v2745 = vadd.f32 %v2733, 1e-05
    %v2746 = vadd.f32 %v2734, 1e-05
    %v2747 = vadd.f32 %v2735, 1e-05
    %v2748 = vrsqrt.pop %v2744
    %v2749 = vrsqrt.pop %v2745
    %v2750 = vrsqrt.pop %v2746
    %v2751 = vrsqrt.pop %v2747
    %v2752 = vmul.f32 %v2740, %v2748
    %v2753 = vmul.f32 %v2741, %v2749
    %v2754 = vmul.f32 %v2742, %v2750
    %v2755 = vmul.f32 %v2743, %v2751
    %2757 = vset.pattern.permute.xlu0 0
    %2758 = vperm.xlu0 %2757, %v2752
    %v2759 = vpop.permute.xlu0 %2758
    %2762 = vset.pattern.permute.xlu0 0
    %2763 = vperm.xlu0 %2762, %v2753
    %v2764 = vpop.permute.xlu0 %2763
    %2767 = vset.pattern.permute.xlu0 0
    %2768 = vperm.xlu0 %2767, %v2754
    %v2769 = vpop.permute.xlu0 %2768
    %2772 = vset.pattern.permute.xlu0 0
    %2773 = vperm.xlu0 %2772, %v2755
    %v2774 = vpop.permute.xlu0 %2773
    %v2776 = vmul.f32 %v2736, %v2759
    %v2777 = vmul.f32 %v2737, %v2764
    %v2778 = vmul.f32 %v2738, %v2769
    %v2779 = vmul.f32 %v2739, %v2774
    %v2780 = vld [vmem:[%s19] sm:$0xff]
    %v2781 = vld [vmem:[%s19 + $0x8] sm:$0xff]
    %v2782 = vld [vmem:[%s19 + $0x10] sm:$0xff]
    %v2783 = vld [vmem:[%s19 + $0x18] sm:$0xff]
    %2785 = vset.pattern.permute.xlu0 0
    %2786 = vperm.xlu0 %2785, %v2780
    %v2787 = vpop.permute.xlu0 %2786
    %2790 = vset.pattern.permute.xlu0 0
    %2791 = vperm.xlu0 %2790, %v2781
    %v2792 = vpop.permute.xlu0 %2791
    %2795 = vset.pattern.permute.xlu0 0
    %2796 = vperm.xlu0 %2795, %v2782
    %v2797 = vpop.permute.xlu0 %2796
    %2800 = vset.pattern.permute.xlu0 0
    %2801 = vperm.xlu0 %2800, %v2783
    %v2802 = vpop.permute.xlu0 %2801
    %v2804 = vadd.f32 %v2776, %v2787
    %v2805 = vadd.f32 %v2777, %v2792
    %v2806 = vadd.f32 %v2778, %v2797
    %v2807 = vadd.f32 %v2779, %v2802
    %v2808 = vmax.f32 %v2804, 0.0
    %v2809 = vmax.f32 %v2805, 0.0
    %v2810 = vmax.f32 %v2806, 0.0
    %v2811 = vmax.f32 %v2807, 0.0
    %v2812 = vld [vmem:[%s65] sm:$0xff]
    %v2813 = vld [vmem:[%s65 + $0x8] sm:$0xff]
    %v2814 = vld [vmem:[%s65 + $0x10] sm:$0xff]
    %v2815 = vld [vmem:[%s65 + $0x18] sm:$0xff]
    %v2817 = vsel %vm161, %v2812, 0
    %v2820 = vsel %vm161, %v2813, 0
    %v2823 = vsel %vm161, %v2814, 0
    %v2826 = vsel %vm161, %v2815, 0
    %2828 = vmatprep.subr.mxu0 0.0
    %2829 = vmatpush1.msra.mxu0 0.0
    %2830 = vmatprep.subr.mxu0 0.0
    %2831 = vmatpush1.msra.mxu0 0.0
    %2832 = vmatprep.subr.mxu0 0.0
    %2833 = vmatpush1.msra.mxu0 0.0
    %2834 = vmatprep.subr.mxu0 0.0
    %2835 = vmatpush1.msra.mxu0 0.0
    %2836 = vmatprep.subr.mxu0 0.0
    %2837 = vmatpush1.msra.mxu0 0.0
    %2838 = vmatprep.subr.mxu0 0.0
    %2839 = vmatpush1.msra.mxu0 0.0
    %2840 = vmatprep.subr.mxu0 0.0
    %2841 = vmatpush1.msra.mxu0 0.0
    %2842 = vmatprep.subr.mxu0 0.0
    %2843 = vmatpush1.msra.mxu0 0.0
    %2844 = vmatprep.subr.mxu0 0.0
    %2845 = vmatpush1.msra.mxu0 0.0
    %2846 = vmatprep.subr.mxu0 0.0
    %2847 = vmatpush1.msra.mxu0 0.0
    %2848 = vmatprep.subr.mxu0 0.0
    %2849 = vmatpush1.msra.mxu0 0.0
    %2850 = vmatprep.subr.mxu0 0.0
    %2851 = vmatpush1.msra.mxu0 0.0
    %2852 = vmatprep.subr.mxu0 0.0
    %2853 = vmatpush1.msra.mxu0 0.0
    %2854 = vmatprep.subr.mxu0 0.0
    %2855 = vmatpush1.msra.mxu0 0.0
    %2856 = vmatprep.subr.mxu0 0.0
    %2857 = vmatpush1.msra.mxu0 0.0
    %2858 = vmatprep.subr.mxu0 0.0
    %2859 = vmatpush1.msra.mxu0 %v167
    %2860 = vmatprep.subr.mxu0 0.0
    %2861 = vmatpush2.msra.mxu0 0.0
    %2862 = vmatprep.subr.mxu0 0.0
    %2863 = vmatpush2.msra.mxu0 0.0
    %2864 = vmatprep.subr.mxu0 0.0
    %2865 = vmatpush2.msra.mxu0 0.0
    %2866 = vmatprep.subr.mxu0 0.0
    %2867 = vmatpush2.msra.mxu0 0.0
    %2868 = vmatprep.subr.mxu0 0.0
    %2869 = vmatpush2.msra.mxu0 0.0
    %2870 = vmatprep.subr.mxu0 0.0
    %2871 = vmatpush2.msra.mxu0 0.0
    %2872 = vmatprep.subr.mxu0 0.0
    %2873 = vmatpush2.msra.mxu0 0.0
    %2874 = vmatprep.subr.mxu0 0.0
    %2875 = vmatpush2.msra.mxu0 0.0
    %2876 = vmatprep.subr.mxu0 0.0
    %2877 = vmatpush2.msra.mxu0 0.0
    %2878 = vmatprep.subr.mxu0 0.0
    %2879 = vmatpush2.msra.mxu0 0.0
    %2880 = vmatprep.subr.mxu0 0.0
    %2881 = vmatpush2.msra.mxu0 0.0
    %2882 = vmatprep.subr.mxu0 0.0
    %2883 = vmatpush2.msra.mxu0 0.0
    %2884 = vmatprep.subr.mxu0 0.0
    %2885 = vmatpush2.msra.mxu0 0.0
    %2886 = vmatprep.subr.mxu0 0.0
    %2887 = vmatpush2.msra.mxu0 0.0
    %2888 = vmatprep.subr.mxu0 0.0
    %2889 = vmatpush2.msra.mxu0 0.0
    %2890 = vmatprep.subr.mxu0 0.0
    %2891 = vmatpush2.msra.mxu0 0.0
    %2892 = vmatprep.mubr.f32.mxu0 0.0
    %2893 = vmatmul.mubr.f32.gmra.mxu0 %v2817
    %v2894 = vpop.f32.mrf.mxu0
    %v2895 = vadd.f32 0.0, %v2894
    %v2896 = vpop.f32.mrf.mxu0
    %2897 = vmatprep.mubr.f32.mxu0 0.0
    %2898 = vmatmul.mubr.f32.gmra.mxu0 %v2820
    %v2899 = vpop.f32.mrf.mxu0
    %v2900 = vadd.f32 0.0, %v2899
    %v2901 = vpop.f32.mrf.mxu0
    %2902 = vmatprep.mubr.f32.mxu0 0.0
    %2903 = vmatmul.mubr.f32.gmra.mxu0 %v2823
    %v2904 = vpop.f32.mrf.mxu0
    %v2905 = vadd.f32 0.0, %v2904
    %v2906 = vpop.f32.mrf.mxu0
    %2907 = vmatprep.mubr.f32.mxu0 0.0
    %2908 = vmatmul.mubr.f32.gmra.mxu0 %v2826
    %v2909 = vpop.f32.mrf.mxu0
    %v2910 = vadd.f32 0.0, %v2909
    %v2911 = vpop.f32.mrf.mxu0
    %2912 = vdwg.mxu0
    %v2913 = vsel %vm844, %v2895, 0.0
    %2914 = vadd.xlane.f32.xlu0 %v2913
    %v2915 = vpop.xlane.xlu0 %2914
    %v2916 = vsel %vm844, %v2900, 0.0
    %2917 = vadd.xlane.f32.xlu0 %v2916
    %v2918 = vpop.xlane.xlu0 %2917
    %v2919 = vsel %vm844, %v2905, 0.0
    %2920 = vadd.xlane.f32.xlu0 %v2919
    %v2921 = vpop.xlane.xlu0 %2920
    %v2922 = vsel %vm844, %v2910, 0.0
    %2923 = vadd.xlane.f32.xlu0 %v2922
    %v2924 = vpop.xlane.xlu0 %2923
    %v2925 = vmul.f32 %v2915, 0.03125
    %v2926 = vmul.f32 %v2918, 0.03125
    %v2927 = vmul.f32 %v2921, 0.03125
    %v2928 = vmul.f32 %v2924, 0.03125
    %v2929 = vmul.f32 %v2895, %v2895
    %v2930 = vmul.f32 %v2900, %v2900
    %v2931 = vmul.f32 %v2905, %v2905
    %v2932 = vmul.f32 %v2910, %v2910
    %v2933 = vsel %vm844, %v2929, 0.0
    %2934 = vadd.xlane.f32.xlu0 %v2933
    %v2935 = vpop.xlane.xlu0 %2934
    %v2936 = vsel %vm844, %v2930, 0.0
    %2937 = vadd.xlane.f32.xlu0 %v2936
    %v2938 = vpop.xlane.xlu0 %2937
    %v2939 = vsel %vm844, %v2931, 0.0
    %2940 = vadd.xlane.f32.xlu0 %v2939
    %v2941 = vpop.xlane.xlu0 %2940
    %v2942 = vsel %vm844, %v2932, 0.0
    %2943 = vadd.xlane.f32.xlu0 %v2942
    %v2944 = vpop.xlane.xlu0 %2943
    %v2945 = vmul.f32 %v2935, 0.03125
    %v2946 = vmul.f32 %v2938, 0.03125
    %v2947 = vmul.f32 %v2941, 0.03125
    %v2948 = vmul.f32 %v2944, 0.03125
    %v2949 = vmul.f32 %v2925, %v2925
    %v2950 = vmul.f32 %v2926, %v2926
    %v2951 = vmul.f32 %v2927, %v2927
    %v2952 = vmul.f32 %v2928, %v2928
    %v2953 = vsub.f32 %v2945, %v2949
    %v2954 = vsub.f32 %v2946, %v2950
    %v2955 = vsub.f32 %v2947, %v2951
    %v2956 = vsub.f32 %v2948, %v2952
    %v2957 = vsub.f32 %v2895, %v2925
    %v2958 = vsub.f32 %v2900, %v2926
    %v2959 = vsub.f32 %v2905, %v2927
    %v2960 = vsub.f32 %v2910, %v2928
    %v2961 = vld [vmem:[%s63] sm:$0xff]
    %v2962 = vld [vmem:[%s63 + $0x8] sm:$0xff]
    %v2963 = vld [vmem:[%s63 + $0x10] sm:$0xff]
    %v2964 = vld [vmem:[%s63 + $0x18] sm:$0xff]
    %v2965 = vadd.f32 %v2953, 1e-05
    %v2966 = vadd.f32 %v2954, 1e-05
    %v2967 = vadd.f32 %v2955, 1e-05
    %v2968 = vadd.f32 %v2956, 1e-05
    %v2969 = vrsqrt.pop %v2965
    %v2970 = vrsqrt.pop %v2966
    %v2971 = vrsqrt.pop %v2967
    %v2972 = vrsqrt.pop %v2968
    %v2973 = vmul.f32 %v2961, %v2969
    %v2974 = vmul.f32 %v2962, %v2970
    %v2975 = vmul.f32 %v2963, %v2971
    %v2976 = vmul.f32 %v2964, %v2972
    %2978 = vset.pattern.permute.xlu0 0
    %2979 = vperm.xlu0 %2978, %v2973
    %v2980 = vpop.permute.xlu0 %2979
    %2983 = vset.pattern.permute.xlu0 0
    %2984 = vperm.xlu0 %2983, %v2974
    %v2985 = vpop.permute.xlu0 %2984
    %2988 = vset.pattern.permute.xlu0 0
    %2989 = vperm.xlu0 %2988, %v2975
    %v2990 = vpop.permute.xlu0 %2989
    %2993 = vset.pattern.permute.xlu0 0
    %2994 = vperm.xlu0 %2993, %v2976
    %v2995 = vpop.permute.xlu0 %2994
    %v2997 = vmul.f32 %v2957, %v2980
    %v2998 = vmul.f32 %v2958, %v2985
    %v2999 = vmul.f32 %v2959, %v2990
    %v3000 = vmul.f32 %v2960, %v2995
    %v3001 = vld [vmem:[%s61] sm:$0xff]
    %v3002 = vld [vmem:[%s61 + $0x8] sm:$0xff]
    %v3003 = vld [vmem:[%s61 + $0x10] sm:$0xff]
    %v3004 = vld [vmem:[%s61 + $0x18] sm:$0xff]
    %3006 = vset.pattern.permute.xlu0 0
    %3007 = vperm.xlu0 %3006, %v3001
    %v3008 = vpop.permute.xlu0 %3007
    %3011 = vset.pattern.permute.xlu0 0
    %3012 = vperm.xlu0 %3011, %v3002
    %v3013 = vpop.permute.xlu0 %3012
    %3016 = vset.pattern.permute.xlu0 0
    %3017 = vperm.xlu0 %3016, %v3003
    %v3018 = vpop.permute.xlu0 %3017
    %3021 = vset.pattern.permute.xlu0 0
    %3022 = vperm.xlu0 %3021, %v3004
    %v3023 = vpop.permute.xlu0 %3022
    %v3025 = vadd.f32 %v2997, %v3008
    %v3026 = vadd.f32 %v2998, %v3013
    %v3027 = vadd.f32 %v2999, %v3018
    %v3028 = vadd.f32 %v3000, %v3023
    %v3029 = vadd.f32 %v2808, %v3025
    %v3030 = vadd.f32 %v2809, %v3026
    %v3031 = vadd.f32 %v2810, %v3027
    %v3032 = vadd.f32 %v2811, %v3028
    %v3033 = vmax.f32 %v3029, 0.0
    %v3034 = vmax.f32 %v3030, 0.0
    %v3035 = vmax.f32 %v3031, 0.0
    %v3036 = vmax.f32 %v3032, 0.0
    %v3037 = vld [vmem:[%s31] sm:$0xff]
    %v3039 = vsel %vm844, %v3037, 0
    %3041 = vmatprep.subr.mxu0 0.0
    %3042 = vmatpush1.msra.mxu0 0.0
    %3043 = vmatprep.subr.mxu0 0.0
    %3044 = vmatpush1.msra.mxu0 0.0
    %3045 = vmatprep.subr.mxu0 0.0
    %3046 = vmatpush1.msra.mxu0 0.0
    %3047 = vmatprep.subr.mxu0 0.0
    %3048 = vmatpush1.msra.mxu0 0.0
    %3049 = vmatprep.subr.mxu0 0.0
    %3050 = vmatpush1.msra.mxu0 0.0
    %3051 = vmatprep.subr.mxu0 0.0
    %3052 = vmatpush1.msra.mxu0 0.0
    %3053 = vmatprep.subr.mxu0 0.0
    %3054 = vmatpush1.msra.mxu0 0.0
    %3055 = vmatprep.subr.mxu0 0.0
    %3056 = vmatpush1.msra.mxu0 0.0
    %3057 = vmatprep.subr.mxu0 0.0
    %3058 = vmatpush1.msra.mxu0 0.0
    %3059 = vmatprep.subr.mxu0 0.0
    %3060 = vmatpush1.msra.mxu0 0.0
    %3061 = vmatprep.subr.mxu0 0.0
    %3062 = vmatpush1.msra.mxu0 0.0
    %3063 = vmatprep.subr.mxu0 0.0
    %3064 = vmatpush1.msra.mxu0 0.0
    %3065 = vmatprep.subr.mxu0 0.0
    %3066 = vmatpush1.msra.mxu0 %v3036
    %3067 = vmatprep.subr.mxu0 0.0
    %3068 = vmatpush1.msra.mxu0 %v3035
    %3069 = vmatprep.subr.mxu0 0.0
    %3070 = vmatpush1.msra.mxu0 %v3034
    %3071 = vmatprep.subr.mxu0 0.0
    %3072 = vmatpush1.msra.mxu0 %v3033
    %3073 = vmatprep.subr.mxu0 0.0
    %3074 = vmatpush2.msra.mxu0 0.0
    %3075 = vmatprep.subr.mxu0 0.0
    %3076 = vmatpush2.msra.mxu0 0.0
    %3077 = vmatprep.subr.mxu0 0.0
    %3078 = vmatpush2.msra.mxu0 0.0
    %3079 = vmatprep.subr.mxu0 0.0
    %3080 = vmatpush2.msra.mxu0 0.0
    %3081 = vmatprep.subr.mxu0 0.0
    %3082 = vmatpush2.msra.mxu0 0.0
    %3083 = vmatprep.subr.mxu0 0.0
    %3084 = vmatpush2.msra.mxu0 0.0
    %3085 = vmatprep.subr.mxu0 0.0
    %3086 = vmatpush2.msra.mxu0 0.0
    %3087 = vmatprep.subr.mxu0 0.0
    %3088 = vmatpush2.msra.mxu0 0.0
    %3089 = vmatprep.subr.mxu0 0.0
    %3090 = vmatpush2.msra.mxu0 0.0
    %3091 = vmatprep.subr.mxu0 0.0
    %3092 = vmatpush2.msra.mxu0 0.0
    %3093 = vmatprep.subr.mxu0 0.0
    %3094 = vmatpush2.msra.mxu0 0.0
    %3095 = vmatprep.subr.mxu0 0.0
    %3096 = vmatpush2.msra.mxu0 0.0
    %3097 = vmatprep.subr.mxu0 0.0
    %3098 = vmatpush2.msra.mxu0 0.0
    %3099 = vmatprep.subr.mxu0 0.0
    %3100 = vmatpush2.msra.mxu0 0.0
    %3101 = vmatprep.subr.mxu0 0.0
    %3102 = vmatpush2.msra.mxu0 0.0
    %3103 = vmatprep.subr.mxu0 0.0
    %3104 = vmatpush2.msra.mxu0 0.0
    %3105 = vmatprep.mubr.f32.mxu0 0.0
    %3106 = vmatmul.mubr.f32.gmra.mxu0 %v3039
    %v3107 = vpop.f32.mrf.mxu0
    %v3108 = vadd.f32 0.0, %v3107
    %v3109 = vpop.f32.mrf.mxu0
    %3110 = vdwg.mxu0
    %3112 = vrot.lane.b32.xlu0 %v3108, 19
    %v3113 = vpop.permute.xlu0 %3112
    %v3115 = vsel %vm243, 0.0, %v3113
    %v3116 = vsel %vm245, %v3115, 0.0
    %3121 = vrot.lane.b32.xlu0 %v3033, 1
    %v3122 = vpop.permute.xlu0 %3121
    %3123 = vrot.lane.b32.xlu0 %v3034, 1
    %v3124 = vpop.permute.xlu0 %3123
    %3125 = vrot.lane.b32.xlu0 %v3035, 1
    %v3126 = vpop.permute.xlu0 %3125
    %3127 = vrot.lane.b32.xlu0 %v3036, 1
    %v3128 = vpop.permute.xlu0 %3127
    %v3133 = vsel %vm250, -inf, %v3122
    %v3134 = vsel %vm250, -inf, %v3124
    %v3135 = vsel %vm250, -inf, %v3126
    %v3136 = vsel %vm250, -inf, %v3128
    %v3137 = vsel %vm252, %v3133, -inf
    %v3138 = vsel %vm252, %v3134, -inf
    %v3139 = vsel %vm252, %v3135, -inf
    %v3140 = vsel %vm252, %v3136, -inf
    %3145 = vrot.lane.b32.xlu0 %v3137, 127
    %v3146 = vpop.permute.xlu0 %3145
    %3147 = vrot.lane.b32.xlu0 %v3138, 127
    %v3148 = vpop.permute.xlu0 %3147
    %3149 = vrot.lane.b32.xlu0 %v3139, 127
    %v3150 = vpop.permute.xlu0 %3149
    %3151 = vrot.lane.b32.xlu0 %v3140, 127
    %v3152 = vpop.permute.xlu0 %3151
    %v3157 = vmax.f32 %v3137, %v3146
    %v3158 = vmax.f32 %v3138, %v3148
    %v3159 = vmax.f32 %v3139, %v3150
    %v3160 = vmax.f32 %v3140, %v3152
    %3161 = vrot.lane.b32.xlu0 %v3137, 126
    %v3162 = vpop.permute.xlu0 %3161
    %3163 = vrot.lane.b32.xlu0 %v3138, 126
    %v3164 = vpop.permute.xlu0 %3163
    %3165 = vrot.lane.b32.xlu0 %v3139, 126
    %v3166 = vpop.permute.xlu0 %3165
    %3167 = vrot.lane.b32.xlu0 %v3140, 126
    %v3168 = vpop.permute.xlu0 %3167
    %v3173 = vmax.f32 %v3157, %v3162
    %v3174 = vmax.f32 %v3158, %v3164
    %v3175 = vmax.f32 %v3159, %v3166
    %v3176 = vmax.f32 %v3160, %v3168
    %3178 = vrot.lane.b32.xlu0 %v3116, 127
    %v3179 = vpop.permute.xlu0 %3178
    %3181 = vrot.lane.b32.xlu0 %v3116, 126
    %v3182 = vpop.permute.xlu0 %3181
    %3184 = vrot.lane.b32.xlu0 %v3116, 125
    %v3185 = vpop.permute.xlu0 %3184
    %3187 = vrot.lane.b32.xlu0 %v3116, 124
    %v3188 = vpop.permute.xlu0 %3187
    %3190 = vrot.lane.b32.xlu0 %v3116, 123
    %v3191 = vpop.permute.xlu0 %3190
    %3193 = vrot.lane.b32.xlu0 %v3116, 122
    %v3194 = vpop.permute.xlu0 %3193
    %3196 = vrot.lane.b32.xlu0 %v3116, 121
    %v3197 = vpop.permute.xlu0 %3196
    %3199 = vrot.lane.b32.xlu0 %v3116, 120
    %v3200 = vpop.permute.xlu0 %3199
    %3202 = vrot.lane.b32.xlu0 %v3116, 119
    %v3203 = vpop.permute.xlu0 %3202
    %3205 = vrot.lane.b32.xlu0 %v3116, 118
    %v3206 = vpop.permute.xlu0 %3205
    %3208 = vrot.lane.b32.xlu0 %v3116, 117
    %v3209 = vpop.permute.xlu0 %3208
    %3211 = vrot.lane.b32.xlu0 %v3116, 116
    %v3212 = vpop.permute.xlu0 %3211
    %3214 = vrot.lane.b32.xlu0 %v3116, 115
    %v3215 = vpop.permute.xlu0 %3214
    %3217 = vrot.lane.b32.xlu0 %v3116, 114
    %v3218 = vpop.permute.xlu0 %3217
    %3220 = vrot.lane.b32.xlu0 %v3116, 113
    %v3221 = vpop.permute.xlu0 %3220
    %3227 = vrot.lane.b32.xlu0 %v3173, 32
    %v3228 = vpop.permute.xlu0 %3227
    %3229 = vrot.lane.b32.xlu0 %v3174, 32
    %v3230 = vpop.permute.xlu0 %3229
    %3231 = vrot.lane.b32.xlu0 %v3175, 32
    %v3232 = vpop.permute.xlu0 %3231
    %3233 = vrot.lane.b32.xlu0 %v3176, 32
    %v3234 = vpop.permute.xlu0 %3233
    %3235 = vrot.lane.b32.xlu0 %v3116, 112
    %v3236 = vpop.permute.xlu0 %3235
    %3237 = vrot.lane.b32.xlu0 %v3179, 112
    %v3238 = vpop.permute.xlu0 %3237
    %3239 = vrot.lane.b32.xlu0 %v3182, 112
    %v3240 = vpop.permute.xlu0 %3239
    %3241 = vrot.lane.b32.xlu0 %v3185, 112
    %v3242 = vpop.permute.xlu0 %3241
    %3243 = vrot.lane.b32.xlu0 %v3188, 112
    %v3244 = vpop.permute.xlu0 %3243
    %3245 = vrot.lane.b32.xlu0 %v3191, 112
    %v3246 = vpop.permute.xlu0 %3245
    %3247 = vrot.lane.b32.xlu0 %v3194, 112
    %v3248 = vpop.permute.xlu0 %3247
    %3249 = vrot.lane.b32.xlu0 %v3197, 112
    %v3250 = vpop.permute.xlu0 %3249
    %3251 = vrot.lane.b32.xlu0 %v3200, 112
    %v3252 = vpop.permute.xlu0 %3251
    %3253 = vrot.lane.b32.xlu0 %v3203, 112
    %v3254 = vpop.permute.xlu0 %3253
    %3255 = vrot.lane.b32.xlu0 %v3206, 112
    %v3256 = vpop.permute.xlu0 %3255
    %3257 = vrot.lane.b32.xlu0 %v3209, 112
    %v3258 = vpop.permute.xlu0 %3257
    %3259 = vrot.lane.b32.xlu0 %v3212, 112
    %v3260 = vpop.permute.xlu0 %3259
    %3261 = vrot.lane.b32.xlu0 %v3215, 112
    %v3262 = vpop.permute.xlu0 %3261
    %3263 = vrot.lane.b32.xlu0 %v3218, 112
    %v3264 = vpop.permute.xlu0 %3263
    %3265 = vrot.lane.b32.xlu0 %v3221, 112
    %v3266 = vpop.permute.xlu0 %3265
    %3283 = vrot.lane.b32.xlu0 %v3116, 96
    %v3284 = vpop.permute.xlu0 %3283
    %3285 = vrot.lane.b32.xlu0 %v3179, 96
    %v3286 = vpop.permute.xlu0 %3285
    %3287 = vrot.lane.b32.xlu0 %v3182, 96
    %v3288 = vpop.permute.xlu0 %3287
    %3289 = vrot.lane.b32.xlu0 %v3185, 96
    %v3290 = vpop.permute.xlu0 %3289
    %3291 = vrot.lane.b32.xlu0 %v3188, 96
    %v3292 = vpop.permute.xlu0 %3291
    %3293 = vrot.lane.b32.xlu0 %v3191, 96
    %v3294 = vpop.permute.xlu0 %3293
    %3295 = vrot.lane.b32.xlu0 %v3194, 96
    %v3296 = vpop.permute.xlu0 %3295
    %3297 = vrot.lane.b32.xlu0 %v3228, 96
    %v3298 = vpop.permute.xlu0 %3297
    %3299 = vrot.lane.b32.xlu0 %v3230, 96
    %v3300 = vpop.permute.xlu0 %3299
    %3301 = vrot.lane.b32.xlu0 %v3232, 96
    %v3302 = vpop.permute.xlu0 %3301
    %3303 = vrot.lane.b32.xlu0 %v3234, 96
    %v3304 = vpop.permute.xlu0 %3303
    %3316 = vrot.lane.b32.xlu0 %v3108, 3
    %v3317 = vpop.permute.xlu0 %3316
    %v3319 = vsel %vm243, 0.0, %v3317
    %v3320 = vsel %vm245, %v3319, 0.0
    %3321 = vrot.lane.b32.xlu0 %v3033, 113
    %v3322 = vpop.permute.xlu0 %3321
    %3323 = vrot.lane.b32.xlu0 %v3034, 113
    %v3324 = vpop.permute.xlu0 %3323
    %3325 = vrot.lane.b32.xlu0 %v3035, 113
    %v3326 = vpop.permute.xlu0 %3325
    %3327 = vrot.lane.b32.xlu0 %v3036, 113
    %v3328 = vpop.permute.xlu0 %3327
    %v3333 = vsel %vm250, -inf, %v3322
    %v3334 = vsel %vm250, -inf, %v3324
    %v3335 = vsel %vm250, -inf, %v3326
    %v3336 = vsel %vm250, -inf, %v3328
    %v3337 = vsel %vm252, %v3333, -inf
    %v3338 = vsel %vm252, %v3334, -inf
    %v3339 = vsel %vm252, %v3335, -inf
    %v3340 = vsel %vm252, %v3336, -inf
    %3345 = vrot.lane.b32.xlu0 %v3337, 127
    %v3346 = vpop.permute.xlu0 %3345
    %3347 = vrot.lane.b32.xlu0 %v3338, 127
    %v3348 = vpop.permute.xlu0 %3347
    %3349 = vrot.lane.b32.xlu0 %v3339, 127
    %v3350 = vpop.permute.xlu0 %3349
    %3351 = vrot.lane.b32.xlu0 %v3340, 127
    %v3352 = vpop.permute.xlu0 %3351
    %v3357 = vmax.f32 %v3337, %v3346
    %v3358 = vmax.f32 %v3338, %v3348
    %v3359 = vmax.f32 %v3339, %v3350
    %v3360 = vmax.f32 %v3340, %v3352
    %3361 = vrot.lane.b32.xlu0 %v3337, 126
    %v3362 = vpop.permute.xlu0 %3361
    %3363 = vrot.lane.b32.xlu0 %v3338, 126
    %v3364 = vpop.permute.xlu0 %3363
    %3365 = vrot.lane.b32.xlu0 %v3339, 126
    %v3366 = vpop.permute.xlu0 %3365
    %3367 = vrot.lane.b32.xlu0 %v3340, 126
    %v3368 = vpop.permute.xlu0 %3367
    %v3373 = vmax.f32 %v3357, %v3362
    %v3374 = vmax.f32 %v3358, %v3364
    %v3375 = vmax.f32 %v3359, %v3366
    %v3376 = vmax.f32 %v3360, %v3368
    %3378 = vrot.lane.b32.xlu0 %v3320, 127
    %v3379 = vpop.permute.xlu0 %3378
    %3380 = vrot.lane.b32.xlu0 %v3320, 126
    %v3381 = vpop.permute.xlu0 %3380
    %3382 = vrot.lane.b32.xlu0 %v3320, 125
    %v3383 = vpop.permute.xlu0 %3382
    %3384 = vrot.lane.b32.xlu0 %v3320, 124
    %v3385 = vpop.permute.xlu0 %3384
    %3386 = vrot.lane.b32.xlu0 %v3320, 123
    %v3387 = vpop.permute.xlu0 %3386
    %3388 = vrot.lane.b32.xlu0 %v3320, 122
    %v3389 = vpop.permute.xlu0 %3388
    %3390 = vrot.lane.b32.xlu0 %v3320, 121
    %v3391 = vpop.permute.xlu0 %3390
    %3392 = vrot.lane.b32.xlu0 %v3320, 120
    %v3393 = vpop.permute.xlu0 %3392
    %3394 = vrot.lane.b32.xlu0 %v3320, 119
    %v3395 = vpop.permute.xlu0 %3394
    %3396 = vrot.lane.b32.xlu0 %v3320, 118
    %v3397 = vpop.permute.xlu0 %3396
    %3398 = vrot.lane.b32.xlu0 %v3320, 117
    %v3399 = vpop.permute.xlu0 %3398
    %3400 = vrot.lane.b32.xlu0 %v3320, 116
    %v3401 = vpop.permute.xlu0 %3400
    %3402 = vrot.lane.b32.xlu0 %v3320, 115
    %v3403 = vpop.permute.xlu0 %3402
    %3404 = vrot.lane.b32.xlu0 %v3320, 114
    %v3405 = vpop.permute.xlu0 %3404
    %3406 = vrot.lane.b32.xlu0 %v3320, 113
    %v3407 = vpop.permute.xlu0 %3406
    %3412 = vrot.lane.b32.xlu0 %v3373, 32
    %v3413 = vpop.permute.xlu0 %3412
    %3414 = vrot.lane.b32.xlu0 %v3374, 32
    %v3415 = vpop.permute.xlu0 %3414
    %3416 = vrot.lane.b32.xlu0 %v3375, 32
    %v3417 = vpop.permute.xlu0 %3416
    %3418 = vrot.lane.b32.xlu0 %v3376, 32
    %v3419 = vpop.permute.xlu0 %3418
    %3420 = vrot.lane.b32.xlu0 %v3320, 112
    %v3421 = vpop.permute.xlu0 %3420
    %3422 = vrot.lane.b32.xlu0 %v3379, 112
    %v3423 = vpop.permute.xlu0 %3422
    %3424 = vrot.lane.b32.xlu0 %v3381, 112
    %v3425 = vpop.permute.xlu0 %3424
    %3426 = vrot.lane.b32.xlu0 %v3383, 112
    %v3427 = vpop.permute.xlu0 %3426
    %3428 = vrot.lane.b32.xlu0 %v3385, 112
    %v3429 = vpop.permute.xlu0 %3428
    %3430 = vrot.lane.b32.xlu0 %v3387, 112
    %v3431 = vpop.permute.xlu0 %3430
    %3432 = vrot.lane.b32.xlu0 %v3389, 112
    %v3433 = vpop.permute.xlu0 %3432
    %3434 = vrot.lane.b32.xlu0 %v3391, 112
    %v3435 = vpop.permute.xlu0 %3434
    %3436 = vrot.lane.b32.xlu0 %v3393, 112
    %v3437 = vpop.permute.xlu0 %3436
    %3438 = vrot.lane.b32.xlu0 %v3395, 112
    %v3439 = vpop.permute.xlu0 %3438
    %3440 = vrot.lane.b32.xlu0 %v3397, 112
    %v3441 = vpop.permute.xlu0 %3440
    %3442 = vrot.lane.b32.xlu0 %v3399, 112
    %v3443 = vpop.permute.xlu0 %3442
    %3444 = vrot.lane.b32.xlu0 %v3401, 112
    %v3445 = vpop.permute.xlu0 %3444
    %3446 = vrot.lane.b32.xlu0 %v3403, 112
    %v3447 = vpop.permute.xlu0 %3446
    %3448 = vrot.lane.b32.xlu0 %v3405, 112
    %v3449 = vpop.permute.xlu0 %3448
    %3450 = vrot.lane.b32.xlu0 %v3407, 112
    %v3451 = vpop.permute.xlu0 %3450
    %3452 = vrot.lane.b32.xlu0 %v3320, 96
    %v3453 = vpop.permute.xlu0 %3452
    %3454 = vrot.lane.b32.xlu0 %v3379, 96
    %v3455 = vpop.permute.xlu0 %3454
    %3456 = vrot.lane.b32.xlu0 %v3381, 96
    %v3457 = vpop.permute.xlu0 %3456
    %3458 = vrot.lane.b32.xlu0 %v3383, 96
    %v3459 = vpop.permute.xlu0 %3458
    %3460 = vrot.lane.b32.xlu0 %v3385, 96
    %v3461 = vpop.permute.xlu0 %3460
    %3462 = vrot.lane.b32.xlu0 %v3387, 96
    %v3463 = vpop.permute.xlu0 %3462
    %3464 = vrot.lane.b32.xlu0 %v3389, 96
    %v3465 = vpop.permute.xlu0 %3464
    %3466 = vrot.lane.b32.xlu0 %v3413, 96
    %v3467 = vpop.permute.xlu0 %3466
    %3468 = vrot.lane.b32.xlu0 %v3415, 96
    %v3469 = vpop.permute.xlu0 %3468
    %3470 = vrot.lane.b32.xlu0 %v3417, 96
    %v3471 = vpop.permute.xlu0 %3470
    %3472 = vrot.lane.b32.xlu0 %v3419, 96
    %v3473 = vpop.permute.xlu0 %3472
    %3474 = vrot.lane.b32.xlu0 %v3320, 16
    %v3475 = vpop.permute.xlu0 %3474
    %3476 = vrot.lane.b32.xlu0 %v3379, 16
    %v3477 = vpop.permute.xlu0 %3476
    %3478 = vrot.lane.b32.xlu0 %v3381, 16
    %v3479 = vpop.permute.xlu0 %3478
    %3480 = vrot.lane.b32.xlu0 %v3383, 16
    %v3481 = vpop.permute.xlu0 %3480
    %3482 = vrot.lane.b32.xlu0 %v3385, 16
    %v3483 = vpop.permute.xlu0 %3482
    %3484 = vrot.lane.b32.xlu0 %v3387, 16
    %v3485 = vpop.permute.xlu0 %3484
    %3486 = vrot.lane.b32.xlu0 %v3389, 16
    %v3487 = vpop.permute.xlu0 %3486
    %3488 = vrot.lane.b32.xlu0 %v3391, 16
    %v3489 = vpop.permute.xlu0 %3488
    %3490 = vrot.lane.b32.xlu0 %v3393, 16
    %v3491 = vpop.permute.xlu0 %3490
    %3492 = vrot.lane.b32.xlu0 %v3395, 16
    %v3493 = vpop.permute.xlu0 %3492
    %3494 = vrot.lane.b32.xlu0 %v3397, 16
    %v3495 = vpop.permute.xlu0 %3494
    %3496 = vrot.lane.b32.xlu0 %v3399, 16
    %v3497 = vpop.permute.xlu0 %3496
    %3498 = vrot.lane.b32.xlu0 %v3401, 16
    %v3499 = vpop.permute.xlu0 %3498
    %3500 = vrot.lane.b32.xlu0 %v3403, 16
    %v3501 = vpop.permute.xlu0 %3500
    %3502 = vrot.lane.b32.xlu0 %v3405, 16
    %v3503 = vpop.permute.xlu0 %3502
    %3504 = vrot.lane.b32.xlu0 %v3407, 16
    %v3505 = vpop.permute.xlu0 %3504
    %3506 = vrot.lane.b32.xlu0 %v3421, 16
    %v3507 = vpop.permute.xlu0 %3506
    %3508 = vrot.lane.b32.xlu0 %v3423, 16
    %v3509 = vpop.permute.xlu0 %3508
    %3510 = vrot.lane.b32.xlu0 %v3425, 16
    %v3511 = vpop.permute.xlu0 %3510
    %3512 = vrot.lane.b32.xlu0 %v3427, 16
    %v3513 = vpop.permute.xlu0 %3512
    %3514 = vrot.lane.b32.xlu0 %v3429, 16
    %v3515 = vpop.permute.xlu0 %3514
    %3516 = vrot.lane.b32.xlu0 %v3431, 16
    %v3517 = vpop.permute.xlu0 %3516
    %3518 = vrot.lane.b32.xlu0 %v3433, 16
    %v3519 = vpop.permute.xlu0 %3518
    %3520 = vrot.lane.b32.xlu0 %v3435, 16
    %v3521 = vpop.permute.xlu0 %3520
    %3522 = vrot.lane.b32.xlu0 %v3437, 16
    %v3523 = vpop.permute.xlu0 %3522
    %3524 = vrot.lane.b32.xlu0 %v3439, 16
    %v3525 = vpop.permute.xlu0 %3524
    %3526 = vrot.lane.b32.xlu0 %v3441, 16
    %v3527 = vpop.permute.xlu0 %3526
    %3528 = vrot.lane.b32.xlu0 %v3443, 16
    %v3529 = vpop.permute.xlu0 %3528
    %3530 = vrot.lane.b32.xlu0 %v3445, 16
    %v3531 = vpop.permute.xlu0 %3530
    %3532 = vrot.lane.b32.xlu0 %v3447, 16
    %v3533 = vpop.permute.xlu0 %3532
    %3534 = vrot.lane.b32.xlu0 %v3449, 16
    %v3535 = vpop.permute.xlu0 %3534
    %3536 = vrot.lane.b32.xlu0 %v3451, 16
    %v3537 = vpop.permute.xlu0 %3536
    %3538 = vrot.lane.b32.xlu0 %v3453, 16
    %v3539 = vpop.permute.xlu0 %3538
    %3540 = vrot.lane.b32.xlu0 %v3455, 16
    %v3541 = vpop.permute.xlu0 %3540
    %3542 = vrot.lane.b32.xlu0 %v3457, 16
    %v3543 = vpop.permute.xlu0 %3542
    %3544 = vrot.lane.b32.xlu0 %v3459, 16
    %v3545 = vpop.permute.xlu0 %3544
    %3546 = vrot.lane.b32.xlu0 %v3461, 16
    %v3547 = vpop.permute.xlu0 %3546
    %3548 = vrot.lane.b32.xlu0 %v3463, 16
    %v3549 = vpop.permute.xlu0 %3548
    %3550 = vrot.lane.b32.xlu0 %v3465, 16
    %v3551 = vpop.permute.xlu0 %3550
    %3552 = vrot.lane.b32.xlu0 %v3467, 16
    %v3553 = vpop.permute.xlu0 %3552
    %3554 = vrot.lane.b32.xlu0 %v3469, 16
    %v3555 = vpop.permute.xlu0 %3554
    %3556 = vrot.lane.b32.xlu0 %v3471, 16
    %v3557 = vpop.permute.xlu0 %3556
    %3558 = vrot.lane.b32.xlu0 %v3473, 16
    %v3559 = vpop.permute.xlu0 %3558
    %v3603 = vsel %vm605, %v3116, %v3475
    %v3604 = vsel %vm605, %v3179, %v3477
    %v3605 = vsel %vm605, %v3182, %v3479
    %v3606 = vsel %vm605, %v3185, %v3481
    %v3607 = vsel %vm605, %v3188, %v3483
    %v3608 = vsel %vm605, %v3191, %v3485
    %v3609 = vsel %vm605, %v3194, %v3487
    %v3610 = vsel %vm605, %v3197, %v3489
    %v3611 = vsel %vm605, %v3200, %v3491
    %v3612 = vsel %vm605, %v3203, %v3493
    %v3613 = vsel %vm605, %v3206, %v3495
    %v3614 = vsel %vm605, %v3209, %v3497
    %v3615 = vsel %vm605, %v3212, %v3499
    %v3616 = vsel %vm605, %v3215, %v3501
    %v3617 = vsel %vm605, %v3218, %v3503
    %v3618 = vsel %vm605, %v3221, %v3505
    %v3619 = vsel %vm605, %v3236, %v3507
    %v3620 = vsel %vm605, %v3238, %v3509
    %v3621 = vsel %vm605, %v3240, %v3511
    %v3622 = vsel %vm605, %v3242, %v3513
    %v3623 = vsel %vm605, %v3244, %v3515
    %v3624 = vsel %vm605, %v3246, %v3517
    %v3625 = vsel %vm605, %v3248, %v3519
    %v3626 = vsel %vm605, %v3250, %v3521
    %v3627 = vsel %vm605, %v3252, %v3523
    %v3628 = vsel %vm605, %v3254, %v3525
    %v3629 = vsel %vm605, %v3256, %v3527
    %v3630 = vsel %vm605, %v3258, %v3529
    %v3631 = vsel %vm605, %v3260, %v3531
    %v3632 = vsel %vm605, %v3262, %v3533
    %v3633 = vsel %vm605, %v3264, %v3535
    %v3634 = vsel %vm605, %v3266, %v3537
    %v3635 = vsel %vm605, %v3284, %v3539
    %v3636 = vsel %vm605, %v3286, %v3541
    %v3637 = vsel %vm605, %v3288, %v3543
    %v3638 = vsel %vm605, %v3290, %v3545
    %v3639 = vsel %vm605, %v3292, %v3547
    %v3640 = vsel %vm605, %v3294, %v3549
    %v3641 = vsel %vm605, %v3296, %v3551
    %v3642 = vsel %vm605, %v3298, %v3553
    %v3643 = vsel %vm605, %v3300, %v3555
    %v3644 = vsel %vm605, %v3302, %v3557
    %v3645 = vsel %vm605, %v3304, %v3559
    %v3646 = vld [vmem:[%s33] sm:$0xff]
    %v3647 = vld [vmem:[%s33 + $0x8] sm:$0xff]
    %v3648 = vld [vmem:[%s33 + $0x10] sm:$0xff]
    %v3649 = vld [vmem:[%s33 + $0x18] sm:$0xff]
    %v3650 = vld [vmem:[%s33 + $0x20] sm:$0xff]
    %v3651 = vld [vmem:[%s33 + $0x28] sm:$0xff]
    %v3652 = vld [vmem:[%s33 + $0x30] sm:$0xff]
    %v3653 = vld [vmem:[%s33 + $0x38] sm:$0xff]
    %v3654 = vld [vmem:[%s33 + $0x40] sm:$0xff]
    %v3655 = vld [vmem:[%s33 + $0x48] sm:$0xff]
    %v3656 = vld [vmem:[%s33 + $0x50] sm:$0xff]
    %v3657 = vld [vmem:[%s33 + $0x58] sm:$0xff]
    %v3659 = vsel %vm1586, %v3648, 0
    %v3662 = vsel %vm1586, %v3651, 0
    %v3665 = vsel %vm1586, %v3654, 0
    %v3668 = vsel %vm1586, %v3657, 0
    %3670 = vmatprep.subr.mxu0 0.0
    %3671 = vmatpush1.msra.mxu0 %v3618
    %3672 = vmatprep.subr.mxu0 0.0
    %3673 = vmatpush1.msra.mxu0 %v3617
    %3674 = vmatprep.subr.mxu0 0.0
    %3675 = vmatpush1.msra.mxu0 %v3616
    %3676 = vmatprep.subr.mxu0 0.0
    %3677 = vmatpush1.msra.mxu0 %v3615
    %3678 = vmatprep.subr.mxu0 0.0
    %3679 = vmatpush1.msra.mxu0 %v3614
    %3680 = vmatprep.subr.mxu0 0.0
    %3681 = vmatpush1.msra.mxu0 %v3613
    %3682 = vmatprep.subr.mxu0 0.0
    %3683 = vmatpush1.msra.mxu0 %v3612
    %3684 = vmatprep.subr.mxu0 0.0
    %3685 = vmatpush1.msra.mxu0 %v3611
    %3686 = vmatprep.subr.mxu0 0.0
    %3687 = vmatpush1.msra.mxu0 %v3610
    %3688 = vmatprep.subr.mxu0 0.0
    %3689 = vmatpush1.msra.mxu0 %v3609
    %3690 = vmatprep.subr.mxu0 0.0
    %3691 = vmatpush1.msra.mxu0 %v3608
    %3692 = vmatprep.subr.mxu0 0.0
    %3693 = vmatpush1.msra.mxu0 %v3607
    %3694 = vmatprep.subr.mxu0 0.0
    %3695 = vmatpush1.msra.mxu0 %v3606
    %3696 = vmatprep.subr.mxu0 0.0
    %3697 = vmatpush1.msra.mxu0 %v3605
    %3698 = vmatprep.subr.mxu0 0.0
    %3699 = vmatpush1.msra.mxu0 %v3604
    %3700 = vmatprep.subr.mxu0 0.0
    %3701 = vmatpush1.msra.mxu0 %v3603
    %3702 = vmatprep.subr.mxu0 0.0
    %3703 = vmatpush2.msra.mxu0 %v3634
    %3704 = vmatprep.subr.mxu0 0.0
    %3705 = vmatpush2.msra.mxu0 %v3633
    %3706 = vmatprep.subr.mxu0 0.0
    %3707 = vmatpush2.msra.mxu0 %v3632
    %3708 = vmatprep.subr.mxu0 0.0
    %3709 = vmatpush2.msra.mxu0 %v3631
    %3710 = vmatprep.subr.mxu0 0.0
    %3711 = vmatpush2.msra.mxu0 %v3630
    %3712 = vmatprep.subr.mxu0 0.0
    %3713 = vmatpush2.msra.mxu0 %v3629
    %3714 = vmatprep.subr.mxu0 0.0
    %3715 = vmatpush2.msra.mxu0 %v3628
    %3716 = vmatprep.subr.mxu0 0.0
    %3717 = vmatpush2.msra.mxu0 %v3627
    %3718 = vmatprep.subr.mxu0 0.0
    %3719 = vmatpush2.msra.mxu0 %v3626
    %3720 = vmatprep.subr.mxu0 0.0
    %3721 = vmatpush2.msra.mxu0 %v3625
    %3722 = vmatprep.subr.mxu0 0.0
    %3723 = vmatpush2.msra.mxu0 %v3624
    %3724 = vmatprep.subr.mxu0 0.0
    %3725 = vmatpush2.msra.mxu0 %v3623
    %3726 = vmatprep.subr.mxu0 0.0
    %3727 = vmatpush2.msra.mxu0 %v3622
    %3728 = vmatprep.subr.mxu0 0.0
    %3729 = vmatpush2.msra.mxu0 %v3621
    %3730 = vmatprep.subr.mxu0 0.0
    %3731 = vmatpush2.msra.mxu0 %v3620
    %3732 = vmatprep.subr.mxu0 0.0
    %3733 = vmatpush2.msra.mxu0 %v3619
    %3734 = vmatprep.mubr.f32.mxu0 %v3647
    %3735 = vmatmul.mubr.f32.gmra.mxu0 %v3646
    %v3736 = vpop.f32.mrf.mxu0
    %v3737 = vadd.f32 0.0, %v3736
    %v3738 = vpop.f32.mrf.mxu0
    %3739 = vmatprep.mubr.f32.mxu0 %v3650
    %3740 = vmatmul.mubr.f32.gmra.mxu0 %v3649
    %v3741 = vpop.f32.mrf.mxu0
    %v3742 = vadd.f32 0.0, %v3741
    %v3743 = vpop.f32.mrf.mxu0
    %3744 = vmatprep.mubr.f32.mxu0 %v3653
    %3745 = vmatmul.mubr.f32.gmra.mxu0 %v3652
    %v3746 = vpop.f32.mrf.mxu0
    %v3747 = vadd.f32 0.0, %v3746
    %v3748 = vpop.f32.mrf.mxu0
    %3749 = vmatprep.mubr.f32.mxu0 %v3656
    %3750 = vmatmul.mubr.f32.gmra.mxu0 %v3655
    %v3751 = vpop.f32.mrf.mxu0
    %v3752 = vadd.f32 0.0, %v3751
    %v3753 = vpop.f32.mrf.mxu0
    %3754 = vdwg.mxu0
    %3755 = vmatprep.subr.mxu0 0.0
    %3756 = vmatpush1.msra.mxu0 0.0
    %3757 = vmatprep.subr.mxu0 0.0
    %3758 = vmatpush1.msra.mxu0 0.0
    %3759 = vmatprep.subr.mxu0 0.0
    %3760 = vmatpush1.msra.mxu0 0.0
    %3761 = vmatprep.subr.mxu0 0.0
    %3762 = vmatpush1.msra.mxu0 0.0
    %3763 = vmatprep.subr.mxu0 0.0
    %3764 = vmatpush1.msra.mxu0 0.0
    %3765 = vmatprep.subr.mxu0 0.0
    %3766 = vmatpush1.msra.mxu0 %v3645
    %3767 = vmatprep.subr.mxu0 0.0
    %3768 = vmatpush1.msra.mxu0 %v3644
    %3769 = vmatprep.subr.mxu0 0.0
    %3770 = vmatpush1.msra.mxu0 %v3643
    %3771 = vmatprep.subr.mxu0 0.0
    %3772 = vmatpush1.msra.mxu0 %v3642
    %3773 = vmatprep.subr.mxu0 0.0
    %3774 = vmatpush1.msra.mxu0 %v3641
    %3775 = vmatprep.subr.mxu0 0.0
    %3776 = vmatpush1.msra.mxu0 %v3640
    %3777 = vmatprep.subr.mxu0 0.0
    %3778 = vmatpush1.msra.mxu0 %v3639
    %3779 = vmatprep.subr.mxu0 0.0
    %3780 = vmatpush1.msra.mxu0 %v3638
    %3781 = vmatprep.subr.mxu0 0.0
    %3782 = vmatpush1.msra.mxu0 %v3637
    %3783 = vmatprep.subr.mxu0 0.0
    %3784 = vmatpush1.msra.mxu0 %v3636
    %3785 = vmatprep.subr.mxu0 0.0
    %3786 = vmatpush1.msra.mxu0 %v3635
    %3787 = vmatprep.subr.mxu0 0.0
    %3788 = vmatpush2.msra.mxu0 0.0
    %3789 = vmatprep.subr.mxu0 0.0
    %3790 = vmatpush2.msra.mxu0 0.0
    %3791 = vmatprep.subr.mxu0 0.0
    %3792 = vmatpush2.msra.mxu0 0.0
    %3793 = vmatprep.subr.mxu0 0.0
    %3794 = vmatpush2.msra.mxu0 0.0
    %3795 = vmatprep.subr.mxu0 0.0
    %3796 = vmatpush2.msra.mxu0 0.0
    %3797 = vmatprep.subr.mxu0 0.0
    %3798 = vmatpush2.msra.mxu0 0.0
    %3799 = vmatprep.subr.mxu0 0.0
    %3800 = vmatpush2.msra.mxu0 0.0
    %3801 = vmatprep.subr.mxu0 0.0
    %3802 = vmatpush2.msra.mxu0 0.0
    %3803 = vmatprep.subr.mxu0 0.0
    %3804 = vmatpush2.msra.mxu0 0.0
    %3805 = vmatprep.subr.mxu0 0.0
    %3806 = vmatpush2.msra.mxu0 0.0
    %3807 = vmatprep.subr.mxu0 0.0
    %3808 = vmatpush2.msra.mxu0 0.0
    %3809 = vmatprep.subr.mxu0 0.0
    %3810 = vmatpush2.msra.mxu0 0.0
    %3811 = vmatprep.subr.mxu0 0.0
    %3812 = vmatpush2.msra.mxu0 0.0
    %3813 = vmatprep.subr.mxu0 0.0
    %3814 = vmatpush2.msra.mxu0 0.0
    %3815 = vmatprep.subr.mxu0 0.0
    %3816 = vmatpush2.msra.mxu0 0.0
    %3817 = vmatprep.subr.mxu0 0.0
    %3818 = vmatpush2.msra.mxu0 0.0
    %3819 = vmatprep.mubr.f32.mxu0 0.0
    %3820 = vmatmul.mubr.f32.gmra.mxu0 %v3659
    %v3821 = vpop.f32.mrf.mxu0
    %v3822 = vadd.f32 %v3737, %v3821
    %v3823 = vpop.f32.mrf.mxu0
    %3824 = vmatprep.mubr.f32.mxu0 0.0
    %3825 = vmatmul.mubr.f32.gmra.mxu0 %v3662
    %v3826 = vpop.f32.mrf.mxu0
    %v3827 = vadd.f32 %v3742, %v3826
    %v3828 = vpop.f32.mrf.mxu0
    %3829 = vmatprep.mubr.f32.mxu0 0.0
    %3830 = vmatmul.mubr.f32.gmra.mxu0 %v3665
    %v3831 = vpop.f32.mrf.mxu0
    %v3832 = vadd.f32 %v3747, %v3831
    %v3833 = vpop.f32.mrf.mxu0
    %3834 = vmatprep.mubr.f32.mxu0 0.0
    %3835 = vmatmul.mubr.f32.gmra.mxu0 %v3668
    %v3836 = vpop.f32.mrf.mxu0
    %v3837 = vadd.f32 %v3752, %v3836
    %v3838 = vpop.f32.mrf.mxu0
    %3839 = vdwg.mxu0
    %v3840 = vsel %vm844, %v3822, 0.0
    %3841 = vadd.xlane.f32.xlu0 %v3840
    %v3842 = vpop.xlane.xlu0 %3841
    %v3843 = vsel %vm844, %v3827, 0.0
    %3844 = vadd.xlane.f32.xlu0 %v3843
    %v3845 = vpop.xlane.xlu0 %3844
    %v3846 = vsel %vm844, %v3832, 0.0
    %3847 = vadd.xlane.f32.xlu0 %v3846
    %v3848 = vpop.xlane.xlu0 %3847
    %v3849 = vsel %vm844, %v3837, 0.0
    %3850 = vadd.xlane.f32.xlu0 %v3849
    %v3851 = vpop.xlane.xlu0 %3850
    %v3852 = vmul.f32 %v3842, 0.03125
    %v3853 = vmul.f32 %v3845, 0.03125
    %v3854 = vmul.f32 %v3848, 0.03125
    %v3855 = vmul.f32 %v3851, 0.03125
    %v3856 = vmul.f32 %v3822, %v3822
    %v3857 = vmul.f32 %v3827, %v3827
    %v3858 = vmul.f32 %v3832, %v3832
    %v3859 = vmul.f32 %v3837, %v3837
    %v3860 = vsel %vm844, %v3856, 0.0
    %3861 = vadd.xlane.f32.xlu0 %v3860
    %v3862 = vpop.xlane.xlu0 %3861
    %v3863 = vsel %vm844, %v3857, 0.0
    %3864 = vadd.xlane.f32.xlu0 %v3863
    %v3865 = vpop.xlane.xlu0 %3864
    %v3866 = vsel %vm844, %v3858, 0.0
    %3867 = vadd.xlane.f32.xlu0 %v3866
    %v3868 = vpop.xlane.xlu0 %3867
    %v3869 = vsel %vm844, %v3859, 0.0
    %3870 = vadd.xlane.f32.xlu0 %v3869
    %v3871 = vpop.xlane.xlu0 %3870
    %v3872 = vmul.f32 %v3862, 0.03125
    %v3873 = vmul.f32 %v3865, 0.03125
    %v3874 = vmul.f32 %v3868, 0.03125
    %v3875 = vmul.f32 %v3871, 0.03125
    %v3876 = vmul.f32 %v3852, %v3852
    %v3877 = vmul.f32 %v3853, %v3853
    %v3878 = vmul.f32 %v3854, %v3854
    %v3879 = vmul.f32 %v3855, %v3855
    %v3880 = vsub.f32 %v3872, %v3876
    %v3881 = vsub.f32 %v3873, %v3877
    %v3882 = vsub.f32 %v3874, %v3878
    %v3883 = vsub.f32 %v3875, %v3879
    %v3884 = vsub.f32 %v3822, %v3852
    %v3885 = vsub.f32 %v3827, %v3853
    %v3886 = vsub.f32 %v3832, %v3854
    %v3887 = vsub.f32 %v3837, %v3855
    %v3888 = vld [vmem:[%s29] sm:$0xff]
    %v3889 = vld [vmem:[%s29 + $0x8] sm:$0xff]
    %v3890 = vld [vmem:[%s29 + $0x10] sm:$0xff]
    %v3891 = vld [vmem:[%s29 + $0x18] sm:$0xff]
    %v3892 = vadd.f32 %v3880, 1e-05
    %v3893 = vadd.f32 %v3881, 1e-05
    %v3894 = vadd.f32 %v3882, 1e-05
    %v3895 = vadd.f32 %v3883, 1e-05
    %v3896 = vrsqrt.pop %v3892
    %v3897 = vrsqrt.pop %v3893
    %v3898 = vrsqrt.pop %v3894
    %v3899 = vrsqrt.pop %v3895
    %v3900 = vmul.f32 %v3888, %v3896
    %v3901 = vmul.f32 %v3889, %v3897
    %v3902 = vmul.f32 %v3890, %v3898
    %v3903 = vmul.f32 %v3891, %v3899
    %3905 = vset.pattern.permute.xlu0 0
    %3906 = vperm.xlu0 %3905, %v3900
    %v3907 = vpop.permute.xlu0 %3906
    %3910 = vset.pattern.permute.xlu0 0
    %3911 = vperm.xlu0 %3910, %v3901
    %v3912 = vpop.permute.xlu0 %3911
    %3915 = vset.pattern.permute.xlu0 0
    %3916 = vperm.xlu0 %3915, %v3902
    %v3917 = vpop.permute.xlu0 %3916
    %3920 = vset.pattern.permute.xlu0 0
    %3921 = vperm.xlu0 %3920, %v3903
    %v3922 = vpop.permute.xlu0 %3921
    %v3924 = vmul.f32 %v3884, %v3907
    %v3925 = vmul.f32 %v3885, %v3912
    %v3926 = vmul.f32 %v3886, %v3917
    %v3927 = vmul.f32 %v3887, %v3922
    %v3928 = vld [vmem:[%s27] sm:$0xff]
    %v3929 = vld [vmem:[%s27 + $0x8] sm:$0xff]
    %v3930 = vld [vmem:[%s27 + $0x10] sm:$0xff]
    %v3931 = vld [vmem:[%s27 + $0x18] sm:$0xff]
    %3933 = vset.pattern.permute.xlu0 0
    %3934 = vperm.xlu0 %3933, %v3928
    %v3935 = vpop.permute.xlu0 %3934
    %3938 = vset.pattern.permute.xlu0 0
    %3939 = vperm.xlu0 %3938, %v3929
    %v3940 = vpop.permute.xlu0 %3939
    %3943 = vset.pattern.permute.xlu0 0
    %3944 = vperm.xlu0 %3943, %v3930
    %v3945 = vpop.permute.xlu0 %3944
    %3948 = vset.pattern.permute.xlu0 0
    %3949 = vperm.xlu0 %3948, %v3931
    %v3950 = vpop.permute.xlu0 %3949
    %v3952 = vadd.f32 %v3924, %v3935
    %v3953 = vadd.f32 %v3925, %v3940
    %v3954 = vadd.f32 %v3926, %v3945
    %v3955 = vadd.f32 %v3927, %v3950
    %v3956 = vmax.f32 %v3952, 0.0
    %v3957 = vmax.f32 %v3953, 0.0
    %v3958 = vmax.f32 %v3954, 0.0
    %v3959 = vmax.f32 %v3955, 0.0
    %v3960 = vld [vmem:[%s39] sm:$0xff]
    %v3962 = vsel %vm844, %v3960, 0
    %3964 = vmatprep.subr.mxu0 0.0
    %3965 = vmatpush1.msra.mxu0 0.0
    %3966 = vmatprep.subr.mxu0 0.0
    %3967 = vmatpush1.msra.mxu0 0.0
    %3968 = vmatprep.subr.mxu0 0.0
    %3969 = vmatpush1.msra.mxu0 0.0
    %3970 = vmatprep.subr.mxu0 0.0
    %3971 = vmatpush1.msra.mxu0 0.0
    %3972 = vmatprep.subr.mxu0 0.0
    %3973 = vmatpush1.msra.mxu0 0.0
    %3974 = vmatprep.subr.mxu0 0.0
    %3975 = vmatpush1.msra.mxu0 0.0
    %3976 = vmatprep.subr.mxu0 0.0
    %3977 = vmatpush1.msra.mxu0 0.0
    %3978 = vmatprep.subr.mxu0 0.0
    %3979 = vmatpush1.msra.mxu0 0.0
    %3980 = vmatprep.subr.mxu0 0.0
    %3981 = vmatpush1.msra.mxu0 0.0
    %3982 = vmatprep.subr.mxu0 0.0
    %3983 = vmatpush1.msra.mxu0 0.0
    %3984 = vmatprep.subr.mxu0 0.0
    %3985 = vmatpush1.msra.mxu0 0.0
    %3986 = vmatprep.subr.mxu0 0.0
    %3987 = vmatpush1.msra.mxu0 0.0
    %3988 = vmatprep.subr.mxu0 0.0
    %3989 = vmatpush1.msra.mxu0 %v3959
    %3990 = vmatprep.subr.mxu0 0.0
    %3991 = vmatpush1.msra.mxu0 %v3958
    %3992 = vmatprep.subr.mxu0 0.0
    %3993 = vmatpush1.msra.mxu0 %v3957
    %3994 = vmatprep.subr.mxu0 0.0
    %3995 = vmatpush1.msra.mxu0 %v3956
    %3996 = vmatprep.subr.mxu0 0.0
    %3997 = vmatpush2.msra.mxu0 0.0
    %3998 = vmatprep.subr.mxu0 0.0
    %3999 = vmatpush2.msra.mxu0 0.0
    %4000 = vmatprep.subr.mxu0 0.0
    %4001 = vmatpush2.msra.mxu0 0.0
    %4002 = vmatprep.subr.mxu0 0.0
    %4003 = vmatpush2.msra.mxu0 0.0
    %4004 = vmatprep.subr.mxu0 0.0
    %4005 = vmatpush2.msra.mxu0 0.0
    %4006 = vmatprep.subr.mxu0 0.0
    %4007 = vmatpush2.msra.mxu0 0.0
    %4008 = vmatprep.subr.mxu0 0.0
    %4009 = vmatpush2.msra.mxu0 0.0
    %4010 = vmatprep.subr.mxu0 0.0
    %4011 = vmatpush2.msra.mxu0 0.0
    %4012 = vmatprep.subr.mxu0 0.0
    %4013 = vmatpush2.msra.mxu0 0.0
    %4014 = vmatprep.subr.mxu0 0.0
    %4015 = vmatpush2.msra.mxu0 0.0
    %4016 = vmatprep.subr.mxu0 0.0
    %4017 = vmatpush2.msra.mxu0 0.0
    %4018 = vmatprep.subr.mxu0 0.0
    %4019 = vmatpush2.msra.mxu0 0.0
    %4020 = vmatprep.subr.mxu0 0.0
    %4021 = vmatpush2.msra.mxu0 0.0
    %4022 = vmatprep.subr.mxu0 0.0
    %4023 = vmatpush2.msra.mxu0 0.0
    %4024 = vmatprep.subr.mxu0 0.0
    %4025 = vmatpush2.msra.mxu0 0.0
    %4026 = vmatprep.subr.mxu0 0.0
    %4027 = vmatpush2.msra.mxu0 0.0
    %4028 = vmatprep.mubr.f32.mxu0 0.0
    %4029 = vmatmul.mubr.f32.gmra.mxu0 %v3962
    %v4030 = vpop.f32.mrf.mxu0
    %v4031 = vadd.f32 0.0, %v4030
    %v4032 = vpop.f32.mrf.mxu0
    %4033 = vdwg.mxu0
    %4035 = vrot.lane.b32.xlu0 %v4031, 19
    %v4036 = vpop.permute.xlu0 %4035
    %v4038 = vsel %vm243, 0.0, %v4036
    %v4039 = vsel %vm245, %v4038, 0.0
    %4044 = vrot.lane.b32.xlu0 %v3956, 1
    %v4045 = vpop.permute.xlu0 %4044
    %4046 = vrot.lane.b32.xlu0 %v3957, 1
    %v4047 = vpop.permute.xlu0 %4046
    %4048 = vrot.lane.b32.xlu0 %v3958, 1
    %v4049 = vpop.permute.xlu0 %4048
    %4050 = vrot.lane.b32.xlu0 %v3959, 1
    %v4051 = vpop.permute.xlu0 %4050
    %v4056 = vsel %vm250, -inf, %v4045
    %v4057 = vsel %vm250, -inf, %v4047
    %v4058 = vsel %vm250, -inf, %v4049
    %v4059 = vsel %vm250, -inf, %v4051
    %v4060 = vsel %vm252, %v4056, -inf
    %v4061 = vsel %vm252, %v4057, -inf
    %v4062 = vsel %vm252, %v4058, -inf
    %v4063 = vsel %vm252, %v4059, -inf
    %4068 = vrot.lane.b32.xlu0 %v4060, 127
    %v4069 = vpop.permute.xlu0 %4068
    %4070 = vrot.lane.b32.xlu0 %v4061, 127
    %v4071 = vpop.permute.xlu0 %4070
    %4072 = vrot.lane.b32.xlu0 %v4062, 127
    %v4073 = vpop.permute.xlu0 %4072
    %4074 = vrot.lane.b32.xlu0 %v4063, 127
    %v4075 = vpop.permute.xlu0 %4074
    %v4080 = vmax.f32 %v4060, %v4069
    %v4081 = vmax.f32 %v4061, %v4071
    %v4082 = vmax.f32 %v4062, %v4073
    %v4083 = vmax.f32 %v4063, %v4075
    %4084 = vrot.lane.b32.xlu0 %v4060, 126
    %v4085 = vpop.permute.xlu0 %4084
    %4086 = vrot.lane.b32.xlu0 %v4061, 126
    %v4087 = vpop.permute.xlu0 %4086
    %4088 = vrot.lane.b32.xlu0 %v4062, 126
    %v4089 = vpop.permute.xlu0 %4088
    %4090 = vrot.lane.b32.xlu0 %v4063, 126
    %v4091 = vpop.permute.xlu0 %4090
    %v4096 = vmax.f32 %v4080, %v4085
    %v4097 = vmax.f32 %v4081, %v4087
    %v4098 = vmax.f32 %v4082, %v4089
    %v4099 = vmax.f32 %v4083, %v4091
    %4101 = vrot.lane.b32.xlu0 %v4039, 127
    %v4102 = vpop.permute.xlu0 %4101
    %4104 = vrot.lane.b32.xlu0 %v4039, 126
    %v4105 = vpop.permute.xlu0 %4104
    %4107 = vrot.lane.b32.xlu0 %v4039, 125
    %v4108 = vpop.permute.xlu0 %4107
    %4110 = vrot.lane.b32.xlu0 %v4039, 124
    %v4111 = vpop.permute.xlu0 %4110
    %4113 = vrot.lane.b32.xlu0 %v4039, 123
    %v4114 = vpop.permute.xlu0 %4113
    %4116 = vrot.lane.b32.xlu0 %v4039, 122
    %v4117 = vpop.permute.xlu0 %4116
    %4119 = vrot.lane.b32.xlu0 %v4039, 121
    %v4120 = vpop.permute.xlu0 %4119
    %4122 = vrot.lane.b32.xlu0 %v4039, 120
    %v4123 = vpop.permute.xlu0 %4122
    %4125 = vrot.lane.b32.xlu0 %v4039, 119
    %v4126 = vpop.permute.xlu0 %4125
    %4128 = vrot.lane.b32.xlu0 %v4039, 118
    %v4129 = vpop.permute.xlu0 %4128
    %4131 = vrot.lane.b32.xlu0 %v4039, 117
    %v4132 = vpop.permute.xlu0 %4131
    %4134 = vrot.lane.b32.xlu0 %v4039, 116
    %v4135 = vpop.permute.xlu0 %4134
    %4137 = vrot.lane.b32.xlu0 %v4039, 115
    %v4138 = vpop.permute.xlu0 %4137
    %4140 = vrot.lane.b32.xlu0 %v4039, 114
    %v4141 = vpop.permute.xlu0 %4140
    %4143 = vrot.lane.b32.xlu0 %v4039, 113
    %v4144 = vpop.permute.xlu0 %4143
    %4150 = vrot.lane.b32.xlu0 %v4096, 32
    %v4151 = vpop.permute.xlu0 %4150
    %4152 = vrot.lane.b32.xlu0 %v4097, 32
    %v4153 = vpop.permute.xlu0 %4152
    %4154 = vrot.lane.b32.xlu0 %v4098, 32
    %v4155 = vpop.permute.xlu0 %4154
    %4156 = vrot.lane.b32.xlu0 %v4099, 32
    %v4157 = vpop.permute.xlu0 %4156
    %4158 = vrot.lane.b32.xlu0 %v4039, 112
    %v4159 = vpop.permute.xlu0 %4158
    %4160 = vrot.lane.b32.xlu0 %v4102, 112
    %v4161 = vpop.permute.xlu0 %4160
    %4162 = vrot.lane.b32.xlu0 %v4105, 112
    %v4163 = vpop.permute.xlu0 %4162
    %4164 = vrot.lane.b32.xlu0 %v4108, 112
    %v4165 = vpop.permute.xlu0 %4164
    %4166 = vrot.lane.b32.xlu0 %v4111, 112
    %v4167 = vpop.permute.xlu0 %4166
    %4168 = vrot.lane.b32.xlu0 %v4114, 112
    %v4169 = vpop.permute.xlu0 %4168
    %4170 = vrot.lane.b32.xlu0 %v4117, 112
    %v4171 = vpop.permute.xlu0 %4170
    %4172 = vrot.lane.b32.xlu0 %v4120, 112
    %v4173 = vpop.permute.xlu0 %4172
    %4174 = vrot.lane.b32.xlu0 %v4123, 112
    %v4175 = vpop.permute.xlu0 %4174
    %4176 = vrot.lane.b32.xlu0 %v4126, 112
    %v4177 = vpop.permute.xlu0 %4176
    %4178 = vrot.lane.b32.xlu0 %v4129, 112
    %v4179 = vpop.permute.xlu0 %4178
    %4180 = vrot.lane.b32.xlu0 %v4132, 112
    %v4181 = vpop.permute.xlu0 %4180
    %4182 = vrot.lane.b32.xlu0 %v4135, 112
    %v4183 = vpop.permute.xlu0 %4182
    %4184 = vrot.lane.b32.xlu0 %v4138, 112
    %v4185 = vpop.permute.xlu0 %4184
    %4186 = vrot.lane.b32.xlu0 %v4141, 112
    %v4187 = vpop.permute.xlu0 %4186
    %4188 = vrot.lane.b32.xlu0 %v4144, 112
    %v4189 = vpop.permute.xlu0 %4188
    %4206 = vrot.lane.b32.xlu0 %v4039, 96
    %v4207 = vpop.permute.xlu0 %4206
    %4208 = vrot.lane.b32.xlu0 %v4102, 96
    %v4209 = vpop.permute.xlu0 %4208
    %4210 = vrot.lane.b32.xlu0 %v4105, 96
    %v4211 = vpop.permute.xlu0 %4210
    %4212 = vrot.lane.b32.xlu0 %v4108, 96
    %v4213 = vpop.permute.xlu0 %4212
    %4214 = vrot.lane.b32.xlu0 %v4111, 96
    %v4215 = vpop.permute.xlu0 %4214
    %4216 = vrot.lane.b32.xlu0 %v4114, 96
    %v4217 = vpop.permute.xlu0 %4216
    %4218 = vrot.lane.b32.xlu0 %v4117, 96
    %v4219 = vpop.permute.xlu0 %4218
    %4220 = vrot.lane.b32.xlu0 %v4151, 96
    %v4221 = vpop.permute.xlu0 %4220
    %4222 = vrot.lane.b32.xlu0 %v4153, 96
    %v4223 = vpop.permute.xlu0 %4222
    %4224 = vrot.lane.b32.xlu0 %v4155, 96
    %v4225 = vpop.permute.xlu0 %4224
    %4226 = vrot.lane.b32.xlu0 %v4157, 96
    %v4227 = vpop.permute.xlu0 %4226
    %4239 = vrot.lane.b32.xlu0 %v4031, 3
    %v4240 = vpop.permute.xlu0 %4239
    %v4242 = vsel %vm243, 0.0, %v4240
    %v4243 = vsel %vm245, %v4242, 0.0
    %4244 = vrot.lane.b32.xlu0 %v3956, 113
    %v4245 = vpop.permute.xlu0 %4244
    %4246 = vrot.lane.b32.xlu0 %v3957, 113
    %v4247 = vpop.permute.xlu0 %4246
    %4248 = vrot.lane.b32.xlu0 %v3958, 113
    %v4249 = vpop.permute.xlu0 %4248
    %4250 = vrot.lane.b32.xlu0 %v3959, 113
    %v4251 = vpop.permute.xlu0 %4250
    %v4256 = vsel %vm250, -inf, %v4245
    %v4257 = vsel %vm250, -inf, %v4247
    %v4258 = vsel %vm250, -inf, %v4249
    %v4259 = vsel %vm250, -inf, %v4251
    %v4260 = vsel %vm252, %v4256, -inf
    %v4261 = vsel %vm252, %v4257, -inf
    %v4262 = vsel %vm252, %v4258, -inf
    %v4263 = vsel %vm252, %v4259, -inf
    %4268 = vrot.lane.b32.xlu0 %v4260, 127
    %v4269 = vpop.permute.xlu0 %4268
    %4270 = vrot.lane.b32.xlu0 %v4261, 127
    %v4271 = vpop.permute.xlu0 %4270
    %4272 = vrot.lane.b32.xlu0 %v4262, 127
    %v4273 = vpop.permute.xlu0 %4272
    %4274 = vrot.lane.b32.xlu0 %v4263, 127
    %v4275 = vpop.permute.xlu0 %4274
    %v4280 = vmax.f32 %v4260, %v4269
    %v4281 = vmax.f32 %v4261, %v4271
    %v4282 = vmax.f32 %v4262, %v4273
    %v4283 = vmax.f32 %v4263, %v4275
    %4284 = vrot.lane.b32.xlu0 %v4260, 126
    %v4285 = vpop.permute.xlu0 %4284
    %4286 = vrot.lane.b32.xlu0 %v4261, 126
    %v4287 = vpop.permute.xlu0 %4286
    %4288 = vrot.lane.b32.xlu0 %v4262, 126
    %v4289 = vpop.permute.xlu0 %4288
    %4290 = vrot.lane.b32.xlu0 %v4263, 126
    %v4291 = vpop.permute.xlu0 %4290
    %v4296 = vmax.f32 %v4280, %v4285
    %v4297 = vmax.f32 %v4281, %v4287
    %v4298 = vmax.f32 %v4282, %v4289
    %v4299 = vmax.f32 %v4283, %v4291
    %4301 = vrot.lane.b32.xlu0 %v4243, 127
    %v4302 = vpop.permute.xlu0 %4301
    %4303 = vrot.lane.b32.xlu0 %v4243, 126
    %v4304 = vpop.permute.xlu0 %4303
    %4305 = vrot.lane.b32.xlu0 %v4243, 125
    %v4306 = vpop.permute.xlu0 %4305
    %4307 = vrot.lane.b32.xlu0 %v4243, 124
    %v4308 = vpop.permute.xlu0 %4307
    %4309 = vrot.lane.b32.xlu0 %v4243, 123
    %v4310 = vpop.permute.xlu0 %4309
    %4311 = vrot.lane.b32.xlu0 %v4243, 122
    %v4312 = vpop.permute.xlu0 %4311
    %4313 = vrot.lane.b32.xlu0 %v4243, 121
    %v4314 = vpop.permute.xlu0 %4313
    %4315 = vrot.lane.b32.xlu0 %v4243, 120
    %v4316 = vpop.permute.xlu0 %4315
    %4317 = vrot.lane.b32.xlu0 %v4243, 119
    %v4318 = vpop.permute.xlu0 %4317
    %4319 = vrot.lane.b32.xlu0 %v4243, 118
    %v4320 = vpop.permute.xlu0 %4319
    %4321 = vrot.lane.b32.xlu0 %v4243, 117
    %v4322 = vpop.permute.xlu0 %4321
    %4323 = vrot.lane.b32.xlu0 %v4243, 116
    %v4324 = vpop.permute.xlu0 %4323
    %4325 = vrot.lane.b32.xlu0 %v4243, 115
    %v4326 = vpop.permute.xlu0 %4325
    %4327 = vrot.lane.b32.xlu0 %v4243, 114
    %v4328 = vpop.permute.xlu0 %4327
    %4329 = vrot.lane.b32.xlu0 %v4243, 113
    %v4330 = vpop.permute.xlu0 %4329
    %4335 = vrot.lane.b32.xlu0 %v4296, 32
    %v4336 = vpop.permute.xlu0 %4335
    %4337 = vrot.lane.b32.xlu0 %v4297, 32
    %v4338 = vpop.permute.xlu0 %4337
    %4339 = vrot.lane.b32.xlu0 %v4298, 32
    %v4340 = vpop.permute.xlu0 %4339
    %4341 = vrot.lane.b32.xlu0 %v4299, 32
    %v4342 = vpop.permute.xlu0 %4341
    %4343 = vrot.lane.b32.xlu0 %v4243, 112
    %v4344 = vpop.permute.xlu0 %4343
    %4345 = vrot.lane.b32.xlu0 %v4302, 112
    %v4346 = vpop.permute.xlu0 %4345
    %4347 = vrot.lane.b32.xlu0 %v4304, 112
    %v4348 = vpop.permute.xlu0 %4347
    %4349 = vrot.lane.b32.xlu0 %v4306, 112
    %v4350 = vpop.permute.xlu0 %4349
    %4351 = vrot.lane.b32.xlu0 %v4308, 112
    %v4352 = vpop.permute.xlu0 %4351
    %4353 = vrot.lane.b32.xlu0 %v4310, 112
    %v4354 = vpop.permute.xlu0 %4353
    %4355 = vrot.lane.b32.xlu0 %v4312, 112
    %v4356 = vpop.permute.xlu0 %4355
    %4357 = vrot.lane.b32.xlu0 %v4314, 112
    %v4358 = vpop.permute.xlu0 %4357
    %4359 = vrot.lane.b32.xlu0 %v4316, 112
    %v4360 = vpop.permute.xlu0 %4359
    %4361 = vrot.lane.b32.xlu0 %v4318, 112
    %v4362 = vpop.permute.xlu0 %4361
    %4363 = vrot.lane.b32.xlu0 %v4320, 112
    %v4364 = vpop.permute.xlu0 %4363
    %4365 = vrot.lane.b32.xlu0 %v4322, 112
    %v4366 = vpop.permute.xlu0 %4365
    %4367 = vrot.lane.b32.xlu0 %v4324, 112
    %v4368 = vpop.permute.xlu0 %4367
    %4369 = vrot.lane.b32.xlu0 %v4326, 112
    %v4370 = vpop.permute.xlu0 %4369
    %4371 = vrot.lane.b32.xlu0 %v4328, 112
    %v4372 = vpop.permute.xlu0 %4371
    %4373 = vrot.lane.b32.xlu0 %v4330, 112
    %v4374 = vpop.permute.xlu0 %4373
    %4375 = vrot.lane.b32.xlu0 %v4243, 96
    %v4376 = vpop.permute.xlu0 %4375
    %4377 = vrot.lane.b32.xlu0 %v4302, 96
    %v4378 = vpop.permute.xlu0 %4377
    %4379 = vrot.lane.b32.xlu0 %v4304, 96
    %v4380 = vpop.permute.xlu0 %4379
    %4381 = vrot.lane.b32.xlu0 %v4306, 96
    %v4382 = vpop.permute.xlu0 %4381
    %4383 = vrot.lane.b32.xlu0 %v4308, 96
    %v4384 = vpop.permute.xlu0 %4383
    %4385 = vrot.lane.b32.xlu0 %v4310, 96
    %v4386 = vpop.permute.xlu0 %4385
    %4387 = vrot.lane.b32.xlu0 %v4312, 96
    %v4388 = vpop.permute.xlu0 %4387
    %4389 = vrot.lane.b32.xlu0 %v4336, 96
    %v4390 = vpop.permute.xlu0 %4389
    %4391 = vrot.lane.b32.xlu0 %v4338, 96
    %v4392 = vpop.permute.xlu0 %4391
    %4393 = vrot.lane.b32.xlu0 %v4340, 96
    %v4394 = vpop.permute.xlu0 %4393
    %4395 = vrot.lane.b32.xlu0 %v4342, 96
    %v4396 = vpop.permute.xlu0 %4395
    %4397 = vrot.lane.b32.xlu0 %v4243, 16
    %v4398 = vpop.permute.xlu0 %4397
    %4399 = vrot.lane.b32.xlu0 %v4302, 16
    %v4400 = vpop.permute.xlu0 %4399
    %4401 = vrot.lane.b32.xlu0 %v4304, 16
    %v4402 = vpop.permute.xlu0 %4401
    %4403 = vrot.lane.b32.xlu0 %v4306, 16
    %v4404 = vpop.permute.xlu0 %4403
    %4405 = vrot.lane.b32.xlu0 %v4308, 16
    %v4406 = vpop.permute.xlu0 %4405
    %4407 = vrot.lane.b32.xlu0 %v4310, 16
    %v4408 = vpop.permute.xlu0 %4407
    %4409 = vrot.lane.b32.xlu0 %v4312, 16
    %v4410 = vpop.permute.xlu0 %4409
    %4411 = vrot.lane.b32.xlu0 %v4314, 16
    %v4412 = vpop.permute.xlu0 %4411
    %4413 = vrot.lane.b32.xlu0 %v4316, 16
    %v4414 = vpop.permute.xlu0 %4413
    %4415 = vrot.lane.b32.xlu0 %v4318, 16
    %v4416 = vpop.permute.xlu0 %4415
    %4417 = vrot.lane.b32.xlu0 %v4320, 16
    %v4418 = vpop.permute.xlu0 %4417
    %4419 = vrot.lane.b32.xlu0 %v4322, 16
    %v4420 = vpop.permute.xlu0 %4419
    %4421 = vrot.lane.b32.xlu0 %v4324, 16
    %v4422 = vpop.permute.xlu0 %4421
    %4423 = vrot.lane.b32.xlu0 %v4326, 16
    %v4424 = vpop.permute.xlu0 %4423
    %4425 = vrot.lane.b32.xlu0 %v4328, 16
    %v4426 = vpop.permute.xlu0 %4425
    %4427 = vrot.lane.b32.xlu0 %v4330, 16
    %v4428 = vpop.permute.xlu0 %4427
    %4429 = vrot.lane.b32.xlu0 %v4344, 16
    %v4430 = vpop.permute.xlu0 %4429
    %4431 = vrot.lane.b32.xlu0 %v4346, 16
    %v4432 = vpop.permute.xlu0 %4431
    %4433 = vrot.lane.b32.xlu0 %v4348, 16
    %v4434 = vpop.permute.xlu0 %4433
    %4435 = vrot.lane.b32.xlu0 %v4350, 16
    %v4436 = vpop.permute.xlu0 %4435
    %4437 = vrot.lane.b32.xlu0 %v4352, 16
    %v4438 = vpop.permute.xlu0 %4437
    %4439 = vrot.lane.b32.xlu0 %v4354, 16
    %v4440 = vpop.permute.xlu0 %4439
    %4441 = vrot.lane.b32.xlu0 %v4356, 16
    %v4442 = vpop.permute.xlu0 %4441
    %4443 = vrot.lane.b32.xlu0 %v4358, 16
    %v4444 = vpop.permute.xlu0 %4443
    %4445 = vrot.lane.b32.xlu0 %v4360, 16
    %v4446 = vpop.permute.xlu0 %4445
    %4447 = vrot.lane.b32.xlu0 %v4362, 16
    %v4448 = vpop.permute.xlu0 %4447
    %4449 = vrot.lane.b32.xlu0 %v4364, 16
    %v4450 = vpop.permute.xlu0 %4449
    %4451 = vrot.lane.b32.xlu0 %v4366, 16
    %v4452 = vpop.permute.xlu0 %4451
    %4453 = vrot.lane.b32.xlu0 %v4368, 16
    %v4454 = vpop.permute.xlu0 %4453
    %4455 = vrot.lane.b32.xlu0 %v4370, 16
    %v4456 = vpop.permute.xlu0 %4455
    %4457 = vrot.lane.b32.xlu0 %v4372, 16
    %v4458 = vpop.permute.xlu0 %4457
    %4459 = vrot.lane.b32.xlu0 %v4374, 16
    %v4460 = vpop.permute.xlu0 %4459
    %4461 = vrot.lane.b32.xlu0 %v4376, 16
    %v4462 = vpop.permute.xlu0 %4461
    %4463 = vrot.lane.b32.xlu0 %v4378, 16
    %v4464 = vpop.permute.xlu0 %4463
    %4465 = vrot.lane.b32.xlu0 %v4380, 16
    %v4466 = vpop.permute.xlu0 %4465
    %4467 = vrot.lane.b32.xlu0 %v4382, 16
    %v4468 = vpop.permute.xlu0 %4467
    %4469 = vrot.lane.b32.xlu0 %v4384, 16
    %v4470 = vpop.permute.xlu0 %4469
    %4471 = vrot.lane.b32.xlu0 %v4386, 16
    %v4472 = vpop.permute.xlu0 %4471
    %4473 = vrot.lane.b32.xlu0 %v4388, 16
    %v4474 = vpop.permute.xlu0 %4473
    %4475 = vrot.lane.b32.xlu0 %v4390, 16
    %v4476 = vpop.permute.xlu0 %4475
    %4477 = vrot.lane.b32.xlu0 %v4392, 16
    %v4478 = vpop.permute.xlu0 %4477
    %4479 = vrot.lane.b32.xlu0 %v4394, 16
    %v4480 = vpop.permute.xlu0 %4479
    %4481 = vrot.lane.b32.xlu0 %v4396, 16
    %v4482 = vpop.permute.xlu0 %4481
    %v4526 = vsel %vm605, %v4039, %v4398
    %v4527 = vsel %vm605, %v4102, %v4400
    %v4528 = vsel %vm605, %v4105, %v4402
    %v4529 = vsel %vm605, %v4108, %v4404
    %v4530 = vsel %vm605, %v4111, %v4406
    %v4531 = vsel %vm605, %v4114, %v4408
    %v4532 = vsel %vm605, %v4117, %v4410
    %v4533 = vsel %vm605, %v4120, %v4412
    %v4534 = vsel %vm605, %v4123, %v4414
    %v4535 = vsel %vm605, %v4126, %v4416
    %v4536 = vsel %vm605, %v4129, %v4418
    %v4537 = vsel %vm605, %v4132, %v4420
    %v4538 = vsel %vm605, %v4135, %v4422
    %v4539 = vsel %vm605, %v4138, %v4424
    %v4540 = vsel %vm605, %v4141, %v4426
    %v4541 = vsel %vm605, %v4144, %v4428
    %v4542 = vsel %vm605, %v4159, %v4430
    %v4543 = vsel %vm605, %v4161, %v4432
    %v4544 = vsel %vm605, %v4163, %v4434
    %v4545 = vsel %vm605, %v4165, %v4436
    %v4546 = vsel %vm605, %v4167, %v4438
    %v4547 = vsel %vm605, %v4169, %v4440
    %v4548 = vsel %vm605, %v4171, %v4442
    %v4549 = vsel %vm605, %v4173, %v4444
    %v4550 = vsel %vm605, %v4175, %v4446
    %v4551 = vsel %vm605, %v4177, %v4448
    %v4552 = vsel %vm605, %v4179, %v4450
    %v4553 = vsel %vm605, %v4181, %v4452
    %v4554 = vsel %vm605, %v4183, %v4454
    %v4555 = vsel %vm605, %v4185, %v4456
    %v4556 = vsel %vm605, %v4187, %v4458
    %v4557 = vsel %vm605, %v4189, %v4460
    %v4558 = vsel %vm605, %v4207, %v4462
    %v4559 = vsel %vm605, %v4209, %v4464
    %v4560 = vsel %vm605, %v4211, %v4466
    %v4561 = vsel %vm605, %v4213, %v4468
    %v4562 = vsel %vm605, %v4215, %v4470
    %v4563 = vsel %vm605, %v4217, %v4472
    %v4564 = vsel %vm605, %v4219, %v4474
    %v4565 = vsel %vm605, %v4221, %v4476
    %v4566 = vsel %vm605, %v4223, %v4478
    %v4567 = vsel %vm605, %v4225, %v4480
    %v4568 = vsel %vm605, %v4227, %v4482
    %v4569 = vld [vmem:[%s41] sm:$0xff]
    %v4570 = vld [vmem:[%s41 + $0x8] sm:$0xff]
    %v4571 = vld [vmem:[%s41 + $0x10] sm:$0xff]
    %v4572 = vld [vmem:[%s41 + $0x18] sm:$0xff]
    %v4573 = vld [vmem:[%s41 + $0x20] sm:$0xff]
    %v4574 = vld [vmem:[%s41 + $0x28] sm:$0xff]
    %v4575 = vld [vmem:[%s41 + $0x30] sm:$0xff]
    %v4576 = vld [vmem:[%s41 + $0x38] sm:$0xff]
    %v4577 = vld [vmem:[%s41 + $0x40] sm:$0xff]
    %v4578 = vld [vmem:[%s41 + $0x48] sm:$0xff]
    %v4579 = vld [vmem:[%s41 + $0x50] sm:$0xff]
    %v4580 = vld [vmem:[%s41 + $0x58] sm:$0xff]
    %v4582 = vsel %vm1586, %v4571, 0
    %v4585 = vsel %vm1586, %v4574, 0
    %v4588 = vsel %vm1586, %v4577, 0
    %v4591 = vsel %vm1586, %v4580, 0
    %4593 = vmatprep.subr.mxu0 0.0
    %4594 = vmatpush1.msra.mxu0 %v4541
    %4595 = vmatprep.subr.mxu0 0.0
    %4596 = vmatpush1.msra.mxu0 %v4540
    %4597 = vmatprep.subr.mxu0 0.0
    %4598 = vmatpush1.msra.mxu0 %v4539
    %4599 = vmatprep.subr.mxu0 0.0
    %4600 = vmatpush1.msra.mxu0 %v4538
    %4601 = vmatprep.subr.mxu0 0.0
    %4602 = vmatpush1.msra.mxu0 %v4537
    %4603 = vmatprep.subr.mxu0 0.0
    %4604 = vmatpush1.msra.mxu0 %v4536
    %4605 = vmatprep.subr.mxu0 0.0
    %4606 = vmatpush1.msra.mxu0 %v4535
    %4607 = vmatprep.subr.mxu0 0.0
    %4608 = vmatpush1.msra.mxu0 %v4534
    %4609 = vmatprep.subr.mxu0 0.0
    %4610 = vmatpush1.msra.mxu0 %v4533
    %4611 = vmatprep.subr.mxu0 0.0
    %4612 = vmatpush1.msra.mxu0 %v4532
    %4613 = vmatprep.subr.mxu0 0.0
    %4614 = vmatpush1.msra.mxu0 %v4531
    %4615 = vmatprep.subr.mxu0 0.0
    %4616 = vmatpush1.msra.mxu0 %v4530
    %4617 = vmatprep.subr.mxu0 0.0
    %4618 = vmatpush1.msra.mxu0 %v4529
    %4619 = vmatprep.subr.mxu0 0.0
    %4620 = vmatpush1.msra.mxu0 %v4528
    %4621 = vmatprep.subr.mxu0 0.0
    %4622 = vmatpush1.msra.mxu0 %v4527
    %4623 = vmatprep.subr.mxu0 0.0
    %4624 = vmatpush1.msra.mxu0 %v4526
    %4625 = vmatprep.subr.mxu0 0.0
    %4626 = vmatpush2.msra.mxu0 %v4557
    %4627 = vmatprep.subr.mxu0 0.0
    %4628 = vmatpush2.msra.mxu0 %v4556
    %4629 = vmatprep.subr.mxu0 0.0
    %4630 = vmatpush2.msra.mxu0 %v4555
    %4631 = vmatprep.subr.mxu0 0.0
    %4632 = vmatpush2.msra.mxu0 %v4554
    %4633 = vmatprep.subr.mxu0 0.0
    %4634 = vmatpush2.msra.mxu0 %v4553
    %4635 = vmatprep.subr.mxu0 0.0
    %4636 = vmatpush2.msra.mxu0 %v4552
    %4637 = vmatprep.subr.mxu0 0.0
    %4638 = vmatpush2.msra.mxu0 %v4551
    %4639 = vmatprep.subr.mxu0 0.0
    %4640 = vmatpush2.msra.mxu0 %v4550
    %4641 = vmatprep.subr.mxu0 0.0
    %4642 = vmatpush2.msra.mxu0 %v4549
    %4643 = vmatprep.subr.mxu0 0.0
    %4644 = vmatpush2.msra.mxu0 %v4548
    %4645 = vmatprep.subr.mxu0 0.0
    %4646 = vmatpush2.msra.mxu0 %v4547
    %4647 = vmatprep.subr.mxu0 0.0
    %4648 = vmatpush2.msra.mxu0 %v4546
    %4649 = vmatprep.subr.mxu0 0.0
    %4650 = vmatpush2.msra.mxu0 %v4545
    %4651 = vmatprep.subr.mxu0 0.0
    %4652 = vmatpush2.msra.mxu0 %v4544
    %4653 = vmatprep.subr.mxu0 0.0
    %4654 = vmatpush2.msra.mxu0 %v4543
    %4655 = vmatprep.subr.mxu0 0.0
    %4656 = vmatpush2.msra.mxu0 %v4542
    %4657 = vmatprep.mubr.f32.mxu0 %v4570
    %4658 = vmatmul.mubr.f32.gmra.mxu0 %v4569
    %v4659 = vpop.f32.mrf.mxu0
    %v4660 = vadd.f32 0.0, %v4659
    %v4661 = vpop.f32.mrf.mxu0
    %4662 = vmatprep.mubr.f32.mxu0 %v4573
    %4663 = vmatmul.mubr.f32.gmra.mxu0 %v4572
    %v4664 = vpop.f32.mrf.mxu0
    %v4665 = vadd.f32 0.0, %v4664
    %v4666 = vpop.f32.mrf.mxu0
    %4667 = vmatprep.mubr.f32.mxu0 %v4576
    %4668 = vmatmul.mubr.f32.gmra.mxu0 %v4575
    %v4669 = vpop.f32.mrf.mxu0
    %v4670 = vadd.f32 0.0, %v4669
    %v4671 = vpop.f32.mrf.mxu0
    %4672 = vmatprep.mubr.f32.mxu0 %v4579
    %4673 = vmatmul.mubr.f32.gmra.mxu0 %v4578
    %v4674 = vpop.f32.mrf.mxu0
    %v4675 = vadd.f32 0.0, %v4674
    %v4676 = vpop.f32.mrf.mxu0
    %4677 = vdwg.mxu0
    %4678 = vmatprep.subr.mxu0 0.0
    %4679 = vmatpush1.msra.mxu0 0.0
    %4680 = vmatprep.subr.mxu0 0.0
    %4681 = vmatpush1.msra.mxu0 0.0
    %4682 = vmatprep.subr.mxu0 0.0
    %4683 = vmatpush1.msra.mxu0 0.0
    %4684 = vmatprep.subr.mxu0 0.0
    %4685 = vmatpush1.msra.mxu0 0.0
    %4686 = vmatprep.subr.mxu0 0.0
    %4687 = vmatpush1.msra.mxu0 0.0
    %4688 = vmatprep.subr.mxu0 0.0
    %4689 = vmatpush1.msra.mxu0 %v4568
    %4690 = vmatprep.subr.mxu0 0.0
    %4691 = vmatpush1.msra.mxu0 %v4567
    %4692 = vmatprep.subr.mxu0 0.0
    %4693 = vmatpush1.msra.mxu0 %v4566
    %4694 = vmatprep.subr.mxu0 0.0
    %4695 = vmatpush1.msra.mxu0 %v4565
    %4696 = vmatprep.subr.mxu0 0.0
    %4697 = vmatpush1.msra.mxu0 %v4564
    %4698 = vmatprep.subr.mxu0 0.0
    %4699 = vmatpush1.msra.mxu0 %v4563
    %4700 = vmatprep.subr.mxu0 0.0
    %4701 = vmatpush1.msra.mxu0 %v4562
    %4702 = vmatprep.subr.mxu0 0.0
    %4703 = vmatpush1.msra.mxu0 %v4561
    %4704 = vmatprep.subr.mxu0 0.0
    %4705 = vmatpush1.msra.mxu0 %v4560
    %4706 = vmatprep.subr.mxu0 0.0
    %4707 = vmatpush1.msra.mxu0 %v4559
    %4708 = vmatprep.subr.mxu0 0.0
    %4709 = vmatpush1.msra.mxu0 %v4558
    %4710 = vmatprep.subr.mxu0 0.0
    %4711 = vmatpush2.msra.mxu0 0.0
    %4712 = vmatprep.subr.mxu0 0.0
    %4713 = vmatpush2.msra.mxu0 0.0
    %4714 = vmatprep.subr.mxu0 0.0
    %4715 = vmatpush2.msra.mxu0 0.0
    %4716 = vmatprep.subr.mxu0 0.0
    %4717 = vmatpush2.msra.mxu0 0.0
    %4718 = vmatprep.subr.mxu0 0.0
    %4719 = vmatpush2.msra.mxu0 0.0
    %4720 = vmatprep.subr.mxu0 0.0
    %4721 = vmatpush2.msra.mxu0 0.0
    %4722 = vmatprep.subr.mxu0 0.0
    %4723 = vmatpush2.msra.mxu0 0.0
    %4724 = vmatprep.subr.mxu0 0.0
    %4725 = vmatpush2.msra.mxu0 0.0
    %4726 = vmatprep.subr.mxu0 0.0
    %4727 = vmatpush2.msra.mxu0 0.0
    %4728 = vmatprep.subr.mxu0 0.0
    %4729 = vmatpush2.msra.mxu0 0.0
    %4730 = vmatprep.subr.mxu0 0.0
    %4731 = vmatpush2.msra.mxu0 0.0
    %4732 = vmatprep.subr.mxu0 0.0
    %4733 = vmatpush2.msra.mxu0 0.0
    %4734 = vmatprep.subr.mxu0 0.0
    %4735 = vmatpush2.msra.mxu0 0.0
    %4736 = vmatprep.subr.mxu0 0.0
    %4737 = vmatpush2.msra.mxu0 0.0
    %4738 = vmatprep.subr.mxu0 0.0
    %4739 = vmatpush2.msra.mxu0 0.0
    %4740 = vmatprep.subr.mxu0 0.0
    %4741 = vmatpush2.msra.mxu0 0.0
    %4742 = vmatprep.mubr.f32.mxu0 0.0
    %4743 = vmatmul.mubr.f32.gmra.mxu0 %v4582
    %v4744 = vpop.f32.mrf.mxu0
    %v4745 = vadd.f32 %v4660, %v4744
    %v4746 = vpop.f32.mrf.mxu0
    %4747 = vmatprep.mubr.f32.mxu0 0.0
    %4748 = vmatmul.mubr.f32.gmra.mxu0 %v4585
    %v4749 = vpop.f32.mrf.mxu0
    %v4750 = vadd.f32 %v4665, %v4749
    %v4751 = vpop.f32.mrf.mxu0
    %4752 = vmatprep.mubr.f32.mxu0 0.0
    %4753 = vmatmul.mubr.f32.gmra.mxu0 %v4588
    %v4754 = vpop.f32.mrf.mxu0
    %v4755 = vadd.f32 %v4670, %v4754
    %v4756 = vpop.f32.mrf.mxu0
    %4757 = vmatprep.mubr.f32.mxu0 0.0
    %4758 = vmatmul.mubr.f32.gmra.mxu0 %v4591
    %v4759 = vpop.f32.mrf.mxu0
    %v4760 = vadd.f32 %v4675, %v4759
    %v4761 = vpop.f32.mrf.mxu0
    %4762 = vdwg.mxu0
    %v4763 = vsel %vm844, %v4745, 0.0
    %4764 = vadd.xlane.f32.xlu0 %v4763
    %v4765 = vpop.xlane.xlu0 %4764
    %v4766 = vsel %vm844, %v4750, 0.0
    %4767 = vadd.xlane.f32.xlu0 %v4766
    %v4768 = vpop.xlane.xlu0 %4767
    %v4769 = vsel %vm844, %v4755, 0.0
    %4770 = vadd.xlane.f32.xlu0 %v4769
    %v4771 = vpop.xlane.xlu0 %4770
    %v4772 = vsel %vm844, %v4760, 0.0
    %4773 = vadd.xlane.f32.xlu0 %v4772
    %v4774 = vpop.xlane.xlu0 %4773
    %v4775 = vmul.f32 %v4765, 0.03125
    %v4776 = vmul.f32 %v4768, 0.03125
    %v4777 = vmul.f32 %v4771, 0.03125
    %v4778 = vmul.f32 %v4774, 0.03125
    %v4779 = vmul.f32 %v4745, %v4745
    %v4780 = vmul.f32 %v4750, %v4750
    %v4781 = vmul.f32 %v4755, %v4755
    %v4782 = vmul.f32 %v4760, %v4760
    %v4783 = vsel %vm844, %v4779, 0.0
    %4784 = vadd.xlane.f32.xlu0 %v4783
    %v4785 = vpop.xlane.xlu0 %4784
    %v4786 = vsel %vm844, %v4780, 0.0
    %4787 = vadd.xlane.f32.xlu0 %v4786
    %v4788 = vpop.xlane.xlu0 %4787
    %v4789 = vsel %vm844, %v4781, 0.0
    %4790 = vadd.xlane.f32.xlu0 %v4789
    %v4791 = vpop.xlane.xlu0 %4790
    %v4792 = vsel %vm844, %v4782, 0.0
    %4793 = vadd.xlane.f32.xlu0 %v4792
    %v4794 = vpop.xlane.xlu0 %4793
    %v4795 = vmul.f32 %v4785, 0.03125
    %v4796 = vmul.f32 %v4788, 0.03125
    %v4797 = vmul.f32 %v4791, 0.03125
    %v4798 = vmul.f32 %v4794, 0.03125
    %v4799 = vmul.f32 %v4775, %v4775
    %v4800 = vmul.f32 %v4776, %v4776
    %v4801 = vmul.f32 %v4777, %v4777
    %v4802 = vmul.f32 %v4778, %v4778
    %v4803 = vsub.f32 %v4795, %v4799
    %v4804 = vsub.f32 %v4796, %v4800
    %v4805 = vsub.f32 %v4797, %v4801
    %v4806 = vsub.f32 %v4798, %v4802
    %v4807 = vsub.f32 %v4745, %v4775
    %v4808 = vsub.f32 %v4750, %v4776
    %v4809 = vsub.f32 %v4755, %v4777
    %v4810 = vsub.f32 %v4760, %v4778
    %v4811 = vld [vmem:[%s37] sm:$0xff]
    %v4812 = vld [vmem:[%s37 + $0x8] sm:$0xff]
    %v4813 = vld [vmem:[%s37 + $0x10] sm:$0xff]
    %v4814 = vld [vmem:[%s37 + $0x18] sm:$0xff]
    %v4815 = vadd.f32 %v4803, 1e-05
    %v4816 = vadd.f32 %v4804, 1e-05
    %v4817 = vadd.f32 %v4805, 1e-05
    %v4818 = vadd.f32 %v4806, 1e-05
    %v4819 = vrsqrt.pop %v4815
    %v4820 = vrsqrt.pop %v4816
    %v4821 = vrsqrt.pop %v4817
    %v4822 = vrsqrt.pop %v4818
    %v4823 = vmul.f32 %v4811, %v4819
    %v4824 = vmul.f32 %v4812, %v4820
    %v4825 = vmul.f32 %v4813, %v4821
    %v4826 = vmul.f32 %v4814, %v4822
    %4828 = vset.pattern.permute.xlu0 0
    %4829 = vperm.xlu0 %4828, %v4823
    %v4830 = vpop.permute.xlu0 %4829
    %4833 = vset.pattern.permute.xlu0 0
    %4834 = vperm.xlu0 %4833, %v4824
    %v4835 = vpop.permute.xlu0 %4834
    %4838 = vset.pattern.permute.xlu0 0
    %4839 = vperm.xlu0 %4838, %v4825
    %v4840 = vpop.permute.xlu0 %4839
    %4843 = vset.pattern.permute.xlu0 0
    %4844 = vperm.xlu0 %4843, %v4826
    %v4845 = vpop.permute.xlu0 %4844
    %v4847 = vmul.f32 %v4807, %v4830
    %v4848 = vmul.f32 %v4808, %v4835
    %v4849 = vmul.f32 %v4809, %v4840
    %v4850 = vmul.f32 %v4810, %v4845
    %v4851 = vld [vmem:[%s35] sm:$0xff]
    %v4852 = vld [vmem:[%s35 + $0x8] sm:$0xff]
    %v4853 = vld [vmem:[%s35 + $0x10] sm:$0xff]
    %v4854 = vld [vmem:[%s35 + $0x18] sm:$0xff]
    %4856 = vset.pattern.permute.xlu0 0
    %4857 = vperm.xlu0 %4856, %v4851
    %v4858 = vpop.permute.xlu0 %4857
    %4861 = vset.pattern.permute.xlu0 0
    %4862 = vperm.xlu0 %4861, %v4852
    %v4863 = vpop.permute.xlu0 %4862
    %4866 = vset.pattern.permute.xlu0 0
    %4867 = vperm.xlu0 %4866, %v4853
    %v4868 = vpop.permute.xlu0 %4867
    %4871 = vset.pattern.permute.xlu0 0
    %4872 = vperm.xlu0 %4871, %v4854
    %v4873 = vpop.permute.xlu0 %4872
    %v4875 = vadd.f32 %v4847, %v4858
    %v4876 = vadd.f32 %v4848, %v4863
    %v4877 = vadd.f32 %v4849, %v4868
    %v4878 = vadd.f32 %v4850, %v4873
    %v4879 = vmax.f32 %v4875, 0.0
    %v4880 = vmax.f32 %v4876, 0.0
    %v4881 = vmax.f32 %v4877, 0.0
    %v4882 = vmax.f32 %v4878, 0.0
    %v4883 = vld [vmem:[#allocation2] sm:$0xff]
    %v4885 = vsel %vm844, %v4883, 0
    %4887 = vmatprep.subr.mxu0 0.0
    %4888 = vmatpush1.msra.mxu0 0.0
    %4889 = vmatprep.subr.mxu0 0.0
    %4890 = vmatpush1.msra.mxu0 0.0
    %4891 = vmatprep.subr.mxu0 0.0
    %4892 = vmatpush1.msra.mxu0 0.0
    %4893 = vmatprep.subr.mxu0 0.0
    %4894 = vmatpush1.msra.mxu0 0.0
    %4895 = vmatprep.subr.mxu0 0.0
    %4896 = vmatpush1.msra.mxu0 0.0
    %4897 = vmatprep.subr.mxu0 0.0
    %4898 = vmatpush1.msra.mxu0 0.0
    %4899 = vmatprep.subr.mxu0 0.0
    %4900 = vmatpush1.msra.mxu0 0.0
    %4901 = vmatprep.subr.mxu0 0.0
    %4902 = vmatpush1.msra.mxu0 0.0
    %4903 = vmatprep.subr.mxu0 0.0
    %4904 = vmatpush1.msra.mxu0 0.0
    %4905 = vmatprep.subr.mxu0 0.0
    %4906 = vmatpush1.msra.mxu0 0.0
    %4907 = vmatprep.subr.mxu0 0.0
    %4908 = vmatpush1.msra.mxu0 0.0
    %4909 = vmatprep.subr.mxu0 0.0
    %4910 = vmatpush1.msra.mxu0 0.0
    %4911 = vmatprep.subr.mxu0 0.0
    %4912 = vmatpush1.msra.mxu0 %v4882
    %4913 = vmatprep.subr.mxu0 0.0
    %4914 = vmatpush1.msra.mxu0 %v4881
    %4915 = vmatprep.subr.mxu0 0.0
    %4916 = vmatpush1.msra.mxu0 %v4880
    %4917 = vmatprep.subr.mxu0 0.0
    %4918 = vmatpush1.msra.mxu0 %v4879
    %4919 = vmatprep.subr.mxu0 0.0
    %4920 = vmatpush2.msra.mxu0 0.0
    %4921 = vmatprep.subr.mxu0 0.0
    %4922 = vmatpush2.msra.mxu0 0.0
    %4923 = vmatprep.subr.mxu0 0.0
    %4924 = vmatpush2.msra.mxu0 0.0
    %4925 = vmatprep.subr.mxu0 0.0
    %4926 = vmatpush2.msra.mxu0 0.0
    %4927 = vmatprep.subr.mxu0 0.0
    %4928 = vmatpush2.msra.mxu0 0.0
    %4929 = vmatprep.subr.mxu0 0.0
    %4930 = vmatpush2.msra.mxu0 0.0
    %4931 = vmatprep.subr.mxu0 0.0
    %4932 = vmatpush2.msra.mxu0 0.0
    %4933 = vmatprep.subr.mxu0 0.0
    %4934 = vmatpush2.msra.mxu0 0.0
    %4935 = vmatprep.subr.mxu0 0.0
    %4936 = vmatpush2.msra.mxu0 0.0
    %4937 = vmatprep.subr.mxu0 0.0
    %4938 = vmatpush2.msra.mxu0 0.0
    %4939 = vmatprep.subr.mxu0 0.0
    %4940 = vmatpush2.msra.mxu0 0.0
    %4941 = vmatprep.subr.mxu0 0.0
    %4942 = vmatpush2.msra.mxu0 0.0
    %4943 = vmatprep.subr.mxu0 0.0
    %4944 = vmatpush2.msra.mxu0 0.0
    %4945 = vmatprep.subr.mxu0 0.0
    %4946 = vmatpush2.msra.mxu0 0.0
    %4947 = vmatprep.subr.mxu0 0.0
    %4948 = vmatpush2.msra.mxu0 0.0
    %4949 = vmatprep.subr.mxu0 0.0
    %4950 = vmatpush2.msra.mxu0 0.0
    %4951 = vmatprep.mubr.f32.mxu0 0.0
    %4952 = vmatmul.mubr.f32.gmra.mxu0 %v4885
    %v4953 = vpop.f32.mrf.mxu0
    %v4954 = vadd.f32 0.0, %v4953
    %v4955 = vpop.f32.mrf.mxu0
    %4956 = vdwg.mxu0
    %4958 = vrot.lane.b32.xlu0 %v4954, 19
    %v4959 = vpop.permute.xlu0 %4958
    %v4961 = vsel %vm243, 0.0, %v4959
    %v4962 = vsel %vm245, %v4961, 0.0
    %4967 = vrot.lane.b32.xlu0 %v4879, 1
    %v4968 = vpop.permute.xlu0 %4967
    %4969 = vrot.lane.b32.xlu0 %v4880, 1
    %v4970 = vpop.permute.xlu0 %4969
    %4971 = vrot.lane.b32.xlu0 %v4881, 1
    %v4972 = vpop.permute.xlu0 %4971
    %4973 = vrot.lane.b32.xlu0 %v4882, 1
    %v4974 = vpop.permute.xlu0 %4973
    %v4979 = vsel %vm250, -inf, %v4968
    %v4980 = vsel %vm250, -inf, %v4970
    %v4981 = vsel %vm250, -inf, %v4972
    %v4982 = vsel %vm250, -inf, %v4974
    %v4983 = vsel %vm252, %v4979, -inf
    %v4984 = vsel %vm252, %v4980, -inf
    %v4985 = vsel %vm252, %v4981, -inf
    %v4986 = vsel %vm252, %v4982, -inf
    %4991 = vrot.lane.b32.xlu0 %v4983, 127
    %v4992 = vpop.permute.xlu0 %4991
    %4993 = vrot.lane.b32.xlu0 %v4984, 127
    %v4994 = vpop.permute.xlu0 %4993
    %4995 = vrot.lane.b32.xlu0 %v4985, 127
    %v4996 = vpop.permute.xlu0 %4995
    %4997 = vrot.lane.b32.xlu0 %v4986, 127
    %v4998 = vpop.permute.xlu0 %4997
    %v5003 = vmax.f32 %v4983, %v4992
    %v5004 = vmax.f32 %v4984, %v4994
    %v5005 = vmax.f32 %v4985, %v4996
    %v5006 = vmax.f32 %v4986, %v4998
    %5007 = vrot.lane.b32.xlu0 %v4983, 126
    %v5008 = vpop.permute.xlu0 %5007
    %5009 = vrot.lane.b32.xlu0 %v4984, 126
    %v5010 = vpop.permute.xlu0 %5009
    %5011 = vrot.lane.b32.xlu0 %v4985, 126
    %v5012 = vpop.permute.xlu0 %5011
    %5013 = vrot.lane.b32.xlu0 %v4986, 126
    %v5014 = vpop.permute.xlu0 %5013
    %v5019 = vmax.f32 %v5003, %v5008
    %v5020 = vmax.f32 %v5004, %v5010
    %v5021 = vmax.f32 %v5005, %v5012
    %v5022 = vmax.f32 %v5006, %v5014
    %5024 = vrot.lane.b32.xlu0 %v4962, 127
    %v5025 = vpop.permute.xlu0 %5024
    %5027 = vrot.lane.b32.xlu0 %v4962, 126
    %v5028 = vpop.permute.xlu0 %5027
    %5030 = vrot.lane.b32.xlu0 %v4962, 125
    %v5031 = vpop.permute.xlu0 %5030
    %5033 = vrot.lane.b32.xlu0 %v4962, 124
    %v5034 = vpop.permute.xlu0 %5033
    %5036 = vrot.lane.b32.xlu0 %v4962, 123
    %v5037 = vpop.permute.xlu0 %5036
    %5039 = vrot.lane.b32.xlu0 %v4962, 122
    %v5040 = vpop.permute.xlu0 %5039
    %5042 = vrot.lane.b32.xlu0 %v4962, 121
    %v5043 = vpop.permute.xlu0 %5042
    %5045 = vrot.lane.b32.xlu0 %v4962, 120
    %v5046 = vpop.permute.xlu0 %5045
    %5048 = vrot.lane.b32.xlu0 %v4962, 119
    %v5049 = vpop.permute.xlu0 %5048
    %5051 = vrot.lane.b32.xlu0 %v4962, 118
    %v5052 = vpop.permute.xlu0 %5051
    %5054 = vrot.lane.b32.xlu0 %v4962, 117
    %v5055 = vpop.permute.xlu0 %5054
    %5057 = vrot.lane.b32.xlu0 %v4962, 116
    %v5058 = vpop.permute.xlu0 %5057
    %5060 = vrot.lane.b32.xlu0 %v4962, 115
    %v5061 = vpop.permute.xlu0 %5060
    %5063 = vrot.lane.b32.xlu0 %v4962, 114
    %v5064 = vpop.permute.xlu0 %5063
    %5066 = vrot.lane.b32.xlu0 %v4962, 113
    %v5067 = vpop.permute.xlu0 %5066
    %5073 = vrot.lane.b32.xlu0 %v5019, 32
    %v5074 = vpop.permute.xlu0 %5073
    %5075 = vrot.lane.b32.xlu0 %v5020, 32
    %v5076 = vpop.permute.xlu0 %5075
    %5077 = vrot.lane.b32.xlu0 %v5021, 32
    %v5078 = vpop.permute.xlu0 %5077
    %5079 = vrot.lane.b32.xlu0 %v5022, 32
    %v5080 = vpop.permute.xlu0 %5079
    %5081 = vrot.lane.b32.xlu0 %v4962, 112
    %v5082 = vpop.permute.xlu0 %5081
    %5083 = vrot.lane.b32.xlu0 %v5025, 112
    %v5084 = vpop.permute.xlu0 %5083
    %5085 = vrot.lane.b32.xlu0 %v5028, 112
    %v5086 = vpop.permute.xlu0 %5085
    %5087 = vrot.lane.b32.xlu0 %v5031, 112
    %v5088 = vpop.permute.xlu0 %5087
    %5089 = vrot.lane.b32.xlu0 %v5034, 112
    %v5090 = vpop.permute.xlu0 %5089
    %5091 = vrot.lane.b32.xlu0 %v5037, 112
    %v5092 = vpop.permute.xlu0 %5091
    %5093 = vrot.lane.b32.xlu0 %v5040, 112
    %v5094 = vpop.permute.xlu0 %5093
    %5095 = vrot.lane.b32.xlu0 %v5043, 112
    %v5096 = vpop.permute.xlu0 %5095
    %5097 = vrot.lane.b32.xlu0 %v5046, 112
    %v5098 = vpop.permute.xlu0 %5097
    %5099 = vrot.lane.b32.xlu0 %v5049, 112
    %v5100 = vpop.permute.xlu0 %5099
    %5101 = vrot.lane.b32.xlu0 %v5052, 112
    %v5102 = vpop.permute.xlu0 %5101
    %5103 = vrot.lane.b32.xlu0 %v5055, 112
    %v5104 = vpop.permute.xlu0 %5103
    %5105 = vrot.lane.b32.xlu0 %v5058, 112
    %v5106 = vpop.permute.xlu0 %5105
    %5107 = vrot.lane.b32.xlu0 %v5061, 112
    %v5108 = vpop.permute.xlu0 %5107
    %5109 = vrot.lane.b32.xlu0 %v5064, 112
    %v5110 = vpop.permute.xlu0 %5109
    %5111 = vrot.lane.b32.xlu0 %v5067, 112
    %v5112 = vpop.permute.xlu0 %5111
    %5129 = vrot.lane.b32.xlu0 %v4962, 96
    %v5130 = vpop.permute.xlu0 %5129
    %5131 = vrot.lane.b32.xlu0 %v5025, 96
    %v5132 = vpop.permute.xlu0 %5131
    %5133 = vrot.lane.b32.xlu0 %v5028, 96
    %v5134 = vpop.permute.xlu0 %5133
    %5135 = vrot.lane.b32.xlu0 %v5031, 96
    %v5136 = vpop.permute.xlu0 %5135
    %5137 = vrot.lane.b32.xlu0 %v5034, 96
    %v5138 = vpop.permute.xlu0 %5137
    %5139 = vrot.lane.b32.xlu0 %v5037, 96
    %v5140 = vpop.permute.xlu0 %5139
    %5141 = vrot.lane.b32.xlu0 %v5040, 96
    %v5142 = vpop.permute.xlu0 %5141
    %5143 = vrot.lane.b32.xlu0 %v5074, 96
    %v5144 = vpop.permute.xlu0 %5143
    %5145 = vrot.lane.b32.xlu0 %v5076, 96
    %v5146 = vpop.permute.xlu0 %5145
    %5147 = vrot.lane.b32.xlu0 %v5078, 96
    %v5148 = vpop.permute.xlu0 %5147
    %5149 = vrot.lane.b32.xlu0 %v5080, 96
    %v5150 = vpop.permute.xlu0 %5149
    %5162 = vrot.lane.b32.xlu0 %v4954, 3
    %v5163 = vpop.permute.xlu0 %5162
    %v5165 = vsel %vm243, 0.0, %v5163
    %v5166 = vsel %vm245, %v5165, 0.0
    %5167 = vrot.lane.b32.xlu0 %v4879, 113
    %v5168 = vpop.permute.xlu0 %5167
    %5169 = vrot.lane.b32.xlu0 %v4880, 113
    %v5170 = vpop.permute.xlu0 %5169
    %5171 = vrot.lane.b32.xlu0 %v4881, 113
    %v5172 = vpop.permute.xlu0 %5171
    %5173 = vrot.lane.b32.xlu0 %v4882, 113
    %v5174 = vpop.permute.xlu0 %5173
    %v5179 = vsel %vm250, -inf, %v5168
    %v5180 = vsel %vm250, -inf, %v5170
    %v5181 = vsel %vm250, -inf, %v5172
    %v5182 = vsel %vm250, -inf, %v5174
    %v5183 = vsel %vm252, %v5179, -inf
    %v5184 = vsel %vm252, %v5180, -inf
    %v5185 = vsel %vm252, %v5181, -inf
    %v5186 = vsel %vm252, %v5182, -inf
    %5191 = vrot.lane.b32.xlu0 %v5183, 127
    %v5192 = vpop.permute.xlu0 %5191
    %5193 = vrot.lane.b32.xlu0 %v5184, 127
    %v5194 = vpop.permute.xlu0 %5193
    %5195 = vrot.lane.b32.xlu0 %v5185, 127
    %v5196 = vpop.permute.xlu0 %5195
    %5197 = vrot.lane.b32.xlu0 %v5186, 127
    %v5198 = vpop.permute.xlu0 %5197
    %v5203 = vmax.f32 %v5183, %v5192
    %v5204 = vmax.f32 %v5184, %v5194
    %v5205 = vmax.f32 %v5185, %v5196
    %v5206 = vmax.f32 %v5186, %v5198
    %5207 = vrot.lane.b32.xlu0 %v5183, 126
    %v5208 = vpop.permute.xlu0 %5207
    %5209 = vrot.lane.b32.xlu0 %v5184, 126
    %v5210 = vpop.permute.xlu0 %5209
    %5211 = vrot.lane.b32.xlu0 %v5185, 126
    %v5212 = vpop.permute.xlu0 %5211
    %5213 = vrot.lane.b32.xlu0 %v5186, 126
    %v5214 = vpop.permute.xlu0 %5213
    %v5219 = vmax.f32 %v5203, %v5208
    %v5220 = vmax.f32 %v5204, %v5210
    %v5221 = vmax.f32 %v5205, %v5212
    %v5222 = vmax.f32 %v5206, %v5214
    %5224 = vrot.lane.b32.xlu0 %v5166, 127
    %v5225 = vpop.permute.xlu0 %5224
    %5226 = vrot.lane.b32.xlu0 %v5166, 126
    %v5227 = vpop.permute.xlu0 %5226
    %5228 = vrot.lane.b32.xlu0 %v5166, 125
    %v5229 = vpop.permute.xlu0 %5228
    %5230 = vrot.lane.b32.xlu0 %v5166, 124
    %v5231 = vpop.permute.xlu0 %5230
    %5232 = vrot.lane.b32.xlu0 %v5166, 123
    %v5233 = vpop.permute.xlu0 %5232
    %5234 = vrot.lane.b32.xlu0 %v5166, 122
    %v5235 = vpop.permute.xlu0 %5234
    %5236 = vrot.lane.b32.xlu0 %v5166, 121
    %v5237 = vpop.permute.xlu0 %5236
    %5238 = vrot.lane.b32.xlu0 %v5166, 120
    %v5239 = vpop.permute.xlu0 %5238
    %5240 = vrot.lane.b32.xlu0 %v5166, 119
    %v5241 = vpop.permute.xlu0 %5240
    %5242 = vrot.lane.b32.xlu0 %v5166, 118
    %v5243 = vpop.permute.xlu0 %5242
    %5244 = vrot.lane.b32.xlu0 %v5166, 117
    %v5245 = vpop.permute.xlu0 %5244
    %5246 = vrot.lane.b32.xlu0 %v5166, 116
    %v5247 = vpop.permute.xlu0 %5246
    %5248 = vrot.lane.b32.xlu0 %v5166, 115
    %v5249 = vpop.permute.xlu0 %5248
    %5250 = vrot.lane.b32.xlu0 %v5166, 114
    %v5251 = vpop.permute.xlu0 %5250
    %5252 = vrot.lane.b32.xlu0 %v5166, 113
    %v5253 = vpop.permute.xlu0 %5252
    %5258 = vrot.lane.b32.xlu0 %v5219, 32
    %v5259 = vpop.permute.xlu0 %5258
    %5260 = vrot.lane.b32.xlu0 %v5220, 32
    %v5261 = vpop.permute.xlu0 %5260
    %5262 = vrot.lane.b32.xlu0 %v5221, 32
    %v5263 = vpop.permute.xlu0 %5262
    %5264 = vrot.lane.b32.xlu0 %v5222, 32
    %v5265 = vpop.permute.xlu0 %5264
    %5266 = vrot.lane.b32.xlu0 %v5166, 112
    %v5267 = vpop.permute.xlu0 %5266
    %5268 = vrot.lane.b32.xlu0 %v5225, 112
    %v5269 = vpop.permute.xlu0 %5268
    %5270 = vrot.lane.b32.xlu0 %v5227, 112
    %v5271 = vpop.permute.xlu0 %5270
    %5272 = vrot.lane.b32.xlu0 %v5229, 112
    %v5273 = vpop.permute.xlu0 %5272
    %5274 = vrot.lane.b32.xlu0 %v5231, 112
    %v5275 = vpop.permute.xlu0 %5274
    %5276 = vrot.lane.b32.xlu0 %v5233, 112
    %v5277 = vpop.permute.xlu0 %5276
    %5278 = vrot.lane.b32.xlu0 %v5235, 112
    %v5279 = vpop.permute.xlu0 %5278
    %5280 = vrot.lane.b32.xlu0 %v5237, 112
    %v5281 = vpop.permute.xlu0 %5280
    %5282 = vrot.lane.b32.xlu0 %v5239, 112
    %v5283 = vpop.permute.xlu0 %5282
    %5284 = vrot.lane.b32.xlu0 %v5241, 112
    %v5285 = vpop.permute.xlu0 %5284
    %5286 = vrot.lane.b32.xlu0 %v5243, 112
    %v5287 = vpop.permute.xlu0 %5286
    %5288 = vrot.lane.b32.xlu0 %v5245, 112
    %v5289 = vpop.permute.xlu0 %5288
    %5290 = vrot.lane.b32.xlu0 %v5247, 112
    %v5291 = vpop.permute.xlu0 %5290
    %5292 = vrot.lane.b32.xlu0 %v5249, 112
    %v5293 = vpop.permute.xlu0 %5292
    %5294 = vrot.lane.b32.xlu0 %v5251, 112
    %v5295 = vpop.permute.xlu0 %5294
    %5296 = vrot.lane.b32.xlu0 %v5253, 112
    %v5297 = vpop.permute.xlu0 %5296
    %5298 = vrot.lane.b32.xlu0 %v5166, 96
    %v5299 = vpop.permute.xlu0 %5298
    %5300 = vrot.lane.b32.xlu0 %v5225, 96
    %v5301 = vpop.permute.xlu0 %5300
    %5302 = vrot.lane.b32.xlu0 %v5227, 96
    %v5303 = vpop.permute.xlu0 %5302
    %5304 = vrot.lane.b32.xlu0 %v5229, 96
    %v5305 = vpop.permute.xlu0 %5304
    %5306 = vrot.lane.b32.xlu0 %v5231, 96
    %v5307 = vpop.permute.xlu0 %5306
    %5308 = vrot.lane.b32.xlu0 %v5233, 96
    %v5309 = vpop.permute.xlu0 %5308
    %5310 = vrot.lane.b32.xlu0 %v5235, 96
    %v5311 = vpop.permute.xlu0 %5310
    %5312 = vrot.lane.b32.xlu0 %v5259, 96
    %v5313 = vpop.permute.xlu0 %5312
    %5314 = vrot.lane.b32.xlu0 %v5261, 96
    %v5315 = vpop.permute.xlu0 %5314
    %5316 = vrot.lane.b32.xlu0 %v5263, 96
    %v5317 = vpop.permute.xlu0 %5316
    %5318 = vrot.lane.b32.xlu0 %v5265, 96
    %v5319 = vpop.permute.xlu0 %5318
    %5320 = vrot.lane.b32.xlu0 %v5166, 16
    %v5321 = vpop.permute.xlu0 %5320
    %5322 = vrot.lane.b32.xlu0 %v5225, 16
    %v5323 = vpop.permute.xlu0 %5322
    %5324 = vrot.lane.b32.xlu0 %v5227, 16
    %v5325 = vpop.permute.xlu0 %5324
    %5326 = vrot.lane.b32.xlu0 %v5229, 16
    %v5327 = vpop.permute.xlu0 %5326
    %5328 = vrot.lane.b32.xlu0 %v5231, 16
    %v5329 = vpop.permute.xlu0 %5328
    %5330 = vrot.lane.b32.xlu0 %v5233, 16
    %v5331 = vpop.permute.xlu0 %5330
    %5332 = vrot.lane.b32.xlu0 %v5235, 16
    %v5333 = vpop.permute.xlu0 %5332
    %5334 = vrot.lane.b32.xlu0 %v5237, 16
    %v5335 = vpop.permute.xlu0 %5334
    %5336 = vrot.lane.b32.xlu0 %v5239, 16
    %v5337 = vpop.permute.xlu0 %5336
    %5338 = vrot.lane.b32.xlu0 %v5241, 16
    %v5339 = vpop.permute.xlu0 %5338
    %5340 = vrot.lane.b32.xlu0 %v5243, 16
    %v5341 = vpop.permute.xlu0 %5340
    %5342 = vrot.lane.b32.xlu0 %v5245, 16
    %v5343 = vpop.permute.xlu0 %5342
    %5344 = vrot.lane.b32.xlu0 %v5247, 16
    %v5345 = vpop.permute.xlu0 %5344
    %5346 = vrot.lane.b32.xlu0 %v5249, 16
    %v5347 = vpop.permute.xlu0 %5346
    %5348 = vrot.lane.b32.xlu0 %v5251, 16
    %v5349 = vpop.permute.xlu0 %5348
    %5350 = vrot.lane.b32.xlu0 %v5253, 16
    %v5351 = vpop.permute.xlu0 %5350
    %5352 = vrot.lane.b32.xlu0 %v5267, 16
    %v5353 = vpop.permute.xlu0 %5352
    %5354 = vrot.lane.b32.xlu0 %v5269, 16
    %v5355 = vpop.permute.xlu0 %5354
    %5356 = vrot.lane.b32.xlu0 %v5271, 16
    %v5357 = vpop.permute.xlu0 %5356
    %5358 = vrot.lane.b32.xlu0 %v5273, 16
    %v5359 = vpop.permute.xlu0 %5358
    %5360 = vrot.lane.b32.xlu0 %v5275, 16
    %v5361 = vpop.permute.xlu0 %5360
    %5362 = vrot.lane.b32.xlu0 %v5277, 16
    %v5363 = vpop.permute.xlu0 %5362
    %5364 = vrot.lane.b32.xlu0 %v5279, 16
    %v5365 = vpop.permute.xlu0 %5364
    %5366 = vrot.lane.b32.xlu0 %v5281, 16
    %v5367 = vpop.permute.xlu0 %5366
    %5368 = vrot.lane.b32.xlu0 %v5283, 16
    %v5369 = vpop.permute.xlu0 %5368
    %5370 = vrot.lane.b32.xlu0 %v5285, 16
    %v5371 = vpop.permute.xlu0 %5370
    %5372 = vrot.lane.b32.xlu0 %v5287, 16
    %v5373 = vpop.permute.xlu0 %5372
    %5374 = vrot.lane.b32.xlu0 %v5289, 16
    %v5375 = vpop.permute.xlu0 %5374
    %5376 = vrot.lane.b32.xlu0 %v5291, 16
    %v5377 = vpop.permute.xlu0 %5376
    %5378 = vrot.lane.b32.xlu0 %v5293, 16
    %v5379 = vpop.permute.xlu0 %5378
    %5380 = vrot.lane.b32.xlu0 %v5295, 16
    %v5381 = vpop.permute.xlu0 %5380
    %5382 = vrot.lane.b32.xlu0 %v5297, 16
    %v5383 = vpop.permute.xlu0 %5382
    %5384 = vrot.lane.b32.xlu0 %v5299, 16
    %v5385 = vpop.permute.xlu0 %5384
    %5386 = vrot.lane.b32.xlu0 %v5301, 16
    %v5387 = vpop.permute.xlu0 %5386
    %5388 = vrot.lane.b32.xlu0 %v5303, 16
    %v5389 = vpop.permute.xlu0 %5388
    %5390 = vrot.lane.b32.xlu0 %v5305, 16
    %v5391 = vpop.permute.xlu0 %5390
    %5392 = vrot.lane.b32.xlu0 %v5307, 16
    %v5393 = vpop.permute.xlu0 %5392
    %5394 = vrot.lane.b32.xlu0 %v5309, 16
    %v5395 = vpop.permute.xlu0 %5394
    %5396 = vrot.lane.b32.xlu0 %v5311, 16
    %v5397 = vpop.permute.xlu0 %5396
    %5398 = vrot.lane.b32.xlu0 %v5313, 16
    %v5399 = vpop.permute.xlu0 %5398
    %5400 = vrot.lane.b32.xlu0 %v5315, 16
    %v5401 = vpop.permute.xlu0 %5400
    %5402 = vrot.lane.b32.xlu0 %v5317, 16
    %v5403 = vpop.permute.xlu0 %5402
    %5404 = vrot.lane.b32.xlu0 %v5319, 16
    %v5405 = vpop.permute.xlu0 %5404
    %v5449 = vsel %vm605, %v4962, %v5321
    %v5450 = vsel %vm605, %v5025, %v5323
    %v5451 = vsel %vm605, %v5028, %v5325
    %v5452 = vsel %vm605, %v5031, %v5327
    %v5453 = vsel %vm605, %v5034, %v5329
    %v5454 = vsel %vm605, %v5037, %v5331
    %v5455 = vsel %vm605, %v5040, %v5333
    %v5456 = vsel %vm605, %v5043, %v5335
    %v5457 = vsel %vm605, %v5046, %v5337
    %v5458 = vsel %vm605, %v5049, %v5339
    %v5459 = vsel %vm605, %v5052, %v5341
    %v5460 = vsel %vm605, %v5055, %v5343
    %v5461 = vsel %vm605, %v5058, %v5345
    %v5462 = vsel %vm605, %v5061, %v5347
    %v5463 = vsel %vm605, %v5064, %v5349
    %v5464 = vsel %vm605, %v5067, %v5351
    %v5465 = vsel %vm605, %v5082, %v5353
    %v5466 = vsel %vm605, %v5084, %v5355
    %v5467 = vsel %vm605, %v5086, %v5357
    %v5468 = vsel %vm605, %v5088, %v5359
    %v5469 = vsel %vm605, %v5090, %v5361
    %v5470 = vsel %vm605, %v5092, %v5363
    %v5471 = vsel %vm605, %v5094, %v5365
    %v5472 = vsel %vm605, %v5096, %v5367
    %v5473 = vsel %vm605, %v5098, %v5369
    %v5474 = vsel %vm605, %v5100, %v5371
    %v5475 = vsel %vm605, %v5102, %v5373
    %v5476 = vsel %vm605, %v5104, %v5375
    %v5477 = vsel %vm605, %v5106, %v5377
    %v5478 = vsel %vm605, %v5108, %v5379
    %v5479 = vsel %vm605, %v5110, %v5381
    %v5480 = vsel %vm605, %v5112, %v5383
    %v5481 = vsel %vm605, %v5130, %v5385
    %v5482 = vsel %vm605, %v5132, %v5387
    %v5483 = vsel %vm605, %v5134, %v5389
    %v5484 = vsel %vm605, %v5136, %v5391
    %v5485 = vsel %vm605, %v5138, %v5393
    %v5486 = vsel %vm605, %v5140, %v5395
    %v5487 = vsel %vm605, %v5142, %v5397
    %v5488 = vsel %vm605, %v5144, %v5399
    %v5489 = vsel %vm605, %v5146, %v5401
    %v5490 = vsel %vm605, %v5148, %v5403
    %v5491 = vsel %vm605, %v5150, %v5405
    %v5492 = vld [vmem:[%s49] sm:$0xff]
    %v5493 = vld [vmem:[%s49 + $0x8] sm:$0xff]
    %v5494 = vld [vmem:[%s49 + $0x10] sm:$0xff]
    %v5495 = vld [vmem:[%s49 + $0x18] sm:$0xff]
    %v5496 = vld [vmem:[%s49 + $0x20] sm:$0xff]
    %v5497 = vld [vmem:[%s49 + $0x28] sm:$0xff]
    %v5498 = vld [vmem:[%s49 + $0x30] sm:$0xff]
    %v5499 = vld [vmem:[%s49 + $0x38] sm:$0xff]
    %v5500 = vld [vmem:[%s49 + $0x40] sm:$0xff]
    %v5501 = vld [vmem:[%s49 + $0x48] sm:$0xff]
    %v5502 = vld [vmem:[%s49 + $0x50] sm:$0xff]
    %v5503 = vld [vmem:[%s49 + $0x58] sm:$0xff]
    %v5505 = vsel %vm1586, %v5494, 0
    %v5508 = vsel %vm1586, %v5497, 0
    %v5511 = vsel %vm1586, %v5500, 0
    %v5514 = vsel %vm1586, %v5503, 0
    %5516 = vmatprep.subr.mxu0 0.0
    %5517 = vmatpush1.msra.mxu0 %v5464
    %5518 = vmatprep.subr.mxu0 0.0
    %5519 = vmatpush1.msra.mxu0 %v5463
    %5520 = vmatprep.subr.mxu0 0.0
    %5521 = vmatpush1.msra.mxu0 %v5462
    %5522 = vmatprep.subr.mxu0 0.0
    %5523 = vmatpush1.msra.mxu0 %v5461
    %5524 = vmatprep.subr.mxu0 0.0
    %5525 = vmatpush1.msra.mxu0 %v5460
    %5526 = vmatprep.subr.mxu0 0.0
    %5527 = vmatpush1.msra.mxu0 %v5459
    %5528 = vmatprep.subr.mxu0 0.0
    %5529 = vmatpush1.msra.mxu0 %v5458
    %5530 = vmatprep.subr.mxu0 0.0
    %5531 = vmatpush1.msra.mxu0 %v5457
    %5532 = vmatprep.subr.mxu0 0.0
    %5533 = vmatpush1.msra.mxu0 %v5456
    %5534 = vmatprep.subr.mxu0 0.0
    %5535 = vmatpush1.msra.mxu0 %v5455
    %5536 = vmatprep.subr.mxu0 0.0
    %5537 = vmatpush1.msra.mxu0 %v5454
    %5538 = vmatprep.subr.mxu0 0.0
    %5539 = vmatpush1.msra.mxu0 %v5453
    %5540 = vmatprep.subr.mxu0 0.0
    %5541 = vmatpush1.msra.mxu0 %v5452
    %5542 = vmatprep.subr.mxu0 0.0
    %5543 = vmatpush1.msra.mxu0 %v5451
    %5544 = vmatprep.subr.mxu0 0.0
    %5545 = vmatpush1.msra.mxu0 %v5450
    %5546 = vmatprep.subr.mxu0 0.0
    %5547 = vmatpush1.msra.mxu0 %v5449
    %5548 = vmatprep.subr.mxu0 0.0
    %5549 = vmatpush2.msra.mxu0 %v5480
    %5550 = vmatprep.subr.mxu0 0.0
    %5551 = vmatpush2.msra.mxu0 %v5479
    %5552 = vmatprep.subr.mxu0 0.0
    %5553 = vmatpush2.msra.mxu0 %v5478
    %5554 = vmatprep.subr.mxu0 0.0
    %5555 = vmatpush2.msra.mxu0 %v5477
    %5556 = vmatprep.subr.mxu0 0.0
    %5557 = vmatpush2.msra.mxu0 %v5476
    %5558 = vmatprep.subr.mxu0 0.0
    %5559 = vmatpush2.msra.mxu0 %v5475
    %5560 = vmatprep.subr.mxu0 0.0
    %5561 = vmatpush2.msra.mxu0 %v5474
    %5562 = vmatprep.subr.mxu0 0.0
    %5563 = vmatpush2.msra.mxu0 %v5473
    %5564 = vmatprep.subr.mxu0 0.0
    %5565 = vmatpush2.msra.mxu0 %v5472
    %5566 = vmatprep.subr.mxu0 0.0
    %5567 = vmatpush2.msra.mxu0 %v5471
    %5568 = vmatprep.subr.mxu0 0.0
    %5569 = vmatpush2.msra.mxu0 %v5470
    %5570 = vmatprep.subr.mxu0 0.0
    %5571 = vmatpush2.msra.mxu0 %v5469
    %5572 = vmatprep.subr.mxu0 0.0
    %5573 = vmatpush2.msra.mxu0 %v5468
    %5574 = vmatprep.subr.mxu0 0.0
    %5575 = vmatpush2.msra.mxu0 %v5467
    %5576 = vmatprep.subr.mxu0 0.0
    %5577 = vmatpush2.msra.mxu0 %v5466
    %5578 = vmatprep.subr.mxu0 0.0
    %5579 = vmatpush2.msra.mxu0 %v5465
    %5580 = vmatprep.mubr.f32.mxu0 %v5493
    %5581 = vmatmul.mubr.f32.gmra.mxu0 %v5492
    %v5582 = vpop.f32.mrf.mxu0
    %v5583 = vadd.f32 0.0, %v5582
    %v5584 = vpop.f32.mrf.mxu0
    %5585 = vmatprep.mubr.f32.mxu0 %v5496
    %5586 = vmatmul.mubr.f32.gmra.mxu0 %v5495
    %v5587 = vpop.f32.mrf.mxu0
    %v5588 = vadd.f32 0.0, %v5587
    %v5589 = vpop.f32.mrf.mxu0
    %5590 = vmatprep.mubr.f32.mxu0 %v5499
    %5591 = vmatmul.mubr.f32.gmra.mxu0 %v5498
    %v5592 = vpop.f32.mrf.mxu0
    %v5593 = vadd.f32 0.0, %v5592
    %v5594 = vpop.f32.mrf.mxu0
    %5595 = vmatprep.mubr.f32.mxu0 %v5502
    %5596 = vmatmul.mubr.f32.gmra.mxu0 %v5501
    %v5597 = vpop.f32.mrf.mxu0
    %v5598 = vadd.f32 0.0, %v5597
    %v5599 = vpop.f32.mrf.mxu0
    %5600 = vdwg.mxu0
    %5601 = vmatprep.subr.mxu0 0.0
    %5602 = vmatpush1.msra.mxu0 0.0
    %5603 = vmatprep.subr.mxu0 0.0
    %5604 = vmatpush1.msra.mxu0 0.0
    %5605 = vmatprep.subr.mxu0 0.0
    %5606 = vmatpush1.msra.mxu0 0.0
    %5607 = vmatprep.subr.mxu0 0.0
    %5608 = vmatpush1.msra.mxu0 0.0
    %5609 = vmatprep.subr.mxu0 0.0
    %5610 = vmatpush1.msra.mxu0 0.0
    %5611 = vmatprep.subr.mxu0 0.0
    %5612 = vmatpush1.msra.mxu0 %v5491
    %5613 = vmatprep.subr.mxu0 0.0
    %5614 = vmatpush1.msra.mxu0 %v5490
    %5615 = vmatprep.subr.mxu0 0.0
    %5616 = vmatpush1.msra.mxu0 %v5489
    %5617 = vmatprep.subr.mxu0 0.0
    %5618 = vmatpush1.msra.mxu0 %v5488
    %5619 = vmatprep.subr.mxu0 0.0
    %5620 = vmatpush1.msra.mxu0 %v5487
    %5621 = vmatprep.subr.mxu0 0.0
    %5622 = vmatpush1.msra.mxu0 %v5486
    %5623 = vmatprep.subr.mxu0 0.0
    %5624 = vmatpush1.msra.mxu0 %v5485
    %5625 = vmatprep.subr.mxu0 0.0
    %5626 = vmatpush1.msra.mxu0 %v5484
    %5627 = vmatprep.subr.mxu0 0.0
    %5628 = vmatpush1.msra.mxu0 %v5483
    %5629 = vmatprep.subr.mxu0 0.0
    %5630 = vmatpush1.msra.mxu0 %v5482
    %5631 = vmatprep.subr.mxu0 0.0
    %5632 = vmatpush1.msra.mxu0 %v5481
    %5633 = vmatprep.subr.mxu0 0.0
    %5634 = vmatpush2.msra.mxu0 0.0
    %5635 = vmatprep.subr.mxu0 0.0
    %5636 = vmatpush2.msra.mxu0 0.0
    %5637 = vmatprep.subr.mxu0 0.0
    %5638 = vmatpush2.msra.mxu0 0.0
    %5639 = vmatprep.subr.mxu0 0.0
    %5640 = vmatpush2.msra.mxu0 0.0
    %5641 = vmatprep.subr.mxu0 0.0
    %5642 = vmatpush2.msra.mxu0 0.0
    %5643 = vmatprep.subr.mxu0 0.0
    %5644 = vmatpush2.msra.mxu0 0.0
    %5645 = vmatprep.subr.mxu0 0.0
    %5646 = vmatpush2.msra.mxu0 0.0
    %5647 = vmatprep.subr.mxu0 0.0
    %5648 = vmatpush2.msra.mxu0 0.0
    %5649 = vmatprep.subr.mxu0 0.0
    %5650 = vmatpush2.msra.mxu0 0.0
    %5651 = vmatprep.subr.mxu0 0.0
    %5652 = vmatpush2.msra.mxu0 0.0
    %5653 = vmatprep.subr.mxu0 0.0
    %5654 = vmatpush2.msra.mxu0 0.0
    %5655 = vmatprep.subr.mxu0 0.0
    %5656 = vmatpush2.msra.mxu0 0.0
    %5657 = vmatprep.subr.mxu0 0.0
    %5658 = vmatpush2.msra.mxu0 0.0
    %5659 = vmatprep.subr.mxu0 0.0
    %5660 = vmatpush2.msra.mxu0 0.0
    %5661 = vmatprep.subr.mxu0 0.0
    %5662 = vmatpush2.msra.mxu0 0.0
    %5663 = vmatprep.subr.mxu0 0.0
    %5664 = vmatpush2.msra.mxu0 0.0
    %5665 = vmatprep.mubr.f32.mxu0 0.0
    %5666 = vmatmul.mubr.f32.gmra.mxu0 %v5505
    %v5667 = vpop.f32.mrf.mxu0
    %v5668 = vadd.f32 %v5583, %v5667
    %v5669 = vpop.f32.mrf.mxu0
    %5670 = vmatprep.mubr.f32.mxu0 0.0
    %5671 = vmatmul.mubr.f32.gmra.mxu0 %v5508
    %v5672 = vpop.f32.mrf.mxu0
    %v5673 = vadd.f32 %v5588, %v5672
    %v5674 = vpop.f32.mrf.mxu0
    %5675 = vmatprep.mubr.f32.mxu0 0.0
    %5676 = vmatmul.mubr.f32.gmra.mxu0 %v5511
    %v5677 = vpop.f32.mrf.mxu0
    %v5678 = vadd.f32 %v5593, %v5677
    %v5679 = vpop.f32.mrf.mxu0
    %5680 = vmatprep.mubr.f32.mxu0 0.0
    %5681 = vmatmul.mubr.f32.gmra.mxu0 %v5514
    %v5682 = vpop.f32.mrf.mxu0
    %v5683 = vadd.f32 %v5598, %v5682
    %v5684 = vpop.f32.mrf.mxu0
    %5685 = vdwg.mxu0
    %v5686 = vsel %vm844, %v5668, 0.0
    %5687 = vadd.xlane.f32.xlu0 %v5686
    %v5688 = vpop.xlane.xlu0 %5687
    %v5689 = vsel %vm844, %v5673, 0.0
    %5690 = vadd.xlane.f32.xlu0 %v5689
    %v5691 = vpop.xlane.xlu0 %5690
    %v5692 = vsel %vm844, %v5678, 0.0
    %5693 = vadd.xlane.f32.xlu0 %v5692
    %v5694 = vpop.xlane.xlu0 %5693
    %v5695 = vsel %vm844, %v5683, 0.0
    %5696 = vadd.xlane.f32.xlu0 %v5695
    %v5697 = vpop.xlane.xlu0 %5696
    %v5698 = vmul.f32 %v5688, 0.03125
    %v5699 = vmul.f32 %v5691, 0.03125
    %v5700 = vmul.f32 %v5694, 0.03125
    %v5701 = vmul.f32 %v5697, 0.03125
    %v5702 = vmul.f32 %v5668, %v5668
    %v5703 = vmul.f32 %v5673, %v5673
    %v5704 = vmul.f32 %v5678, %v5678
    %v5705 = vmul.f32 %v5683, %v5683
    %v5706 = vsel %vm844, %v5702, 0.0
    %5707 = vadd.xlane.f32.xlu0 %v5706
    %v5708 = vpop.xlane.xlu0 %5707
    %v5709 = vsel %vm844, %v5703, 0.0
    %5710 = vadd.xlane.f32.xlu0 %v5709
    %v5711 = vpop.xlane.xlu0 %5710
    %v5712 = vsel %vm844, %v5704, 0.0
    %5713 = vadd.xlane.f32.xlu0 %v5712
    %v5714 = vpop.xlane.xlu0 %5713
    %v5715 = vsel %vm844, %v5705, 0.0
    %5716 = vadd.xlane.f32.xlu0 %v5715
    %v5717 = vpop.xlane.xlu0 %5716
    %v5718 = vmul.f32 %v5708, 0.03125
    %v5719 = vmul.f32 %v5711, 0.03125
    %v5720 = vmul.f32 %v5714, 0.03125
    %v5721 = vmul.f32 %v5717, 0.03125
    %v5722 = vmul.f32 %v5698, %v5698
    %v5723 = vmul.f32 %v5699, %v5699
    %v5724 = vmul.f32 %v5700, %v5700
    %v5725 = vmul.f32 %v5701, %v5701
    %v5726 = vsub.f32 %v5718, %v5722
    %v5727 = vsub.f32 %v5719, %v5723
    %v5728 = vsub.f32 %v5720, %v5724
    %v5729 = vsub.f32 %v5721, %v5725
    %v5730 = vsub.f32 %v5668, %v5698
    %v5731 = vsub.f32 %v5673, %v5699
    %v5732 = vsub.f32 %v5678, %v5700
    %v5733 = vsub.f32 %v5683, %v5701
    %v5734 = vld [vmem:[%s45] sm:$0xff]
    %v5735 = vld [vmem:[%s45 + $0x8] sm:$0xff]
    %v5736 = vld [vmem:[%s45 + $0x10] sm:$0xff]
    %v5737 = vld [vmem:[%s45 + $0x18] sm:$0xff]
    %v5738 = vadd.f32 %v5726, 1e-05
    %v5739 = vadd.f32 %v5727, 1e-05
    %v5740 = vadd.f32 %v5728, 1e-05
    %v5741 = vadd.f32 %v5729, 1e-05
    %v5742 = vrsqrt.pop %v5738
    %v5743 = vrsqrt.pop %v5739
    %v5744 = vrsqrt.pop %v5740
    %v5745 = vrsqrt.pop %v5741
    %v5746 = vmul.f32 %v5734, %v5742
    %v5747 = vmul.f32 %v5735, %v5743
    %v5748 = vmul.f32 %v5736, %v5744
    %v5749 = vmul.f32 %v5737, %v5745
    %5751 = vset.pattern.permute.xlu0 0
    %5752 = vperm.xlu0 %5751, %v5746
    %v5753 = vpop.permute.xlu0 %5752
    %5756 = vset.pattern.permute.xlu0 0
    %5757 = vperm.xlu0 %5756, %v5747
    %v5758 = vpop.permute.xlu0 %5757
    %5761 = vset.pattern.permute.xlu0 0
    %5762 = vperm.xlu0 %5761, %v5748
    %v5763 = vpop.permute.xlu0 %5762
    %5766 = vset.pattern.permute.xlu0 0
    %5767 = vperm.xlu0 %5766, %v5749
    %v5768 = vpop.permute.xlu0 %5767
    %v5770 = vmul.f32 %v5730, %v5753
    %v5771 = vmul.f32 %v5731, %v5758
    %v5772 = vmul.f32 %v5732, %v5763
    %v5773 = vmul.f32 %v5733, %v5768
    %v5774 = vld [vmem:[%s43] sm:$0xff]
    %v5775 = vld [vmem:[%s43 + $0x8] sm:$0xff]
    %v5776 = vld [vmem:[%s43 + $0x10] sm:$0xff]
    %v5777 = vld [vmem:[%s43 + $0x18] sm:$0xff]
    %5779 = vset.pattern.permute.xlu0 0
    %5780 = vperm.xlu0 %5779, %v5774
    %v5781 = vpop.permute.xlu0 %5780
    %5784 = vset.pattern.permute.xlu0 0
    %5785 = vperm.xlu0 %5784, %v5775
    %v5786 = vpop.permute.xlu0 %5785
    %5789 = vset.pattern.permute.xlu0 0
    %5790 = vperm.xlu0 %5789, %v5776
    %v5791 = vpop.permute.xlu0 %5790
    %5794 = vset.pattern.permute.xlu0 0
    %5795 = vperm.xlu0 %5794, %v5777
    %v5796 = vpop.permute.xlu0 %5795
    %v5798 = vadd.f32 %v5770, %v5781
    %v5799 = vadd.f32 %v5771, %v5786
    %v5800 = vadd.f32 %v5772, %v5791
    %v5801 = vadd.f32 %v5773, %v5796
    %v5802 = vmax.f32 %v5798, 0.0
    %v5803 = vmax.f32 %v5799, 0.0
    %v5804 = vmax.f32 %v5800, 0.0
    %v5805 = vmax.f32 %v5801, 0.0
    %v5806 = vsel %vm844, %v3033, 0.0
    %5807 = vadd.xlane.f32.xlu0 %v5806
    %v5808 = vpop.xlane.xlu0 %5807
    %v5809 = vsel %vm844, %v3034, 0.0
    %5810 = vadd.xlane.f32.xlu0 %v5809
    %v5811 = vpop.xlane.xlu0 %5810
    %v5812 = vsel %vm844, %v3035, 0.0
    %5813 = vadd.xlane.f32.xlu0 %v5812
    %v5814 = vpop.xlane.xlu0 %5813
    %v5815 = vsel %vm844, %v3036, 0.0
    %5816 = vadd.xlane.f32.xlu0 %v5815
    %v5817 = vpop.xlane.xlu0 %5816
    %v5818 = vmul.f32 %v5808, 0.03125
    %v5819 = vmul.f32 %v5811, 0.03125
    %v5820 = vmul.f32 %v5814, 0.03125
    %v5821 = vmul.f32 %v5817, 0.03125
    %v5822 = vmul.f32 %v3033, %v3033
    %v5823 = vmul.f32 %v3034, %v3034
    %v5824 = vmul.f32 %v3035, %v3035
    %v5825 = vmul.f32 %v3036, %v3036
    %v5826 = vsel %vm844, %v5822, 0.0
    %5827 = vadd.xlane.f32.xlu0 %v5826
    %v5828 = vpop.xlane.xlu0 %5827
    %v5829 = vsel %vm844, %v5823, 0.0
    %5830 = vadd.xlane.f32.xlu0 %v5829
    %v5831 = vpop.xlane.xlu0 %5830
    %v5832 = vsel %vm844, %v5824, 0.0
    %5833 = vadd.xlane.f32.xlu0 %v5832
    %v5834 = vpop.xlane.xlu0 %5833
    %v5835 = vsel %vm844, %v5825, 0.0
    %5836 = vadd.xlane.f32.xlu0 %v5835
    %v5837 = vpop.xlane.xlu0 %5836
    %v5838 = vmul.f32 %v5828, 0.03125
    %v5839 = vmul.f32 %v5831, 0.03125
    %v5840 = vmul.f32 %v5834, 0.03125
    %v5841 = vmul.f32 %v5837, 0.03125
    %v5842 = vmul.f32 %v5818, %v5818
    %v5843 = vmul.f32 %v5819, %v5819
    %v5844 = vmul.f32 %v5820, %v5820
    %v5845 = vmul.f32 %v5821, %v5821
    %v5846 = vsub.f32 %v5838, %v5842
    %v5847 = vsub.f32 %v5839, %v5843
    %v5848 = vsub.f32 %v5840, %v5844
    %v5849 = vsub.f32 %v5841, %v5845
    %v5850 = vsub.f32 %v3033, %v5818
    %v5851 = vsub.f32 %v3034, %v5819
    %v5852 = vsub.f32 %v3035, %v5820
    %v5853 = vsub.f32 %v3036, %v5821
    %v5854 = vld [vmem:[%s69] sm:$0xff]
    %v5855 = vld [vmem:[%s69 + $0x8] sm:$0xff]
    %v5856 = vld [vmem:[%s69 + $0x10] sm:$0xff]
    %v5857 = vld [vmem:[%s69 + $0x18] sm:$0xff]
    %v5858 = vadd.f32 %v5846, 1e-05
    %v5859 = vadd.f32 %v5847, 1e-05
    %v5860 = vadd.f32 %v5848, 1e-05
    %v5861 = vadd.f32 %v5849, 1e-05
    %v5862 = vrsqrt.pop %v5858
    %v5863 = vrsqrt.pop %v5859
    %v5864 = vrsqrt.pop %v5860
    %v5865 = vrsqrt.pop %v5861
    %v5866 = vmul.f32 %v5854, %v5862
    %v5867 = vmul.f32 %v5855, %v5863
    %v5868 = vmul.f32 %v5856, %v5864
    %v5869 = vmul.f32 %v5857, %v5865
    %5871 = vset.pattern.permute.xlu0 0
    %5872 = vperm.xlu0 %5871, %v5866
    %v5873 = vpop.permute.xlu0 %5872
    %5876 = vset.pattern.permute.xlu0 0
    %5877 = vperm.xlu0 %5876, %v5867
    %v5878 = vpop.permute.xlu0 %5877
    %5881 = vset.pattern.permute.xlu0 0
    %5882 = vperm.xlu0 %5881, %v5868
    %v5883 = vpop.permute.xlu0 %5882
    %5886 = vset.pattern.permute.xlu0 0
    %5887 = vperm.xlu0 %5886, %v5869
    %v5888 = vpop.permute.xlu0 %5887
    %v5890 = vmul.f32 %v5850, %v5873
    %v5891 = vmul.f32 %v5851, %v5878
    %v5892 = vmul.f32 %v5852, %v5883
    %v5893 = vmul.f32 %v5853, %v5888
    %v5894 = vld [vmem:[%s67] sm:$0xff]
    %v5895 = vld [vmem:[%s67 + $0x8] sm:$0xff]
    %v5896 = vld [vmem:[%s67 + $0x10] sm:$0xff]
    %v5897 = vld [vmem:[%s67 + $0x18] sm:$0xff]
    %5899 = vset.pattern.permute.xlu0 0
    %5900 = vperm.xlu0 %5899, %v5894
    %v5901 = vpop.permute.xlu0 %5900
    %5904 = vset.pattern.permute.xlu0 0
    %5905 = vperm.xlu0 %5904, %v5895
    %v5906 = vpop.permute.xlu0 %5905
    %5909 = vset.pattern.permute.xlu0 0
    %5910 = vperm.xlu0 %5909, %v5896
    %v5911 = vpop.permute.xlu0 %5910
    %5914 = vset.pattern.permute.xlu0 0
    %5915 = vperm.xlu0 %5914, %v5897
    %v5916 = vpop.permute.xlu0 %5915
    %v5918 = vadd.f32 %v5890, %v5901
    %v5919 = vadd.f32 %v5891, %v5906
    %v5920 = vadd.f32 %v5892, %v5911
    %v5921 = vadd.f32 %v5893, %v5916
    %v5922 = vadd.f32 %v5802, %v5918
    %v5923 = vadd.f32 %v5803, %v5919
    %v5924 = vadd.f32 %v5804, %v5920
    %v5925 = vadd.f32 %v5805, %v5921
    %v5926 = vmax.f32 %v5922, 0.0
    %v5927 = vmax.f32 %v5923, 0.0
    %v5928 = vmax.f32 %v5924, 0.0
    %v5929 = vmax.f32 %v5925, 0.0
    %v5930 = vld [vmem:[%s59] sm:$0xff]
    %v5931 = vld [vmem:[%s59 + $0x8] sm:$0xff]
    %v5932 = vld [vmem:[%s59 + $0x10] sm:$0xff]
    %v5933 = vld [vmem:[%s59 + $0x18] sm:$0xff]
    %v5935 = vsel %vm844, %v5926, 0
    %v5938 = vsel %vm844, %v5927, 0
    %v5941 = vsel %vm844, %v5928, 0
    %v5944 = vsel %vm844, %v5929, 0
    %5946 = vmatprep.subr.mxu0 0.0
    %5947 = vmatpush1.msra.mxu0 0.0
    %5948 = vmatprep.subr.mxu0 0.0
    %5949 = vmatpush1.msra.mxu0 0.0
    %5950 = vmatprep.subr.mxu0 0.0
    %5951 = vmatpush1.msra.mxu0 0.0
    %5952 = vmatprep.subr.mxu0 0.0
    %5953 = vmatpush1.msra.mxu0 0.0
    %5954 = vmatprep.subr.mxu0 0.0
    %5955 = vmatpush1.msra.mxu0 0.0
    %5956 = vmatprep.subr.mxu0 0.0
    %5957 = vmatpush1.msra.mxu0 0.0
    %5958 = vmatprep.subr.mxu0 0.0
    %5959 = vmatpush1.msra.mxu0 0.0
    %5960 = vmatprep.subr.mxu0 0.0
    %5961 = vmatpush1.msra.mxu0 0.0
    %5962 = vmatprep.subr.mxu0 0.0
    %5963 = vmatpush1.msra.mxu0 0.0
    %5964 = vmatprep.subr.mxu0 0.0
    %5965 = vmatpush1.msra.mxu0 0.0
    %5966 = vmatprep.subr.mxu0 0.0
    %5967 = vmatpush1.msra.mxu0 0.0
    %5968 = vmatprep.subr.mxu0 0.0
    %5969 = vmatpush1.msra.mxu0 0.0
    %5970 = vmatprep.subr.mxu0 0.0
    %5971 = vmatpush1.msra.mxu0 %v5933
    %5972 = vmatprep.subr.mxu0 0.0
    %5973 = vmatpush1.msra.mxu0 %v5932
    %5974 = vmatprep.subr.mxu0 0.0
    %5975 = vmatpush1.msra.mxu0 %v5931
    %5976 = vmatprep.subr.mxu0 0.0
    %5977 = vmatpush1.msra.mxu0 %v5930
    %5978 = vmatprep.subr.mxu0 0.0
    %5979 = vmatpush2.msra.mxu0 0.0
    %5980 = vmatprep.subr.mxu0 0.0
    %5981 = vmatpush2.msra.mxu0 0.0
    %5982 = vmatprep.subr.mxu0 0.0
    %5983 = vmatpush2.msra.mxu0 0.0
    %5984 = vmatprep.subr.mxu0 0.0
    %5985 = vmatpush2.msra.mxu0 0.0
    %5986 = vmatprep.subr.mxu0 0.0
    %5987 = vmatpush2.msra.mxu0 0.0
    %5988 = vmatprep.subr.mxu0 0.0
    %5989 = vmatpush2.msra.mxu0 0.0
    %5990 = vmatprep.subr.mxu0 0.0
    %5991 = vmatpush2.msra.mxu0 0.0
    %5992 = vmatprep.subr.mxu0 0.0
    %5993 = vmatpush2.msra.mxu0 0.0
    %5994 = vmatprep.subr.mxu0 0.0
    %5995 = vmatpush2.msra.mxu0 0.0
    %5996 = vmatprep.subr.mxu0 0.0
    %5997 = vmatpush2.msra.mxu0 0.0
    %5998 = vmatprep.subr.mxu0 0.0
    %5999 = vmatpush2.msra.mxu0 0.0
    %6000 = vmatprep.subr.mxu0 0.0
    %6001 = vmatpush2.msra.mxu0 0.0
    %6002 = vmatprep.subr.mxu0 0.0
    %6003 = vmatpush2.msra.mxu0 0.0
    %6004 = vmatprep.subr.mxu0 0.0
    %6005 = vmatpush2.msra.mxu0 0.0
    %6006 = vmatprep.subr.mxu0 0.0
    %6007 = vmatpush2.msra.mxu0 0.0
    %6008 = vmatprep.subr.mxu0 0.0
    %6009 = vmatpush2.msra.mxu0 0.0
    %6010 = vmatprep.mubr.f32.mxu0 0.0
    %6011 = vmatmul.mubr.f32.gmra.mxu0 %v5935
    %v6012 = vpop.f32.mrf.mxu0
    %v6013 = vadd.f32 0.0, %v6012
    %v6014 = vpop.f32.mrf.mxu0
    %6015 = vmatprep.mubr.f32.mxu0 0.0
    %6016 = vmatmul.mubr.f32.gmra.mxu0 %v5938
    %v6017 = vpop.f32.mrf.mxu0
    %v6018 = vadd.f32 0.0, %v6017
    %v6019 = vpop.f32.mrf.mxu0
    %6020 = vmatprep.mubr.f32.mxu0 0.0
    %6021 = vmatmul.mubr.f32.gmra.mxu0 %v5941
    %v6022 = vpop.f32.mrf.mxu0
    %v6023 = vadd.f32 0.0, %v6022
    %v6024 = vpop.f32.mrf.mxu0
    %6025 = vmatprep.mubr.f32.mxu0 0.0
    %6026 = vmatmul.mubr.f32.gmra.mxu0 %v5944
    %v6027 = vpop.f32.mrf.mxu0
    %v6028 = vadd.f32 0.0, %v6027
    %v6029 = vpop.f32.mrf.mxu0
    %6030 = vdwg.mxu0
    %v6031 = vld [vmem:[%s57] sm:$0xff]
    %v6032 = vld [vmem:[%s57 + $0x8] sm:$0xff]
    %v6033 = vld [vmem:[%s57 + $0x10] sm:$0xff]
    %v6034 = vld [vmem:[%s57 + $0x18] sm:$0xff]
    %v6035 = vld [vmem:[%s53] sm:$0x1]
    %v6037 = vsel %vm844, 0.0, 0
    %6039 = vmatprep.subr.mxu0 0.0
    %6040 = vmatpush1.msra.mxu0 0.0
    %6041 = vmatprep.subr.mxu0 0.0
    %6042 = vmatpush1.msra.mxu0 0.0
    %6043 = vmatprep.subr.mxu0 0.0
    %6044 = vmatpush1.msra.mxu0 0.0
    %6045 = vmatprep.subr.mxu0 0.0
    %6046 = vmatpush1.msra.mxu0 0.0
    %6047 = vmatprep.subr.mxu0 0.0
    %6048 = vmatpush1.msra.mxu0 0.0
    %6049 = vmatprep.subr.mxu0 0.0
    %6050 = vmatpush1.msra.mxu0 0.0
    %6051 = vmatprep.subr.mxu0 0.0
    %6052 = vmatpush1.msra.mxu0 0.0
    %6053 = vmatprep.subr.mxu0 0.0
    %6054 = vmatpush1.msra.mxu0 0.0
    %6055 = vmatprep.subr.mxu0 0.0
    %6056 = vmatpush1.msra.mxu0 0.0
    %6057 = vmatprep.subr.mxu0 0.0
    %6058 = vmatpush1.msra.mxu0 0.0
    %6059 = vmatprep.subr.mxu0 0.0
    %6060 = vmatpush1.msra.mxu0 0.0
    %6061 = vmatprep.subr.mxu0 0.0
    %6062 = vmatpush1.msra.mxu0 0.0
    %6063 = vmatprep.subr.mxu0 0.0
    %6064 = vmatpush1.msra.mxu0 %v6034
    %6065 = vmatprep.subr.mxu0 0.0
    %6066 = vmatpush1.msra.mxu0 %v6033
    %6067 = vmatprep.subr.mxu0 0.0
    %6068 = vmatpush1.msra.mxu0 %v6032
    %6069 = vmatprep.subr.mxu0 0.0
    %6070 = vmatpush1.msra.mxu0 %v6031
    %6071 = vmatprep.subr.mxu0 0.0
    %6072 = vmatpush2.msra.mxu0 0.0
    %6073 = vmatprep.subr.mxu0 0.0
    %6074 = vmatpush2.msra.mxu0 0.0
    %6075 = vmatprep.subr.mxu0 0.0
    %6076 = vmatpush2.msra.mxu0 0.0
    %6077 = vmatprep.subr.mxu0 0.0
    %6078 = vmatpush2.msra.mxu0 0.0
    %6079 = vmatprep.subr.mxu0 0.0
    %6080 = vmatpush2.msra.mxu0 0.0
    %6081 = vmatprep.subr.mxu0 0.0
    %6082 = vmatpush2.msra.mxu0 0.0
    %6083 = vmatprep.subr.mxu0 0.0
    %6084 = vmatpush2.msra.mxu0 0.0
    %6085 = vmatprep.subr.mxu0 0.0
    %6086 = vmatpush2.msra.mxu0 0.0
    %6087 = vmatprep.subr.mxu0 0.0
    %6088 = vmatpush2.msra.mxu0 0.0
    %6089 = vmatprep.subr.mxu0 0.0
    %6090 = vmatpush2.msra.mxu0 0.0
    %6091 = vmatprep.subr.mxu0 0.0
    %6092 = vmatpush2.msra.mxu0 0.0
    %6093 = vmatprep.subr.mxu0 0.0
    %6094 = vmatpush2.msra.mxu0 0.0
    %6095 = vmatprep.subr.mxu0 0.0
    %6096 = vmatpush2.msra.mxu0 0.0
    %6097 = vmatprep.subr.mxu0 0.0
    %6098 = vmatpush2.msra.mxu0 0.0
    %6099 = vmatprep.subr.mxu0 0.0
    %6100 = vmatpush2.msra.mxu0 0.0
    %6101 = vmatprep.subr.mxu0 0.0
    %6102 = vmatpush2.msra.mxu0 0.0
    %6103 = vmatprep.mubr.f32.mxu0 0.0
    %6104 = vmatmul.mubr.f32.gmra.mxu0 %v6037
    %v6105 = vpop.f32.mrf.mxu0
    %v6106 = vadd.f32 0.0, %v6105
    %v6107 = vpop.f32.mrf.mxu0
    %6108 = vdwg.mxu0
    %v6109 = vadd.f32 %v6013, %v6106
    %v6110 = vadd.f32 %v6109, %v6035
    %v6111 = vtanh.pop %v6110
    %v6113 = vsel %vm844, %v6111, 0
    %6115 = vmatprep.subr.mxu0 0.0
    %6116 = vmatpush1.msra.mxu0 0.0
    %6117 = vmatprep.subr.mxu0 0.0
    %6118 = vmatpush1.msra.mxu0 0.0
    %6119 = vmatprep.subr.mxu0 0.0
    %6120 = vmatpush1.msra.mxu0 0.0
    %6121 = vmatprep.subr.mxu0 0.0
    %6122 = vmatpush1.msra.mxu0 0.0
    %6123 = vmatprep.subr.mxu0 0.0
    %6124 = vmatpush1.msra.mxu0 0.0
    %6125 = vmatprep.subr.mxu0 0.0
    %6126 = vmatpush1.msra.mxu0 0.0
    %6127 = vmatprep.subr.mxu0 0.0
    %6128 = vmatpush1.msra.mxu0 0.0
    %6129 = vmatprep.subr.mxu0 0.0
    %6130 = vmatpush1.msra.mxu0 0.0
    %6131 = vmatprep.subr.mxu0 0.0
    %6132 = vmatpush1.msra.mxu0 0.0
    %6133 = vmatprep.subr.mxu0 0.0
    %6134 = vmatpush1.msra.mxu0 0.0
    %6135 = vmatprep.subr.mxu0 0.0
    %6136 = vmatpush1.msra.mxu0 0.0
    %6137 = vmatprep.subr.mxu0 0.0
    %6138 = vmatpush1.msra.mxu0 0.0
    %6139 = vmatprep.subr.mxu0 0.0
    %6140 = vmatpush1.msra.mxu0 %v6034
    %6141 = vmatprep.subr.mxu0 0.0
    %6142 = vmatpush1.msra.mxu0 %v6033
    %6143 = vmatprep.subr.mxu0 0.0
    %6144 = vmatpush1.msra.mxu0 %v6032
    %6145 = vmatprep.subr.mxu0 0.0
    %6146 = vmatpush1.msra.mxu0 %v6031
    %6147 = vmatprep.subr.mxu0 0.0
    %6148 = vmatpush2.msra.mxu0 0.0
    %6149 = vmatprep.subr.mxu0 0.0
    %6150 = vmatpush2.msra.mxu0 0.0
    %6151 = vmatprep.subr.mxu0 0.0
    %6152 = vmatpush2.msra.mxu0 0.0
    %6153 = vmatprep.subr.mxu0 0.0
    %6154 = vmatpush2.msra.mxu0 0.0
    %6155 = vmatprep.subr.mxu0 0.0
    %6156 = vmatpush2.msra.mxu0 0.0
    %6157 = vmatprep.subr.mxu0 0.0
    %6158 = vmatpush2.msra.mxu0 0.0
    %6159 = vmatprep.subr.mxu0 0.0
    %6160 = vmatpush2.msra.mxu0 0.0
    %6161 = vmatprep.subr.mxu0 0.0
    %6162 = vmatpush2.msra.mxu0 0.0
    %6163 = vmatprep.subr.mxu0 0.0
    %6164 = vmatpush2.msra.mxu0 0.0
    %6165 = vmatprep.subr.mxu0 0.0
    %6166 = vmatpush2.msra.mxu0 0.0
    %6167 = vmatprep.subr.mxu0 0.0
    %6168 = vmatpush2.msra.mxu0 0.0
    %6169 = vmatprep.subr.mxu0 0.0
    %6170 = vmatpush2.msra.mxu0 0.0
    %6171 = vmatprep.subr.mxu0 0.0
    %6172 = vmatpush2.msra.mxu0 0.0
    %6173 = vmatprep.subr.mxu0 0.0
    %6174 = vmatpush2.msra.mxu0 0.0
    %6175 = vmatprep.subr.mxu0 0.0
    %6176 = vmatpush2.msra.mxu0 0.0
    %6177 = vmatprep.subr.mxu0 0.0
    %6178 = vmatpush2.msra.mxu0 0.0
    %6179 = vmatprep.mubr.f32.mxu0 0.0
    %6180 = vmatmul.mubr.f32.gmra.mxu0 %v6113
    %v6181 = vpop.f32.mrf.mxu0
    %v6182 = vadd.f32 0.0, %v6181
    %v6183 = vpop.f32.mrf.mxu0
    %6184 = vdwg.mxu0
    %v6186 = vrot.slane %v6182, 7
    %v6188 = vadd.f32 %v6013, %v6186
    %v6190 = vlaneseq
    %v6191 = vshrl.u32 %v6190, 7
    %v6192 = vsub.s32 0, %v6191
    %v6193 = vrot.slane %v6035, %v6192
    %v6195 = vadd.f32 %v6188, %v6193
    %v6196 = vtanh.pop %v6195
    %v6198 = vrot.slane %v6196, 1
    %v6199 = vsel %vm844, %v6198, 0
    %6201 = vmatprep.subr.mxu0 0.0
    %6202 = vmatpush1.msra.mxu0 0.0
    %6203 = vmatprep.subr.mxu0 0.0
    %6204 = vmatpush1.msra.mxu0 0.0
    %6205 = vmatprep.subr.mxu0 0.0
    %6206 = vmatpush1.msra.mxu0 0.0
    %6207 = vmatprep.subr.mxu0 0.0
    %6208 = vmatpush1.msra.mxu0 0.0
    %6209 = vmatprep.subr.mxu0 0.0
    %6210 = vmatpush1.msra.mxu0 0.0
    %6211 = vmatprep.subr.mxu0 0.0
    %6212 = vmatpush1.msra.mxu0 0.0
    %6213 = vmatprep.subr.mxu0 0.0
    %6214 = vmatpush1.msra.mxu0 0.0
    %6215 = vmatprep.subr.mxu0 0.0
    %6216 = vmatpush1.msra.mxu0 0.0
    %6217 = vmatprep.subr.mxu0 0.0
    %6218 = vmatpush1.msra.mxu0 0.0
    %6219 = vmatprep.subr.mxu0 0.0
    %6220 = vmatpush1.msra.mxu0 0.0
    %6221 = vmatprep.subr.mxu0 0.0
    %6222 = vmatpush1.msra.mxu0 0.0
    %6223 = vmatprep.subr.mxu0 0.0
    %6224 = vmatpush1.msra.mxu0 0.0
    %6225 = vmatprep.subr.mxu0 0.0
    %6226 = vmatpush1.msra.mxu0 %v6034
    %6227 = vmatprep.subr.mxu0 0.0
    %6228 = vmatpush1.msra.mxu0 %v6033
    %6229 = vmatprep.subr.mxu0 0.0
    %6230 = vmatpush1.msra.mxu0 %v6032
    %6231 = vmatprep.subr.mxu0 0.0
    %6232 = vmatpush1.msra.mxu0 %v6031
    %6233 = vmatprep.subr.mxu0 0.0
    %6234 = vmatpush2.msra.mxu0 0.0
    %6235 = vmatprep.subr.mxu0 0.0
    %6236 = vmatpush2.msra.mxu0 0.0
    %6237 = vmatprep.subr.mxu0 0.0
    %6238 = vmatpush2.msra.mxu0 0.0
    %6239 = vmatprep.subr.mxu0 0.0
    %6240 = vmatpush2.msra.mxu0 0.0
    %6241 = vmatprep.subr.mxu0 0.0
    %6242 = vmatpush2.msra.mxu0 0.0
    %6243 = vmatprep.subr.mxu0 0.0
    %6244 = vmatpush2.msra.mxu0 0.0
    %6245 = vmatprep.subr.mxu0 0.0
    %6246 = vmatpush2.msra.mxu0 0.0
    %6247 = vmatprep.subr.mxu0 0.0
    %6248 = vmatpush2.msra.mxu0 0.0
    %6249 = vmatprep.subr.mxu0 0.0
    %6250 = vmatpush2.msra.mxu0 0.0
    %6251 = vmatprep.subr.mxu0 0.0
    %6252 = vmatpush2.msra.mxu0 0.0
    %6253 = vmatprep.subr.mxu0 0.0
    %6254 = vmatpush2.msra.mxu0 0.0
    %6255 = vmatprep.subr.mxu0 0.0
    %6256 = vmatpush2.msra.mxu0 0.0
    %6257 = vmatprep.subr.mxu0 0.0
    %6258 = vmatpush2.msra.mxu0 0.0
    %6259 = vmatprep.subr.mxu0 0.0
    %6260 = vmatpush2.msra.mxu0 0.0
    %6261 = vmatprep.subr.mxu0 0.0
    %6262 = vmatpush2.msra.mxu0 0.0
    %6263 = vmatprep.subr.mxu0 0.0
    %6264 = vmatpush2.msra.mxu0 0.0
    %6265 = vmatprep.mubr.f32.mxu0 0.0
    %6266 = vmatmul.mubr.f32.gmra.mxu0 %v6199
    %v6267 = vpop.f32.mrf.mxu0
    %v6268 = vadd.f32 0.0, %v6267
    %v6269 = vpop.f32.mrf.mxu0
    %6270 = vdwg.mxu0
    %v6272 = vrot.slane %v6268, 6
    %v6274 = vadd.f32 %v6013, %v6272
    %v6275 = vadd.f32 %v6274, %v6193
    %v6276 = vtanh.pop %v6275
    %v6278 = vrot.slane %v6276, 2
    %v6279 = vsel %vm844, %v6278, 0
    %6281 = vmatprep.subr.mxu0 0.0
    %6282 = vmatpush1.msra.mxu0 0.0
    %6283 = vmatprep.subr.mxu0 0.0
    %6284 = vmatpush1.msra.mxu0 0.0
    %6285 = vmatprep.subr.mxu0 0.0
    %6286 = vmatpush1.msra.mxu0 0.0
    %6287 = vmatprep.subr.mxu0 0.0
    %6288 = vmatpush1.msra.mxu0 0.0
    %6289 = vmatprep.subr.mxu0 0.0
    %6290 = vmatpush1.msra.mxu0 0.0
    %6291 = vmatprep.subr.mxu0 0.0
    %6292 = vmatpush1.msra.mxu0 0.0
    %6293 = vmatprep.subr.mxu0 0.0
    %6294 = vmatpush1.msra.mxu0 0.0
    %6295 = vmatprep.subr.mxu0 0.0
    %6296 = vmatpush1.msra.mxu0 0.0
    %6297 = vmatprep.subr.mxu0 0.0
    %6298 = vmatpush1.msra.mxu0 0.0
    %6299 = vmatprep.subr.mxu0 0.0
    %6300 = vmatpush1.msra.mxu0 0.0
    %6301 = vmatprep.subr.mxu0 0.0
    %6302 = vmatpush1.msra.mxu0 0.0
    %6303 = vmatprep.subr.mxu0 0.0
    %6304 = vmatpush1.msra.mxu0 0.0
    %6305 = vmatprep.subr.mxu0 0.0
    %6306 = vmatpush1.msra.mxu0 %v6034
    %6307 = vmatprep.subr.mxu0 0.0
    %6308 = vmatpush1.msra.mxu0 %v6033
    %6309 = vmatprep.subr.mxu0 0.0
    %6310 = vmatpush1.msra.mxu0 %v6032
    %6311 = vmatprep.subr.mxu0 0.0
    %6312 = vmatpush1.msra.mxu0 %v6031
    %6313 = vmatprep.subr.mxu0 0.0
    %6314 = vmatpush2.msra.mxu0 0.0
    %6315 = vmatprep.subr.mxu0 0.0
    %6316 = vmatpush2.msra.mxu0 0.0
    %6317 = vmatprep.subr.mxu0 0.0
    %6318 = vmatpush2.msra.mxu0 0.0
    %6319 = vmatprep.subr.mxu0 0.0
    %6320 = vmatpush2.msra.mxu0 0.0
    %6321 = vmatprep.subr.mxu0 0.0
    %6322 = vmatpush2.msra.mxu0 0.0
    %6323 = vmatprep.subr.mxu0 0.0
    %6324 = vmatpush2.msra.mxu0 0.0
    %6325 = vmatprep.subr.mxu0 0.0
    %6326 = vmatpush2.msra.mxu0 0.0
    %6327 = vmatprep.subr.mxu0 0.0
    %6328 = vmatpush2.msra.mxu0 0.0
    %6329 = vmatprep.subr.mxu0 0.0
    %6330 = vmatpush2.msra.mxu0 0.0
    %6331 = vmatprep.subr.mxu0 0.0
    %6332 = vmatpush2.msra.mxu0 0.0
    %6333 = vmatprep.subr.mxu0 0.0
    %6334 = vmatpush2.msra.mxu0 0.0
    %6335 = vmatprep.subr.mxu0 0.0
    %6336 = vmatpush2.msra.mxu0 0.0
    %6337 = vmatprep.subr.mxu0 0.0
    %6338 = vmatpush2.msra.mxu0 0.0
    %6339 = vmatprep.subr.mxu0 0.0
    %6340 = vmatpush2.msra.mxu0 0.0
    %6341 = vmatprep.subr.mxu0 0.0
    %6342 = vmatpush2.msra.mxu0 0.0
    %6343 = vmatprep.subr.mxu0 0.0
    %6344 = vmatpush2.msra.mxu0 0.0
    %6345 = vmatprep.mubr.f32.mxu0 0.0
    %6346 = vmatmul.mubr.f32.gmra.mxu0 %v6279
    %v6347 = vpop.f32.mrf.mxu0
    %v6348 = vadd.f32 0.0, %v6347
    %v6349 = vpop.f32.mrf.mxu0
    %6350 = vdwg.mxu0
    %v6352 = vrot.slane %v6348, 5
    %v6354 = vadd.f32 %v6013, %v6352
    %v6355 = vadd.f32 %v6354, %v6193
    %v6356 = vtanh.pop %v6355
    %v6358 = vrot.slane %v6356, 3
    %v6359 = vsel %vm844, %v6358, 0
    %6361 = vmatprep.subr.mxu0 0.0
    %6362 = vmatpush1.msra.mxu0 0.0
    %6363 = vmatprep.subr.mxu0 0.0
    %6364 = vmatpush1.msra.mxu0 0.0
    %6365 = vmatprep.subr.mxu0 0.0
    %6366 = vmatpush1.msra.mxu0 0.0
    %6367 = vmatprep.subr.mxu0 0.0
    %6368 = vmatpush1.msra.mxu0 0.0
    %6369 = vmatprep.subr.mxu0 0.0
    %6370 = vmatpush1.msra.mxu0 0.0
    %6371 = vmatprep.subr.mxu0 0.0
    %6372 = vmatpush1.msra.mxu0 0.0
    %6373 = vmatprep.subr.mxu0 0.0
    %6374 = vmatpush1.msra.mxu0 0.0
    %6375 = vmatprep.subr.mxu0 0.0
    %6376 = vmatpush1.msra.mxu0 0.0
    %6377 = vmatprep.subr.mxu0 0.0
    %6378 = vmatpush1.msra.mxu0 0.0
    %6379 = vmatprep.subr.mxu0 0.0
    %6380 = vmatpush1.msra.mxu0 0.0
    %6381 = vmatprep.subr.mxu0 0.0
    %6382 = vmatpush1.msra.mxu0 0.0
    %6383 = vmatprep.subr.mxu0 0.0
    %6384 = vmatpush1.msra.mxu0 0.0
    %6385 = vmatprep.subr.mxu0 0.0
    %6386 = vmatpush1.msra.mxu0 %v6034
    %6387 = vmatprep.subr.mxu0 0.0
    %6388 = vmatpush1.msra.mxu0 %v6033
    %6389 = vmatprep.subr.mxu0 0.0
    %6390 = vmatpush1.msra.mxu0 %v6032
    %6391 = vmatprep.subr.mxu0 0.0
    %6392 = vmatpush1.msra.mxu0 %v6031
    %6393 = vmatprep.subr.mxu0 0.0
    %6394 = vmatpush2.msra.mxu0 0.0
    %6395 = vmatprep.subr.mxu0 0.0
    %6396 = vmatpush2.msra.mxu0 0.0
    %6397 = vmatprep.subr.mxu0 0.0
    %6398 = vmatpush2.msra.mxu0 0.0
    %6399 = vmatprep.subr.mxu0 0.0
    %6400 = vmatpush2.msra.mxu0 0.0
    %6401 = vmatprep.subr.mxu0 0.0
    %6402 = vmatpush2.msra.mxu0 0.0
    %6403 = vmatprep.subr.mxu0 0.0
    %6404 = vmatpush2.msra.mxu0 0.0
    %6405 = vmatprep.subr.mxu0 0.0
    %6406 = vmatpush2.msra.mxu0 0.0
    %6407 = vmatprep.subr.mxu0 0.0
    %6408 = vmatpush2.msra.mxu0 0.0
    %6409 = vmatprep.subr.mxu0 0.0
    %6410 = vmatpush2.msra.mxu0 0.0
    %6411 = vmatprep.subr.mxu0 0.0
    %6412 = vmatpush2.msra.mxu0 0.0
    %6413 = vmatprep.subr.mxu0 0.0
    %6414 = vmatpush2.msra.mxu0 0.0
    %6415 = vmatprep.subr.mxu0 0.0
    %6416 = vmatpush2.msra.mxu0 0.0
    %6417 = vmatprep.subr.mxu0 0.0
    %6418 = vmatpush2.msra.mxu0 0.0
    %6419 = vmatprep.subr.mxu0 0.0
    %6420 = vmatpush2.msra.mxu0 0.0
    %6421 = vmatprep.subr.mxu0 0.0
    %6422 = vmatpush2.msra.mxu0 0.0
    %6423 = vmatprep.subr.mxu0 0.0
    %6424 = vmatpush2.msra.mxu0 0.0
    %6425 = vmatprep.mubr.f32.mxu0 0.0
    %6426 = vmatmul.mubr.f32.gmra.mxu0 %v6359
    %v6427 = vpop.f32.mrf.mxu0
    %v6428 = vadd.f32 0.0, %v6427
    %v6429 = vpop.f32.mrf.mxu0
    %6430 = vdwg.mxu0
    %v6432 = vrot.slane %v6428, 4
    %v6434 = vadd.f32 %v6013, %v6432
    %v6435 = vadd.f32 %v6434, %v6193
    %v6436 = vtanh.pop %v6435
    %v6438 = vrot.slane %v6436, 4
    %v6439 = vsel %vm844, %v6438, 0
    %6441 = vmatprep.subr.mxu0 0.0
    %6442 = vmatpush1.msra.mxu0 0.0
    %6443 = vmatprep.subr.mxu0 0.0
    %6444 = vmatpush1.msra.mxu0 0.0
    %6445 = vmatprep.subr.mxu0 0.0
    %6446 = vmatpush1.msra.mxu0 0.0
    %6447 = vmatprep.subr.mxu0 0.0
    %6448 = vmatpush1.msra.mxu0 0.0
    %6449 = vmatprep.subr.mxu0 0.0
    %6450 = vmatpush1.msra.mxu0 0.0
    %6451 = vmatprep.subr.mxu0 0.0
    %6452 = vmatpush1.msra.mxu0 0.0
    %6453 = vmatprep.subr.mxu0 0.0
    %6454 = vmatpush1.msra.mxu0 0.0
    %6455 = vmatprep.subr.mxu0 0.0
    %6456 = vmatpush1.msra.mxu0 0.0
    %6457 = vmatprep.subr.mxu0 0.0
    %6458 = vmatpush1.msra.mxu0 0.0
    %6459 = vmatprep.subr.mxu0 0.0
    %6460 = vmatpush1.msra.mxu0 0.0
    %6461 = vmatprep.subr.mxu0 0.0
    %6462 = vmatpush1.msra.mxu0 0.0
    %6463 = vmatprep.subr.mxu0 0.0
    %6464 = vmatpush1.msra.mxu0 0.0
    %6465 = vmatprep.subr.mxu0 0.0
    %6466 = vmatpush1.msra.mxu0 %v6034
    %6467 = vmatprep.subr.mxu0 0.0
    %6468 = vmatpush1.msra.mxu0 %v6033
    %6469 = vmatprep.subr.mxu0 0.0
    %6470 = vmatpush1.msra.mxu0 %v6032
    %6471 = vmatprep.subr.mxu0 0.0
    %6472 = vmatpush1.msra.mxu0 %v6031
    %6473 = vmatprep.subr.mxu0 0.0
    %6474 = vmatpush2.msra.mxu0 0.0
    %6475 = vmatprep.subr.mxu0 0.0
    %6476 = vmatpush2.msra.mxu0 0.0
    %6477 = vmatprep.subr.mxu0 0.0
    %6478 = vmatpush2.msra.mxu0 0.0
    %6479 = vmatprep.subr.mxu0 0.0
    %6480 = vmatpush2.msra.mxu0 0.0
    %6481 = vmatprep.subr.mxu0 0.0
    %6482 = vmatpush2.msra.mxu0 0.0
    %6483 = vmatprep.subr.mxu0 0.0
    %6484 = vmatpush2.msra.mxu0 0.0
    %6485 = vmatprep.subr.mxu0 0.0
    %6486 = vmatpush2.msra.mxu0 0.0
    %6487 = vmatprep.subr.mxu0 0.0
    %6488 = vmatpush2.msra.mxu0 0.0
    %6489 = vmatprep.subr.mxu0 0.0
    %6490 = vmatpush2.msra.mxu0 0.0
    %6491 = vmatprep.subr.mxu0 0.0
    %6492 = vmatpush2.msra.mxu0 0.0
    %6493 = vmatprep.subr.mxu0 0.0
    %6494 = vmatpush2.msra.mxu0 0.0
    %6495 = vmatprep.subr.mxu0 0.0
    %6496 = vmatpush2.msra.mxu0 0.0
    %6497 = vmatprep.subr.mxu0 0.0
    %6498 = vmatpush2.msra.mxu0 0.0
    %6499 = vmatprep.subr.mxu0 0.0
    %6500 = vmatpush2.msra.mxu0 0.0
    %6501 = vmatprep.subr.mxu0 0.0
    %6502 = vmatpush2.msra.mxu0 0.0
    %6503 = vmatprep.subr.mxu0 0.0
    %6504 = vmatpush2.msra.mxu0 0.0
    %6505 = vmatprep.mubr.f32.mxu0 0.0
    %6506 = vmatmul.mubr.f32.gmra.mxu0 %v6439
    %v6507 = vpop.f32.mrf.mxu0
    %v6508 = vadd.f32 0.0, %v6507
    %v6509 = vpop.f32.mrf.mxu0
    %6510 = vdwg.mxu0
    %v6512 = vrot.slane %v6508, 3
    %v6514 = vadd.f32 %v6013, %v6512
    %v6515 = vadd.f32 %v6514, %v6193
    %v6516 = vtanh.pop %v6515
    %v6518 = vrot.slane %v6516, 5
    %v6519 = vsel %vm844, %v6518, 0
    %6521 = vmatprep.subr.mxu0 0.0
    %6522 = vmatpush1.msra.mxu0 0.0
    %6523 = vmatprep.subr.mxu0 0.0
    %6524 = vmatpush1.msra.mxu0 0.0
    %6525 = vmatprep.subr.mxu0 0.0
    %6526 = vmatpush1.msra.mxu0 0.0
    %6527 = vmatprep.subr.mxu0 0.0
    %6528 = vmatpush1.msra.mxu0 0.0
    %6529 = vmatprep.subr.mxu0 0.0
    %6530 = vmatpush1.msra.mxu0 0.0
    %6531 = vmatprep.subr.mxu0 0.0
    %6532 = vmatpush1.msra.mxu0 0.0
    %6533 = vmatprep.subr.mxu0 0.0
    %6534 = vmatpush1.msra.mxu0 0.0
    %6535 = vmatprep.subr.mxu0 0.0
    %6536 = vmatpush1.msra.mxu0 0.0
    %6537 = vmatprep.subr.mxu0 0.0
    %6538 = vmatpush1.msra.mxu0 0.0
    %6539 = vmatprep.subr.mxu0 0.0
    %6540 = vmatpush1.msra.mxu0 0.0
    %6541 = vmatprep.subr.mxu0 0.0
    %6542 = vmatpush1.msra.mxu0 0.0
    %6543 = vmatprep.subr.mxu0 0.0
    %6544 = vmatpush1.msra.mxu0 0.0
    %6545 = vmatprep.subr.mxu0 0.0
    %6546 = vmatpush1.msra.mxu0 %v6034
    %6547 = vmatprep.subr.mxu0 0.0
    %6548 = vmatpush1.msra.mxu0 %v6033
    %6549 = vmatprep.subr.mxu0 0.0
    %6550 = vmatpush1.msra.mxu0 %v6032
    %6551 = vmatprep.subr.mxu0 0.0
    %6552 = vmatpush1.msra.mxu0 %v6031
    %6553 = vmatprep.subr.mxu0 0.0
    %6554 = vmatpush2.msra.mxu0 0.0
    %6555 = vmatprep.subr.mxu0 0.0
    %6556 = vmatpush2.msra.mxu0 0.0
    %6557 = vmatprep.subr.mxu0 0.0
    %6558 = vmatpush2.msra.mxu0 0.0
    %6559 = vmatprep.subr.mxu0 0.0
    %6560 = vmatpush2.msra.mxu0 0.0
    %6561 = vmatprep.subr.mxu0 0.0
    %6562 = vmatpush2.msra.mxu0 0.0
    %6563 = vmatprep.subr.mxu0 0.0
    %6564 = vmatpush2.msra.mxu0 0.0
    %6565 = vmatprep.subr.mxu0 0.0
    %6566 = vmatpush2.msra.mxu0 0.0
    %6567 = vmatprep.subr.mxu0 0.0
    %6568 = vmatpush2.msra.mxu0 0.0
    %6569 = vmatprep.subr.mxu0 0.0
    %6570 = vmatpush2.msra.mxu0 0.0
    %6571 = vmatprep.subr.mxu0 0.0
    %6572 = vmatpush2.msra.mxu0 0.0
    %6573 = vmatprep.subr.mxu0 0.0
    %6574 = vmatpush2.msra.mxu0 0.0
    %6575 = vmatprep.subr.mxu0 0.0
    %6576 = vmatpush2.msra.mxu0 0.0
    %6577 = vmatprep.subr.mxu0 0.0
    %6578 = vmatpush2.msra.mxu0 0.0
    %6579 = vmatprep.subr.mxu0 0.0
    %6580 = vmatpush2.msra.mxu0 0.0
    %6581 = vmatprep.subr.mxu0 0.0
    %6582 = vmatpush2.msra.mxu0 0.0
    %6583 = vmatprep.subr.mxu0 0.0
    %6584 = vmatpush2.msra.mxu0 0.0
    %6585 = vmatprep.mubr.f32.mxu0 0.0
    %6586 = vmatmul.mubr.f32.gmra.mxu0 %v6519
    %v6587 = vpop.f32.mrf.mxu0
    %v6588 = vadd.f32 0.0, %v6587
    %v6589 = vpop.f32.mrf.mxu0
    %6590 = vdwg.mxu0
    %v6592 = vrot.slane %v6588, 2
    %v6594 = vadd.f32 %v6013, %v6592
    %v6595 = vadd.f32 %v6594, %v6193
    %v6596 = vtanh.pop %v6595
    %v6598 = vrot.slane %v6596, 6
    %v6599 = vsel %vm844, %v6598, 0
    %6601 = vmatprep.subr.mxu0 0.0
    %6602 = vmatpush1.msra.mxu0 0.0
    %6603 = vmatprep.subr.mxu0 0.0
    %6604 = vmatpush1.msra.mxu0 0.0
    %6605 = vmatprep.subr.mxu0 0.0
    %6606 = vmatpush1.msra.mxu0 0.0
    %6607 = vmatprep.subr.mxu0 0.0
    %6608 = vmatpush1.msra.mxu0 0.0
    %6609 = vmatprep.subr.mxu0 0.0
    %6610 = vmatpush1.msra.mxu0 0.0
    %6611 = vmatprep.subr.mxu0 0.0
    %6612 = vmatpush1.msra.mxu0 0.0
    %6613 = vmatprep.subr.mxu0 0.0
    %6614 = vmatpush1.msra.mxu0 0.0
    %6615 = vmatprep.subr.mxu0 0.0
    %6616 = vmatpush1.msra.mxu0 0.0
    %6617 = vmatprep.subr.mxu0 0.0
    %6618 = vmatpush1.msra.mxu0 0.0
    %6619 = vmatprep.subr.mxu0 0.0
    %6620 = vmatpush1.msra.mxu0 0.0
    %6621 = vmatprep.subr.mxu0 0.0
    %6622 = vmatpush1.msra.mxu0 0.0
    %6623 = vmatprep.subr.mxu0 0.0
    %6624 = vmatpush1.msra.mxu0 0.0
    %6625 = vmatprep.subr.mxu0 0.0
    %6626 = vmatpush1.msra.mxu0 %v6034
    %6627 = vmatprep.subr.mxu0 0.0
    %6628 = vmatpush1.msra.mxu0 %v6033
    %6629 = vmatprep.subr.mxu0 0.0
    %6630 = vmatpush1.msra.mxu0 %v6032
    %6631 = vmatprep.subr.mxu0 0.0
    %6632 = vmatpush1.msra.mxu0 %v6031
    %6633 = vmatprep.subr.mxu0 0.0
    %6634 = vmatpush2.msra.mxu0 0.0
    %6635 = vmatprep.subr.mxu0 0.0
    %6636 = vmatpush2.msra.mxu0 0.0
    %6637 = vmatprep.subr.mxu0 0.0
    %6638 = vmatpush2.msra.mxu0 0.0
    %6639 = vmatprep.subr.mxu0 0.0
    %6640 = vmatpush2.msra.mxu0 0.0
    %6641 = vmatprep.subr.mxu0 0.0
    %6642 = vmatpush2.msra.mxu0 0.0
    %6643 = vmatprep.subr.mxu0 0.0
    %6644 = vmatpush2.msra.mxu0 0.0
    %6645 = vmatprep.subr.mxu0 0.0
    %6646 = vmatpush2.msra.mxu0 0.0
    %6647 = vmatprep.subr.mxu0 0.0
    %6648 = vmatpush2.msra.mxu0 0.0
    %6649 = vmatprep.subr.mxu0 0.0
    %6650 = vmatpush2.msra.mxu0 0.0
    %6651 = vmatprep.subr.mxu0 0.0
    %6652 = vmatpush2.msra.mxu0 0.0
    %6653 = vmatprep.subr.mxu0 0.0
    %6654 = vmatpush2.msra.mxu0 0.0
    %6655 = vmatprep.subr.mxu0 0.0
    %6656 = vmatpush2.msra.mxu0 0.0
    %6657 = vmatprep.subr.mxu0 0.0
    %6658 = vmatpush2.msra.mxu0 0.0
    %6659 = vmatprep.subr.mxu0 0.0
    %6660 = vmatpush2.msra.mxu0 0.0
    %6661 = vmatprep.subr.mxu0 0.0
    %6662 = vmatpush2.msra.mxu0 0.0
    %6663 = vmatprep.subr.mxu0 0.0
    %6664 = vmatpush2.msra.mxu0 0.0
    %6665 = vmatprep.mubr.f32.mxu0 0.0
    %6666 = vmatmul.mubr.f32.gmra.mxu0 %v6599
    %v6667 = vpop.f32.mrf.mxu0
    %v6668 = vadd.f32 0.0, %v6667
    %v6669 = vpop.f32.mrf.mxu0
    %6670 = vdwg.mxu0
    %v6672 = vrot.slane %v6668, 1
    %v6674 = vadd.f32 %v6013, %v6672
    %v6675 = vadd.f32 %v6674, %v6193
    %v6676 = vtanh.pop %v6675
    %v6678 = vrot.slane %v6676, 7
    %v6679 = vsel %vm844, %v6678, 0
    %6681 = vmatprep.subr.mxu0 0.0
    %6682 = vmatpush1.msra.mxu0 0.0
    %6683 = vmatprep.subr.mxu0 0.0
    %6684 = vmatpush1.msra.mxu0 0.0
    %6685 = vmatprep.subr.mxu0 0.0
    %6686 = vmatpush1.msra.mxu0 0.0
    %6687 = vmatprep.subr.mxu0 0.0
    %6688 = vmatpush1.msra.mxu0 0.0
    %6689 = vmatprep.subr.mxu0 0.0
    %6690 = vmatpush1.msra.mxu0 0.0
    %6691 = vmatprep.subr.mxu0 0.0
    %6692 = vmatpush1.msra.mxu0 0.0
    %6693 = vmatprep.subr.mxu0 0.0
    %6694 = vmatpush1.msra.mxu0 0.0
    %6695 = vmatprep.subr.mxu0 0.0
    %6696 = vmatpush1.msra.mxu0 0.0
    %6697 = vmatprep.subr.mxu0 0.0
    %6698 = vmatpush1.msra.mxu0 0.0
    %6699 = vmatprep.subr.mxu0 0.0
    %6700 = vmatpush1.msra.mxu0 0.0
    %6701 = vmatprep.subr.mxu0 0.0
    %6702 = vmatpush1.msra.mxu0 0.0
    %6703 = vmatprep.subr.mxu0 0.0
    %6704 = vmatpush1.msra.mxu0 0.0
    %6705 = vmatprep.subr.mxu0 0.0
    %6706 = vmatpush1.msra.mxu0 %v6034
    %6707 = vmatprep.subr.mxu0 0.0
    %6708 = vmatpush1.msra.mxu0 %v6033
    %6709 = vmatprep.subr.mxu0 0.0
    %6710 = vmatpush1.msra.mxu0 %v6032
    %6711 = vmatprep.subr.mxu0 0.0
    %6712 = vmatpush1.msra.mxu0 %v6031
    %6713 = vmatprep.subr.mxu0 0.0
    %6714 = vmatpush2.msra.mxu0 0.0
    %6715 = vmatprep.subr.mxu0 0.0
    %6716 = vmatpush2.msra.mxu0 0.0
    %6717 = vmatprep.subr.mxu0 0.0
    %6718 = vmatpush2.msra.mxu0 0.0
    %6719 = vmatprep.subr.mxu0 0.0
    %6720 = vmatpush2.msra.mxu0 0.0
    %6721 = vmatprep.subr.mxu0 0.0
    %6722 = vmatpush2.msra.mxu0 0.0
    %6723 = vmatprep.subr.mxu0 0.0
    %6724 = vmatpush2.msra.mxu0 0.0
    %6725 = vmatprep.subr.mxu0 0.0
    %6726 = vmatpush2.msra.mxu0 0.0
    %6727 = vmatprep.subr.mxu0 0.0
    %6728 = vmatpush2.msra.mxu0 0.0
    %6729 = vmatprep.subr.mxu0 0.0
    %6730 = vmatpush2.msra.mxu0 0.0
    %6731 = vmatprep.subr.mxu0 0.0
    %6732 = vmatpush2.msra.mxu0 0.0
    %6733 = vmatprep.subr.mxu0 0.0
    %6734 = vmatpush2.msra.mxu0 0.0
    %6735 = vmatprep.subr.mxu0 0.0
    %6736 = vmatpush2.msra.mxu0 0.0
    %6737 = vmatprep.subr.mxu0 0.0
    %6738 = vmatpush2.msra.mxu0 0.0
    %6739 = vmatprep.subr.mxu0 0.0
    %6740 = vmatpush2.msra.mxu0 0.0
    %6741 = vmatprep.subr.mxu0 0.0
    %6742 = vmatpush2.msra.mxu0 0.0
    %6743 = vmatprep.subr.mxu0 0.0
    %6744 = vmatpush2.msra.mxu0 0.0
    %6745 = vmatprep.mubr.f32.mxu0 0.0
    %6746 = vmatmul.mubr.f32.gmra.mxu0 %v6679
    %v6747 = vpop.f32.mrf.mxu0
    %v6748 = vadd.f32 0.0, %v6747
    %v6749 = vpop.f32.mrf.mxu0
    %6750 = vdwg.mxu0
    %v6751 = vadd.f32 %v6018, %v6748
    %v6752 = vadd.f32 %v6751, %v6035
    %v6753 = vtanh.pop %v6752
    %v6755 = vsel %vm844, %v6753, 0
    %6757 = vmatprep.subr.mxu0 0.0
    %6758 = vmatpush1.msra.mxu0 0.0
    %6759 = vmatprep.subr.mxu0 0.0
    %6760 = vmatpush1.msra.mxu0 0.0
    %6761 = vmatprep.subr.mxu0 0.0
    %6762 = vmatpush1.msra.mxu0 0.0
    %6763 = vmatprep.subr.mxu0 0.0
    %6764 = vmatpush1.msra.mxu0 0.0
    %6765 = vmatprep.subr.mxu0 0.0
    %6766 = vmatpush1.msra.mxu0 0.0
    %6767 = vmatprep.subr.mxu0 0.0
    %6768 = vmatpush1.msra.mxu0 0.0
    %6769 = vmatprep.subr.mxu0 0.0
    %6770 = vmatpush1.msra.mxu0 0.0
    %6771 = vmatprep.subr.mxu0 0.0
    %6772 = vmatpush1.msra.mxu0 0.0
    %6773 = vmatprep.subr.mxu0 0.0
    %6774 = vmatpush1.msra.mxu0 0.0
    %6775 = vmatprep.subr.mxu0 0.0
    %6776 = vmatpush1.msra.mxu0 0.0
    %6777 = vmatprep.subr.mxu0 0.0
    %6778 = vmatpush1.msra.mxu0 0.0
    %6779 = vmatprep.subr.mxu0 0.0
    %6780 = vmatpush1.msra.mxu0 0.0
    %6781 = vmatprep.subr.mxu0 0.0
    %6782 = vmatpush1.msra.mxu0 %v6034
    %6783 = vmatprep.subr.mxu0 0.0
    %6784 = vmatpush1.msra.mxu0 %v6033
    %6785 = vmatprep.subr.mxu0 0.0
    %6786 = vmatpush1.msra.mxu0 %v6032
    %6787 = vmatprep.subr.mxu0 0.0
    %6788 = vmatpush1.msra.mxu0 %v6031
    %6789 = vmatprep.subr.mxu0 0.0
    %6790 = vmatpush2.msra.mxu0 0.0
    %6791 = vmatprep.subr.mxu0 0.0
    %6792 = vmatpush2.msra.mxu0 0.0
    %6793 = vmatprep.subr.mxu0 0.0
    %6794 = vmatpush2.msra.mxu0 0.0
    %6795 = vmatprep.subr.mxu0 0.0
    %6796 = vmatpush2.msra.mxu0 0.0
    %6797 = vmatprep.subr.mxu0 0.0
    %6798 = vmatpush2.msra.mxu0 0.0
    %6799 = vmatprep.subr.mxu0 0.0
    %6800 = vmatpush2.msra.mxu0 0.0
    %6801 = vmatprep.subr.mxu0 0.0
    %6802 = vmatpush2.msra.mxu0 0.0
    %6803 = vmatprep.subr.mxu0 0.0
    %6804 = vmatpush2.msra.mxu0 0.0
    %6805 = vmatprep.subr.mxu0 0.0
    %6806 = vmatpush2.msra.mxu0 0.0
    %6807 = vmatprep.subr.mxu0 0.0
    %6808 = vmatpush2.msra.mxu0 0.0
    %6809 = vmatprep.subr.mxu0 0.0
    %6810 = vmatpush2.msra.mxu0 0.0
    %6811 = vmatprep.subr.mxu0 0.0
    %6812 = vmatpush2.msra.mxu0 0.0
    %6813 = vmatprep.subr.mxu0 0.0
    %6814 = vmatpush2.msra.mxu0 0.0
    %6815 = vmatprep.subr.mxu0 0.0
    %6816 = vmatpush2.msra.mxu0 0.0
    %6817 = vmatprep.subr.mxu0 0.0
    %6818 = vmatpush2.msra.mxu0 0.0
    %6819 = vmatprep.subr.mxu0 0.0
    %6820 = vmatpush2.msra.mxu0 0.0
    %6821 = vmatprep.mubr.f32.mxu0 0.0
    %6822 = vmatmul.mubr.f32.gmra.mxu0 %v6755
    %v6823 = vpop.f32.mrf.mxu0
    %v6824 = vadd.f32 0.0, %v6823
    %v6825 = vpop.f32.mrf.mxu0
    %6826 = vdwg.mxu0
    %v6828 = vrot.slane %v6824, 7
    %v6830 = vadd.f32 %v6018, %v6828
    %v6831 = vadd.f32 %v6830, %v6193
    %v6832 = vtanh.pop %v6831
    %v6834 = vrot.slane %v6832, 1
    %v6835 = vsel %vm844, %v6834, 0
    %6837 = vmatprep.subr.mxu0 0.0
    %6838 = vmatpush1.msra.mxu0 0.0
    %6839 = vmatprep.subr.mxu0 0.0
    %6840 = vmatpush1.msra.mxu0 0.0
    %6841 = vmatprep.subr.mxu0 0.0
    %6842 = vmatpush1.msra.mxu0 0.0
    %6843 = vmatprep.subr.mxu0 0.0
    %6844 = vmatpush1.msra.mxu0 0.0
    %6845 = vmatprep.subr.mxu0 0.0
    %6846 = vmatpush1.msra.mxu0 0.0
    %6847 = vmatprep.subr.mxu0 0.0
    %6848 = vmatpush1.msra.mxu0 0.0
    %6849 = vmatprep.subr.mxu0 0.0
    %6850 = vmatpush1.msra.mxu0 0.0
    %6851 = vmatprep.subr.mxu0 0.0
    %6852 = vmatpush1.msra.mxu0 0.0
    %6853 = vmatprep.subr.mxu0 0.0
    %6854 = vmatpush1.msra.mxu0 0.0
    %6855 = vmatprep.subr.mxu0 0.0
    %6856 = vmatpush1.msra.mxu0 0.0
    %6857 = vmatprep.subr.mxu0 0.0
    %6858 = vmatpush1.msra.mxu0 0.0
    %6859 = vmatprep.subr.mxu0 0.0
    %6860 = vmatpush1.msra.mxu0 0.0
    %6861 = vmatprep.subr.mxu0 0.0
    %6862 = vmatpush1.msra.mxu0 %v6034
    %6863 = vmatprep.subr.mxu0 0.0
    %6864 = vmatpush1.msra.mxu0 %v6033
    %6865 = vmatprep.subr.mxu0 0.0
    %6866 = vmatpush1.msra.mxu0 %v6032
    %6867 = vmatprep.subr.mxu0 0.0
    %6868 = vmatpush1.msra.mxu0 %v6031
    %6869 = vmatprep.subr.mxu0 0.0
    %6870 = vmatpush2.msra.mxu0 0.0
    %6871 = vmatprep.subr.mxu0 0.0
    %6872 = vmatpush2.msra.mxu0 0.0
    %6873 = vmatprep.subr.mxu0 0.0
    %6874 = vmatpush2.msra.mxu0 0.0
    %6875 = vmatprep.subr.mxu0 0.0
    %6876 = vmatpush2.msra.mxu0 0.0
    %6877 = vmatprep.subr.mxu0 0.0
    %6878 = vmatpush2.msra.mxu0 0.0
    %6879 = vmatprep.subr.mxu0 0.0
    %6880 = vmatpush2.msra.mxu0 0.0
    %6881 = vmatprep.subr.mxu0 0.0
    %6882 = vmatpush2.msra.mxu0 0.0
    %6883 = vmatprep.subr.mxu0 0.0
    %6884 = vmatpush2.msra.mxu0 0.0
    %6885 = vmatprep.subr.mxu0 0.0
    %6886 = vmatpush2.msra.mxu0 0.0
    %6887 = vmatprep.subr.mxu0 0.0
    %6888 = vmatpush2.msra.mxu0 0.0
    %6889 = vmatprep.subr.mxu0 0.0
    %6890 = vmatpush2.msra.mxu0 0.0
    %6891 = vmatprep.subr.mxu0 0.0
    %6892 = vmatpush2.msra.mxu0 0.0
    %6893 = vmatprep.subr.mxu0 0.0
    %6894 = vmatpush2.msra.mxu0 0.0
    %6895 = vmatprep.subr.mxu0 0.0
    %6896 = vmatpush2.msra.mxu0 0.0
    %6897 = vmatprep.subr.mxu0 0.0
    %6898 = vmatpush2.msra.mxu0 0.0
    %6899 = vmatprep.subr.mxu0 0.0
    %6900 = vmatpush2.msra.mxu0 0.0
    %6901 = vmatprep.mubr.f32.mxu0 0.0
    %6902 = vmatmul.mubr.f32.gmra.mxu0 %v6835
    %v6903 = vpop.f32.mrf.mxu0
    %v6904 = vadd.f32 0.0, %v6903
    %v6905 = vpop.f32.mrf.mxu0
    %6906 = vdwg.mxu0
    %v6908 = vrot.slane %v6904, 6
    %v6910 = vadd.f32 %v6018, %v6908
    %v6911 = vadd.f32 %v6910, %v6193
    %v6912 = vtanh.pop %v6911
    %v6914 = vrot.slane %v6912, 2
    %v6915 = vsel %vm844, %v6914, 0
    %6917 = vmatprep.subr.mxu0 0.0
    %6918 = vmatpush1.msra.mxu0 0.0
    %6919 = vmatprep.subr.mxu0 0.0
    %6920 = vmatpush1.msra.mxu0 0.0
    %6921 = vmatprep.subr.mxu0 0.0
    %6922 = vmatpush1.msra.mxu0 0.0
    %6923 = vmatprep.subr.mxu0 0.0
    %6924 = vmatpush1.msra.mxu0 0.0
    %6925 = vmatprep.subr.mxu0 0.0
    %6926 = vmatpush1.msra.mxu0 0.0
    %6927 = vmatprep.subr.mxu0 0.0
    %6928 = vmatpush1.msra.mxu0 0.0
    %6929 = vmatprep.subr.mxu0 0.0
    %6930 = vmatpush1.msra.mxu0 0.0
    %6931 = vmatprep.subr.mxu0 0.0
    %6932 = vmatpush1.msra.mxu0 0.0
    %6933 = vmatprep.subr.mxu0 0.0
    %6934 = vmatpush1.msra.mxu0 0.0
    %6935 = vmatprep.subr.mxu0 0.0
    %6936 = vmatpush1.msra.mxu0 0.0
    %6937 = vmatprep.subr.mxu0 0.0
    %6938 = vmatpush1.msra.mxu0 0.0
    %6939 = vmatprep.subr.mxu0 0.0
    %6940 = vmatpush1.msra.mxu0 0.0
    %6941 = vmatprep.subr.mxu0 0.0
    %6942 = vmatpush1.msra.mxu0 %v6034
    %6943 = vmatprep.subr.mxu0 0.0
    %6944 = vmatpush1.msra.mxu0 %v6033
    %6945 = vmatprep.subr.mxu0 0.0
    %6946 = vmatpush1.msra.mxu0 %v6032
    %6947 = vmatprep.subr.mxu0 0.0
    %6948 = vmatpush1.msra.mxu0 %v6031
    %6949 = vmatprep.subr.mxu0 0.0
    %6950 = vmatpush2.msra.mxu0 0.0
    %6951 = vmatprep.subr.mxu0 0.0
    %6952 = vmatpush2.msra.mxu0 0.0
    %6953 = vmatprep.subr.mxu0 0.0
    %6954 = vmatpush2.msra.mxu0 0.0
    %6955 = vmatprep.subr.mxu0 0.0
    %6956 = vmatpush2.msra.mxu0 0.0
    %6957 = vmatprep.subr.mxu0 0.0
    %6958 = vmatpush2.msra.mxu0 0.0
    %6959 = vmatprep.subr.mxu0 0.0
    %6960 = vmatpush2.msra.mxu0 0.0
    %6961 = vmatprep.subr.mxu0 0.0
    %6962 = vmatpush2.msra.mxu0 0.0
    %6963 = vmatprep.subr.mxu0 0.0
    %6964 = vmatpush2.msra.mxu0 0.0
    %6965 = vmatprep.subr.mxu0 0.0
    %6966 = vmatpush2.msra.mxu0 0.0
    %6967 = vmatprep.subr.mxu0 0.0
    %6968 = vmatpush2.msra.mxu0 0.0
    %6969 = vmatprep.subr.mxu0 0.0
    %6970 = vmatpush2.msra.mxu0 0.0
    %6971 = vmatprep.subr.mxu0 0.0
    %6972 = vmatpush2.msra.mxu0 0.0
    %6973 = vmatprep.subr.mxu0 0.0
    %6974 = vmatpush2.msra.mxu0 0.0
    %6975 = vmatprep.subr.mxu0 0.0
    %6976 = vmatpush2.msra.mxu0 0.0
    %6977 = vmatprep.subr.mxu0 0.0
    %6978 = vmatpush2.msra.mxu0 0.0
    %6979 = vmatprep.subr.mxu0 0.0
    %6980 = vmatpush2.msra.mxu0 0.0
    %6981 = vmatprep.mubr.f32.mxu0 0.0
    %6982 = vmatmul.mubr.f32.gmra.mxu0 %v6915
    %v6983 = vpop.f32.mrf.mxu0
    %v6984 = vadd.f32 0.0, %v6983
    %v6985 = vpop.f32.mrf.mxu0
    %6986 = vdwg.mxu0
    %v6988 = vrot.slane %v6984, 5
    %v6990 = vadd.f32 %v6018, %v6988
    %v6991 = vadd.f32 %v6990, %v6193
    %v6992 = vtanh.pop %v6991
    %v6994 = vrot.slane %v6992, 3
    %v6995 = vsel %vm844, %v6994, 0
    %6997 = vmatprep.subr.mxu0 0.0
    %6998 = vmatpush1.msra.mxu0 0.0
    %6999 = vmatprep.subr.mxu0 0.0
    %7000 = vmatpush1.msra.mxu0 0.0
    %7001 = vmatprep.subr.mxu0 0.0
    %7002 = vmatpush1.msra.mxu0 0.0
    %7003 = vmatprep.subr.mxu0 0.0
    %7004 = vmatpush1.msra.mxu0 0.0
    %7005 = vmatprep.subr.mxu0 0.0
    %7006 = vmatpush1.msra.mxu0 0.0
    %7007 = vmatprep.subr.mxu0 0.0
    %7008 = vmatpush1.msra.mxu0 0.0
    %7009 = vmatprep.subr.mxu0 0.0
    %7010 = vmatpush1.msra.mxu0 0.0
    %7011 = vmatprep.subr.mxu0 0.0
    %7012 = vmatpush1.msra.mxu0 0.0
    %7013 = vmatprep.subr.mxu0 0.0
    %7014 = vmatpush1.msra.mxu0 0.0
    %7015 = vmatprep.subr.mxu0 0.0
    %7016 = vmatpush1.msra.mxu0 0.0
    %7017 = vmatprep.subr.mxu0 0.0
    %7018 = vmatpush1.msra.mxu0 0.0
    %7019 = vmatprep.subr.mxu0 0.0
    %7020 = vmatpush1.msra.mxu0 0.0
    %7021 = vmatprep.subr.mxu0 0.0
    %7022 = vmatpush1.msra.mxu0 %v6034
    %7023 = vmatprep.subr.mxu0 0.0
    %7024 = vmatpush1.msra.mxu0 %v6033
    %7025 = vmatprep.subr.mxu0 0.0
    %7026 = vmatpush1.msra.mxu0 %v6032
    %7027 = vmatprep.subr.mxu0 0.0
    %7028 = vmatpush1.msra.mxu0 %v6031
    %7029 = vmatprep.subr.mxu0 0.0
    %7030 = vmatpush2.msra.mxu0 0.0
    %7031 = vmatprep.subr.mxu0 0.0
    %7032 = vmatpush2.msra.mxu0 0.0
    %7033 = vmatprep.subr.mxu0 0.0
    %7034 = vmatpush2.msra.mxu0 0.0
    %7035 = vmatprep.subr.mxu0 0.0
    %7036 = vmatpush2.msra.mxu0 0.0
    %7037 = vmatprep.subr.mxu0 0.0
    %7038 = vmatpush2.msra.mxu0 0.0
    %7039 = vmatprep.subr.mxu0 0.0
    %7040 = vmatpush2.msra.mxu0 0.0
    %7041 = vmatprep.subr.mxu0 0.0
    %7042 = vmatpush2.msra.mxu0 0.0
    %7043 = vmatprep.subr.mxu0 0.0
    %7044 = vmatpush2.msra.mxu0 0.0
    %7045 = vmatprep.subr.mxu0 0.0
    %7046 = vmatpush2.msra.mxu0 0.0
    %7047 = vmatprep.subr.mxu0 0.0
    %7048 = vmatpush2.msra.mxu0 0.0
    %7049 = vmatprep.subr.mxu0 0.0
    %7050 = vmatpush2.msra.mxu0 0.0
    %7051 = vmatprep.subr.mxu0 0.0
    %7052 = vmatpush2.msra.mxu0 0.0
    %7053 = vmatprep.subr.mxu0 0.0
    %7054 = vmatpush2.msra.mxu0 0.0
    %7055 = vmatprep.subr.mxu0 0.0
    %7056 = vmatpush2.msra.mxu0 0.0
    %7057 = vmatprep.subr.mxu0 0.0
    %7058 = vmatpush2.msra.mxu0 0.0
    %7059 = vmatprep.subr.mxu0 0.0
    %7060 = vmatpush2.msra.mxu0 0.0
    %7061 = vmatprep.mubr.f32.mxu0 0.0
    %7062 = vmatmul.mubr.f32.gmra.mxu0 %v6995
    %v7063 = vpop.f32.mrf.mxu0
    %v7064 = vadd.f32 0.0, %v7063
    %v7065 = vpop.f32.mrf.mxu0
    %7066 = vdwg.mxu0
    %v7068 = vrot.slane %v7064, 4
    %v7070 = vadd.f32 %v6018, %v7068
    %v7071 = vadd.f32 %v7070, %v6193
    %v7072 = vtanh.pop %v7071
    %v7074 = vrot.slane %v7072, 4
    %v7075 = vsel %vm844, %v7074, 0
    %7077 = vmatprep.subr.mxu0 0.0
    %7078 = vmatpush1.msra.mxu0 0.0
    %7079 = vmatprep.subr.mxu0 0.0
    %7080 = vmatpush1.msra.mxu0 0.0
    %7081 = vmatprep.subr.mxu0 0.0
    %7082 = vmatpush1.msra.mxu0 0.0
    %7083 = vmatprep.subr.mxu0 0.0
    %7084 = vmatpush1.msra.mxu0 0.0
    %7085 = vmatprep.subr.mxu0 0.0
    %7086 = vmatpush1.msra.mxu0 0.0
    %7087 = vmatprep.subr.mxu0 0.0
    %7088 = vmatpush1.msra.mxu0 0.0
    %7089 = vmatprep.subr.mxu0 0.0
    %7090 = vmatpush1.msra.mxu0 0.0
    %7091 = vmatprep.subr.mxu0 0.0
    %7092 = vmatpush1.msra.mxu0 0.0
    %7093 = vmatprep.subr.mxu0 0.0
    %7094 = vmatpush1.msra.mxu0 0.0
    %7095 = vmatprep.subr.mxu0 0.0
    %7096 = vmatpush1.msra.mxu0 0.0
    %7097 = vmatprep.subr.mxu0 0.0
    %7098 = vmatpush1.msra.mxu0 0.0
    %7099 = vmatprep.subr.mxu0 0.0
    %7100 = vmatpush1.msra.mxu0 0.0
    %7101 = vmatprep.subr.mxu0 0.0
    %7102 = vmatpush1.msra.mxu0 %v6034
    %7103 = vmatprep.subr.mxu0 0.0
    %7104 = vmatpush1.msra.mxu0 %v6033
    %7105 = vmatprep.subr.mxu0 0.0
    %7106 = vmatpush1.msra.mxu0 %v6032
    %7107 = vmatprep.subr.mxu0 0.0
    %7108 = vmatpush1.msra.mxu0 %v6031
    %7109 = vmatprep.subr.mxu0 0.0
    %7110 = vmatpush2.msra.mxu0 0.0
    %7111 = vmatprep.subr.mxu0 0.0
    %7112 = vmatpush2.msra.mxu0 0.0
    %7113 = vmatprep.subr.mxu0 0.0
    %7114 = vmatpush2.msra.mxu0 0.0
    %7115 = vmatprep.subr.mxu0 0.0
    %7116 = vmatpush2.msra.mxu0 0.0
    %7117 = vmatprep.subr.mxu0 0.0
    %7118 = vmatpush2.msra.mxu0 0.0
    %7119 = vmatprep.subr.mxu0 0.0
    %7120 = vmatpush2.msra.mxu0 0.0
    %7121 = vmatprep.subr.mxu0 0.0
    %7122 = vmatpush2.msra.mxu0 0.0
    %7123 = vmatprep.subr.mxu0 0.0
    %7124 = vmatpush2.msra.mxu0 0.0
    %7125 = vmatprep.subr.mxu0 0.0
    %7126 = vmatpush2.msra.mxu0 0.0
    %7127 = vmatprep.subr.mxu0 0.0
    %7128 = vmatpush2.msra.mxu0 0.0
    %7129 = vmatprep.subr.mxu0 0.0
    %7130 = vmatpush2.msra.mxu0 0.0
    %7131 = vmatprep.subr.mxu0 0.0
    %7132 = vmatpush2.msra.mxu0 0.0
    %7133 = vmatprep.subr.mxu0 0.0
    %7134 = vmatpush2.msra.mxu0 0.0
    %7135 = vmatprep.subr.mxu0 0.0
    %7136 = vmatpush2.msra.mxu0 0.0
    %7137 = vmatprep.subr.mxu0 0.0
    %7138 = vmatpush2.msra.mxu0 0.0
    %7139 = vmatprep.subr.mxu0 0.0
    %7140 = vmatpush2.msra.mxu0 0.0
    %7141 = vmatprep.mubr.f32.mxu0 0.0
    %7142 = vmatmul.mubr.f32.gmra.mxu0 %v7075
    %v7143 = vpop.f32.mrf.mxu0
    %v7144 = vadd.f32 0.0, %v7143
    %v7145 = vpop.f32.mrf.mxu0
    %7146 = vdwg.mxu0
    %v7148 = vrot.slane %v7144, 3
    %v7150 = vadd.f32 %v6018, %v7148
    %v7151 = vadd.f32 %v7150, %v6193
    %v7152 = vtanh.pop %v7151
    %v7154 = vrot.slane %v7152, 5
    %v7155 = vsel %vm844, %v7154, 0
    %7157 = vmatprep.subr.mxu0 0.0
    %7158 = vmatpush1.msra.mxu0 0.0
    %7159 = vmatprep.subr.mxu0 0.0
    %7160 = vmatpush1.msra.mxu0 0.0
    %7161 = vmatprep.subr.mxu0 0.0
    %7162 = vmatpush1.msra.mxu0 0.0
    %7163 = vmatprep.subr.mxu0 0.0
    %7164 = vmatpush1.msra.mxu0 0.0
    %7165 = vmatprep.subr.mxu0 0.0
    %7166 = vmatpush1.msra.mxu0 0.0
    %7167 = vmatprep.subr.mxu0 0.0
    %7168 = vmatpush1.msra.mxu0 0.0
    %7169 = vmatprep.subr.mxu0 0.0
    %7170 = vmatpush1.msra.mxu0 0.0
    %7171 = vmatprep.subr.mxu0 0.0
    %7172 = vmatpush1.msra.mxu0 0.0
    %7173 = vmatprep.subr.mxu0 0.0
    %7174 = vmatpush1.msra.mxu0 0.0
    %7175 = vmatprep.subr.mxu0 0.0
    %7176 = vmatpush1.msra.mxu0 0.0
    %7177 = vmatprep.subr.mxu0 0.0
    %7178 = vmatpush1.msra.mxu0 0.0
    %7179 = vmatprep.subr.mxu0 0.0
    %7180 = vmatpush1.msra.mxu0 0.0
    %7181 = vmatprep.subr.mxu0 0.0
    %7182 = vmatpush1.msra.mxu0 %v6034
    %7183 = vmatprep.subr.mxu0 0.0
    %7184 = vmatpush1.msra.mxu0 %v6033
    %7185 = vmatprep.subr.mxu0 0.0
    %7186 = vmatpush1.msra.mxu0 %v6032
    %7187 = vmatprep.subr.mxu0 0.0
    %7188 = vmatpush1.msra.mxu0 %v6031
    %7189 = vmatprep.subr.mxu0 0.0
    %7190 = vmatpush2.msra.mxu0 0.0
    %7191 = vmatprep.subr.mxu0 0.0
    %7192 = vmatpush2.msra.mxu0 0.0
    %7193 = vmatprep.subr.mxu0 0.0
    %7194 = vmatpush2.msra.mxu0 0.0
    %7195 = vmatprep.subr.mxu0 0.0
    %7196 = vmatpush2.msra.mxu0 0.0
    %7197 = vmatprep.subr.mxu0 0.0
    %7198 = vmatpush2.msra.mxu0 0.0
    %7199 = vmatprep.subr.mxu0 0.0
    %7200 = vmatpush2.msra.mxu0 0.0
    %7201 = vmatprep.subr.mxu0 0.0
    %7202 = vmatpush2.msra.mxu0 0.0
    %7203 = vmatprep.subr.mxu0 0.0
    %7204 = vmatpush2.msra.mxu0 0.0
    %7205 = vmatprep.subr.mxu0 0.0
    %7206 = vmatpush2.msra.mxu0 0.0
    %7207 = vmatprep.subr.mxu0 0.0
    %7208 = vmatpush2.msra.mxu0 0.0
    %7209 = vmatprep.subr.mxu0 0.0
    %7210 = vmatpush2.msra.mxu0 0.0
    %7211 = vmatprep.subr.mxu0 0.0
    %7212 = vmatpush2.msra.mxu0 0.0
    %7213 = vmatprep.subr.mxu0 0.0
    %7214 = vmatpush2.msra.mxu0 0.0
    %7215 = vmatprep.subr.mxu0 0.0
    %7216 = vmatpush2.msra.mxu0 0.0
    %7217 = vmatprep.subr.mxu0 0.0
    %7218 = vmatpush2.msra.mxu0 0.0
    %7219 = vmatprep.subr.mxu0 0.0
    %7220 = vmatpush2.msra.mxu0 0.0
    %7221 = vmatprep.mubr.f32.mxu0 0.0
    %7222 = vmatmul.mubr.f32.gmra.mxu0 %v7155
    %v7223 = vpop.f32.mrf.mxu0
    %v7224 = vadd.f32 0.0, %v7223
    %v7225 = vpop.f32.mrf.mxu0
    %7226 = vdwg.mxu0
    %v7228 = vrot.slane %v7224, 2
    %v7230 = vadd.f32 %v6018, %v7228
    %v7231 = vadd.f32 %v7230, %v6193
    %v7232 = vtanh.pop %v7231
    %v7234 = vrot.slane %v7232, 6
    %v7235 = vsel %vm844, %v7234, 0
    %7237 = vmatprep.subr.mxu0 0.0
    %7238 = vmatpush1.msra.mxu0 0.0
    %7239 = vmatprep.subr.mxu0 0.0
    %7240 = vmatpush1.msra.mxu0 0.0
    %7241 = vmatprep.subr.mxu0 0.0
    %7242 = vmatpush1.msra.mxu0 0.0
    %7243 = vmatprep.subr.mxu0 0.0
    %7244 = vmatpush1.msra.mxu0 0.0
    %7245 = vmatprep.subr.mxu0 0.0
    %7246 = vmatpush1.msra.mxu0 0.0
    %7247 = vmatprep.subr.mxu0 0.0
    %7248 = vmatpush1.msra.mxu0 0.0
    %7249 = vmatprep.subr.mxu0 0.0
    %7250 = vmatpush1.msra.mxu0 0.0
    %7251 = vmatprep.subr.mxu0 0.0
    %7252 = vmatpush1.msra.mxu0 0.0
    %7253 = vmatprep.subr.mxu0 0.0
    %7254 = vmatpush1.msra.mxu0 0.0
    %7255 = vmatprep.subr.mxu0 0.0
    %7256 = vmatpush1.msra.mxu0 0.0
    %7257 = vmatprep.subr.mxu0 0.0
    %7258 = vmatpush1.msra.mxu0 0.0
    %7259 = vmatprep.subr.mxu0 0.0
    %7260 = vmatpush1.msra.mxu0 0.0
    %7261 = vmatprep.subr.mxu0 0.0
    %7262 = vmatpush1.msra.mxu0 %v6034
    %7263 = vmatprep.subr.mxu0 0.0
    %7264 = vmatpush1.msra.mxu0 %v6033
    %7265 = vmatprep.subr.mxu0 0.0
    %7266 = vmatpush1.msra.mxu0 %v6032
    %7267 = vmatprep.subr.mxu0 0.0
    %7268 = vmatpush1.msra.mxu0 %v6031
    %7269 = vmatprep.subr.mxu0 0.0
    %7270 = vmatpush2.msra.mxu0 0.0
    %7271 = vmatprep.subr.mxu0 0.0
    %7272 = vmatpush2.msra.mxu0 0.0
    %7273 = vmatprep.subr.mxu0 0.0
    %7274 = vmatpush2.msra.mxu0 0.0
    %7275 = vmatprep.subr.mxu0 0.0
    %7276 = vmatpush2.msra.mxu0 0.0
    %7277 = vmatprep.subr.mxu0 0.0
    %7278 = vmatpush2.msra.mxu0 0.0
    %7279 = vmatprep.subr.mxu0 0.0
    %7280 = vmatpush2.msra.mxu0 0.0
    %7281 = vmatprep.subr.mxu0 0.0
    %7282 = vmatpush2.msra.mxu0 0.0
    %7283 = vmatprep.subr.mxu0 0.0
    %7284 = vmatpush2.msra.mxu0 0.0
    %7285 = vmatprep.subr.mxu0 0.0
    %7286 = vmatpush2.msra.mxu0 0.0
    %7287 = vmatprep.subr.mxu0 0.0
    %7288 = vmatpush2.msra.mxu0 0.0
    %7289 = vmatprep.subr.mxu0 0.0
    %7290 = vmatpush2.msra.mxu0 0.0
    %7291 = vmatprep.subr.mxu0 0.0
    %7292 = vmatpush2.msra.mxu0 0.0
    %7293 = vmatprep.subr.mxu0 0.0
    %7294 = vmatpush2.msra.mxu0 0.0
    %7295 = vmatprep.subr.mxu0 0.0
    %7296 = vmatpush2.msra.mxu0 0.0
    %7297 = vmatprep.subr.mxu0 0.0
    %7298 = vmatpush2.msra.mxu0 0.0
    %7299 = vmatprep.subr.mxu0 0.0
    %7300 = vmatpush2.msra.mxu0 0.0
    %7301 = vmatprep.mubr.f32.mxu0 0.0
    %7302 = vmatmul.mubr.f32.gmra.mxu0 %v7235
    %v7303 = vpop.f32.mrf.mxu0
    %v7304 = vadd.f32 0.0, %v7303
    %v7305 = vpop.f32.mrf.mxu0
    %7306 = vdwg.mxu0
    %v7308 = vrot.slane %v7304, 1
    %v7310 = vadd.f32 %v6018, %v7308
    %v7311 = vadd.f32 %v7310, %v6193
    %v7312 = vtanh.pop %v7311
    %v7314 = vrot.slane %v7312, 7
    %v7315 = vsel %vm844, %v7314, 0
    %7317 = vmatprep.subr.mxu0 0.0
    %7318 = vmatpush1.msra.mxu0 0.0
    %7319 = vmatprep.subr.mxu0 0.0
    %7320 = vmatpush1.msra.mxu0 0.0
    %7321 = vmatprep.subr.mxu0 0.0
    %7322 = vmatpush1.msra.mxu0 0.0
    %7323 = vmatprep.subr.mxu0 0.0
    %7324 = vmatpush1.msra.mxu0 0.0
    %7325 = vmatprep.subr.mxu0 0.0
    %7326 = vmatpush1.msra.mxu0 0.0
    %7327 = vmatprep.subr.mxu0 0.0
    %7328 = vmatpush1.msra.mxu0 0.0
    %7329 = vmatprep.subr.mxu0 0.0
    %7330 = vmatpush1.msra.mxu0 0.0
    %7331 = vmatprep.subr.mxu0 0.0
    %7332 = vmatpush1.msra.mxu0 0.0
    %7333 = vmatprep.subr.mxu0 0.0
    %7334 = vmatpush1.msra.mxu0 0.0
    %7335 = vmatprep.subr.mxu0 0.0
    %7336 = vmatpush1.msra.mxu0 0.0
    %7337 = vmatprep.subr.mxu0 0.0
    %7338 = vmatpush1.msra.mxu0 0.0
    %7339 = vmatprep.subr.mxu0 0.0
    %7340 = vmatpush1.msra.mxu0 0.0
    %7341 = vmatprep.subr.mxu0 0.0
    %7342 = vmatpush1.msra.mxu0 %v6034
    %7343 = vmatprep.subr.mxu0 0.0
    %7344 = vmatpush1.msra.mxu0 %v6033
    %7345 = vmatprep.subr.mxu0 0.0
    %7346 = vmatpush1.msra.mxu0 %v6032
    %7347 = vmatprep.subr.mxu0 0.0
    %7348 = vmatpush1.msra.mxu0 %v6031
    %7349 = vmatprep.subr.mxu0 0.0
    %7350 = vmatpush2.msra.mxu0 0.0
    %7351 = vmatprep.subr.mxu0 0.0
    %7352 = vmatpush2.msra.mxu0 0.0
    %7353 = vmatprep.subr.mxu0 0.0
    %7354 = vmatpush2.msra.mxu0 0.0
    %7355 = vmatprep.subr.mxu0 0.0
    %7356 = vmatpush2.msra.mxu0 0.0
    %7357 = vmatprep.subr.mxu0 0.0
    %7358 = vmatpush2.msra.mxu0 0.0
    %7359 = vmatprep.subr.mxu0 0.0
    %7360 = vmatpush2.msra.mxu0 0.0
    %7361 = vmatprep.subr.mxu0 0.0
    %7362 = vmatpush2.msra.mxu0 0.0
    %7363 = vmatprep.subr.mxu0 0.0
    %7364 = vmatpush2.msra.mxu0 0.0
    %7365 = vmatprep.subr.mxu0 0.0
    %7366 = vmatpush2.msra.mxu0 0.0
    %7367 = vmatprep.subr.mxu0 0.0
    %7368 = vmatpush2.msra.mxu0 0.0
    %7369 = vmatprep.subr.mxu0 0.0
    %7370 = vmatpush2.msra.mxu0 0.0
    %7371 = vmatprep.subr.mxu0 0.0
    %7372 = vmatpush2.msra.mxu0 0.0
    %7373 = vmatprep.subr.mxu0 0.0
    %7374 = vmatpush2.msra.mxu0 0.0
    %7375 = vmatprep.subr.mxu0 0.0
    %7376 = vmatpush2.msra.mxu0 0.0
    %7377 = vmatprep.subr.mxu0 0.0
    %7378 = vmatpush2.msra.mxu0 0.0
    %7379 = vmatprep.subr.mxu0 0.0
    %7380 = vmatpush2.msra.mxu0 0.0
    %7381 = vmatprep.mubr.f32.mxu0 0.0
    %7382 = vmatmul.mubr.f32.gmra.mxu0 %v7315
    %v7383 = vpop.f32.mrf.mxu0
    %v7384 = vadd.f32 0.0, %v7383
    %v7385 = vpop.f32.mrf.mxu0
    %7386 = vdwg.mxu0
    %v7387 = vadd.f32 %v6023, %v7384
    %v7388 = vadd.f32 %v7387, %v6035
    %v7389 = vtanh.pop %v7388
    %v7391 = vsel %vm844, %v7389, 0
    %7393 = vmatprep.subr.mxu0 0.0
    %7394 = vmatpush1.msra.mxu0 0.0
    %7395 = vmatprep.subr.mxu0 0.0
    %7396 = vmatpush1.msra.mxu0 0.0
    %7397 = vmatprep.subr.mxu0 0.0
    %7398 = vmatpush1.msra.mxu0 0.0
    %7399 = vmatprep.subr.mxu0 0.0
    %7400 = vmatpush1.msra.mxu0 0.0
    %7401 = vmatprep.subr.mxu0 0.0
    %7402 = vmatpush1.msra.mxu0 0.0
    %7403 = vmatprep.subr.mxu0 0.0
    %7404 = vmatpush1.msra.mxu0 0.0
    %7405 = vmatprep.subr.mxu0 0.0
    %7406 = vmatpush1.msra.mxu0 0.0
    %7407 = vmatprep.subr.mxu0 0.0
    %7408 = vmatpush1.msra.mxu0 0.0
    %7409 = vmatprep.subr.mxu0 0.0
    %7410 = vmatpush1.msra.mxu0 0.0
    %7411 = vmatprep.subr.mxu0 0.0
    %7412 = vmatpush1.msra.mxu0 0.0
    %7413 = vmatprep.subr.mxu0 0.0
    %7414 = vmatpush1.msra.mxu0 0.0
    %7415 = vmatprep.subr.mxu0 0.0
    %7416 = vmatpush1.msra.mxu0 0.0
    %7417 = vmatprep.subr.mxu0 0.0
    %7418 = vmatpush1.msra.mxu0 %v6034
    %7419 = vmatprep.subr.mxu0 0.0
    %7420 = vmatpush1.msra.mxu0 %v6033
    %7421 = vmatprep.subr.mxu0 0.0
    %7422 = vmatpush1.msra.mxu0 %v6032
    %7423 = vmatprep.subr.mxu0 0.0
    %7424 = vmatpush1.msra.mxu0 %v6031
    %7425 = vmatprep.subr.mxu0 0.0
    %7426 = vmatpush2.msra.mxu0 0.0
    %7427 = vmatprep.subr.mxu0 0.0
    %7428 = vmatpush2.msra.mxu0 0.0
    %7429 = vmatprep.subr.mxu0 0.0
    %7430 = vmatpush2.msra.mxu0 0.0
    %7431 = vmatprep.subr.mxu0 0.0
    %7432 = vmatpush2.msra.mxu0 0.0
    %7433 = vmatprep.subr.mxu0 0.0
    %7434 = vmatpush2.msra.mxu0 0.0
    %7435 = vmatprep.subr.mxu0 0.0
    %7436 = vmatpush2.msra.mxu0 0.0
    %7437 = vmatprep.subr.mxu0 0.0
    %7438 = vmatpush2.msra.mxu0 0.0
    %7439 = vmatprep.subr.mxu0 0.0
    %7440 = vmatpush2.msra.mxu0 0.0
    %7441 = vmatprep.subr.mxu0 0.0
    %7442 = vmatpush2.msra.mxu0 0.0
    %7443 = vmatprep.subr.mxu0 0.0
    %7444 = vmatpush2.msra.mxu0 0.0
    %7445 = vmatprep.subr.mxu0 0.0
    %7446 = vmatpush2.msra.mxu0 0.0
    %7447 = vmatprep.subr.mxu0 0.0
    %7448 = vmatpush2.msra.mxu0 0.0
    %7449 = vmatprep.subr.mxu0 0.0
    %7450 = vmatpush2.msra.mxu0 0.0
    %7451 = vmatprep.subr.mxu0 0.0
    %7452 = vmatpush2.msra.mxu0 0.0
    %7453 = vmatprep.subr.mxu0 0.0
    %7454 = vmatpush2.msra.mxu0 0.0
    %7455 = vmatprep.subr.mxu0 0.0
    %7456 = vmatpush2.msra.mxu0 0.0
    %7457 = vmatprep.mubr.f32.mxu0 0.0
    %7458 = vmatmul.mubr.f32.gmra.mxu0 %v7391
    %v7459 = vpop.f32.mrf.mxu0
    %v7460 = vadd.f32 0.0, %v7459
    %v7461 = vpop.f32.mrf.mxu0
    %7462 = vdwg.mxu0
    %v7464 = vrot.slane %v7460, 7
    %v7466 = vadd.f32 %v6023, %v7464
    %v7467 = vadd.f32 %v7466, %v6193
    %v7468 = vtanh.pop %v7467
    %v7470 = vrot.slane %v7468, 1
    %v7471 = vsel %vm844, %v7470, 0
    %7473 = vmatprep.subr.mxu0 0.0
    %7474 = vmatpush1.msra.mxu0 0.0
    %7475 = vmatprep.subr.mxu0 0.0
    %7476 = vmatpush1.msra.mxu0 0.0
    %7477 = vmatprep.subr.mxu0 0.0
    %7478 = vmatpush1.msra.mxu0 0.0
    %7479 = vmatprep.subr.mxu0 0.0
    %7480 = vmatpush1.msra.mxu0 0.0
    %7481 = vmatprep.subr.mxu0 0.0
    %7482 = vmatpush1.msra.mxu0 0.0
    %7483 = vmatprep.subr.mxu0 0.0
    %7484 = vmatpush1.msra.mxu0 0.0
    %7485 = vmatprep.subr.mxu0 0.0
    %7486 = vmatpush1.msra.mxu0 0.0
    %7487 = vmatprep.subr.mxu0 0.0
    %7488 = vmatpush1.msra.mxu0 0.0
    %7489 = vmatprep.subr.mxu0 0.0
    %7490 = vmatpush1.msra.mxu0 0.0
    %7491 = vmatprep.subr.mxu0 0.0
    %7492 = vmatpush1.msra.mxu0 0.0
    %7493 = vmatprep.subr.mxu0 0.0
    %7494 = vmatpush1.msra.mxu0 0.0
    %7495 = vmatprep.subr.mxu0 0.0
    %7496 = vmatpush1.msra.mxu0 0.0
    %7497 = vmatprep.subr.mxu0 0.0
    %7498 = vmatpush1.msra.mxu0 %v6034
    %7499 = vmatprep.subr.mxu0 0.0
    %7500 = vmatpush1.msra.mxu0 %v6033
    %7501 = vmatprep.subr.mxu0 0.0
    %7502 = vmatpush1.msra.mxu0 %v6032
    %7503 = vmatprep.subr.mxu0 0.0
    %7504 = vmatpush1.msra.mxu0 %v6031
    %7505 = vmatprep.subr.mxu0 0.0
    %7506 = vmatpush2.msra.mxu0 0.0
    %7507 = vmatprep.subr.mxu0 0.0
    %7508 = vmatpush2.msra.mxu0 0.0
    %7509 = vmatprep.subr.mxu0 0.0
    %7510 = vmatpush2.msra.mxu0 0.0
    %7511 = vmatprep.subr.mxu0 0.0
    %7512 = vmatpush2.msra.mxu0 0.0
    %7513 = vmatprep.subr.mxu0 0.0
    %7514 = vmatpush2.msra.mxu0 0.0
    %7515 = vmatprep.subr.mxu0 0.0
    %7516 = vmatpush2.msra.mxu0 0.0
    %7517 = vmatprep.subr.mxu0 0.0
    %7518 = vmatpush2.msra.mxu0 0.0
    %7519 = vmatprep.subr.mxu0 0.0
    %7520 = vmatpush2.msra.mxu0 0.0
    %7521 = vmatprep.subr.mxu0 0.0
    %7522 = vmatpush2.msra.mxu0 0.0
    %7523 = vmatprep.subr.mxu0 0.0
    %7524 = vmatpush2.msra.mxu0 0.0
    %7525 = vmatprep.subr.mxu0 0.0
    %7526 = vmatpush2.msra.mxu0 0.0
    %7527 = vmatprep.subr.mxu0 0.0
    %7528 = vmatpush2.msra.mxu0 0.0
    %7529 = vmatprep.subr.mxu0 0.0
    %7530 = vmatpush2.msra.mxu0 0.0
    %7531 = vmatprep.subr.mxu0 0.0
    %7532 = vmatpush2.msra.mxu0 0.0
    %7533 = vmatprep.subr.mxu0 0.0
    %7534 = vmatpush2.msra.mxu0 0.0
    %7535 = vmatprep.subr.mxu0 0.0
    %7536 = vmatpush2.msra.mxu0 0.0
    %7537 = vmatprep.mubr.f32.mxu0 0.0
    %7538 = vmatmul.mubr.f32.gmra.mxu0 %v7471
    %v7539 = vpop.f32.mrf.mxu0
    %v7540 = vadd.f32 0.0, %v7539
    %v7541 = vpop.f32.mrf.mxu0
    %7542 = vdwg.mxu0
    %v7544 = vrot.slane %v7540, 6
    %v7546 = vadd.f32 %v6023, %v7544
    %v7547 = vadd.f32 %v7546, %v6193
    %v7548 = vtanh.pop %v7547
    %v7550 = vrot.slane %v7548, 2
    %v7551 = vsel %vm844, %v7550, 0
    %7553 = vmatprep.subr.mxu0 0.0
    %7554 = vmatpush1.msra.mxu0 0.0
    %7555 = vmatprep.subr.mxu0 0.0
    %7556 = vmatpush1.msra.mxu0 0.0
    %7557 = vmatprep.subr.mxu0 0.0
    %7558 = vmatpush1.msra.mxu0 0.0
    %7559 = vmatprep.subr.mxu0 0.0
    %7560 = vmatpush1.msra.mxu0 0.0
    %7561 = vmatprep.subr.mxu0 0.0
    %7562 = vmatpush1.msra.mxu0 0.0
    %7563 = vmatprep.subr.mxu0 0.0
    %7564 = vmatpush1.msra.mxu0 0.0
    %7565 = vmatprep.subr.mxu0 0.0
    %7566 = vmatpush1.msra.mxu0 0.0
    %7567 = vmatprep.subr.mxu0 0.0
    %7568 = vmatpush1.msra.mxu0 0.0
    %7569 = vmatprep.subr.mxu0 0.0
    %7570 = vmatpush1.msra.mxu0 0.0
    %7571 = vmatprep.subr.mxu0 0.0
    %7572 = vmatpush1.msra.mxu0 0.0
    %7573 = vmatprep.subr.mxu0 0.0
    %7574 = vmatpush1.msra.mxu0 0.0
    %7575 = vmatprep.subr.mxu0 0.0
    %7576 = vmatpush1.msra.mxu0 0.0
    %7577 = vmatprep.subr.mxu0 0.0
    %7578 = vmatpush1.msra.mxu0 %v6034
    %7579 = vmatprep.subr.mxu0 0.0
    %7580 = vmatpush1.msra.mxu0 %v6033
    %7581 = vmatprep.subr.mxu0 0.0
    %7582 = vmatpush1.msra.mxu0 %v6032
    %7583 = vmatprep.subr.mxu0 0.0
    %7584 = vmatpush1.msra.mxu0 %v6031
    %7585 = vmatprep.subr.mxu0 0.0
    %7586 = vmatpush2.msra.mxu0 0.0
    %7587 = vmatprep.subr.mxu0 0.0
    %7588 = vmatpush2.msra.mxu0 0.0
    %7589 = vmatprep.subr.mxu0 0.0
    %7590 = vmatpush2.msra.mxu0 0.0
    %7591 = vmatprep.subr.mxu0 0.0
    %7592 = vmatpush2.msra.mxu0 0.0
    %7593 = vmatprep.subr.mxu0 0.0
    %7594 = vmatpush2.msra.mxu0 0.0
    %7595 = vmatprep.subr.mxu0 0.0
    %7596 = vmatpush2.msra.mxu0 0.0
    %7597 = vmatprep.subr.mxu0 0.0
    %7598 = vmatpush2.msra.mxu0 0.0
    %7599 = vmatprep.subr.mxu0 0.0
    %7600 = vmatpush2.msra.mxu0 0.0
    %7601 = vmatprep.subr.mxu0 0.0
    %7602 = vmatpush2.msra.mxu0 0.0
    %7603 = vmatprep.subr.mxu0 0.0
    %7604 = vmatpush2.msra.mxu0 0.0
    %7605 = vmatprep.subr.mxu0 0.0
    %7606 = vmatpush2.msra.mxu0 0.0
    %7607 = vmatprep.subr.mxu0 0.0
    %7608 = vmatpush2.msra.mxu0 0.0
    %7609 = vmatprep.subr.mxu0 0.0
    %7610 = vmatpush2.msra.mxu0 0.0
    %7611 = vmatprep.subr.mxu0 0.0
    %7612 = vmatpush2.msra.mxu0 0.0
    %7613 = vmatprep.subr.mxu0 0.0
    %7614 = vmatpush2.msra.mxu0 0.0
    %7615 = vmatprep.subr.mxu0 0.0
    %7616 = vmatpush2.msra.mxu0 0.0
    %7617 = vmatprep.mubr.f32.mxu0 0.0
    %7618 = vmatmul.mubr.f32.gmra.mxu0 %v7551
    %v7619 = vpop.f32.mrf.mxu0
    %v7620 = vadd.f32 0.0, %v7619
    %v7621 = vpop.f32.mrf.mxu0
    %7622 = vdwg.mxu0
    %v7624 = vrot.slane %v7620, 5
    %v7626 = vadd.f32 %v6023, %v7624
    %v7627 = vadd.f32 %v7626, %v6193
    %v7628 = vtanh.pop %v7627
    %v7630 = vrot.slane %v7628, 3
    %v7631 = vsel %vm844, %v7630, 0
    %7633 = vmatprep.subr.mxu0 0.0
    %7634 = vmatpush1.msra.mxu0 0.0
    %7635 = vmatprep.subr.mxu0 0.0
    %7636 = vmatpush1.msra.mxu0 0.0
    %7637 = vmatprep.subr.mxu0 0.0
    %7638 = vmatpush1.msra.mxu0 0.0
    %7639 = vmatprep.subr.mxu0 0.0
    %7640 = vmatpush1.msra.mxu0 0.0
    %7641 = vmatprep.subr.mxu0 0.0
    %7642 = vmatpush1.msra.mxu0 0.0
    %7643 = vmatprep.subr.mxu0 0.0
    %7644 = vmatpush1.msra.mxu0 0.0
    %7645 = vmatprep.subr.mxu0 0.0
    %7646 = vmatpush1.msra.mxu0 0.0
    %7647 = vmatprep.subr.mxu0 0.0
    %7648 = vmatpush1.msra.mxu0 0.0
    %7649 = vmatprep.subr.mxu0 0.0
    %7650 = vmatpush1.msra.mxu0 0.0
    %7651 = vmatprep.subr.mxu0 0.0
    %7652 = vmatpush1.msra.mxu0 0.0
    %7653 = vmatprep.subr.mxu0 0.0
    %7654 = vmatpush1.msra.mxu0 0.0
    %7655 = vmatprep.subr.mxu0 0.0
    %7656 = vmatpush1.msra.mxu0 0.0
    %7657 = vmatprep.subr.mxu0 0.0
    %7658 = vmatpush1.msra.mxu0 %v6034
    %7659 = vmatprep.subr.mxu0 0.0
    %7660 = vmatpush1.msra.mxu0 %v6033
    %7661 = vmatprep.subr.mxu0 0.0
    %7662 = vmatpush1.msra.mxu0 %v6032
    %7663 = vmatprep.subr.mxu0 0.0
    %7664 = vmatpush1.msra.mxu0 %v6031
    %7665 = vmatprep.subr.mxu0 0.0
    %7666 = vmatpush2.msra.mxu0 0.0
    %7667 = vmatprep.subr.mxu0 0.0
    %7668 = vmatpush2.msra.mxu0 0.0
    %7669 = vmatprep.subr.mxu0 0.0
    %7670 = vmatpush2.msra.mxu0 0.0
    %7671 = vmatprep.subr.mxu0 0.0
    %7672 = vmatpush2.msra.mxu0 0.0
    %7673 = vmatprep.subr.mxu0 0.0
    %7674 = vmatpush2.msra.mxu0 0.0
    %7675 = vmatprep.subr.mxu0 0.0
    %7676 = vmatpush2.msra.mxu0 0.0
    %7677 = vmatprep.subr.mxu0 0.0
    %7678 = vmatpush2.msra.mxu0 0.0
    %7679 = vmatprep.subr.mxu0 0.0
    %7680 = vmatpush2.msra.mxu0 0.0
    %7681 = vmatprep.subr.mxu0 0.0
    %7682 = vmatpush2.msra.mxu0 0.0
    %7683 = vmatprep.subr.mxu0 0.0
    %7684 = vmatpush2.msra.mxu0 0.0
    %7685 = vmatprep.subr.mxu0 0.0
    %7686 = vmatpush2.msra.mxu0 0.0
    %7687 = vmatprep.subr.mxu0 0.0
    %7688 = vmatpush2.msra.mxu0 0.0
    %7689 = vmatprep.subr.mxu0 0.0
    %7690 = vmatpush2.msra.mxu0 0.0
    %7691 = vmatprep.subr.mxu0 0.0
    %7692 = vmatpush2.msra.mxu0 0.0
    %7693 = vmatprep.subr.mxu0 0.0
    %7694 = vmatpush2.msra.mxu0 0.0
    %7695 = vmatprep.subr.mxu0 0.0
    %7696 = vmatpush2.msra.mxu0 0.0
    %7697 = vmatprep.mubr.f32.mxu0 0.0
    %7698 = vmatmul.mubr.f32.gmra.mxu0 %v7631
    %v7699 = vpop.f32.mrf.mxu0
    %v7700 = vadd.f32 0.0, %v7699
    %v7701 = vpop.f32.mrf.mxu0
    %7702 = vdwg.mxu0
    %v7704 = vrot.slane %v7700, 4
    %v7706 = vadd.f32 %v6023, %v7704
    %v7707 = vadd.f32 %v7706, %v6193
    %v7708 = vtanh.pop %v7707
    %v7710 = vrot.slane %v7708, 4
    %v7711 = vsel %vm844, %v7710, 0
    %7713 = vmatprep.subr.mxu0 0.0
    %7714 = vmatpush1.msra.mxu0 0.0
    %7715 = vmatprep.subr.mxu0 0.0
    %7716 = vmatpush1.msra.mxu0 0.0
    %7717 = vmatprep.subr.mxu0 0.0
    %7718 = vmatpush1.msra.mxu0 0.0
    %7719 = vmatprep.subr.mxu0 0.0
    %7720 = vmatpush1.msra.mxu0 0.0
    %7721 = vmatprep.subr.mxu0 0.0
    %7722 = vmatpush1.msra.mxu0 0.0
    %7723 = vmatprep.subr.mxu0 0.0
    %7724 = vmatpush1.msra.mxu0 0.0
    %7725 = vmatprep.subr.mxu0 0.0
    %7726 = vmatpush1.msra.mxu0 0.0
    %7727 = vmatprep.subr.mxu0 0.0
    %7728 = vmatpush1.msra.mxu0 0.0
    %7729 = vmatprep.subr.mxu0 0.0
    %7730 = vmatpush1.msra.mxu0 0.0
    %7731 = vmatprep.subr.mxu0 0.0
    %7732 = vmatpush1.msra.mxu0 0.0
    %7733 = vmatprep.subr.mxu0 0.0
    %7734 = vmatpush1.msra.mxu0 0.0
    %7735 = vmatprep.subr.mxu0 0.0
    %7736 = vmatpush1.msra.mxu0 0.0
    %7737 = vmatprep.subr.mxu0 0.0
    %7738 = vmatpush1.msra.mxu0 %v6034
    %7739 = vmatprep.subr.mxu0 0.0
    %7740 = vmatpush1.msra.mxu0 %v6033
    %7741 = vmatprep.subr.mxu0 0.0
    %7742 = vmatpush1.msra.mxu0 %v6032
    %7743 = vmatprep.subr.mxu0 0.0
    %7744 = vmatpush1.msra.mxu0 %v6031
    %7745 = vmatprep.subr.mxu0 0.0
    %7746 = vmatpush2.msra.mxu0 0.0
    %7747 = vmatprep.subr.mxu0 0.0
    %7748 = vmatpush2.msra.mxu0 0.0
    %7749 = vmatprep.subr.mxu0 0.0
    %7750 = vmatpush2.msra.mxu0 0.0
    %7751 = vmatprep.subr.mxu0 0.0
    %7752 = vmatpush2.msra.mxu0 0.0
    %7753 = vmatprep.subr.mxu0 0.0
    %7754 = vmatpush2.msra.mxu0 0.0
    %7755 = vmatprep.subr.mxu0 0.0
    %7756 = vmatpush2.msra.mxu0 0.0
    %7757 = vmatprep.subr.mxu0 0.0
    %7758 = vmatpush2.msra.mxu0 0.0
    %7759 = vmatprep.subr.mxu0 0.0
    %7760 = vmatpush2.msra.mxu0 0.0
    %7761 = vmatprep.subr.mxu0 0.0
    %7762 = vmatpush2.msra.mxu0 0.0
    %7763 = vmatprep.subr.mxu0 0.0
    %7764 = vmatpush2.msra.mxu0 0.0
    %7765 = vmatprep.subr.mxu0 0.0
    %7766 = vmatpush2.msra.mxu0 0.0
    %7767 = vmatprep.subr.mxu0 0.0
    %7768 = vmatpush2.msra.mxu0 0.0
    %7769 = vmatprep.subr.mxu0 0.0
    %7770 = vmatpush2.msra.mxu0 0.0
    %7771 = vmatprep.subr.mxu0 0.0
    %7772 = vmatpush2.msra.mxu0 0.0
    %7773 = vmatprep.subr.mxu0 0.0
    %7774 = vmatpush2.msra.mxu0 0.0
    %7775 = vmatprep.subr.mxu0 0.0
    %7776 = vmatpush2.msra.mxu0 0.0
    %7777 = vmatprep.mubr.f32.mxu0 0.0
    %7778 = vmatmul.mubr.f32.gmra.mxu0 %v7711
    %v7779 = vpop.f32.mrf.mxu0
    %v7780 = vadd.f32 0.0, %v7779
    %v7781 = vpop.f32.mrf.mxu0
    %7782 = vdwg.mxu0
    %v7784 = vrot.slane %v7780, 3
    %v7786 = vadd.f32 %v6023, %v7784
    %v7787 = vadd.f32 %v7786, %v6193
    %v7788 = vtanh.pop %v7787
    %v7790 = vrot.slane %v7788, 5
    %v7791 = vsel %vm844, %v7790, 0
    %7793 = vmatprep.subr.mxu0 0.0
    %7794 = vmatpush1.msra.mxu0 0.0
    %7795 = vmatprep.subr.mxu0 0.0
    %7796 = vmatpush1.msra.mxu0 0.0
    %7797 = vmatprep.subr.mxu0 0.0
    %7798 = vmatpush1.msra.mxu0 0.0
    %7799 = vmatprep.subr.mxu0 0.0
    %7800 = vmatpush1.msra.mxu0 0.0
    %7801 = vmatprep.subr.mxu0 0.0
    %7802 = vmatpush1.msra.mxu0 0.0
    %7803 = vmatprep.subr.mxu0 0.0
    %7804 = vmatpush1.msra.mxu0 0.0
    %7805 = vmatprep.subr.mxu0 0.0
    %7806 = vmatpush1.msra.mxu0 0.0
    %7807 = vmatprep.subr.mxu0 0.0
    %7808 = vmatpush1.msra.mxu0 0.0
    %7809 = vmatprep.subr.mxu0 0.0
    %7810 = vmatpush1.msra.mxu0 0.0
    %7811 = vmatprep.subr.mxu0 0.0
    %7812 = vmatpush1.msra.mxu0 0.0
    %7813 = vmatprep.subr.mxu0 0.0
    %7814 = vmatpush1.msra.mxu0 0.0
    %7815 = vmatprep.subr.mxu0 0.0
    %7816 = vmatpush1.msra.mxu0 0.0
    %7817 = vmatprep.subr.mxu0 0.0
    %7818 = vmatpush1.msra.mxu0 %v6034
    %7819 = vmatprep.subr.mxu0 0.0
    %7820 = vmatpush1.msra.mxu0 %v6033
    %7821 = vmatprep.subr.mxu0 0.0
    %7822 = vmatpush1.msra.mxu0 %v6032
    %7823 = vmatprep.subr.mxu0 0.0
    %7824 = vmatpush1.msra.mxu0 %v6031
    %7825 = vmatprep.subr.mxu0 0.0
    %7826 = vmatpush2.msra.mxu0 0.0
    %7827 = vmatprep.subr.mxu0 0.0
    %7828 = vmatpush2.msra.mxu0 0.0
    %7829 = vmatprep.subr.mxu0 0.0
    %7830 = vmatpush2.msra.mxu0 0.0
    %7831 = vmatprep.subr.mxu0 0.0
    %7832 = vmatpush2.msra.mxu0 0.0
    %7833 = vmatprep.subr.mxu0 0.0
    %7834 = vmatpush2.msra.mxu0 0.0
    %7835 = vmatprep.subr.mxu0 0.0
    %7836 = vmatpush2.msra.mxu0 0.0
    %7837 = vmatprep.subr.mxu0 0.0
    %7838 = vmatpush2.msra.mxu0 0.0
    %7839 = vmatprep.subr.mxu0 0.0
    %7840 = vmatpush2.msra.mxu0 0.0
    %7841 = vmatprep.subr.mxu0 0.0
    %7842 = vmatpush2.msra.mxu0 0.0
    %7843 = vmatprep.subr.mxu0 0.0
    %7844 = vmatpush2.msra.mxu0 0.0
    %7845 = vmatprep.subr.mxu0 0.0
    %7846 = vmatpush2.msra.mxu0 0.0
    %7847 = vmatprep.subr.mxu0 0.0
    %7848 = vmatpush2.msra.mxu0 0.0
    %7849 = vmatprep.subr.mxu0 0.0
    %7850 = vmatpush2.msra.mxu0 0.0
    %7851 = vmatprep.subr.mxu0 0.0
    %7852 = vmatpush2.msra.mxu0 0.0
    %7853 = vmatprep.subr.mxu0 0.0
    %7854 = vmatpush2.msra.mxu0 0.0
    %7855 = vmatprep.subr.mxu0 0.0
    %7856 = vmatpush2.msra.mxu0 0.0
    %7857 = vmatprep.mubr.f32.mxu0 0.0
    %7858 = vmatmul.mubr.f32.gmra.mxu0 %v7791
    %v7859 = vpop.f32.mrf.mxu0
    %v7860 = vadd.f32 0.0, %v7859
    %v7861 = vpop.f32.mrf.mxu0
    %7862 = vdwg.mxu0
    %v7864 = vrot.slane %v7860, 2
    %v7866 = vadd.f32 %v6023, %v7864
    %v7867 = vadd.f32 %v7866, %v6193
    %v7868 = vtanh.pop %v7867
    %v7870 = vrot.slane %v7868, 6
    %v7871 = vsel %vm844, %v7870, 0
    %7873 = vmatprep.subr.mxu0 0.0
    %7874 = vmatpush1.msra.mxu0 0.0
    %7875 = vmatprep.subr.mxu0 0.0
    %7876 = vmatpush1.msra.mxu0 0.0
    %7877 = vmatprep.subr.mxu0 0.0
    %7878 = vmatpush1.msra.mxu0 0.0
    %7879 = vmatprep.subr.mxu0 0.0
    %7880 = vmatpush1.msra.mxu0 0.0
    %7881 = vmatprep.subr.mxu0 0.0
    %7882 = vmatpush1.msra.mxu0 0.0
    %7883 = vmatprep.subr.mxu0 0.0
    %7884 = vmatpush1.msra.mxu0 0.0
    %7885 = vmatprep.subr.mxu0 0.0
    %7886 = vmatpush1.msra.mxu0 0.0
    %7887 = vmatprep.subr.mxu0 0.0
    %7888 = vmatpush1.msra.mxu0 0.0
    %7889 = vmatprep.subr.mxu0 0.0
    %7890 = vmatpush1.msra.mxu0 0.0
    %7891 = vmatprep.subr.mxu0 0.0
    %7892 = vmatpush1.msra.mxu0 0.0
    %7893 = vmatprep.subr.mxu0 0.0
    %7894 = vmatpush1.msra.mxu0 0.0
    %7895 = vmatprep.subr.mxu0 0.0
    %7896 = vmatpush1.msra.mxu0 0.0
    %7897 = vmatprep.subr.mxu0 0.0
    %7898 = vmatpush1.msra.mxu0 %v6034
    %7899 = vmatprep.subr.mxu0 0.0
    %7900 = vmatpush1.msra.mxu0 %v6033
    %7901 = vmatprep.subr.mxu0 0.0
    %7902 = vmatpush1.msra.mxu0 %v6032
    %7903 = vmatprep.subr.mxu0 0.0
    %7904 = vmatpush1.msra.mxu0 %v6031
    %7905 = vmatprep.subr.mxu0 0.0
    %7906 = vmatpush2.msra.mxu0 0.0
    %7907 = vmatprep.subr.mxu0 0.0
    %7908 = vmatpush2.msra.mxu0 0.0
    %7909 = vmatprep.subr.mxu0 0.0
    %7910 = vmatpush2.msra.mxu0 0.0
    %7911 = vmatprep.subr.mxu0 0.0
    %7912 = vmatpush2.msra.mxu0 0.0
    %7913 = vmatprep.subr.mxu0 0.0
    %7914 = vmatpush2.msra.mxu0 0.0
    %7915 = vmatprep.subr.mxu0 0.0
    %7916 = vmatpush2.msra.mxu0 0.0
    %7917 = vmatprep.subr.mxu0 0.0
    %7918 = vmatpush2.msra.mxu0 0.0
    %7919 = vmatprep.subr.mxu0 0.0
    %7920 = vmatpush2.msra.mxu0 0.0
    %7921 = vmatprep.subr.mxu0 0.0
    %7922 = vmatpush2.msra.mxu0 0.0
    %7923 = vmatprep.subr.mxu0 0.0
    %7924 = vmatpush2.msra.mxu0 0.0
    %7925 = vmatprep.subr.mxu0 0.0
    %7926 = vmatpush2.msra.mxu0 0.0
    %7927 = vmatprep.subr.mxu0 0.0
    %7928 = vmatpush2.msra.mxu0 0.0
    %7929 = vmatprep.subr.mxu0 0.0
    %7930 = vmatpush2.msra.mxu0 0.0
    %7931 = vmatprep.subr.mxu0 0.0
    %7932 = vmatpush2.msra.mxu0 0.0
    %7933 = vmatprep.subr.mxu0 0.0
    %7934 = vmatpush2.msra.mxu0 0.0
    %7935 = vmatprep.subr.mxu0 0.0
    %7936 = vmatpush2.msra.mxu0 0.0
    %7937 = vmatprep.mubr.f32.mxu0 0.0
    %7938 = vmatmul.mubr.f32.gmra.mxu0 %v7871
    %v7939 = vpop.f32.mrf.mxu0
    %v7940 = vadd.f32 0.0, %v7939
    %v7941 = vpop.f32.mrf.mxu0
    %7942 = vdwg.mxu0
    %v7944 = vrot.slane %v7940, 1
    %v7946 = vadd.f32 %v6023, %v7944
    %v7947 = vadd.f32 %v7946, %v6193
    %v7948 = vtanh.pop %v7947
    %v7950 = vrot.slane %v7948, 7
    %v7951 = vsel %vm844, %v7950, 0
    %7953 = vmatprep.subr.mxu0 0.0
    %7954 = vmatpush1.msra.mxu0 0.0
    %7955 = vmatprep.subr.mxu0 0.0
    %7956 = vmatpush1.msra.mxu0 0.0
    %7957 = vmatprep.subr.mxu0 0.0
    %7958 = vmatpush1.msra.mxu0 0.0
    %7959 = vmatprep.subr.mxu0 0.0
    %7960 = vmatpush1.msra.mxu0 0.0
    %7961 = vmatprep.subr.mxu0 0.0
    %7962 = vmatpush1.msra.mxu0 0.0
    %7963 = vmatprep.subr.mxu0 0.0
    %7964 = vmatpush1.msra.mxu0 0.0
    %7965 = vmatprep.subr.mxu0 0.0
    %7966 = vmatpush1.msra.mxu0 0.0
    %7967 = vmatprep.subr.mxu0 0.0
    %7968 = vmatpush1.msra.mxu0 0.0
    %7969 = vmatprep.subr.mxu0 0.0
    %7970 = vmatpush1.msra.mxu0 0.0
    %7971 = vmatprep.subr.mxu0 0.0
    %7972 = vmatpush1.msra.mxu0 0.0
    %7973 = vmatprep.subr.mxu0 0.0
    %7974 = vmatpush1.msra.mxu0 0.0
    %7975 = vmatprep.subr.mxu0 0.0
    %7976 = vmatpush1.msra.mxu0 0.0
    %7977 = vmatprep.subr.mxu0 0.0
    %7978 = vmatpush1.msra.mxu0 %v6034
    %7979 = vmatprep.subr.mxu0 0.0
    %7980 = vmatpush1.msra.mxu0 %v6033
    %7981 = vmatprep.subr.mxu0 0.0
    %7982 = vmatpush1.msra.mxu0 %v6032
    %7983 = vmatprep.subr.mxu0 0.0
    %7984 = vmatpush1.msra.mxu0 %v6031
    %7985 = vmatprep.subr.mxu0 0.0
    %7986 = vmatpush2.msra.mxu0 0.0
    %7987 = vmatprep.subr.mxu0 0.0
    %7988 = vmatpush2.msra.mxu0 0.0
    %7989 = vmatprep.subr.mxu0 0.0
    %7990 = vmatpush2.msra.mxu0 0.0
    %7991 = vmatprep.subr.mxu0 0.0
    %7992 = vmatpush2.msra.mxu0 0.0
    %7993 = vmatprep.subr.mxu0 0.0
    %7994 = vmatpush2.msra.mxu0 0.0
    %7995 = vmatprep.subr.mxu0 0.0
    %7996 = vmatpush2.msra.mxu0 0.0
    %7997 = vmatprep.subr.mxu0 0.0
    %7998 = vmatpush2.msra.mxu0 0.0
    %7999 = vmatprep.subr.mxu0 0.0
    %8000 = vmatpush2.msra.mxu0 0.0
    %8001 = vmatprep.subr.mxu0 0.0
    %8002 = vmatpush2.msra.mxu0 0.0
    %8003 = vmatprep.subr.mxu0 0.0
    %8004 = vmatpush2.msra.mxu0 0.0
    %8005 = vmatprep.subr.mxu0 0.0
    %8006 = vmatpush2.msra.mxu0 0.0
    %8007 = vmatprep.subr.mxu0 0.0
    %8008 = vmatpush2.msra.mxu0 0.0
    %8009 = vmatprep.subr.mxu0 0.0
    %8010 = vmatpush2.msra.mxu0 0.0
    %8011 = vmatprep.subr.mxu0 0.0
    %8012 = vmatpush2.msra.mxu0 0.0
    %8013 = vmatprep.subr.mxu0 0.0
    %8014 = vmatpush2.msra.mxu0 0.0
    %8015 = vmatprep.subr.mxu0 0.0
    %8016 = vmatpush2.msra.mxu0 0.0
    %8017 = vmatprep.mubr.f32.mxu0 0.0
    %8018 = vmatmul.mubr.f32.gmra.mxu0 %v7951
    %v8019 = vpop.f32.mrf.mxu0
    %v8020 = vadd.f32 0.0, %v8019
    %v8021 = vpop.f32.mrf.mxu0
    %8022 = vdwg.mxu0
    %v8023 = vadd.f32 %v6028, %v8020
    %v8024 = vadd.f32 %v8023, %v6035
    %v8025 = vtanh.pop %v8024
    %v8027 = vsel %vm844, %v8025, 0
    %8029 = vmatprep.subr.mxu0 0.0
    %8030 = vmatpush1.msra.mxu0 0.0
    %8031 = vmatprep.subr.mxu0 0.0
    %8032 = vmatpush1.msra.mxu0 0.0
    %8033 = vmatprep.subr.mxu0 0.0
    %8034 = vmatpush1.msra.mxu0 0.0
    %8035 = vmatprep.subr.mxu0 0.0
    %8036 = vmatpush1.msra.mxu0 0.0
    %8037 = vmatprep.subr.mxu0 0.0
    %8038 = vmatpush1.msra.mxu0 0.0
    %8039 = vmatprep.subr.mxu0 0.0
    %8040 = vmatpush1.msra.mxu0 0.0
    %8041 = vmatprep.subr.mxu0 0.0
    %8042 = vmatpush1.msra.mxu0 0.0
    %8043 = vmatprep.subr.mxu0 0.0
    %8044 = vmatpush1.msra.mxu0 0.0
    %8045 = vmatprep.subr.mxu0 0.0
    %8046 = vmatpush1.msra.mxu0 0.0
    %8047 = vmatprep.subr.mxu0 0.0
    %8048 = vmatpush1.msra.mxu0 0.0
    %8049 = vmatprep.subr.mxu0 0.0
    %8050 = vmatpush1.msra.mxu0 0.0
    %8051 = vmatprep.subr.mxu0 0.0
    %8052 = vmatpush1.msra.mxu0 0.0
    %8053 = vmatprep.subr.mxu0 0.0
    %8054 = vmatpush1.msra.mxu0 %v6034
    %8055 = vmatprep.subr.mxu0 0.0
    %8056 = vmatpush1.msra.mxu0 %v6033
    %8057 = vmatprep.subr.mxu0 0.0
    %8058 = vmatpush1.msra.mxu0 %v6032
    %8059 = vmatprep.subr.mxu0 0.0
    %8060 = vmatpush1.msra.mxu0 %v6031
    %8061 = vmatprep.subr.mxu0 0.0
    %8062 = vmatpush2.msra.mxu0 0.0
    %8063 = vmatprep.subr.mxu0 0.0
    %8064 = vmatpush2.msra.mxu0 0.0
    %8065 = vmatprep.subr.mxu0 0.0
    %8066 = vmatpush2.msra.mxu0 0.0
    %8067 = vmatprep.subr.mxu0 0.0
    %8068 = vmatpush2.msra.mxu0 0.0
    %8069 = vmatprep.subr.mxu0 0.0
    %8070 = vmatpush2.msra.mxu0 0.0
    %8071 = vmatprep.subr.mxu0 0.0
    %8072 = vmatpush2.msra.mxu0 0.0
    %8073 = vmatprep.subr.mxu0 0.0
    %8074 = vmatpush2.msra.mxu0 0.0
    %8075 = vmatprep.subr.mxu0 0.0
    %8076 = vmatpush2.msra.mxu0 0.0
    %8077 = vmatprep.subr.mxu0 0.0
    %8078 = vmatpush2.msra.mxu0 0.0
    %8079 = vmatprep.subr.mxu0 0.0
    %8080 = vmatpush2.msra.mxu0 0.0
    %8081 = vmatprep.subr.mxu0 0.0
    %8082 = vmatpush2.msra.mxu0 0.0
    %8083 = vmatprep.subr.mxu0 0.0
    %8084 = vmatpush2.msra.mxu0 0.0
    %8085 = vmatprep.subr.mxu0 0.0
    %8086 = vmatpush2.msra.mxu0 0.0
    %8087 = vmatprep.subr.mxu0 0.0
    %8088 = vmatpush2.msra.mxu0 0.0
    %8089 = vmatprep.subr.mxu0 0.0
    %8090 = vmatpush2.msra.mxu0 0.0
    %8091 = vmatprep.subr.mxu0 0.0
    %8092 = vmatpush2.msra.mxu0 0.0
    %8093 = vmatprep.mubr.f32.mxu0 0.0
    %8094 = vmatmul.mubr.f32.gmra.mxu0 %v8027
    %v8095 = vpop.f32.mrf.mxu0
    %v8096 = vadd.f32 0.0, %v8095
    %v8097 = vpop.f32.mrf.mxu0
    %8098 = vdwg.mxu0
    %v8100 = vrot.slane %v8096, 7
    %v8102 = vadd.f32 %v6028, %v8100
    %v8103 = vadd.f32 %v8102, %v6193
    %v8104 = vtanh.pop %v8103
    %v8106 = vrot.slane %v8104, 1
    %v8107 = vsel %vm844, %v8106, 0
    %8109 = vmatprep.subr.mxu0 0.0
    %8110 = vmatpush1.msra.mxu0 0.0
    %8111 = vmatprep.subr.mxu0 0.0
    %8112 = vmatpush1.msra.mxu0 0.0
    %8113 = vmatprep.subr.mxu0 0.0
    %8114 = vmatpush1.msra.mxu0 0.0
    %8115 = vmatprep.subr.mxu0 0.0
    %8116 = vmatpush1.msra.mxu0 0.0
    %8117 = vmatprep.subr.mxu0 0.0
    %8118 = vmatpush1.msra.mxu0 0.0
    %8119 = vmatprep.subr.mxu0 0.0
    %8120 = vmatpush1.msra.mxu0 0.0
    %8121 = vmatprep.subr.mxu0 0.0
    %8122 = vmatpush1.msra.mxu0 0.0
    %8123 = vmatprep.subr.mxu0 0.0
    %8124 = vmatpush1.msra.mxu0 0.0
    %8125 = vmatprep.subr.mxu0 0.0
    %8126 = vmatpush1.msra.mxu0 0.0
    %8127 = vmatprep.subr.mxu0 0.0
    %8128 = vmatpush1.msra.mxu0 0.0
    %8129 = vmatprep.subr.mxu0 0.0
    %8130 = vmatpush1.msra.mxu0 0.0
    %8131 = vmatprep.subr.mxu0 0.0
    %8132 = vmatpush1.msra.mxu0 0.0
    %8133 = vmatprep.subr.mxu0 0.0
    %8134 = vmatpush1.msra.mxu0 %v6034
    %8135 = vmatprep.subr.mxu0 0.0
    %8136 = vmatpush1.msra.mxu0 %v6033
    %8137 = vmatprep.subr.mxu0 0.0
    %8138 = vmatpush1.msra.mxu0 %v6032
    %8139 = vmatprep.subr.mxu0 0.0
    %8140 = vmatpush1.msra.mxu0 %v6031
    %8141 = vmatprep.subr.mxu0 0.0
    %8142 = vmatpush2.msra.mxu0 0.0
    %8143 = vmatprep.subr.mxu0 0.0
    %8144 = vmatpush2.msra.mxu0 0.0
    %8145 = vmatprep.subr.mxu0 0.0
    %8146 = vmatpush2.msra.mxu0 0.0
    %8147 = vmatprep.subr.mxu0 0.0
    %8148 = vmatpush2.msra.mxu0 0.0
    %8149 = vmatprep.subr.mxu0 0.0
    %8150 = vmatpush2.msra.mxu0 0.0
    %8151 = vmatprep.subr.mxu0 0.0
    %8152 = vmatpush2.msra.mxu0 0.0
    %8153 = vmatprep.subr.mxu0 0.0
    %8154 = vmatpush2.msra.mxu0 0.0
    %8155 = vmatprep.subr.mxu0 0.0
    %8156 = vmatpush2.msra.mxu0 0.0
    %8157 = vmatprep.subr.mxu0 0.0
    %8158 = vmatpush2.msra.mxu0 0.0
    %8159 = vmatprep.subr.mxu0 0.0
    %8160 = vmatpush2.msra.mxu0 0.0
    %8161 = vmatprep.subr.mxu0 0.0
    %8162 = vmatpush2.msra.mxu0 0.0
    %8163 = vmatprep.subr.mxu0 0.0
    %8164 = vmatpush2.msra.mxu0 0.0
    %8165 = vmatprep.subr.mxu0 0.0
    %8166 = vmatpush2.msra.mxu0 0.0
    %8167 = vmatprep.subr.mxu0 0.0
    %8168 = vmatpush2.msra.mxu0 0.0
    %8169 = vmatprep.subr.mxu0 0.0
    %8170 = vmatpush2.msra.mxu0 0.0
    %8171 = vmatprep.subr.mxu0 0.0
    %8172 = vmatpush2.msra.mxu0 0.0
    %8173 = vmatprep.mubr.f32.mxu0 0.0
    %8174 = vmatmul.mubr.f32.gmra.mxu0 %v8107
    %v8175 = vpop.f32.mrf.mxu0
    %v8176 = vadd.f32 0.0, %v8175
    %v8177 = vpop.f32.mrf.mxu0
    %8178 = vdwg.mxu0
    %v8180 = vrot.slane %v8176, 6
    %v8182 = vadd.f32 %v6028, %v8180
    %v8183 = vadd.f32 %v8182, %v6193
    %v8184 = vtanh.pop %v8183
    %v8186 = vrot.slane %v8184, 2
    %v8187 = vsel %vm844, %v8186, 0
    %8189 = vmatprep.subr.mxu0 0.0
    %8190 = vmatpush1.msra.mxu0 0.0
    %8191 = vmatprep.subr.mxu0 0.0
    %8192 = vmatpush1.msra.mxu0 0.0
    %8193 = vmatprep.subr.mxu0 0.0
    %8194 = vmatpush1.msra.mxu0 0.0
    %8195 = vmatprep.subr.mxu0 0.0
    %8196 = vmatpush1.msra.mxu0 0.0
    %8197 = vmatprep.subr.mxu0 0.0
    %8198 = vmatpush1.msra.mxu0 0.0
    %8199 = vmatprep.subr.mxu0 0.0
    %8200 = vmatpush1.msra.mxu0 0.0
    %8201 = vmatprep.subr.mxu0 0.0
    %8202 = vmatpush1.msra.mxu0 0.0
    %8203 = vmatprep.subr.mxu0 0.0
    %8204 = vmatpush1.msra.mxu0 0.0
    %8205 = vmatprep.subr.mxu0 0.0
    %8206 = vmatpush1.msra.mxu0 0.0
    %8207 = vmatprep.subr.mxu0 0.0
    %8208 = vmatpush1.msra.mxu0 0.0
    %8209 = vmatprep.subr.mxu0 0.0
    %8210 = vmatpush1.msra.mxu0 0.0
    %8211 = vmatprep.subr.mxu0 0.0
    %8212 = vmatpush1.msra.mxu0 0.0
    %8213 = vmatprep.subr.mxu0 0.0
    %8214 = vmatpush1.msra.mxu0 %v6034
    %8215 = vmatprep.subr.mxu0 0.0
    %8216 = vmatpush1.msra.mxu0 %v6033
    %8217 = vmatprep.subr.mxu0 0.0
    %8218 = vmatpush1.msra.mxu0 %v6032
    %8219 = vmatprep.subr.mxu0 0.0
    %8220 = vmatpush1.msra.mxu0 %v6031
    %8221 = vmatprep.subr.mxu0 0.0
    %8222 = vmatpush2.msra.mxu0 0.0
    %8223 = vmatprep.subr.mxu0 0.0
    %8224 = vmatpush2.msra.mxu0 0.0
    %8225 = vmatprep.subr.mxu0 0.0
    %8226 = vmatpush2.msra.mxu0 0.0
    %8227 = vmatprep.subr.mxu0 0.0
    %8228 = vmatpush2.msra.mxu0 0.0
    %8229 = vmatprep.subr.mxu0 0.0
    %8230 = vmatpush2.msra.mxu0 0.0
    %8231 = vmatprep.subr.mxu0 0.0
    %8232 = vmatpush2.msra.mxu0 0.0
    %8233 = vmatprep.subr.mxu0 0.0
    %8234 = vmatpush2.msra.mxu0 0.0
    %8235 = vmatprep.subr.mxu0 0.0
    %8236 = vmatpush2.msra.mxu0 0.0
    %8237 = vmatprep.subr.mxu0 0.0
    %8238 = vmatpush2.msra.mxu0 0.0
    %8239 = vmatprep.subr.mxu0 0.0
    %8240 = vmatpush2.msra.mxu0 0.0
    %8241 = vmatprep.subr.mxu0 0.0
    %8242 = vmatpush2.msra.mxu0 0.0
    %8243 = vmatprep.subr.mxu0 0.0
    %8244 = vmatpush2.msra.mxu0 0.0
    %8245 = vmatprep.subr.mxu0 0.0
    %8246 = vmatpush2.msra.mxu0 0.0
    %8247 = vmatprep.subr.mxu0 0.0
    %8248 = vmatpush2.msra.mxu0 0.0
    %8249 = vmatprep.subr.mxu0 0.0
    %8250 = vmatpush2.msra.mxu0 0.0
    %8251 = vmatprep.subr.mxu0 0.0
    %8252 = vmatpush2.msra.mxu0 0.0
    %8253 = vmatprep.mubr.f32.mxu0 0.0
    %8254 = vmatmul.mubr.f32.gmra.mxu0 %v8187
    %v8255 = vpop.f32.mrf.mxu0
    %v8256 = vadd.f32 0.0, %v8255
    %v8257 = vpop.f32.mrf.mxu0
    %8258 = vdwg.mxu0
    %v8260 = vrot.slane %v8256, 5
    %v8262 = vadd.f32 %v6028, %v8260
    %v8263 = vadd.f32 %v8262, %v6193
    %v8264 = vtanh.pop %v8263
    %v8266 = vrot.slane %v8264, 3
    %v8267 = vsel %vm844, %v8266, 0
    %8269 = vmatprep.subr.mxu0 0.0
    %8270 = vmatpush1.msra.mxu0 0.0
    %8271 = vmatprep.subr.mxu0 0.0
    %8272 = vmatpush1.msra.mxu0 0.0
    %8273 = vmatprep.subr.mxu0 0.0
    %8274 = vmatpush1.msra.mxu0 0.0
    %8275 = vmatprep.subr.mxu0 0.0
    %8276 = vmatpush1.msra.mxu0 0.0
    %8277 = vmatprep.subr.mxu0 0.0
    %8278 = vmatpush1.msra.mxu0 0.0
    %8279 = vmatprep.subr.mxu0 0.0
    %8280 = vmatpush1.msra.mxu0 0.0
    %8281 = vmatprep.subr.mxu0 0.0
    %8282 = vmatpush1.msra.mxu0 0.0
    %8283 = vmatprep.subr.mxu0 0.0
    %8284 = vmatpush1.msra.mxu0 0.0
    %8285 = vmatprep.subr.mxu0 0.0
    %8286 = vmatpush1.msra.mxu0 0.0
    %8287 = vmatprep.subr.mxu0 0.0
    %8288 = vmatpush1.msra.mxu0 0.0
    %8289 = vmatprep.subr.mxu0 0.0
    %8290 = vmatpush1.msra.mxu0 0.0
    %8291 = vmatprep.subr.mxu0 0.0
    %8292 = vmatpush1.msra.mxu0 0.0
    %8293 = vmatprep.subr.mxu0 0.0
    %8294 = vmatpush1.msra.mxu0 %v6034
    %8295 = vmatprep.subr.mxu0 0.0
    %8296 = vmatpush1.msra.mxu0 %v6033
    %8297 = vmatprep.subr.mxu0 0.0
    %8298 = vmatpush1.msra.mxu0 %v6032
    %8299 = vmatprep.subr.mxu0 0.0
    %8300 = vmatpush1.msra.mxu0 %v6031
    %8301 = vmatprep.subr.mxu0 0.0
    %8302 = vmatpush2.msra.mxu0 0.0
    %8303 = vmatprep.subr.mxu0 0.0
    %8304 = vmatpush2.msra.mxu0 0.0
    %8305 = vmatprep.subr.mxu0 0.0
    %8306 = vmatpush2.msra.mxu0 0.0
    %8307 = vmatprep.subr.mxu0 0.0
    %8308 = vmatpush2.msra.mxu0 0.0
    %8309 = vmatprep.subr.mxu0 0.0
    %8310 = vmatpush2.msra.mxu0 0.0
    %8311 = vmatprep.subr.mxu0 0.0
    %8312 = vmatpush2.msra.mxu0 0.0
    %8313 = vmatprep.subr.mxu0 0.0
    %8314 = vmatpush2.msra.mxu0 0.0
    %8315 = vmatprep.subr.mxu0 0.0
    %8316 = vmatpush2.msra.mxu0 0.0
    %8317 = vmatprep.subr.mxu0 0.0
    %8318 = vmatpush2.msra.mxu0 0.0
    %8319 = vmatprep.subr.mxu0 0.0
    %8320 = vmatpush2.msra.mxu0 0.0
    %8321 = vmatprep.subr.mxu0 0.0
    %8322 = vmatpush2.msra.mxu0 0.0
    %8323 = vmatprep.subr.mxu0 0.0
    %8324 = vmatpush2.msra.mxu0 0.0
    %8325 = vmatprep.subr.mxu0 0.0
    %8326 = vmatpush2.msra.mxu0 0.0
    %8327 = vmatprep.subr.mxu0 0.0
    %8328 = vmatpush2.msra.mxu0 0.0
    %8329 = vmatprep.subr.mxu0 0.0
    %8330 = vmatpush2.msra.mxu0 0.0
    %8331 = vmatprep.subr.mxu0 0.0
    %8332 = vmatpush2.msra.mxu0 0.0
    %8333 = vmatprep.mubr.f32.mxu0 0.0
    %8334 = vmatmul.mubr.f32.gmra.mxu0 %v8267
    %v8335 = vpop.f32.mrf.mxu0
    %v8336 = vadd.f32 0.0, %v8335
    %v8337 = vpop.f32.mrf.mxu0
    %8338 = vdwg.mxu0
    %v8340 = vrot.slane %v8336, 4
    %v8342 = vadd.f32 %v6028, %v8340
    %v8343 = vadd.f32 %v8342, %v6193
    %v8344 = vtanh.pop %v8343
    %v8346 = vrot.slane %v8344, 4
    %v8347 = vsel %vm844, %v8346, 0
    %8349 = vmatprep.subr.mxu0 0.0
    %8350 = vmatpush1.msra.mxu0 0.0
    %8351 = vmatprep.subr.mxu0 0.0
    %8352 = vmatpush1.msra.mxu0 0.0
    %8353 = vmatprep.subr.mxu0 0.0
    %8354 = vmatpush1.msra.mxu0 0.0
    %8355 = vmatprep.subr.mxu0 0.0
    %8356 = vmatpush1.msra.mxu0 0.0
    %8357 = vmatprep.subr.mxu0 0.0
    %8358 = vmatpush1.msra.mxu0 0.0
    %8359 = vmatprep.subr.mxu0 0.0
    %8360 = vmatpush1.msra.mxu0 0.0
    %8361 = vmatprep.subr.mxu0 0.0
    %8362 = vmatpush1.msra.mxu0 0.0
    %8363 = vmatprep.subr.mxu0 0.0
    %8364 = vmatpush1.msra.mxu0 0.0
    %8365 = vmatprep.subr.mxu0 0.0
    %8366 = vmatpush1.msra.mxu0 0.0
    %8367 = vmatprep.subr.mxu0 0.0
    %8368 = vmatpush1.msra.mxu0 0.0
    %8369 = vmatprep.subr.mxu0 0.0
    %8370 = vmatpush1.msra.mxu0 0.0
    %8371 = vmatprep.subr.mxu0 0.0
    %8372 = vmatpush1.msra.mxu0 0.0
    %8373 = vmatprep.subr.mxu0 0.0
    %8374 = vmatpush1.msra.mxu0 %v6034
    %8375 = vmatprep.subr.mxu0 0.0
    %8376 = vmatpush1.msra.mxu0 %v6033
    %8377 = vmatprep.subr.mxu0 0.0
    %8378 = vmatpush1.msra.mxu0 %v6032
    %8379 = vmatprep.subr.mxu0 0.0
    %8380 = vmatpush1.msra.mxu0 %v6031
    %8381 = vmatprep.subr.mxu0 0.0
    %8382 = vmatpush2.msra.mxu0 0.0
    %8383 = vmatprep.subr.mxu0 0.0
    %8384 = vmatpush2.msra.mxu0 0.0
    %8385 = vmatprep.subr.mxu0 0.0
    %8386 = vmatpush2.msra.mxu0 0.0
    %8387 = vmatprep.subr.mxu0 0.0
    %8388 = vmatpush2.msra.mxu0 0.0
    %8389 = vmatprep.subr.mxu0 0.0
    %8390 = vmatpush2.msra.mxu0 0.0
    %8391 = vmatprep.subr.mxu0 0.0
    %8392 = vmatpush2.msra.mxu0 0.0
    %8393 = vmatprep.subr.mxu0 0.0
    %8394 = vmatpush2.msra.mxu0 0.0
    %8395 = vmatprep.subr.mxu0 0.0
    %8396 = vmatpush2.msra.mxu0 0.0
    %8397 = vmatprep.subr.mxu0 0.0
    %8398 = vmatpush2.msra.mxu0 0.0
    %8399 = vmatprep.subr.mxu0 0.0
    %8400 = vmatpush2.msra.mxu0 0.0
    %8401 = vmatprep.subr.mxu0 0.0
    %8402 = vmatpush2.msra.mxu0 0.0
    %8403 = vmatprep.subr.mxu0 0.0
    %8404 = vmatpush2.msra.mxu0 0.0
    %8405 = vmatprep.subr.mxu0 0.0
    %8406 = vmatpush2.msra.mxu0 0.0
    %8407 = vmatprep.subr.mxu0 0.0
    %8408 = vmatpush2.msra.mxu0 0.0
    %8409 = vmatprep.subr.mxu0 0.0
    %8410 = vmatpush2.msra.mxu0 0.0
    %8411 = vmatprep.subr.mxu0 0.0
    %8412 = vmatpush2.msra.mxu0 0.0
    %8413 = vmatprep.mubr.f32.mxu0 0.0
    %8414 = vmatmul.mubr.f32.gmra.mxu0 %v8347
    %v8415 = vpop.f32.mrf.mxu0
    %v8416 = vadd.f32 0.0, %v8415
    %v8417 = vpop.f32.mrf.mxu0
    %8418 = vdwg.mxu0
    %v8420 = vrot.slane %v8416, 3
    %v8422 = vadd.f32 %v6028, %v8420
    %v8423 = vadd.f32 %v8422, %v6193
    %v8424 = vtanh.pop %v8423
    %v8426 = vrot.slane %v8424, 5
    %v8427 = vsel %vm844, %v8426, 0
    %8429 = vmatprep.subr.mxu0 0.0
    %8430 = vmatpush1.msra.mxu0 0.0
    %8431 = vmatprep.subr.mxu0 0.0
    %8432 = vmatpush1.msra.mxu0 0.0
    %8433 = vmatprep.subr.mxu0 0.0
    %8434 = vmatpush1.msra.mxu0 0.0
    %8435 = vmatprep.subr.mxu0 0.0
    %8436 = vmatpush1.msra.mxu0 0.0
    %8437 = vmatprep.subr.mxu0 0.0
    %8438 = vmatpush1.msra.mxu0 0.0
    %8439 = vmatprep.subr.mxu0 0.0
    %8440 = vmatpush1.msra.mxu0 0.0
    %8441 = vmatprep.subr.mxu0 0.0
    %8442 = vmatpush1.msra.mxu0 0.0
    %8443 = vmatprep.subr.mxu0 0.0
    %8444 = vmatpush1.msra.mxu0 0.0
    %8445 = vmatprep.subr.mxu0 0.0
    %8446 = vmatpush1.msra.mxu0 0.0
    %8447 = vmatprep.subr.mxu0 0.0
    %8448 = vmatpush1.msra.mxu0 0.0
    %8449 = vmatprep.subr.mxu0 0.0
    %8450 = vmatpush1.msra.mxu0 0.0
    %8451 = vmatprep.subr.mxu0 0.0
    %8452 = vmatpush1.msra.mxu0 0.0
    %8453 = vmatprep.subr.mxu0 0.0
    %8454 = vmatpush1.msra.mxu0 %v6034
    %8455 = vmatprep.subr.mxu0 0.0
    %8456 = vmatpush1.msra.mxu0 %v6033
    %8457 = vmatprep.subr.mxu0 0.0
    %8458 = vmatpush1.msra.mxu0 %v6032
    %8459 = vmatprep.subr.mxu0 0.0
    %8460 = vmatpush1.msra.mxu0 %v6031
    %8461 = vmatprep.subr.mxu0 0.0
    %8462 = vmatpush2.msra.mxu0 0.0
    %8463 = vmatprep.subr.mxu0 0.0
    %8464 = vmatpush2.msra.mxu0 0.0
    %8465 = vmatprep.subr.mxu0 0.0
    %8466 = vmatpush2.msra.mxu0 0.0
    %8467 = vmatprep.subr.mxu0 0.0
    %8468 = vmatpush2.msra.mxu0 0.0
    %8469 = vmatprep.subr.mxu0 0.0
    %8470 = vmatpush2.msra.mxu0 0.0
    %8471 = vmatprep.subr.mxu0 0.0
    %8472 = vmatpush2.msra.mxu0 0.0
    %8473 = vmatprep.subr.mxu0 0.0
    %8474 = vmatpush2.msra.mxu0 0.0
    %8475 = vmatprep.subr.mxu0 0.0
    %8476 = vmatpush2.msra.mxu0 0.0
    %8477 = vmatprep.subr.mxu0 0.0
    %8478 = vmatpush2.msra.mxu0 0.0
    %8479 = vmatprep.subr.mxu0 0.0
    %8480 = vmatpush2.msra.mxu0 0.0
    %8481 = vmatprep.subr.mxu0 0.0
    %8482 = vmatpush2.msra.mxu0 0.0
    %8483 = vmatprep.subr.mxu0 0.0
    %8484 = vmatpush2.msra.mxu0 0.0
    %8485 = vmatprep.subr.mxu0 0.0
    %8486 = vmatpush2.msra.mxu0 0.0
    %8487 = vmatprep.subr.mxu0 0.0
    %8488 = vmatpush2.msra.mxu0 0.0
    %8489 = vmatprep.subr.mxu0 0.0
    %8490 = vmatpush2.msra.mxu0 0.0
    %8491 = vmatprep.subr.mxu0 0.0
    %8492 = vmatpush2.msra.mxu0 0.0
    %8493 = vmatprep.mubr.f32.mxu0 0.0
    %8494 = vmatmul.mubr.f32.gmra.mxu0 %v8427
    %v8495 = vpop.f32.mrf.mxu0
    %v8496 = vadd.f32 0.0, %v8495
    %v8497 = vpop.f32.mrf.mxu0
    %8498 = vdwg.mxu0
    %v8500 = vrot.slane %v8496, 2
    %v8502 = vadd.f32 %v6028, %v8500
    %v8503 = vadd.f32 %v8502, %v6193
    %v8504 = vtanh.pop %v8503
    %v8506 = vrot.slane %v8504, 6
    %v8507 = vsel %vm844, %v8506, 0
    %8509 = vmatprep.subr.mxu0 0.0
    %8510 = vmatpush1.msra.mxu0 0.0
    %8511 = vmatprep.subr.mxu0 0.0
    %8512 = vmatpush1.msra.mxu0 0.0
    %8513 = vmatprep.subr.mxu0 0.0
    %8514 = vmatpush1.msra.mxu0 0.0
    %8515 = vmatprep.subr.mxu0 0.0
    %8516 = vmatpush1.msra.mxu0 0.0
    %8517 = vmatprep.subr.mxu0 0.0
    %8518 = vmatpush1.msra.mxu0 0.0
    %8519 = vmatprep.subr.mxu0 0.0
    %8520 = vmatpush1.msra.mxu0 0.0
    %8521 = vmatprep.subr.mxu0 0.0
    %8522 = vmatpush1.msra.mxu0 0.0
    %8523 = vmatprep.subr.mxu0 0.0
    %8524 = vmatpush1.msra.mxu0 0.0
    %8525 = vmatprep.subr.mxu0 0.0
    %8526 = vmatpush1.msra.mxu0 0.0
    %8527 = vmatprep.subr.mxu0 0.0
    %8528 = vmatpush1.msra.mxu0 0.0
    %8529 = vmatprep.subr.mxu0 0.0
    %8530 = vmatpush1.msra.mxu0 0.0
    %8531 = vmatprep.subr.mxu0 0.0
    %8532 = vmatpush1.msra.mxu0 0.0
    %8533 = vmatprep.subr.mxu0 0.0
    %8534 = vmatpush1.msra.mxu0 %v6034
    %8535 = vmatprep.subr.mxu0 0.0
    %8536 = vmatpush1.msra.mxu0 %v6033
    %8537 = vmatprep.subr.mxu0 0.0
    %8538 = vmatpush1.msra.mxu0 %v6032
    %8539 = vmatprep.subr.mxu0 0.0
    %8540 = vmatpush1.msra.mxu0 %v6031
    %8541 = vmatprep.subr.mxu0 0.0
    %8542 = vmatpush2.msra.mxu0 0.0
    %8543 = vmatprep.subr.mxu0 0.0
    %8544 = vmatpush2.msra.mxu0 0.0
    %8545 = vmatprep.subr.mxu0 0.0
    %8546 = vmatpush2.msra.mxu0 0.0
    %8547 = vmatprep.subr.mxu0 0.0
    %8548 = vmatpush2.msra.mxu0 0.0
    %8549 = vmatprep.subr.mxu0 0.0
    %8550 = vmatpush2.msra.mxu0 0.0
    %8551 = vmatprep.subr.mxu0 0.0
    %8552 = vmatpush2.msra.mxu0 0.0
    %8553 = vmatprep.subr.mxu0 0.0
    %8554 = vmatpush2.msra.mxu0 0.0
    %8555 = vmatprep.subr.mxu0 0.0
    %8556 = vmatpush2.msra.mxu0 0.0
    %8557 = vmatprep.subr.mxu0 0.0
    %8558 = vmatpush2.msra.mxu0 0.0
    %8559 = vmatprep.subr.mxu0 0.0
    %8560 = vmatpush2.msra.mxu0 0.0
    %8561 = vmatprep.subr.mxu0 0.0
    %8562 = vmatpush2.msra.mxu0 0.0
    %8563 = vmatprep.subr.mxu0 0.0
    %8564 = vmatpush2.msra.mxu0 0.0
    %8565 = vmatprep.subr.mxu0 0.0
    %8566 = vmatpush2.msra.mxu0 0.0
    %8567 = vmatprep.subr.mxu0 0.0
    %8568 = vmatpush2.msra.mxu0 0.0
    %8569 = vmatprep.subr.mxu0 0.0
    %8570 = vmatpush2.msra.mxu0 0.0
    %8571 = vmatprep.subr.mxu0 0.0
    %8572 = vmatpush2.msra.mxu0 0.0
    %8573 = vmatprep.mubr.f32.mxu0 0.0
    %8574 = vmatmul.mubr.f32.gmra.mxu0 %v8507
    %v8575 = vpop.f32.mrf.mxu0
    %v8576 = vadd.f32 0.0, %v8575
    %v8577 = vpop.f32.mrf.mxu0
    %8578 = vdwg.mxu0
    %v8580 = vrot.slane %v8576, 1
    %v8582 = vadd.f32 %v6028, %v8580
    %v8583 = vadd.f32 %v8582, %v6193
    %v8584 = vtanh.pop %v8583
    %v8585 = vld [vmem:[%s55] sm:$0xff]
    %v8586 = vld [vmem:[%s55 + $0x8] sm:$0xff]
    %v8587 = vld [vmem:[%s55 + $0x10] sm:$0xff]
    %v8588 = vld [vmem:[%s55 + $0x18] sm:$0xff]
    %v8589 = vld [vmem:[%s51] sm:$0x1]
    %v8591 = vrot.slane %v8584, 7
    %v8592 = vsel %vm844, %v8591, 0
    %8594 = vmatprep.subr.mxu0 0.0
    %8595 = vmatpush1.msra.mxu0 0.0
    %8596 = vmatprep.subr.mxu0 0.0
    %8597 = vmatpush1.msra.mxu0 0.0
    %8598 = vmatprep.subr.mxu0 0.0
    %8599 = vmatpush1.msra.mxu0 0.0
    %8600 = vmatprep.subr.mxu0 0.0
    %8601 = vmatpush1.msra.mxu0 0.0
    %8602 = vmatprep.subr.mxu0 0.0
    %8603 = vmatpush1.msra.mxu0 0.0
    %8604 = vmatprep.subr.mxu0 0.0
    %8605 = vmatpush1.msra.mxu0 0.0
    %8606 = vmatprep.subr.mxu0 0.0
    %8607 = vmatpush1.msra.mxu0 0.0
    %8608 = vmatprep.subr.mxu0 0.0
    %8609 = vmatpush1.msra.mxu0 0.0
    %8610 = vmatprep.subr.mxu0 0.0
    %8611 = vmatpush1.msra.mxu0 0.0
    %8612 = vmatprep.subr.mxu0 0.0
    %8613 = vmatpush1.msra.mxu0 0.0
    %8614 = vmatprep.subr.mxu0 0.0
    %8615 = vmatpush1.msra.mxu0 0.0
    %8616 = vmatprep.subr.mxu0 0.0
    %8617 = vmatpush1.msra.mxu0 0.0
    %8618 = vmatprep.subr.mxu0 0.0
    %8619 = vmatpush1.msra.mxu0 %v8588
    %8620 = vmatprep.subr.mxu0 0.0
    %8621 = vmatpush1.msra.mxu0 %v8587
    %8622 = vmatprep.subr.mxu0 0.0
    %8623 = vmatpush1.msra.mxu0 %v8586
    %8624 = vmatprep.subr.mxu0 0.0
    %8625 = vmatpush1.msra.mxu0 %v8585
    %8626 = vmatprep.subr.mxu0 0.0
    %8627 = vmatpush2.msra.mxu0 0.0
    %8628 = vmatprep.subr.mxu0 0.0
    %8629 = vmatpush2.msra.mxu0 0.0
    %8630 = vmatprep.subr.mxu0 0.0
    %8631 = vmatpush2.msra.mxu0 0.0
    %8632 = vmatprep.subr.mxu0 0.0
    %8633 = vmatpush2.msra.mxu0 0.0
    %8634 = vmatprep.subr.mxu0 0.0
    %8635 = vmatpush2.msra.mxu0 0.0
    %8636 = vmatprep.subr.mxu0 0.0
    %8637 = vmatpush2.msra.mxu0 0.0
    %8638 = vmatprep.subr.mxu0 0.0
    %8639 = vmatpush2.msra.mxu0 0.0
    %8640 = vmatprep.subr.mxu0 0.0
    %8641 = vmatpush2.msra.mxu0 0.0
    %8642 = vmatprep.subr.mxu0 0.0
    %8643 = vmatpush2.msra.mxu0 0.0
    %8644 = vmatprep.subr.mxu0 0.0
    %8645 = vmatpush2.msra.mxu0 0.0
    %8646 = vmatprep.subr.mxu0 0.0
    %8647 = vmatpush2.msra.mxu0 0.0
    %8648 = vmatprep.subr.mxu0 0.0
    %8649 = vmatpush2.msra.mxu0 0.0
    %8650 = vmatprep.subr.mxu0 0.0
    %8651 = vmatpush2.msra.mxu0 0.0
    %8652 = vmatprep.subr.mxu0 0.0
    %8653 = vmatpush2.msra.mxu0 0.0
    %8654 = vmatprep.subr.mxu0 0.0
    %8655 = vmatpush2.msra.mxu0 0.0
    %8656 = vmatprep.subr.mxu0 0.0
    %8657 = vmatpush2.msra.mxu0 0.0
    %8658 = vmatprep.mubr.f32.mxu0 0.0
    %8659 = vmatmul.mubr.f32.gmra.mxu0 %v8592
    %v8660 = vpop.f32.mrf.mxu0
    %v8661 = vadd.f32 %v8589, %v8660
    %v8662 = vpop.f32.mrf.mxu0
    %8663 = vdwg.mxu0
    %v8665 = vrot.slane %v8661, 7
    %8666 = vrot.lane.b32.xlu0 %v8665, 125
    %v8667 = vpop.permute.xlu0 %8666
    %vm8669 = vcmask 1040384
    %v8670 = vsel %vm8669, %v8661, %v8667
    %vm8671 = vcmask 17408
    %8672 = vst.msk [vmem:[#allocation5] sm:$0x3] %vm8671, %v8670
    // Predicated region
    $region146: #{forward.1} parent=1 // pred_check
      _
    $region147: #{forward.1} parent=1 // pred_check_branch
      %8674 = sbr.rel (0) target = $region149
    $region148: #{forward.1} parent=1 // pred_region
      %s8676 = ssub.s32 32, 32
      %8677 = vsyncadd [#allocation4], %s8676
      %s8679 = sshll.u32 [#allocation5], 4
      %s8680 = int_to_ptr.vmem [resolvable:$true] %s8679
      %8682 = dma.vmem_to_hbm [thread:$0]  %s8680, 32, %s71, [#allocation4]
    $region149: #{forward.1} parent=1 // pred_fallthru
      _
    // Predicated region
    $region150: #{forward.1} parent=1 // pred_check
      _
    $region151: #{forward.1} parent=1 // pred_check_branch
      %8684 = sbr.rel (0) target = $region153
    $region152: #{forward.1} parent=1 // pred_region
      %8685 = dma.done [#allocation4], 32
    $region153: #{forward.1} parent=1 // pred_fallthru
      _
    %8686 = vsyncpa [#allocation3], 1
    %8687 = vsyncpa [#allocation4], 1

</llo_original>
